<compile_context>
chip_gen: v5e
topology: v5e:2x2
jax: 0.10.0
libtpu: 0.0.40
codegen_flags: <defaults>
</compile_context>

<pallas_src>
import functools

import jax
import jax.numpy as jnp
from jax.experimental import pallas as pl
from jax.experimental.pallas import tpu as pltpu


_VMEM_SPEC = pl.BlockSpec(memory_space=pltpu.MemorySpace.VMEM)


# ---------------------------------------------------------------------------
# Pallas kernels (one per network block; whole arrays resident in VMEM)
# ---------------------------------------------------------------------------
def _enc_block_kernel(w_ref, p_ref, b_ref, g_ref, bt_ref, o_ref, *, bn_eps):
    """Conv3x3(pad1) + BN(batch stats) + AvgPool(2) + ReLU, fully fused.

    w_ref : (Cout, 9*Cin)    bf16  conv weight, (kh, kw, ci)-major columns
    p_ref : (4, 9*Cin, Mp)   bf16  im2col patches grouped by pooling phase
    b_ref/g_ref/bt_ref : (Cout, 1) f32  conv bias / BN gamma / BN beta
    o_ref : (Cout, Mp)       f32   pooled + BN-affine + ReLU output
    """
    w = w_ref[...]
    bias = b_ref[...]
    cout, mp = o_ref.shape
    pooled = jnp.zeros((cout, mp), jnp.float32)
    s1 = jnp.zeros((cout, 1), jnp.float32)
    s2 = jnp.zeros((cout, 1), jnp.float32)
    for ph in range(4):
        acc = jnp.dot(w, p_ref[ph], preferred_element_type=jnp.float32) + bias
        pooled = pooled + 0.25 * acc
        s1 = s1 + jnp.sum(acc, axis=1, keepdims=True)
        s2 = s2 + jnp.sum(acc * acc, axis=1, keepdims=True)
    n = 4.0 * mp                              # elements per channel (un-pooled)
    mu = s1 / n
    var = s2 / n - mu * mu                    # biased (training-mode) variance
    scale = g_ref[...] / jnp.sqrt(var + bn_eps)
    shift = bt_ref[...] - mu * scale
    # BN affine is per-channel and commutes with AvgPool; ReLU comes after.
    o_ref[...] = jnp.maximum(pooled * scale + shift, 0.0)


def _latent_kernel(w_ref, p_ref, b_ref, eps_ref, z_ref, kl_ref):
    """mean/log_var convs + reparameterization + KL partial sum, fused.

    w_ref : (2, C, 9*C) bf16  stacked [mean; log_var] conv weights
    p_ref : (9*C, M)    bf16  im2col patches of the encoder output
    b_ref : (2, C, 1)   f32
    eps_ref : (C, M)    f32   N(0,1) noise
    z_ref : (C, M)      f32   sampled latent
    kl_ref: (1, 1)      f32   sum(1 + lv - m^2 - exp(lv))
    """
    p = p_ref[...]
    m = jnp.dot(w_ref[0], p, preferred_element_type=jnp.float32) + b_ref[0]
    lv = jnp.dot(w_ref[1], p, preferred_element_type=jnp.float32) + b_ref[1]
    z_ref[...] = m + eps_ref[...] * jnp.exp(0.5 * lv)
    kl_ref[...] = jnp.sum(1.0 + lv - m * m - jnp.exp(lv),
                          axis=(0, 1), keepdims=True)


def _dec_block_kernel(w_ref, p_ref, b_ref, g_ref, bt_ref, o_ref, *, bn_eps):
    """ConvTranspose(4,2,1) as 4 sub-pixel phases + BN + ReLU, fused.

    w_ref : (4, Cout, 9*Cin) bf16  per-phase stride-1 conv weights
    p_ref : (9*Cin, M)       bf16  im2col patches of the decoder input (pad 1)
    b_ref/g_ref/bt_ref : (Cout, 1) f32
    o_ref : (4, Cout, M)     f32   per-phase output (interleaved in JAX)
    """
    p = p_ref[...]
    bias = b_ref[...]
    accs = []
    s1 = jnp.zeros_like(bias)
    s2 = jnp.zeros_like(bias)
    for ph in range(4):
        acc = jnp.dot(w_ref[ph], p, preferred_element_type=jnp.float32) + bias
        accs.append(acc)
        s1 = s1 + jnp.sum(acc, axis=1, keepdims=True)
        s2 = s2 + jnp.sum(acc * acc, axis=1, keepdims=True)
    n = 4.0 * p.shape[1]                      # elements per channel (all phases)
    mu = s1 / n
    var = s2 / n - mu * mu
    scale = g_ref[...] / jnp.sqrt(var + bn_eps)
    shift = bt_ref[...] - mu * scale
    for ph in range(4):
        o_ref[ph] = jnp.maximum(accs[ph] * scale + shift, 0.0)


def _dec_final_kernel(w_ref, p_ref, b_ref, x_ref, y_ref, bce_ref):
    """Final ConvTranspose(Cin->1) + Sigmoid + BCE reconstruction-loss sum.

    w_ref : (4, 9*Cin) bf16  4 sub-pixel phases of the single output channel
    p_ref : (9*Cin, M) bf16
    b_ref : (4, 1)     f32
    x_ref : (4, M)     f32   input image, phase-decomposed to match y
    y_ref : (4, M)     f32   sigmoid output (phase-decomposed)
    bce_ref : (1, 1)   f32   sum(x*log(y+eps) + (1-x)*log(1-y+eps))
    """
    acc = (jnp.dot(w_ref[...], p_ref[...], preferred_element_type=jnp.float32)
           + b_ref[...])
    y = jax.nn.sigmoid(acc)
    y_ref[...] = y
    x = x_ref[...]
    t = x * jnp.log(y + 1e-15) + (1.0 - x) * jnp.log(1.0 - y + 1e-15)
    bce_ref[...] = jnp.sum(t, axis=(0, 1), keepdims=True)


# ---------------------------------------------------------------------------
# Plain-JAX glue: bf16 im2col, weight prep, phase interleave
# ---------------------------------------------------------------------------
def conv_weight_T(w_oihw):
    """Conv2d weight (O, I, 3, 3) -> (O, 9*I) bf16, (kh, kw, ci)-major cols."""
    cout, cin, kh, kw = w_oihw.shape
    return (jnp.transpose(w_oihw, (0, 2, 3, 1))
            .reshape(cout, kh * kw * cin).astype(jnp.bfloat16))


def convt_phase_weight(w_iohw):
    """ConvTranspose2d(k=4, s=2, p=1) weight (I, O, 4, 4) -> (4, O, 9*I) bf16.

    Phase p = rh*2 + rw is a stride-1 3x3 (pad-1) conv producing the output
    pixels (2h+rh, 2w+rw); columns are (ki, kj, ci)-major.
    """
    cin, cout, _, _ = w_iohw.shape
    w = w_iohw.astype(jnp.bfloat16)
    zeros = jnp.zeros((cout, cin), jnp.bfloat16)
    phases = []
    for rh in range(2):
        for rw in range(2):
            cols = []
            for ki in range(3):
                for kj in range(3):
                    if ki in (rh, rh + 1) and kj in (rw, rw + 1):
                        kh = 3 + rh - 2 * ki
                        kw = 3 + rw - 2 * kj
                        cols.append(jnp.transpose(w[:, :, kh, kw]))
                    else:
                        cols.append(zeros)
            phases.append(jnp.concatenate(cols, axis=1))   # (Cout, 9*Cin)
    return jnp.stack(phases, axis=0)                        # (4, Cout, 9*Cin)


def im2col(x_cbhw):
    """Stride-1 pad-1 3x3 im2col: (C,B,H,W) -> (9*C, B*H*W) bf16."""
    c, b, h, w = x_cbhw.shape
    xp = jnp.pad(x_cbhw.astype(jnp.bfloat16), ((0, 0), (0, 0), (1, 1), (1, 1)))
    taps = [xp[:, :, i:i + h, j:j + w] for i in range(3) for j in range(3)]
    return jnp.stack(taps, axis=0).reshape(9 * c, b * h * w)


def im2col_pool_phases(x_cbhw):
    """im2col with output columns grouped by 2x2 pooling phase.

    (C,B,H,W) -> (4, 9*C, B*(H//2)*(W//2)) bf16, phase p = (h%2)*2 + (w%2).
    """
    c, b, h, w = x_cbhw.shape
    hp, wp = h // 2, w // 2
    xp = jnp.pad(x_cbhw.astype(jnp.bfloat16), ((0, 0), (0, 0), (1, 1), (1, 1)))
    taps = [xp[:, :, i:i + h, j:j + w] for i in range(3) for j in range(3)]
    pat = jnp.stack(taps, axis=0).reshape(9, c, b, hp, 2, wp, 2)
    pat = jnp.transpose(pat, (4, 6, 0, 1, 2, 3, 5))      # (2,2,9,C,B,Hp,Wp)
    return pat.reshape(4, 9 * c, b * hp * wp), (b, hp, wp)


def interleave_phases(y4, cout, b, h, w):
    """(4, Cout, B*H*W) per-phase slab -> (Cout, B, 2H, 2W)."""
    y = y4.reshape(2, 2, cout, b, h, w)
    y = jnp.transpose(y, (2, 3, 4, 0, 5, 1))             # (Cout,B,H,2,W,2)
    return y.reshape(cout, b, 2 * h, 2 * w)


# ---------------------------------------------------------------------------
# Network blocks (one pallas_call each)
# ---------------------------------------------------------------------------
def encoder_block(h, blk, bn_eps=1e-5):
    cout = blk["w"].shape[0]
    pat, (b, hp, wp) = im2col_pool_phases(h)
    out = pl.pallas_call(
        functools.partial(_enc_block_kernel, bn_eps=bn_eps),
        out_shape=jax.ShapeDtypeStruct((cout, pat.shape[2]), jnp.float32),
        in_specs=[_VMEM_SPEC] * 5,
        out_specs=_VMEM_SPEC,
    )(conv_weight_T(blk["w"]), pat,
      blk["b"].reshape(cout, 1), blk["gamma"].reshape(cout, 1),
      blk["beta"].reshape(cout, 1))
    return out.reshape(cout, b, hp, wp)


def decoder_block(h, blk, bn_eps=1e-5):
    cin, b, hh, ww = h.shape
    cout = blk["w"].shape[1]
    m = b * hh * ww
    y4 = pl.pallas_call(
        functools.partial(_dec_block_kernel, bn_eps=bn_eps),
        out_shape=jax.ShapeDtypeStruct((4, cout, m), jnp.float32),
        in_specs=[_VMEM_SPEC] * 5,
        out_specs=_VMEM_SPEC,
    )(convt_phase_weight(blk["w"]), im2col(h),
      blk["b"].reshape(cout, 1), blk["gamma"].reshape(cout, 1),
      blk["beta"].reshape(cout, 1))
    return interleave_phases(y4, cout, b, hh, ww)


def decoder_final(h, blk, x_cbhw):
    cin, b, hh, ww = h.shape
    m = b * hh * ww
    wph = convt_phase_weight(blk["w"]).reshape(4, 9 * cin)      # Cout == 1
    bias4 = jnp.tile(blk["b"], 4).reshape(4, 1).astype(jnp.float32)
    # Input image decomposed into the same 4 sub-pixel phases as y.
    x_ph = jnp.transpose(x_cbhw.reshape(1, b, hh, 2, ww, 2),
                         (3, 5, 0, 1, 2, 4)).reshape(4, m)
    y4, bce_sum = pl.pallas_call(
        _dec_final_kernel,
        out_shape=(jax.ShapeDtypeStruct((4, m), jnp.float32),
                   jax.ShapeDtypeStruct((1, 1), jnp.float32)),
        in_specs=[_VMEM_SPEC] * 4,
        out_specs=(_VMEM_SPEC, _VMEM_SPEC),
    )(wph, im2col(h), bias4, x_ph)
    y = interleave_phases(y4.reshape(4, 1, m), 1, b, hh, ww)
    loss_rec = -bce_sum[0, 0] / (b * (2 * hh) * (2 * ww))
    return y, loss_rec


def vae_forward(x_nchw, params, eps_key):
    x = jnp.transpose(x_nchw, (1, 0, 2, 3)).astype(jnp.float32)   # (1,B,64,64)

    h = x
    for blk in params["enc_blocks"]:
        h = encoder_block(h, blk)                                 # (32,B,4,4)

    # Latent: mean/log_var convs + reparameterization + KL, one kernel.
    c, b, hh, ww = h.shape
    m = b * hh * ww
    wboth = jnp.stack([conv_weight_T(params["mean_w"]),
                       conv_weight_T(params["logvar_w"])], axis=0)
    bboth = jnp.stack([params["mean_b"].reshape(c, 1),
                       params["logvar_b"].reshape(c, 1)], axis=0)
    # TODO(synk): epsilon drawn with jax.random on host (torch.randn
    # equivalent); not generated with the on-chip Pallas PRNG.
    eps2d = jax.random.normal(eps_key, (c, m), jnp.float32)
    z2d, kl_sum = pl.pallas_call(
        _latent_kernel,
        out_shape=(jax.ShapeDtypeStruct((c, m), jnp.float32),
                   jax.ShapeDtypeStruct((1, 1), jnp.float32)),
        in_specs=[_VMEM_SPEC] * 4,
        out_specs=(_VMEM_SPEC, _VMEM_SPEC),
    )(wboth, im2col(h), bboth, eps2d)
    kl_div = -0.5 * kl_sum[0, 0] / (c * m)
    z = z2d.reshape(c, b, hh, ww)

    h = z
    for blk in params["dec_blocks"][:-1]:
        h = decoder_block(h, blk)
    y, loss_rec = decoder_final(h, params["dec_blocks"][-1], x)

    y_nchw = jnp.transpose(y, (1, 0, 2, 3))
    z_nchw = jnp.transpose(z, (1, 0, 2, 3))
    return y_nchw, z_nchw, kl_div, loss_rec


# ---------------------------------------------------------------------------
# Deterministic parameter init (synthetic weights; PyTorch default BN affine)
# ---------------------------------------------------------------------------
def init_params(key):
    keys = iter(jax.random.split(key, 64))

    def rand(shape, scale=0.1):
        return scale * jax.random.normal(next(keys), shape, jnp.float32)

    params = {"enc_blocks": [], "dec_blocks": []}
    for cin, cout in [(1, 8), (8, 16), (16, 32), (32, 32)]:
        params["enc_blocks"].append(
            dict(w=rand((cout, cin, 3, 3)), b=rand((cout,), 0.01),
                 gamma=jnp.ones((cout,), jnp.float32),
                 beta=jnp.zeros((cout,), jnp.float32)))
    params["mean_w"] = rand((32, 32, 3, 3))
    params["mean_b"] = rand((32,), 0.01)
    params["logvar_w"] = rand((32, 32, 3, 3))
    params["logvar_b"] = rand((32,), 0.01)
    for cin, cout, has_bn in [(32, 32, True), (32, 16, True),
                              (16, 8, True), (8, 1, False)]:
        params["dec_blocks"].append(
            dict(w=rand((cin, cout, 4, 4)),   # ConvTranspose2d: (Cin,Cout,kh,kw)
                 b=rand((cout,), 0.01),
                 gamma=jnp.ones((cout,), jnp.float32) if has_bn else None,
                 beta=jnp.zeros((cout,), jnp.float32) if has_bn else None))
    return params


if __name__ == "__main__":
    root = jax.random.PRNGKey(0)
    k_param, k_data, k_eps = jax.random.split(root, 3)

    # Encoder architecture fixes spatial size at 64x64 (4x AvgPool(2) -> 4x4).
    x = jax.random.uniform(k_data, (2, 1, 64, 64), dtype=jnp.float32)

    params = init_params(k_param)
    fwd = jax.jit(vae_forward)
    y, z, kl, loss_rec = fwd(x, params, k_eps)

    jax.block_until_ready((y, z, kl, loss_rec))
    assert y.shape == (2, 1, 64, 64)
    assert z.shape == (2, 32, 4, 4)
    assert kl.shape == () and loss_rec.shape == ()
    print("KERNEL_OK")
</pallas_src>

<mosaic_0001>
module attributes {stable_mosaic.version = 11 : i64} {
  func.func @_enc_block_kernel(%arg0: memref<8x9xbf16, #tpu.memory_space<vmem>>, %arg1: memref<4x9x2048xbf16, #tpu.memory_space<vmem>>, %arg2: memref<8x1xf32, #tpu.memory_space<vmem>>, %arg3: memref<8x1xf32, #tpu.memory_space<vmem>>, %arg4: memref<8x1xf32, #tpu.memory_space<vmem>>, %arg5: memref<8x2048xf32, #tpu.memory_space<vmem>>) attributes {dimension_semantics = [], scalar_prefetch = 0 : i64, scratch_operands = 0 : i64, tpu.core_type = #tpu.core_type<tc>} {
    %c0 = arith.constant 0 : index
    %c0_0 = arith.constant 0 : index
    %0 = vector.load %arg0[%c0, %c0_0] : memref<8x9xbf16, #tpu.memory_space<vmem>>, vector<8x9xbf16>
    %c0_1 = arith.constant 0 : index
    %c0_2 = arith.constant 0 : index
    %1 = vector.load %arg2[%c0_1, %c0_2] : memref<8x1xf32, #tpu.memory_space<vmem>>, vector<8x1xf32>
    %cst = arith.constant 0.000000e+00 : f32
    %2 = vector.broadcast %cst : f32 to vector<8x2048xf32>
    %cst_3 = arith.constant 0.000000e+00 : f32
    %3 = vector.broadcast %cst_3 : f32 to vector<8x1xf32>
    %cst_4 = arith.constant 0.000000e+00 : f32
    %4 = vector.broadcast %cst_4 : f32 to vector<8x1xf32>
    %c0_5 = arith.constant 0 : index
    %c0_6 = arith.constant 0 : index
    %c0_7 = arith.constant 0 : index
    %5 = vector.load %arg1[%c0_5, %c0_6, %c0_7] : memref<4x9x2048xbf16, #tpu.memory_space<vmem>>, vector<1x9x2048xbf16>
    %6 = vector.shape_cast %5 : vector<1x9x2048xbf16> to vector<9x2048xbf16>
    %cst_8 = arith.constant dense<0.000000e+00> : vector<8x2048xf32>
    %7 = tpu.matmul %0, %6, %cst_8 {dimension_numbers = #tpu.dot_dimension_numbers<[1], [0], [0], [1], [0, 0, 1, 1], [], []>} : vector<8x9xbf16>, vector<9x2048xbf16>, vector<8x2048xf32> -> vector<8x2048xf32>
    %8 = vector.broadcast %1 : vector<8x1xf32> to vector<8x2048xf32>
    %9 = arith.addf %7, %8 : vector<8x2048xf32>
    %cst_9 = arith.constant 2.500000e-01 : f32
    %10 = vector.broadcast %cst_9 : f32 to vector<8x2048xf32>
    %11 = arith.mulf %10, %9 : vector<8x2048xf32>
    %12 = arith.addf %2, %11 : vector<8x2048xf32>
    %cst_10 = arith.constant dense<0.000000e+00> : vector<8xf32>
    %13 = vector.multi_reduction <add>, %9, %cst_10 [1] : vector<8x2048xf32> to vector<8xf32>
    %14 = vector.shape_cast %13 : vector<8xf32> to vector<8x1xf32>
    %15 = arith.addf %3, %14 : vector<8x1xf32>
    %16 = arith.mulf %9, %9 : vector<8x2048xf32>
    %cst_11 = arith.constant dense<0.000000e+00> : vector<8xf32>
    %17 = vector.multi_reduction <add>, %16, %cst_11 [1] : vector<8x2048xf32> to vector<8xf32>
    %18 = vector.shape_cast %17 : vector<8xf32> to vector<8x1xf32>
    %19 = arith.addf %4, %18 : vector<8x1xf32>
    %c1 = arith.constant 1 : index
    %c0_12 = arith.constant 0 : index
    %c0_13 = arith.constant 0 : index
    %20 = vector.load %arg1[%c1, %c0_12, %c0_13] : memref<4x9x2048xbf16, #tpu.memory_space<vmem>>, vector<1x9x2048xbf16>
    %21 = vector.shape_cast %20 : vector<1x9x2048xbf16> to vector<9x2048xbf16>
    %cst_14 = arith.constant dense<0.000000e+00> : vector<8x2048xf32>
    %22 = tpu.matmul %0, %21, %cst_14 {dimension_numbers = #tpu.dot_dimension_numbers<[1], [0], [0], [1], [0, 0, 1, 1], [], []>} : vector<8x9xbf16>, vector<9x2048xbf16>, vector<8x2048xf32> -> vector<8x2048xf32>
    %23 = vector.broadcast %1 : vector<8x1xf32> to vector<8x2048xf32>
    %24 = arith.addf %22, %23 : vector<8x2048xf32>
    %cst_15 = arith.constant 2.500000e-01 : f32
    %25 = vector.broadcast %cst_15 : f32 to vector<8x2048xf32>
    %26 = arith.mulf %25, %24 : vector<8x2048xf32>
    %27 = arith.addf %12, %26 : vector<8x2048xf32>
    %cst_16 = arith.constant dense<0.000000e+00> : vector<8xf32>
    %28 = vector.multi_reduction <add>, %24, %cst_16 [1] : vector<8x2048xf32> to vector<8xf32>
    %29 = vector.shape_cast %28 : vector<8xf32> to vector<8x1xf32>
    %30 = arith.addf %15, %29 : vector<8x1xf32>
    %31 = arith.mulf %24, %24 : vector<8x2048xf32>
    %cst_17 = arith.constant dense<0.000000e+00> : vector<8xf32>
    %32 = vector.multi_reduction <add>, %31, %cst_17 [1] : vector<8x2048xf32> to vector<8xf32>
    %33 = vector.shape_cast %32 : vector<8xf32> to vector<8x1xf32>
    %34 = arith.addf %19, %33 : vector<8x1xf32>
    %c2 = arith.constant 2 : index
    %c0_18 = arith.constant 0 : index
    %c0_19 = arith.constant 0 : index
    %35 = vector.load %arg1[%c2, %c0_18, %c0_19] : memref<4x9x2048xbf16, #tpu.memory_space<vmem>>, vector<1x9x2048xbf16>
    %36 = vector.shape_cast %35 : vector<1x9x2048xbf16> to vector<9x2048xbf16>
    %cst_20 = arith.constant dense<0.000000e+00> : vector<8x2048xf32>
    %37 = tpu.matmul %0, %36, %cst_20 {dimension_numbers = #tpu.dot_dimension_numbers<[1], [0], [0], [1], [0, 0, 1, 1], [], []>} : vector<8x9xbf16>, vector<9x2048xbf16>, vector<8x2048xf32> -> vector<8x2048xf32>
    %38 = vector.broadcast %1 : vector<8x1xf32> to vector<8x2048xf32>
    %39 = arith.addf %37, %38 : vector<8x2048xf32>
    %cst_21 = arith.constant 2.500000e-01 : f32
    %40 = vector.broadcast %cst_21 : f32 to vector<8x2048xf32>
    %41 = arith.mulf %40, %39 : vector<8x2048xf32>
    %42 = arith.addf %27, %41 : vector<8x2048xf32>
    %cst_22 = arith.constant dense<0.000000e+00> : vector<8xf32>
    %43 = vector.multi_reduction <add>, %39, %cst_22 [1] : vector<8x2048xf32> to vector<8xf32>
    %44 = vector.shape_cast %43 : vector<8xf32> to vector<8x1xf32>
    %45 = arith.addf %30, %44 : vector<8x1xf32>
    %46 = arith.mulf %39, %39 : vector<8x2048xf32>
    %cst_23 = arith.constant dense<0.000000e+00> : vector<8xf32>
    %47 = vector.multi_reduction <add>, %46, %cst_23 [1] : vector<8x2048xf32> to vector<8xf32>
    %48 = vector.shape_cast %47 : vector<8xf32> to vector<8x1xf32>
    %49 = arith.addf %34, %48 : vector<8x1xf32>
    %c3 = arith.constant 3 : index
    %c0_24 = arith.constant 0 : index
    %c0_25 = arith.constant 0 : index
    %50 = vector.load %arg1[%c3, %c0_24, %c0_25] : memref<4x9x2048xbf16, #tpu.memory_space<vmem>>, vector<1x9x2048xbf16>
    %51 = vector.shape_cast %50 : vector<1x9x2048xbf16> to vector<9x2048xbf16>
    %cst_26 = arith.constant dense<0.000000e+00> : vector<8x2048xf32>
    %52 = tpu.matmul %0, %51, %cst_26 {dimension_numbers = #tpu.dot_dimension_numbers<[1], [0], [0], [1], [0, 0, 1, 1], [], []>} : vector<8x9xbf16>, vector<9x2048xbf16>, vector<8x2048xf32> -> vector<8x2048xf32>
    %53 = vector.broadcast %1 : vector<8x1xf32> to vector<8x2048xf32>
    %54 = arith.addf %52, %53 : vector<8x2048xf32>
    %cst_27 = arith.constant 2.500000e-01 : f32
    %55 = vector.broadcast %cst_27 : f32 to vector<8x2048xf32>
    %56 = arith.mulf %55, %54 : vector<8x2048xf32>
    %57 = arith.addf %42, %56 : vector<8x2048xf32>
    %cst_28 = arith.constant dense<0.000000e+00> : vector<8xf32>
    %58 = vector.multi_reduction <add>, %54, %cst_28 [1] : vector<8x2048xf32> to vector<8xf32>
    %59 = vector.shape_cast %58 : vector<8xf32> to vector<8x1xf32>
    %60 = arith.addf %45, %59 : vector<8x1xf32>
    %61 = arith.mulf %54, %54 : vector<8x2048xf32>
    %cst_29 = arith.constant dense<0.000000e+00> : vector<8xf32>
    %62 = vector.multi_reduction <add>, %61, %cst_29 [1] : vector<8x2048xf32> to vector<8xf32>
    %63 = vector.shape_cast %62 : vector<8xf32> to vector<8x1xf32>
    %64 = arith.addf %49, %63 : vector<8x1xf32>
    %cst_30 = arith.constant 8.192000e+03 : f32
    %65 = vector.broadcast %cst_30 : f32 to vector<8x1xf32>
    %66 = arith.divf %60, %65 : vector<8x1xf32>
    %cst_31 = arith.constant 8.192000e+03 : f32
    %67 = vector.broadcast %cst_31 : f32 to vector<8x1xf32>
    %68 = arith.divf %64, %67 : vector<8x1xf32>
    %69 = arith.mulf %66, %66 : vector<8x1xf32>
    %70 = arith.subf %68, %69 : vector<8x1xf32>
    %c0_32 = arith.constant 0 : index
    %c0_33 = arith.constant 0 : index
    %71 = vector.load %arg3[%c0_32, %c0_33] : memref<8x1xf32, #tpu.memory_space<vmem>>, vector<8x1xf32>
    %cst_34 = arith.constant 9.99999974E-6 : f32
    %72 = vector.broadcast %cst_34 : f32 to vector<8x1xf32>
    %73 = arith.addf %70, %72 : vector<8x1xf32>
    %74 = math.sqrt %73 : vector<8x1xf32>
    %75 = arith.divf %71, %74 : vector<8x1xf32>
    %c0_35 = arith.constant 0 : index
    %c0_36 = arith.constant 0 : index
    %76 = vector.load %arg4[%c0_35, %c0_36] : memref<8x1xf32, #tpu.memory_space<vmem>>, vector<8x1xf32>
    %77 = arith.mulf %66, %75 : vector<8x1xf32>
    %78 = arith.subf %76, %77 : vector<8x1xf32>
    %79 = vector.broadcast %75 : vector<8x1xf32> to vector<8x2048xf32>
    %80 = arith.mulf %57, %79 : vector<8x2048xf32>
    %81 = vector.broadcast %78 : vector<8x1xf32> to vector<8x2048xf32>
    %82 = arith.addf %80, %81 : vector<8x2048xf32>
    %cst_37 = arith.constant 0.000000e+00 : f32
    %83 = vector.broadcast %cst_37 : f32 to vector<8x2048xf32>
    %84 = arith.maximumf %82, %83 : vector<8x2048xf32>
    %c0_38 = arith.constant 0 : index
    %c0_39 = arith.constant 0 : index
    %85 = vector.load %arg5[%c0_38, %c0_39] : memref<8x2048xf32, #tpu.memory_space<vmem>>, vector<8x2048xf32>
    tpu.vector_store %arg5[%c0_38, %c0_39], %84 {strides = array<i32>} : memref<8x2048xf32, #tpu.memory_space<vmem>>, vector<8x2048xf32>,
    return
  }
}

module attributes {stable_mosaic.version = 11 : i64} {
  func.func @_enc_block_kernel(%arg0: memref<16x72xbf16, #tpu.memory_space<vmem>>, %arg1: memref<4x72x512xbf16, #tpu.memory_space<vmem>>, %arg2: memref<16x1xf32, #tpu.memory_space<vmem>>, %arg3: memref<16x1xf32, #tpu.memory_space<vmem>>, %arg4: memref<16x1xf32, #tpu.memory_space<vmem>>, %arg5: memref<16x512xf32, #tpu.memory_space<vmem>>) attributes {dimension_semantics = [], scalar_prefetch = 0 : i64, scratch_operands = 0 : i64, tpu.core_type = #tpu.core_type<tc>} {
    %c0 = arith.constant 0 : index
    %c0_0 = arith.constant 0 : index
    %0 = vector.load %arg0[%c0, %c0_0] : memref<16x72xbf16, #tpu.memory_space<vmem>>, vector<16x72xbf16>
    %c0_1 = arith.constant 0 : index
    %c0_2 = arith.constant 0 : index
    %1 = vector.load %arg2[%c0_1, %c0_2] : memref<16x1xf32, #tpu.memory_space<vmem>>, vector<16x1xf32>
    %cst = arith.constant 0.000000e+00 : f32
    %2 = vector.broadcast %cst : f32 to vector<16x512xf32>
    %cst_3 = arith.constant 0.000000e+00 : f32
    %3 = vector.broadcast %cst_3 : f32 to vector<16x1xf32>
    %cst_4 = arith.constant 0.000000e+00 : f32
    %4 = vector.broadcast %cst_4 : f32 to vector<16x1xf32>
    %c0_5 = arith.constant 0 : index
    %c0_6 = arith.constant 0 : index
    %c0_7 = arith.constant 0 : index
    %5 = vector.load %arg1[%c0_5, %c0_6, %c0_7] : memref<4x72x512xbf16, #tpu.memory_space<vmem>>, vector<1x72x512xbf16>
    %6 = vector.shape_cast %5 : vector<1x72x512xbf16> to vector<72x512xbf16>
    %cst_8 = arith.constant dense<0.000000e+00> : vector<16x512xf32>
    %7 = tpu.matmul %0, %6, %cst_8 {dimension_numbers = #tpu.dot_dimension_numbers<[1], [0], [0], [1], [0, 0, 1, 1], [], []>} : vector<16x72xbf16>, vector<72x512xbf16>, vector<16x512xf32> -> vector<16x512xf32>
    %8 = vector.broadcast %1 : vector<16x1xf32> to vector<16x512xf32>
    %9 = arith.addf %7, %8 : vector<16x512xf32>
    %cst_9 = arith.constant 2.500000e-01 : f32
    %10 = vector.broadcast %cst_9 : f32 to vector<16x512xf32>
    %11 = arith.mulf %10, %9 : vector<16x512xf32>
    %12 = arith.addf %2, %11 : vector<16x512xf32>
    %cst_10 = arith.constant dense<0.000000e+00> : vector<16xf32>
    %13 = vector.multi_reduction <add>, %9, %cst_10 [1] : vector<16x512xf32> to vector<16xf32>
    %14 = vector.shape_cast %13 : vector<16xf32> to vector<16x1xf32>
    %15 = arith.addf %3, %14 : vector<16x1xf32>
    %16 = arith.mulf %9, %9 : vector<16x512xf32>
    %cst_11 = arith.constant dense<0.000000e+00> : vector<16xf32>
    %17 = vector.multi_reduction <add>, %16, %cst_11 [1] : vector<16x512xf32> to vector<16xf32>
    %18 = vector.shape_cast %17 : vector<16xf32> to vector<16x1xf32>
    %19 = arith.addf %4, %18 : vector<16x1xf32>
    %c1 = arith.constant 1 : index
    %c0_12 = arith.constant 0 : index
    %c0_13 = arith.constant 0 : index
    %20 = vector.load %arg1[%c1, %c0_12, %c0_13] : memref<4x72x512xbf16, #tpu.memory_space<vmem>>, vector<1x72x512xbf16>
    %21 = vector.shape_cast %20 : vector<1x72x512xbf16> to vector<72x512xbf16>
    %cst_14 = arith.constant dense<0.000000e+00> : vector<16x512xf32>
    %22 = tpu.matmul %0, %21, %cst_14 {dimension_numbers = #tpu.dot_dimension_numbers<[1], [0], [0], [1], [0, 0, 1, 1], [], []>} : vector<16x72xbf16>, vector<72x512xbf16>, vector<16x512xf32> -> vector<16x512xf32>
    %23 = vector.broadcast %1 : vector<16x1xf32> to vector<16x512xf32>
    %24 = arith.addf %22, %23 : vector<16x512xf32>
    %cst_15 = arith.constant 2.500000e-01 : f32
    %25 = vector.broadcast %cst_15 : f32 to vector<16x512xf32>
    %26 = arith.mulf %25, %24 : vector<16x512xf32>
    %27 = arith.addf %12, %26 : vector<16x512xf32>
    %cst_16 = arith.constant dense<0.000000e+00> : vector<16xf32>
    %28 = vector.multi_reduction <add>, %24, %cst_16 [1] : vector<16x512xf32> to vector<16xf32>
    %29 = vector.shape_cast %28 : vector<16xf32> to vector<16x1xf32>
    %30 = arith.addf %15, %29 : vector<16x1xf32>
    %31 = arith.mulf %24, %24 : vector<16x512xf32>
    %cst_17 = arith.constant dense<0.000000e+00> : vector<16xf32>
    %32 = vector.multi_reduction <add>, %31, %cst_17 [1] : vector<16x512xf32> to vector<16xf32>
    %33 = vector.shape_cast %32 : vector<16xf32> to vector<16x1xf32>
    %34 = arith.addf %19, %33 : vector<16x1xf32>
    %c2 = arith.constant 2 : index
    %c0_18 = arith.constant 0 : index
    %c0_19 = arith.constant 0 : index
    %35 = vector.load %arg1[%c2, %c0_18, %c0_19] : memref<4x72x512xbf16, #tpu.memory_space<vmem>>, vector<1x72x512xbf16>
    %36 = vector.shape_cast %35 : vector<1x72x512xbf16> to vector<72x512xbf16>
    %cst_20 = arith.constant dense<0.000000e+00> : vector<16x512xf32>
    %37 = tpu.matmul %0, %36, %cst_20 {dimension_numbers = #tpu.dot_dimension_numbers<[1], [0], [0], [1], [0, 0, 1, 1], [], []>} : vector<16x72xbf16>, vector<72x512xbf16>, vector<16x512xf32> -> vector<16x512xf32>
    %38 = vector.broadcast %1 : vector<16x1xf32> to vector<16x512xf32>
    %39 = arith.addf %37, %38 : vector<16x512xf32>
    %cst_21 = arith.constant 2.500000e-01 : f32
    %40 = vector.broadcast %cst_21 : f32 to vector<16x512xf32>
    %41 = arith.mulf %40, %39 : vector<16x512xf32>
    %42 = arith.addf %27, %41 : vector<16x512xf32>
    %cst_22 = arith.constant dense<0.000000e+00> : vector<16xf32>
    %43 = vector.multi_reduction <add>, %39, %cst_22 [1] : vector<16x512xf32> to vector<16xf32>
    %44 = vector.shape_cast %43 : vector<16xf32> to vector<16x1xf32>
    %45 = arith.addf %30, %44 : vector<16x1xf32>
    %46 = arith.mulf %39, %39 : vector<16x512xf32>
    %cst_23 = arith.constant dense<0.000000e+00> : vector<16xf32>
    %47 = vector.multi_reduction <add>, %46, %cst_23 [1] : vector<16x512xf32> to vector<16xf32>
    %48 = vector.shape_cast %47 : vector<16xf32> to vector<16x1xf32>
    %49 = arith.addf %34, %48 : vector<16x1xf32>
    %c3 = arith.constant 3 : index
    %c0_24 = arith.constant 0 : index
    %c0_25 = arith.constant 0 : index
    %50 = vector.load %arg1[%c3, %c0_24, %c0_25] : memref<4x72x512xbf16, #tpu.memory_space<vmem>>, vector<1x72x512xbf16>
    %51 = vector.shape_cast %50 : vector<1x72x512xbf16> to vector<72x512xbf16>
    %cst_26 = arith.constant dense<0.000000e+00> : vector<16x512xf32>
    %52 = tpu.matmul %0, %51, %cst_26 {dimension_numbers = #tpu.dot_dimension_numbers<[1], [0], [0], [1], [0, 0, 1, 1], [], []>} : vector<16x72xbf16>, vector<72x512xbf16>, vector<16x512xf32> -> vector<16x512xf32>
    %53 = vector.broadcast %1 : vector<16x1xf32> to vector<16x512xf32>
    %54 = arith.addf %52, %53 : vector<16x512xf32>
    %cst_27 = arith.constant 2.500000e-01 : f32
    %55 = vector.broadcast %cst_27 : f32 to vector<16x512xf32>
    %56 = arith.mulf %55, %54 : vector<16x512xf32>
    %57 = arith.addf %42, %56 : vector<16x512xf32>
    %cst_28 = arith.constant dense<0.000000e+00> : vector<16xf32>
    %58 = vector.multi_reduction <add>, %54, %cst_28 [1] : vector<16x512xf32> to vector<16xf32>
    %59 = vector.shape_cast %58 : vector<16xf32> to vector<16x1xf32>
    %60 = arith.addf %45, %59 : vector<16x1xf32>
    %61 = arith.mulf %54, %54 : vector<16x512xf32>
    %cst_29 = arith.constant dense<0.000000e+00> : vector<16xf32>
    %62 = vector.multi_reduction <add>, %61, %cst_29 [1] : vector<16x512xf32> to vector<16xf32>
    %63 = vector.shape_cast %62 : vector<16xf32> to vector<16x1xf32>
    %64 = arith.addf %49, %63 : vector<16x1xf32>
    %cst_30 = arith.constant 2.048000e+03 : f32
    %65 = vector.broadcast %cst_30 : f32 to vector<16x1xf32>
    %66 = arith.divf %60, %65 : vector<16x1xf32>
    %cst_31 = arith.constant 2.048000e+03 : f32
    %67 = vector.broadcast %cst_31 : f32 to vector<16x1xf32>
    %68 = arith.divf %64, %67 : vector<16x1xf32>
    %69 = arith.mulf %66, %66 : vector<16x1xf32>
    %70 = arith.subf %68, %69 : vector<16x1xf32>
    %c0_32 = arith.constant 0 : index
    %c0_33 = arith.constant 0 : index
    %71 = vector.load %arg3[%c0_32, %c0_33] : memref<16x1xf32, #tpu.memory_space<vmem>>, vector<16x1xf32>
    %cst_34 = arith.constant 9.99999974E-6 : f32
    %72 = vector.broadcast %cst_34 : f32 to vector<16x1xf32>
    %73 = arith.addf %70, %72 : vector<16x1xf32>
    %74 = math.sqrt %73 : vector<16x1xf32>
    %75 = arith.divf %71, %74 : vector<16x1xf32>
    %c0_35 = arith.constant 0 : index
    %c0_36 = arith.constant 0 : index
    %76 = vector.load %arg4[%c0_35, %c0_36] : memref<16x1xf32, #tpu.memory_space<vmem>>, vector<16x1xf32>
    %77 = arith.mulf %66, %75 : vector<16x1xf32>
    %78 = arith.subf %76, %77 : vector<16x1xf32>
    %79 = vector.broadcast %75 : vector<16x1xf32> to vector<16x512xf32>
    %80 = arith.mulf %57, %79 : vector<16x512xf32>
    %81 = vector.broadcast %78 : vector<16x1xf32> to vector<16x512xf32>
    %82 = arith.addf %80, %81 : vector<16x512xf32>
    %cst_37 = arith.constant 0.000000e+00 : f32
    %83 = vector.broadcast %cst_37 : f32 to vector<16x512xf32>
    %84 = arith.maximumf %82, %83 : vector<16x512xf32>
    %c0_38 = arith.constant 0 : index
    %c0_39 = arith.constant 0 : index
    %85 = vector.load %arg5[%c0_38, %c0_39] : memref<16x512xf32, #tpu.memory_space<vmem>>, vector<16x512xf32>
    tpu.vector_store %arg5[%c0_38, %c0_39], %84 {strides = array<i32>} : memref<16x512xf32, #tpu.memory_space<vmem>>, vector<16x512xf32>,
    return
  }
}

module attributes {stable_mosaic.version = 11 : i64} {
  func.func @_enc_block_kernel(%arg0: memref<32x144xbf16, #tpu.memory_space<vmem>>, %arg1: memref<4x144x128xbf16, #tpu.memory_space<vmem>>, %arg2: memref<32x1xf32, #tpu.memory_space<vmem>>, %arg3: memref<32x1xf32, #tpu.memory_space<vmem>>, %arg4: memref<32x1xf32, #tpu.memory_space<vmem>>, %arg5: memref<32x128xf32, #tpu.memory_space<vmem>>) attributes {dimension_semantics = [], scalar_prefetch = 0 : i64, scratch_operands = 0 : i64, tpu.core_type = #tpu.core_type<tc>} {
    %c0 = arith.constant 0 : index
    %c0_0 = arith.constant 0 : index
    %0 = vector.load %arg0[%c0, %c0_0] : memref<32x144xbf16, #tpu.memory_space<vmem>>, vector<32x144xbf16>
    %c0_1 = arith.constant 0 : index
    %c0_2 = arith.constant 0 : index
    %1 = vector.load %arg2[%c0_1, %c0_2] : memref<32x1xf32, #tpu.memory_space<vmem>>, vector<32x1xf32>
    %cst = arith.constant 0.000000e+00 : f32
    %2 = vector.broadcast %cst : f32 to vector<32x128xf32>
    %cst_3 = arith.constant 0.000000e+00 : f32
    %3 = vector.broadcast %cst_3 : f32 to vector<32x1xf32>
    %cst_4 = arith.constant 0.000000e+00 : f32
    %4 = vector.broadcast %cst_4 : f32 to vector<32x1xf32>
    %c0_5 = arith.constant 0 : index
    %c0_6 = arith.constant 0 : index
    %c0_7 = arith.constant 0 : index
    %5 = vector.load %arg1[%c0_5, %c0_6, %c0_7] : memref<4x144x128xbf16, #tpu.memory_space<vmem>>, vector<1x144x128xbf16>
    %6 = vector.shape_cast %5 : vector<1x144x128xbf16> to vector<144x128xbf16>
    %cst_8 = arith.constant dense<0.000000e+00> : vector<32x128xf32>
    %7 = tpu.matmul %0, %6, %cst_8 {dimension_numbers = #tpu.dot_dimension_numbers<[1], [0], [0], [1], [0, 0, 1, 1], [], []>} : vector<32x144xbf16>, vector<144x128xbf16>, vector<32x128xf32> -> vector<32x128xf32>
    %8 = vector.broadcast %1 : vector<32x1xf32> to vector<32x128xf32>
    %9 = arith.addf %7, %8 : vector<32x128xf32>
    %cst_9 = arith.constant 2.500000e-01 : f32
    %10 = vector.broadcast %cst_9 : f32 to vector<32x128xf32>
    %11 = arith.mulf %10, %9 : vector<32x128xf32>
    %12 = arith.addf %2, %11 : vector<32x128xf32>
    %cst_10 = arith.constant dense<0.000000e+00> : vector<32xf32>
    %13 = vector.multi_reduction <add>, %9, %cst_10 [1] : vector<32x128xf32> to vector<32xf32>
    %14 = vector.shape_cast %13 : vector<32xf32> to vector<32x1xf32>
    %15 = arith.addf %3, %14 : vector<32x1xf32>
    %16 = arith.mulf %9, %9 : vector<32x128xf32>
    %cst_11 = arith.constant dense<0.000000e+00> : vector<32xf32>
    %17 = vector.multi_reduction <add>, %16, %cst_11 [1] : vector<32x128xf32> to vector<32xf32>
    %18 = vector.shape_cast %17 : vector<32xf32> to vector<32x1xf32>
    %19 = arith.addf %4, %18 : vector<32x1xf32>
    %c1 = arith.constant 1 : index
    %c0_12 = arith.constant 0 : index
    %c0_13 = arith.constant 0 : index
    %20 = vector.load %arg1[%c1, %c0_12, %c0_13] : memref<4x144x128xbf16, #tpu.memory_space<vmem>>, vector<1x144x128xbf16>
    %21 = vector.shape_cast %20 : vector<1x144x128xbf16> to vector<144x128xbf16>
    %cst_14 = arith.constant dense<0.000000e+00> : vector<32x128xf32>
    %22 = tpu.matmul %0, %21, %cst_14 {dimension_numbers = #tpu.dot_dimension_numbers<[1], [0], [0], [1], [0, 0, 1, 1], [], []>} : vector<32x144xbf16>, vector<144x128xbf16>, vector<32x128xf32> -> vector<32x128xf32>
    %23 = vector.broadcast %1 : vector<32x1xf32> to vector<32x128xf32>
    %24 = arith.addf %22, %23 : vector<32x128xf32>
    %cst_15 = arith.constant 2.500000e-01 : f32
    %25 = vector.broadcast %cst_15 : f32 to vector<32x128xf32>
    %26 = arith.mulf %25, %24 : vector<32x128xf32>
    %27 = arith.addf %12, %26 : vector<32x128xf32>
    %cst_16 = arith.constant dense<0.000000e+00> : vector<32xf32>
    %28 = vector.multi_reduction <add>, %24, %cst_16 [1] : vector<32x128xf32> to vector<32xf32>
    %29 = vector.shape_cast %28 : vector<32xf32> to vector<32x1xf32>
    %30 = arith.addf %15, %29 : vector<32x1xf32>
    %31 = arith.mulf %24, %24 : vector<32x128xf32>
    %cst_17 = arith.constant dense<0.000000e+00> : vector<32xf32>
    %32 = vector.multi_reduction <add>, %31, %cst_17 [1] : vector<32x128xf32> to vector<32xf32>
    %33 = vector.shape_cast %32 : vector<32xf32> to vector<32x1xf32>
    %34 = arith.addf %19, %33 : vector<32x1xf32>
    %c2 = arith.constant 2 : index
    %c0_18 = arith.constant 0 : index
    %c0_19 = arith.constant 0 : index
    %35 = vector.load %arg1[%c2, %c0_18, %c0_19] : memref<4x144x128xbf16, #tpu.memory_space<vmem>>, vector<1x144x128xbf16>
    %36 = vector.shape_cast %35 : vector<1x144x128xbf16> to vector<144x128xbf16>
    %cst_20 = arith.constant dense<0.000000e+00> : vector<32x128xf32>
    %37 = tpu.matmul %0, %36, %cst_20 {dimension_numbers = #tpu.dot_dimension_numbers<[1], [0], [0], [1], [0, 0, 1, 1], [], []>} : vector<32x144xbf16>, vector<144x128xbf16>, vector<32x128xf32> -> vector<32x128xf32>
    %38 = vector.broadcast %1 : vector<32x1xf32> to vector<32x128xf32>
    %39 = arith.addf %37, %38 : vector<32x128xf32>
    %cst_21 = arith.constant 2.500000e-01 : f32
    %40 = vector.broadcast %cst_21 : f32 to vector<32x128xf32>
    %41 = arith.mulf %40, %39 : vector<32x128xf32>
    %42 = arith.addf %27, %41 : vector<32x128xf32>
    %cst_22 = arith.constant dense<0.000000e+00> : vector<32xf32>
    %43 = vector.multi_reduction <add>, %39, %cst_22 [1] : vector<32x128xf32> to vector<32xf32>
    %44 = vector.shape_cast %43 : vector<32xf32> to vector<32x1xf32>
    %45 = arith.addf %30, %44 : vector<32x1xf32>
    %46 = arith.mulf %39, %39 : vector<32x128xf32>
    %cst_23 = arith.constant dense<0.000000e+00> : vector<32xf32>
    %47 = vector.multi_reduction <add>, %46, %cst_23 [1] : vector<32x128xf32> to vector<32xf32>
    %48 = vector.shape_cast %47 : vector<32xf32> to vector<32x1xf32>
    %49 = arith.addf %34, %48 : vector<32x1xf32>
    %c3 = arith.constant 3 : index
    %c0_24 = arith.constant 0 : index
    %c0_25 = arith.constant 0 : index
    %50 = vector.load %arg1[%c3, %c0_24, %c0_25] : memref<4x144x128xbf16, #tpu.memory_space<vmem>>, vector<1x144x128xbf16>
    %51 = vector.shape_cast %50 : vector<1x144x128xbf16> to vector<144x128xbf16>
    %cst_26 = arith.constant dense<0.000000e+00> : vector<32x128xf32>
    %52 = tpu.matmul %0, %51, %cst_26 {dimension_numbers = #tpu.dot_dimension_numbers<[1], [0], [0], [1], [0, 0, 1, 1], [], []>} : vector<32x144xbf16>, vector<144x128xbf16>, vector<32x128xf32> -> vector<32x128xf32>
    %53 = vector.broadcast %1 : vector<32x1xf32> to vector<32x128xf32>
    %54 = arith.addf %52, %53 : vector<32x128xf32>
    %cst_27 = arith.constant 2.500000e-01 : f32
    %55 = vector.broadcast %cst_27 : f32 to vector<32x128xf32>
    %56 = arith.mulf %55, %54 : vector<32x128xf32>
    %57 = arith.addf %42, %56 : vector<32x128xf32>
    %cst_28 = arith.constant dense<0.000000e+00> : vector<32xf32>
    %58 = vector.multi_reduction <add>, %54, %cst_28 [1] : vector<32x128xf32> to vector<32xf32>
    %59 = vector.shape_cast %58 : vector<32xf32> to vector<32x1xf32>
    %60 = arith.addf %45, %59 : vector<32x1xf32>
    %61 = arith.mulf %54, %54 : vector<32x128xf32>
    %cst_29 = arith.constant dense<0.000000e+00> : vector<32xf32>
    %62 = vector.multi_reduction <add>, %61, %cst_29 [1] : vector<32x128xf32> to vector<32xf32>
    %63 = vector.shape_cast %62 : vector<32xf32> to vector<32x1xf32>
    %64 = arith.addf %49, %63 : vector<32x1xf32>
    %cst_30 = arith.constant 5.120000e+02 : f32
    %65 = vector.broadcast %cst_30 : f32 to vector<32x1xf32>
    %66 = arith.divf %60, %65 : vector<32x1xf32>
    %cst_31 = arith.constant 5.120000e+02 : f32
    %67 = vector.broadcast %cst_31 : f32 to vector<32x1xf32>
    %68 = arith.divf %64, %67 : vector<32x1xf32>
    %69 = arith.mulf %66, %66 : vector<32x1xf32>
    %70 = arith.subf %68, %69 : vector<32x1xf32>
    %c0_32 = arith.constant 0 : index
    %c0_33 = arith.constant 0 : index
    %71 = vector.load %arg3[%c0_32, %c0_33] : memref<32x1xf32, #tpu.memory_space<vmem>>, vector<32x1xf32>
    %cst_34 = arith.constant 9.99999974E-6 : f32
    %72 = vector.broadcast %cst_34 : f32 to vector<32x1xf32>
    %73 = arith.addf %70, %72 : vector<32x1xf32>
    %74 = math.sqrt %73 : vector<32x1xf32>
    %75 = arith.divf %71, %74 : vector<32x1xf32>
    %c0_35 = arith.constant 0 : index
    %c0_36 = arith.constant 0 : index
    %76 = vector.load %arg4[%c0_35, %c0_36] : memref<32x1xf32, #tpu.memory_space<vmem>>, vector<32x1xf32>
    %77 = arith.mulf %66, %75 : vector<32x1xf32>
    %78 = arith.subf %76, %77 : vector<32x1xf32>
    %79 = vector.broadcast %75 : vector<32x1xf32> to vector<32x128xf32>
    %80 = arith.mulf %57, %79 : vector<32x128xf32>
    %81 = vector.broadcast %78 : vector<32x1xf32> to vector<32x128xf32>
    %82 = arith.addf %80, %81 : vector<32x128xf32>
    %cst_37 = arith.constant 0.000000e+00 : f32
    %83 = vector.broadcast %cst_37 : f32 to vector<32x128xf32>
    %84 = arith.maximumf %82, %83 : vector<32x128xf32>
    %c0_38 = arith.constant 0 : index
    %c0_39 = arith.constant 0 : index
    %85 = vector.load %arg5[%c0_38, %c0_39] : memref<32x128xf32, #tpu.memory_space<vmem>>, vector<32x128xf32>
    tpu.vector_store %arg5[%c0_38, %c0_39], %84 {strides = array<i32>} : memref<32x128xf32, #tpu.memory_space<vmem>>, vector<32x128xf32>,
    return
  }
}

module attributes {stable_mosaic.version = 11 : i64} {
  func.func @_enc_block_kernel(%arg0: memref<32x288xbf16, #tpu.memory_space<vmem>>, %arg1: memref<4x288x32xbf16, #tpu.memory_space<vmem>>, %arg2: memref<32x1xf32, #tpu.memory_space<vmem>>, %arg3: memref<32x1xf32, #tpu.memory_space<vmem>>, %arg4: memref<32x1xf32, #tpu.memory_space<vmem>>, %arg5: memref<32x32xf32, #tpu.memory_space<vmem>>) attributes {dimension_semantics = [], scalar_prefetch = 0 : i64, scratch_operands = 0 : i64, tpu.core_type = #tpu.core_type<tc>} {
    %c0 = arith.constant 0 : index
    %c0_0 = arith.constant 0 : index
    %0 = vector.load %arg0[%c0, %c0_0] : memref<32x288xbf16, #tpu.memory_space<vmem>>, vector<32x288xbf16>
    %c0_1 = arith.constant 0 : index
    %c0_2 = arith.constant 0 : index
    %1 = vector.load %arg2[%c0_1, %c0_2] : memref<32x1xf32, #tpu.memory_space<vmem>>, vector<32x1xf32>
    %cst = arith.constant 0.000000e+00 : f32
    %2 = vector.broadcast %cst : f32 to vector<32x32xf32>
    %cst_3 = arith.constant 0.000000e+00 : f32
    %3 = vector.broadcast %cst_3 : f32 to vector<32x1xf32>
    %cst_4 = arith.constant 0.000000e+00 : f32
    %4 = vector.broadcast %cst_4 : f32 to vector<32x1xf32>
    %c0_5 = arith.constant 0 : index
    %c0_6 = arith.constant 0 : index
    %c0_7 = arith.constant 0 : index
    %5 = vector.load %arg1[%c0_5, %c0_6, %c0_7] : memref<4x288x32xbf16, #tpu.memory_space<vmem>>, vector<1x288x32xbf16>
    %6 = vector.shape_cast %5 : vector<1x288x32xbf16> to vector<288x32xbf16>
    %cst_8 = arith.constant dense<0.000000e+00> : vector<32x32xf32>
    %7 = tpu.matmul %0, %6, %cst_8 {dimension_numbers = #tpu.dot_dimension_numbers<[1], [0], [0], [1], [0, 0, 1, 1], [], []>} : vector<32x288xbf16>, vector<288x32xbf16>, vector<32x32xf32> -> vector<32x32xf32>
    %8 = vector.broadcast %1 : vector<32x1xf32> to vector<32x32xf32>
    %9 = arith.addf %7, %8 : vector<32x32xf32>
    %cst_9 = arith.constant 2.500000e-01 : f32
    %10 = vector.broadcast %cst_9 : f32 to vector<32x32xf32>
    %11 = arith.mulf %10, %9 : vector<32x32xf32>
    %12 = arith.addf %2, %11 : vector<32x32xf32>
    %cst_10 = arith.constant dense<0.000000e+00> : vector<32xf32>
    %13 = vector.multi_reduction <add>, %9, %cst_10 [1] : vector<32x32xf32> to vector<32xf32>
    %14 = vector.shape_cast %13 : vector<32xf32> to vector<32x1xf32>
    %15 = arith.addf %3, %14 : vector<32x1xf32>
    %16 = arith.mulf %9, %9 : vector<32x32xf32>
    %cst_11 = arith.constant dense<0.000000e+00> : vector<32xf32>
    %17 = vector.multi_reduction <add>, %16, %cst_11 [1] : vector<32x32xf32> to vector<32xf32>
    %18 = vector.shape_cast %17 : vector<32xf32> to vector<32x1xf32>
    %19 = arith.addf %4, %18 : vector<32x1xf32>
    %c1 = arith.constant 1 : index
    %c0_12 = arith.constant 0 : index
    %c0_13 = arith.constant 0 : index
    %20 = vector.load %arg1[%c1, %c0_12, %c0_13] : memref<4x288x32xbf16, #tpu.memory_space<vmem>>, vector<1x288x32xbf16>
    %21 = vector.shape_cast %20 : vector<1x288x32xbf16> to vector<288x32xbf16>
    %cst_14 = arith.constant dense<0.000000e+00> : vector<32x32xf32>
    %22 = tpu.matmul %0, %21, %cst_14 {dimension_numbers = #tpu.dot_dimension_numbers<[1], [0], [0], [1], [0, 0, 1, 1], [], []>} : vector<32x288xbf16>, vector<288x32xbf16>, vector<32x32xf32> -> vector<32x32xf32>
    %23 = vector.broadcast %1 : vector<32x1xf32> to vector<32x32xf32>
    %24 = arith.addf %22, %23 : vector<32x32xf32>
    %cst_15 = arith.constant 2.500000e-01 : f32
    %25 = vector.broadcast %cst_15 : f32 to vector<32x32xf32>
    %26 = arith.mulf %25, %24 : vector<32x32xf32>
    %27 = arith.addf %12, %26 : vector<32x32xf32>
    %cst_16 = arith.constant dense<0.000000e+00> : vector<32xf32>
    %28 = vector.multi_reduction <add>, %24, %cst_16 [1] : vector<32x32xf32> to vector<32xf32>
    %29 = vector.shape_cast %28 : vector<32xf32> to vector<32x1xf32>
    %30 = arith.addf %15, %29 : vector<32x1xf32>
    %31 = arith.mulf %24, %24 : vector<32x32xf32>
    %cst_17 = arith.constant dense<0.000000e+00> : vector<32xf32>
    %32 = vector.multi_reduction <add>, %31, %cst_17 [1] : vector<32x32xf32> to vector<32xf32>
    %33 = vector.shape_cast %32 : vector<32xf32> to vector<32x1xf32>
    %34 = arith.addf %19, %33 : vector<32x1xf32>
    %c2 = arith.constant 2 : index
    %c0_18 = arith.constant 0 : index
    %c0_19 = arith.constant 0 : index
    %35 = vector.load %arg1[%c2, %c0_18, %c0_19] : memref<4x288x32xbf16, #tpu.memory_space<vmem>>, vector<1x288x32xbf16>
    %36 = vector.shape_cast %35 : vector<1x288x32xbf16> to vector<288x32xbf16>
    %cst_20 = arith.constant dense<0.000000e+00> : vector<32x32xf32>
    %37 = tpu.matmul %0, %36, %cst_20 {dimension_numbers = #tpu.dot_dimension_numbers<[1], [0], [0], [1], [0, 0, 1, 1], [], []>} : vector<32x288xbf16>, vector<288x32xbf16>, vector<32x32xf32> -> vector<32x32xf32>
    %38 = vector.broadcast %1 : vector<32x1xf32> to vector<32x32xf32>
    %39 = arith.addf %37, %38 : vector<32x32xf32>
    %cst_21 = arith.constant 2.500000e-01 : f32
    %40 = vector.broadcast %cst_21 : f32 to vector<32x32xf32>
    %41 = arith.mulf %40, %39 : vector<32x32xf32>
    %42 = arith.addf %27, %41 : vector<32x32xf32>
    %cst_22 = arith.constant dense<0.000000e+00> : vector<32xf32>
    %43 = vector.multi_reduction <add>, %39, %cst_22 [1] : vector<32x32xf32> to vector<32xf32>
    %44 = vector.shape_cast %43 : vector<32xf32> to vector<32x1xf32>
    %45 = arith.addf %30, %44 : vector<32x1xf32>
    %46 = arith.mulf %39, %39 : vector<32x32xf32>
    %cst_23 = arith.constant dense<0.000000e+00> : vector<32xf32>
    %47 = vector.multi_reduction <add>, %46, %cst_23 [1] : vector<32x32xf32> to vector<32xf32>
    %48 = vector.shape_cast %47 : vector<32xf32> to vector<32x1xf32>
    %49 = arith.addf %34, %48 : vector<32x1xf32>
    %c3 = arith.constant 3 : index
    %c0_24 = arith.constant 0 : index
    %c0_25 = arith.constant 0 : index
    %50 = vector.load %arg1[%c3, %c0_24, %c0_25] : memref<4x288x32xbf16, #tpu.memory_space<vmem>>, vector<1x288x32xbf16>
    %51 = vector.shape_cast %50 : vector<1x288x32xbf16> to vector<288x32xbf16>
    %cst_26 = arith.constant dense<0.000000e+00> : vector<32x32xf32>
    %52 = tpu.matmul %0, %51, %cst_26 {dimension_numbers = #tpu.dot_dimension_numbers<[1], [0], [0], [1], [0, 0, 1, 1], [], []>} : vector<32x288xbf16>, vector<288x32xbf16>, vector<32x32xf32> -> vector<32x32xf32>
    %53 = vector.broadcast %1 : vector<32x1xf32> to vector<32x32xf32>
    %54 = arith.addf %52, %53 : vector<32x32xf32>
    %cst_27 = arith.constant 2.500000e-01 : f32
    %55 = vector.broadcast %cst_27 : f32 to vector<32x32xf32>
    %56 = arith.mulf %55, %54 : vector<32x32xf32>
    %57 = arith.addf %42, %56 : vector<32x32xf32>
    %cst_28 = arith.constant dense<0.000000e+00> : vector<32xf32>
    %58 = vector.multi_reduction <add>, %54, %cst_28 [1] : vector<32x32xf32> to vector<32xf32>
    %59 = vector.shape_cast %58 : vector<32xf32> to vector<32x1xf32>
    %60 = arith.addf %45, %59 : vector<32x1xf32>
    %61 = arith.mulf %54, %54 : vector<32x32xf32>
    %cst_29 = arith.constant dense<0.000000e+00> : vector<32xf32>
    %62 = vector.multi_reduction <add>, %61, %cst_29 [1] : vector<32x32xf32> to vector<32xf32>
    %63 = vector.shape_cast %62 : vector<32xf32> to vector<32x1xf32>
    %64 = arith.addf %49, %63 : vector<32x1xf32>
    %cst_30 = arith.constant 1.280000e+02 : f32
    %65 = vector.broadcast %cst_30 : f32 to vector<32x1xf32>
    %66 = arith.divf %60, %65 : vector<32x1xf32>
    %cst_31 = arith.constant 1.280000e+02 : f32
    %67 = vector.broadcast %cst_31 : f32 to vector<32x1xf32>
    %68 = arith.divf %64, %67 : vector<32x1xf32>
    %69 = arith.mulf %66, %66 : vector<32x1xf32>
    %70 = arith.subf %68, %69 : vector<32x1xf32>
    %c0_32 = arith.constant 0 : index
    %c0_33 = arith.constant 0 : index
    %71 = vector.load %arg3[%c0_32, %c0_33] : memref<32x1xf32, #tpu.memory_space<vmem>>, vector<32x1xf32>
    %cst_34 = arith.constant 9.99999974E-6 : f32
    %72 = vector.broadcast %cst_34 : f32 to vector<32x1xf32>
    %73 = arith.addf %70, %72 : vector<32x1xf32>
    %74 = math.sqrt %73 : vector<32x1xf32>
    %75 = arith.divf %71, %74 : vector<32x1xf32>
    %c0_35 = arith.constant 0 : index
    %c0_36 = arith.constant 0 : index
    %76 = vector.load %arg4[%c0_35, %c0_36] : memref<32x1xf32, #tpu.memory_space<vmem>>, vector<32x1xf32>
    %77 = arith.mulf %66, %75 : vector<32x1xf32>
    %78 = arith.subf %76, %77 : vector<32x1xf32>
    %79 = vector.broadcast %75 : vector<32x1xf32> to vector<32x32xf32>
    %80 = arith.mulf %57, %79 : vector<32x32xf32>
    %81 = vector.broadcast %78 : vector<32x1xf32> to vector<32x32xf32>
    %82 = arith.addf %80, %81 : vector<32x32xf32>
    %cst_37 = arith.constant 0.000000e+00 : f32
    %83 = vector.broadcast %cst_37 : f32 to vector<32x32xf32>
    %84 = arith.maximumf %82, %83 : vector<32x32xf32>
    %c0_38 = arith.constant 0 : index
    %c0_39 = arith.constant 0 : index
    %85 = vector.load %arg5[%c0_38, %c0_39] : memref<32x32xf32, #tpu.memory_space<vmem>>, vector<32x32xf32>
    tpu.vector_store %arg5[%c0_38, %c0_39], %84 {strides = array<i32>} : memref<32x32xf32, #tpu.memory_space<vmem>>, vector<32x32xf32>,
    return
  }
}

module attributes {stable_mosaic.version = 11 : i64} {
  func.func @_latent_kernel(%arg0: memref<2x32x288xbf16, #tpu.memory_space<vmem>>, %arg1: memref<288x32xbf16, #tpu.memory_space<vmem>>, %arg2: memref<2x32x1xf32, #tpu.memory_space<vmem>>, %arg3: memref<32x32xf32, #tpu.memory_space<vmem>>, %arg4: memref<32x32xf32, #tpu.memory_space<vmem>>, %arg5: memref<1x1xf32, #tpu.memory_space<vmem>>) attributes {dimension_semantics = [], scalar_prefetch = 0 : i64, scratch_operands = 0 : i64, tpu.core_type = #tpu.core_type<tc>} {
    %c0 = arith.constant 0 : index
    %c0_0 = arith.constant 0 : index
    %0 = vector.load %arg1[%c0, %c0_0] : memref<288x32xbf16, #tpu.memory_space<vmem>>, vector<288x32xbf16>
    %c0_1 = arith.constant 0 : index
    %c0_2 = arith.constant 0 : index
    %c0_3 = arith.constant 0 : index
    %1 = vector.load %arg0[%c0_1, %c0_2, %c0_3] : memref<2x32x288xbf16, #tpu.memory_space<vmem>>, vector<1x32x288xbf16>
    %2 = vector.shape_cast %1 : vector<1x32x288xbf16> to vector<32x288xbf16>
    %cst = arith.constant dense<0.000000e+00> : vector<32x32xf32>
    %3 = tpu.matmul %2, %0, %cst {dimension_numbers = #tpu.dot_dimension_numbers<[1], [0], [0], [1], [0, 0, 1, 1], [], []>} : vector<32x288xbf16>, vector<288x32xbf16>, vector<32x32xf32> -> vector<32x32xf32>
    %c0_4 = arith.constant 0 : index
    %c0_5 = arith.constant 0 : index
    %c0_6 = arith.constant 0 : index
    %4 = vector.load %arg2[%c0_4, %c0_5, %c0_6] : memref<2x32x1xf32, #tpu.memory_space<vmem>>, vector<1x32x1xf32>
    %5 = vector.shape_cast %4 : vector<1x32x1xf32> to vector<32x1xf32>
    %6 = vector.broadcast %5 : vector<32x1xf32> to vector<32x32xf32>
    %7 = arith.addf %3, %6 : vector<32x32xf32>
    %c1 = arith.constant 1 : index
    %c0_7 = arith.constant 0 : index
    %c0_8 = arith.constant 0 : index
    %8 = vector.load %arg0[%c1, %c0_7, %c0_8] : memref<2x32x288xbf16, #tpu.memory_space<vmem>>, vector<1x32x288xbf16>
    %9 = vector.shape_cast %8 : vector<1x32x288xbf16> to vector<32x288xbf16>
    %cst_9 = arith.constant dense<0.000000e+00> : vector<32x32xf32>
    %10 = tpu.matmul %9, %0, %cst_9 {dimension_numbers = #tpu.dot_dimension_numbers<[1], [0], [0], [1], [0, 0, 1, 1], [], []>} : vector<32x288xbf16>, vector<288x32xbf16>, vector<32x32xf32> -> vector<32x32xf32>
    %c1_10 = arith.constant 1 : index
    %c0_11 = arith.constant 0 : index
    %c0_12 = arith.constant 0 : index
    %11 = vector.load %arg2[%c1_10, %c0_11, %c0_12] : memref<2x32x1xf32, #tpu.memory_space<vmem>>, vector<1x32x1xf32>
    %12 = vector.shape_cast %11 : vector<1x32x1xf32> to vector<32x1xf32>
    %13 = vector.broadcast %12 : vector<32x1xf32> to vector<32x32xf32>
    %14 = arith.addf %10, %13 : vector<32x32xf32>
    %c0_13 = arith.constant 0 : index
    %c0_14 = arith.constant 0 : index
    %15 = vector.load %arg3[%c0_13, %c0_14] : memref<32x32xf32, #tpu.memory_space<vmem>>, vector<32x32xf32>
    %cst_15 = arith.constant 5.000000e-01 : f32
    %16 = vector.broadcast %cst_15 : f32 to vector<32x32xf32>
    %17 = arith.mulf %16, %14 : vector<32x32xf32>
    %18 = math.exp %17 : vector<32x32xf32>
    %19 = arith.mulf %15, %18 : vector<32x32xf32>
    %20 = arith.addf %7, %19 : vector<32x32xf32>
    %c0_16 = arith.constant 0 : index
    %c0_17 = arith.constant 0 : index
    %21 = vector.load %arg4[%c0_16, %c0_17] : memref<32x32xf32, #tpu.memory_space<vmem>>, vector<32x32xf32>
    tpu.vector_store %arg4[%c0_16, %c0_17], %20 {strides = array<i32>} : memref<32x32xf32, #tpu.memory_space<vmem>>, vector<32x32xf32>,
    %cst_18 = arith.constant 1.000000e+00 : f32
    %22 = vector.broadcast %cst_18 : f32 to vector<32x32xf32>
    %23 = arith.addf %22, %14 : vector<32x32xf32>
    %24 = arith.mulf %7, %7 : vector<32x32xf32>
    %25 = arith.subf %23, %24 : vector<32x32xf32>
    %26 = math.exp %14 : vector<32x32xf32>
    %27 = arith.subf %25, %26 : vector<32x32xf32>
    %28 = vector.shape_cast %27 : vector<32x32xf32> to vector<1x32x32xf32>
    %cst_19 = arith.constant dense<0.000000e+00> : vector<1xf32>
    %29 = vector.multi_reduction <add>, %28, %cst_19 [1, 2] : vector<1x32x32xf32> to vector<1xf32>
    %30 = vector.shape_cast %29 : vector<1xf32> to vector<1x1x1xf32>
    %31 = vector.extract %30[0, 0, 0] : f32 from vector<1x1x1xf32>
    %32 = vector.broadcast %31 : f32 to vector<1x1xf32>
    %c0_20 = arith.constant 0 : index
    %c0_21 = arith.constant 0 : index
    %33 = vector.load %arg5[%c0_20, %c0_21] : memref<1x1xf32, #tpu.memory_space<vmem>>, vector<1x1xf32>
    tpu.vector_store %arg5[%c0_20, %c0_21], %32 {strides = array<i32>} : memref<1x1xf32, #tpu.memory_space<vmem>>, vector<1x1xf32>,
    return
  }
}

module attributes {stable_mosaic.version = 11 : i64} {
  func.func @_dec_block_kernel(%arg0: memref<4x32x288xbf16, #tpu.memory_space<vmem>>, %arg1: memref<288x32xbf16, #tpu.memory_space<vmem>>, %arg2: memref<32x1xf32, #tpu.memory_space<vmem>>, %arg3: memref<32x1xf32, #tpu.memory_space<vmem>>, %arg4: memref<32x1xf32, #tpu.memory_space<vmem>>, %arg5: memref<4x32x32xf32, #tpu.memory_space<vmem>>) attributes {dimension_semantics = [], scalar_prefetch = 0 : i64, scratch_operands = 0 : i64, tpu.core_type = #tpu.core_type<tc>} {
    %c0 = arith.constant 0 : index
    %c0_0 = arith.constant 0 : index
    %0 = vector.load %arg1[%c0, %c0_0] : memref<288x32xbf16, #tpu.memory_space<vmem>>, vector<288x32xbf16>
    %c0_1 = arith.constant 0 : index
    %c0_2 = arith.constant 0 : index
    %1 = vector.load %arg2[%c0_1, %c0_2] : memref<32x1xf32, #tpu.memory_space<vmem>>, vector<32x1xf32>
    %cst = arith.constant 0.000000e+00 : f32
    %2 = vector.broadcast %cst : f32 to vector<32x1xf32>
    %cst_3 = arith.constant 0.000000e+00 : f32
    %3 = vector.broadcast %cst_3 : f32 to vector<32x1xf32>
    %c0_4 = arith.constant 0 : index
    %c0_5 = arith.constant 0 : index
    %c0_6 = arith.constant 0 : index
    %4 = vector.load %arg0[%c0_4, %c0_5, %c0_6] : memref<4x32x288xbf16, #tpu.memory_space<vmem>>, vector<1x32x288xbf16>
    %5 = vector.shape_cast %4 : vector<1x32x288xbf16> to vector<32x288xbf16>
    %cst_7 = arith.constant dense<0.000000e+00> : vector<32x32xf32>
    %6 = tpu.matmul %5, %0, %cst_7 {dimension_numbers = #tpu.dot_dimension_numbers<[1], [0], [0], [1], [0, 0, 1, 1], [], []>} : vector<32x288xbf16>, vector<288x32xbf16>, vector<32x32xf32> -> vector<32x32xf32>
    %7 = vector.broadcast %1 : vector<32x1xf32> to vector<32x32xf32>
    %8 = arith.addf %6, %7 : vector<32x32xf32>
    %cst_8 = arith.constant dense<0.000000e+00> : vector<32xf32>
    %9 = vector.multi_reduction <add>, %8, %cst_8 [1] : vector<32x32xf32> to vector<32xf32>
    %10 = vector.shape_cast %9 : vector<32xf32> to vector<32x1xf32>
    %11 = arith.addf %2, %10 : vector<32x1xf32>
    %12 = arith.mulf %8, %8 : vector<32x32xf32>
    %cst_9 = arith.constant dense<0.000000e+00> : vector<32xf32>
    %13 = vector.multi_reduction <add>, %12, %cst_9 [1] : vector<32x32xf32> to vector<32xf32>
    %14 = vector.shape_cast %13 : vector<32xf32> to vector<32x1xf32>
    %15 = arith.addf %3, %14 : vector<32x1xf32>
    %c1 = arith.constant 1 : index
    %c0_10 = arith.constant 0 : index
    %c0_11 = arith.constant 0 : index
    %16 = vector.load %arg0[%c1, %c0_10, %c0_11] : memref<4x32x288xbf16, #tpu.memory_space<vmem>>, vector<1x32x288xbf16>
    %17 = vector.shape_cast %16 : vector<1x32x288xbf16> to vector<32x288xbf16>
    %cst_12 = arith.constant dense<0.000000e+00> : vector<32x32xf32>
    %18 = tpu.matmul %17, %0, %cst_12 {dimension_numbers = #tpu.dot_dimension_numbers<[1], [0], [0], [1], [0, 0, 1, 1], [], []>} : vector<32x288xbf16>, vector<288x32xbf16>, vector<32x32xf32> -> vector<32x32xf32>
    %19 = vector.broadcast %1 : vector<32x1xf32> to vector<32x32xf32>
    %20 = arith.addf %18, %19 : vector<32x32xf32>
    %cst_13 = arith.constant dense<0.000000e+00> : vector<32xf32>
    %21 = vector.multi_reduction <add>, %20, %cst_13 [1] : vector<32x32xf32> to vector<32xf32>
    %22 = vector.shape_cast %21 : vector<32xf32> to vector<32x1xf32>
    %23 = arith.addf %11, %22 : vector<32x1xf32>
    %24 = arith.mulf %20, %20 : vector<32x32xf32>
    %cst_14 = arith.constant dense<0.000000e+00> : vector<32xf32>
    %25 = vector.multi_reduction <add>, %24, %cst_14 [1] : vector<32x32xf32> to vector<32xf32>
    %26 = vector.shape_cast %25 : vector<32xf32> to vector<32x1xf32>
    %27 = arith.addf %15, %26 : vector<32x1xf32>
    %c2 = arith.constant 2 : index
    %c0_15 = arith.constant 0 : index
    %c0_16 = arith.constant 0 : index
    %28 = vector.load %arg0[%c2, %c0_15, %c0_16] : memref<4x32x288xbf16, #tpu.memory_space<vmem>>, vector<1x32x288xbf16>
    %29 = vector.shape_cast %28 : vector<1x32x288xbf16> to vector<32x288xbf16>
    %cst_17 = arith.constant dense<0.000000e+00> : vector<32x32xf32>
    %30 = tpu.matmul %29, %0, %cst_17 {dimension_numbers = #tpu.dot_dimension_numbers<[1], [0], [0], [1], [0, 0, 1, 1], [], []>} : vector<32x288xbf16>, vector<288x32xbf16>, vector<32x32xf32> -> vector<32x32xf32>
    %31 = vector.broadcast %1 : vector<32x1xf32> to vector<32x32xf32>
    %32 = arith.addf %30, %31 : vector<32x32xf32>
    %cst_18 = arith.constant dense<0.000000e+00> : vector<32xf32>
    %33 = vector.multi_reduction <add>, %32, %cst_18 [1] : vector<32x32xf32> to vector<32xf32>
    %34 = vector.shape_cast %33 : vector<32xf32> to vector<32x1xf32>
    %35 = arith.addf %23, %34 : vector<32x1xf32>
    %36 = arith.mulf %32, %32 : vector<32x32xf32>
    %cst_19 = arith.constant dense<0.000000e+00> : vector<32xf32>
    %37 = vector.multi_reduction <add>, %36, %cst_19 [1] : vector<32x32xf32> to vector<32xf32>
    %38 = vector.shape_cast %37 : vector<32xf32> to vector<32x1xf32>
    %39 = arith.addf %27, %38 : vector<32x1xf32>
    %c3 = arith.constant 3 : index
    %c0_20 = arith.constant 0 : index
    %c0_21 = arith.constant 0 : index
    %40 = vector.load %arg0[%c3, %c0_20, %c0_21] : memref<4x32x288xbf16, #tpu.memory_space<vmem>>, vector<1x32x288xbf16>
    %41 = vector.shape_cast %40 : vector<1x32x288xbf16> to vector<32x288xbf16>
    %cst_22 = arith.constant dense<0.000000e+00> : vector<32x32xf32>
    %42 = tpu.matmul %41, %0, %cst_22 {dimension_numbers = #tpu.dot_dimension_numbers<[1], [0], [0], [1], [0, 0, 1, 1], [], []>} : vector<32x288xbf16>, vector<288x32xbf16>, vector<32x32xf32> -> vector<32x32xf32>
    %43 = vector.broadcast %1 : vector<32x1xf32> to vector<32x32xf32>
    %44 = arith.addf %42, %43 : vector<32x32xf32>
    %cst_23 = arith.constant dense<0.000000e+00> : vector<32xf32>
    %45 = vector.multi_reduction <add>, %44, %cst_23 [1] : vector<32x32xf32> to vector<32xf32>
    %46 = vector.shape_cast %45 : vector<32xf32> to vector<32x1xf32>
    %47 = arith.addf %35, %46 : vector<32x1xf32>
    %48 = arith.mulf %44, %44 : vector<32x32xf32>
    %cst_24 = arith.constant dense<0.000000e+00> : vector<32xf32>
    %49 = vector.multi_reduction <add>, %48, %cst_24 [1] : vector<32x32xf32> to vector<32xf32>
    %50 = vector.shape_cast %49 : vector<32xf32> to vector<32x1xf32>
    %51 = arith.addf %39, %50 : vector<32x1xf32>
    %cst_25 = arith.constant 1.280000e+02 : f32
    %52 = vector.broadcast %cst_25 : f32 to vector<32x1xf32>
    %53 = arith.divf %47, %52 : vector<32x1xf32>
    %cst_26 = arith.constant 1.280000e+02 : f32
    %54 = vector.broadcast %cst_26 : f32 to vector<32x1xf32>
    %55 = arith.divf %51, %54 : vector<32x1xf32>
    %56 = arith.mulf %53, %53 : vector<32x1xf32>
    %57 = arith.subf %55, %56 : vector<32x1xf32>
    %c0_27 = arith.constant 0 : index
    %c0_28 = arith.constant 0 : index
    %58 = vector.load %arg3[%c0_27, %c0_28] : memref<32x1xf32, #tpu.memory_space<vmem>>, vector<32x1xf32>
    %cst_29 = arith.constant 9.99999974E-6 : f32
    %59 = vector.broadcast %cst_29 : f32 to vector<32x1xf32>
    %60 = arith.addf %57, %59 : vector<32x1xf32>
    %61 = math.sqrt %60 : vector<32x1xf32>
    %62 = arith.divf %58, %61 : vector<32x1xf32>
    %c0_30 = arith.constant 0 : index
    %c0_31 = arith.constant 0 : index
    %63 = vector.load %arg4[%c0_30, %c0_31] : memref<32x1xf32, #tpu.memory_space<vmem>>, vector<32x1xf32>
    %64 = arith.mulf %53, %62 : vector<32x1xf32>
    %65 = arith.subf %63, %64 : vector<32x1xf32>
    %66 = vector.broadcast %62 : vector<32x1xf32> to vector<32x32xf32>
    %67 = arith.mulf %8, %66 : vector<32x32xf32>
    %68 = vector.broadcast %65 : vector<32x1xf32> to vector<32x32xf32>
    %69 = arith.addf %67, %68 : vector<32x32xf32>
    %cst_32 = arith.constant 0.000000e+00 : f32
    %70 = vector.broadcast %cst_32 : f32 to vector<32x32xf32>
    %71 = arith.maximumf %69, %70 : vector<32x32xf32>
    %c0_33 = arith.constant 0 : index
    %c0_34 = arith.constant 0 : index
    %c0_35 = arith.constant 0 : index
    %72 = vector.load %arg5[%c0_33, %c0_34, %c0_35] : memref<4x32x32xf32, #tpu.memory_space<vmem>>, vector<1x32x32xf32>
    %73 = vector.shape_cast %72 : vector<1x32x32xf32> to vector<32x32xf32>
    %74 = vector.shape_cast %71 : vector<32x32xf32> to vector<1x32x32xf32>
    tpu.vector_store %arg5[%c0_33, %c0_34, %c0_35], %74 {strides = array<i32>} : memref<4x32x32xf32, #tpu.memory_space<vmem>>, vector<1x32x32xf32>,
    %75 = vector.broadcast %62 : vector<32x1xf32> to vector<32x32xf32>
    %76 = arith.mulf %20, %75 : vector<32x32xf32>
    %77 = vector.broadcast %65 : vector<32x1xf32> to vector<32x32xf32>
    %78 = arith.addf %76, %77 : vector<32x32xf32>
    %cst_36 = arith.constant 0.000000e+00 : f32
    %79 = vector.broadcast %cst_36 : f32 to vector<32x32xf32>
    %80 = arith.maximumf %78, %79 : vector<32x32xf32>
    %c1_37 = arith.constant 1 : index
    %c0_38 = arith.constant 0 : index
    %c0_39 = arith.constant 0 : index
    %81 = vector.load %arg5[%c1_37, %c0_38, %c0_39] : memref<4x32x32xf32, #tpu.memory_space<vmem>>, vector<1x32x32xf32>
    %82 = vector.shape_cast %81 : vector<1x32x32xf32> to vector<32x32xf32>
    %83 = vector.shape_cast %80 : vector<32x32xf32> to vector<1x32x32xf32>
    tpu.vector_store %arg5[%c1_37, %c0_38, %c0_39], %83 {strides = array<i32>} : memref<4x32x32xf32, #tpu.memory_space<vmem>>, vector<1x32x32xf32>,
    %84 = vector.broadcast %62 : vector<32x1xf32> to vector<32x32xf32>
    %85 = arith.mulf %32, %84 : vector<32x32xf32>
    %86 = vector.broadcast %65 : vector<32x1xf32> to vector<32x32xf32>
    %87 = arith.addf %85, %86 : vector<32x32xf32>
    %cst_40 = arith.constant 0.000000e+00 : f32
    %88 = vector.broadcast %cst_40 : f32 to vector<32x32xf32>
    %89 = arith.maximumf %87, %88 : vector<32x32xf32>
    %c2_41 = arith.constant 2 : index
    %c0_42 = arith.constant 0 : index
    %c0_43 = arith.constant 0 : index
    %90 = vector.load %arg5[%c2_41, %c0_42, %c0_43] : memref<4x32x32xf32, #tpu.memory_space<vmem>>, vector<1x32x32xf32>
    %91 = vector.shape_cast %90 : vector<1x32x32xf32> to vector<32x32xf32>
    %92 = vector.shape_cast %89 : vector<32x32xf32> to vector<1x32x32xf32>
    tpu.vector_store %arg5[%c2_41, %c0_42, %c0_43], %92 {strides = array<i32>} : memref<4x32x32xf32, #tpu.memory_space<vmem>>, vector<1x32x32xf32>,
    %93 = vector.broadcast %62 : vector<32x1xf32> to vector<32x32xf32>
    %94 = arith.mulf %44, %93 : vector<32x32xf32>
    %95 = vector.broadcast %65 : vector<32x1xf32> to vector<32x32xf32>
    %96 = arith.addf %94, %95 : vector<32x32xf32>
    %cst_44 = arith.constant 0.000000e+00 : f32
    %97 = vector.broadcast %cst_44 : f32 to vector<32x32xf32>
    %98 = arith.maximumf %96, %97 : vector<32x32xf32>
    %c3_45 = arith.constant 3 : index
    %c0_46 = arith.constant 0 : index
    %c0_47 = arith.constant 0 : index
    %99 = vector.load %arg5[%c3_45, %c0_46, %c0_47] : memref<4x32x32xf32, #tpu.memory_space<vmem>>, vector<1x32x32xf32>
    %100 = vector.shape_cast %99 : vector<1x32x32xf32> to vector<32x32xf32>
    %101 = vector.shape_cast %98 : vector<32x32xf32> to vector<1x32x32xf32>
    tpu.vector_store %arg5[%c3_45, %c0_46, %c0_47], %101 {strides = array<i32>} : memref<4x32x32xf32, #tpu.memory_space<vmem>>, vector<1x32x32xf32>,
    return
  }
}

module attributes {stable_mosaic.version = 11 : i64} {
  func.func @_dec_block_kernel(%arg0: memref<4x16x288xbf16, #tpu.memory_space<vmem>>, %arg1: memref<288x128xbf16, #tpu.memory_space<vmem>>, %arg2: memref<16x1xf32, #tpu.memory_space<vmem>>, %arg3: memref<16x1xf32, #tpu.memory_space<vmem>>, %arg4: memref<16x1xf32, #tpu.memory_space<vmem>>, %arg5: memref<4x16x128xf32, #tpu.memory_space<vmem>>) attributes {dimension_semantics = [], scalar_prefetch = 0 : i64, scratch_operands = 0 : i64, tpu.core_type = #tpu.core_type<tc>} {
    %c0 = arith.constant 0 : index
    %c0_0 = arith.constant 0 : index
    %0 = vector.load %arg1[%c0, %c0_0] : memref<288x128xbf16, #tpu.memory_space<vmem>>, vector<288x128xbf16>
    %c0_1 = arith.constant 0 : index
    %c0_2 = arith.constant 0 : index
    %1 = vector.load %arg2[%c0_1, %c0_2] : memref<16x1xf32, #tpu.memory_space<vmem>>, vector<16x1xf32>
    %cst = arith.constant 0.000000e+00 : f32
    %2 = vector.broadcast %cst : f32 to vector<16x1xf32>
    %cst_3 = arith.constant 0.000000e+00 : f32
    %3 = vector.broadcast %cst_3 : f32 to vector<16x1xf32>
    %c0_4 = arith.constant 0 : index
    %c0_5 = arith.constant 0 : index
    %c0_6 = arith.constant 0 : index
    %4 = vector.load %arg0[%c0_4, %c0_5, %c0_6] : memref<4x16x288xbf16, #tpu.memory_space<vmem>>, vector<1x16x288xbf16>
    %5 = vector.shape_cast %4 : vector<1x16x288xbf16> to vector<16x288xbf16>
    %cst_7 = arith.constant dense<0.000000e+00> : vector<16x128xf32>
    %6 = tpu.matmul %5, %0, %cst_7 {dimension_numbers = #tpu.dot_dimension_numbers<[1], [0], [0], [1], [0, 0, 1, 1], [], []>} : vector<16x288xbf16>, vector<288x128xbf16>, vector<16x128xf32> -> vector<16x128xf32>
    %7 = vector.broadcast %1 : vector<16x1xf32> to vector<16x128xf32>
    %8 = arith.addf %6, %7 : vector<16x128xf32>
    %cst_8 = arith.constant dense<0.000000e+00> : vector<16xf32>
    %9 = vector.multi_reduction <add>, %8, %cst_8 [1] : vector<16x128xf32> to vector<16xf32>
    %10 = vector.shape_cast %9 : vector<16xf32> to vector<16x1xf32>
    %11 = arith.addf %2, %10 : vector<16x1xf32>
    %12 = arith.mulf %8, %8 : vector<16x128xf32>
    %cst_9 = arith.constant dense<0.000000e+00> : vector<16xf32>
    %13 = vector.multi_reduction <add>, %12, %cst_9 [1] : vector<16x128xf32> to vector<16xf32>
    %14 = vector.shape_cast %13 : vector<16xf32> to vector<16x1xf32>
    %15 = arith.addf %3, %14 : vector<16x1xf32>
    %c1 = arith.constant 1 : index
    %c0_10 = arith.constant 0 : index
    %c0_11 = arith.constant 0 : index
    %16 = vector.load %arg0[%c1, %c0_10, %c0_11] : memref<4x16x288xbf16, #tpu.memory_space<vmem>>, vector<1x16x288xbf16>
    %17 = vector.shape_cast %16 : vector<1x16x288xbf16> to vector<16x288xbf16>
    %cst_12 = arith.constant dense<0.000000e+00> : vector<16x128xf32>
    %18 = tpu.matmul %17, %0, %cst_12 {dimension_numbers = #tpu.dot_dimension_numbers<[1], [0], [0], [1], [0, 0, 1, 1], [], []>} : vector<16x288xbf16>, vector<288x128xbf16>, vector<16x128xf32> -> vector<16x128xf32>
    %19 = vector.broadcast %1 : vector<16x1xf32> to vector<16x128xf32>
    %20 = arith.addf %18, %19 : vector<16x128xf32>
    %cst_13 = arith.constant dense<0.000000e+00> : vector<16xf32>
    %21 = vector.multi_reduction <add>, %20, %cst_13 [1] : vector<16x128xf32> to vector<16xf32>
    %22 = vector.shape_cast %21 : vector<16xf32> to vector<16x1xf32>
    %23 = arith.addf %11, %22 : vector<16x1xf32>
    %24 = arith.mulf %20, %20 : vector<16x128xf32>
    %cst_14 = arith.constant dense<0.000000e+00> : vector<16xf32>
    %25 = vector.multi_reduction <add>, %24, %cst_14 [1] : vector<16x128xf32> to vector<16xf32>
    %26 = vector.shape_cast %25 : vector<16xf32> to vector<16x1xf32>
    %27 = arith.addf %15, %26 : vector<16x1xf32>
    %c2 = arith.constant 2 : index
    %c0_15 = arith.constant 0 : index
    %c0_16 = arith.constant 0 : index
    %28 = vector.load %arg0[%c2, %c0_15, %c0_16] : memref<4x16x288xbf16, #tpu.memory_space<vmem>>, vector<1x16x288xbf16>
    %29 = vector.shape_cast %28 : vector<1x16x288xbf16> to vector<16x288xbf16>
    %cst_17 = arith.constant dense<0.000000e+00> : vector<16x128xf32>
    %30 = tpu.matmul %29, %0, %cst_17 {dimension_numbers = #tpu.dot_dimension_numbers<[1], [0], [0], [1], [0, 0, 1, 1], [], []>} : vector<16x288xbf16>, vector<288x128xbf16>, vector<16x128xf32> -> vector<16x128xf32>
    %31 = vector.broadcast %1 : vector<16x1xf32> to vector<16x128xf32>
    %32 = arith.addf %30, %31 : vector<16x128xf32>
    %cst_18 = arith.constant dense<0.000000e+00> : vector<16xf32>
    %33 = vector.multi_reduction <add>, %32, %cst_18 [1] : vector<16x128xf32> to vector<16xf32>
    %34 = vector.shape_cast %33 : vector<16xf32> to vector<16x1xf32>
    %35 = arith.addf %23, %34 : vector<16x1xf32>
    %36 = arith.mulf %32, %32 : vector<16x128xf32>
    %cst_19 = arith.constant dense<0.000000e+00> : vector<16xf32>
    %37 = vector.multi_reduction <add>, %36, %cst_19 [1] : vector<16x128xf32> to vector<16xf32>
    %38 = vector.shape_cast %37 : vector<16xf32> to vector<16x1xf32>
    %39 = arith.addf %27, %38 : vector<16x1xf32>
    %c3 = arith.constant 3 : index
    %c0_20 = arith.constant 0 : index
    %c0_21 = arith.constant 0 : index
    %40 = vector.load %arg0[%c3, %c0_20, %c0_21] : memref<4x16x288xbf16, #tpu.memory_space<vmem>>, vector<1x16x288xbf16>
    %41 = vector.shape_cast %40 : vector<1x16x288xbf16> to vector<16x288xbf16>
    %cst_22 = arith.constant dense<0.000000e+00> : vector<16x128xf32>
    %42 = tpu.matmul %41, %0, %cst_22 {dimension_numbers = #tpu.dot_dimension_numbers<[1], [0], [0], [1], [0, 0, 1, 1], [], []>} : vector<16x288xbf16>, vector<288x128xbf16>, vector<16x128xf32> -> vector<16x128xf32>
    %43 = vector.broadcast %1 : vector<16x1xf32> to vector<16x128xf32>
    %44 = arith.addf %42, %43 : vector<16x128xf32>
    %cst_23 = arith.constant dense<0.000000e+00> : vector<16xf32>
    %45 = vector.multi_reduction <add>, %44, %cst_23 [1] : vector<16x128xf32> to vector<16xf32>
    %46 = vector.shape_cast %45 : vector<16xf32> to vector<16x1xf32>
    %47 = arith.addf %35, %46 : vector<16x1xf32>
    %48 = arith.mulf %44, %44 : vector<16x128xf32>
    %cst_24 = arith.constant dense<0.000000e+00> : vector<16xf32>
    %49 = vector.multi_reduction <add>, %48, %cst_24 [1] : vector<16x128xf32> to vector<16xf32>
    %50 = vector.shape_cast %49 : vector<16xf32> to vector<16x1xf32>
    %51 = arith.addf %39, %50 : vector<16x1xf32>
    %cst_25 = arith.constant 5.120000e+02 : f32
    %52 = vector.broadcast %cst_25 : f32 to vector<16x1xf32>
    %53 = arith.divf %47, %52 : vector<16x1xf32>
    %cst_26 = arith.constant 5.120000e+02 : f32
    %54 = vector.broadcast %cst_26 : f32 to vector<16x1xf32>
    %55 = arith.divf %51, %54 : vector<16x1xf32>
    %56 = arith.mulf %53, %53 : vector<16x1xf32>
    %57 = arith.subf %55, %56 : vector<16x1xf32>
    %c0_27 = arith.constant 0 : index
    %c0_28 = arith.constant 0 : index
    %58 = vector.load %arg3[%c0_27, %c0_28] : memref<16x1xf32, #tpu.memory_space<vmem>>, vector<16x1xf32>
    %cst_29 = arith.constant 9.99999974E-6 : f32
    %59 = vector.broadcast %cst_29 : f32 to vector<16x1xf32>
    %60 = arith.addf %57, %59 : vector<16x1xf32>
    %61 = math.sqrt %60 : vector<16x1xf32>
    %62 = arith.divf %58, %61 : vector<16x1xf32>
    %c0_30 = arith.constant 0 : index
    %c0_31 = arith.constant 0 : index
    %63 = vector.load %arg4[%c0_30, %c0_31] : memref<16x1xf32, #tpu.memory_space<vmem>>, vector<16x1xf32>
    %64 = arith.mulf %53, %62 : vector<16x1xf32>
    %65 = arith.subf %63, %64 : vector<16x1xf32>
    %66 = vector.broadcast %62 : vector<16x1xf32> to vector<16x128xf32>
    %67 = arith.mulf %8, %66 : vector<16x128xf32>
    %68 = vector.broadcast %65 : vector<16x1xf32> to vector<16x128xf32>
    %69 = arith.addf %67, %68 : vector<16x128xf32>
    %cst_32 = arith.constant 0.000000e+00 : f32
    %70 = vector.broadcast %cst_32 : f32 to vector<16x128xf32>
    %71 = arith.maximumf %69, %70 : vector<16x128xf32>
    %c0_33 = arith.constant 0 : index
    %c0_34 = arith.constant 0 : index
    %c0_35 = arith.constant 0 : index
    %72 = vector.load %arg5[%c0_33, %c0_34, %c0_35] : memref<4x16x128xf32, #tpu.memory_space<vmem>>, vector<1x16x128xf32>
    %73 = vector.shape_cast %72 : vector<1x16x128xf32> to vector<16x128xf32>
    %74 = vector.shape_cast %71 : vector<16x128xf32> to vector<1x16x128xf32>
    tpu.vector_store %arg5[%c0_33, %c0_34, %c0_35], %74 {strides = array<i32>} : memref<4x16x128xf32, #tpu.memory_space<vmem>>, vector<1x16x128xf32>,
    %75 = vector.broadcast %62 : vector<16x1xf32> to vector<16x128xf32>
    %76 = arith.mulf %20, %75 : vector<16x128xf32>
    %77 = vector.broadcast %65 : vector<16x1xf32> to vector<16x128xf32>
    %78 = arith.addf %76, %77 : vector<16x128xf32>
    %cst_36 = arith.constant 0.000000e+00 : f32
    %79 = vector.broadcast %cst_36 : f32 to vector<16x128xf32>
    %80 = arith.maximumf %78, %79 : vector<16x128xf32>
    %c1_37 = arith.constant 1 : index
    %c0_38 = arith.constant 0 : index
    %c0_39 = arith.constant 0 : index
    %81 = vector.load %arg5[%c1_37, %c0_38, %c0_39] : memref<4x16x128xf32, #tpu.memory_space<vmem>>, vector<1x16x128xf32>
    %82 = vector.shape_cast %81 : vector<1x16x128xf32> to vector<16x128xf32>
    %83 = vector.shape_cast %80 : vector<16x128xf32> to vector<1x16x128xf32>
    tpu.vector_store %arg5[%c1_37, %c0_38, %c0_39], %83 {strides = array<i32>} : memref<4x16x128xf32, #tpu.memory_space<vmem>>, vector<1x16x128xf32>,
    %84 = vector.broadcast %62 : vector<16x1xf32> to vector<16x128xf32>
    %85 = arith.mulf %32, %84 : vector<16x128xf32>
    %86 = vector.broadcast %65 : vector<16x1xf32> to vector<16x128xf32>
    %87 = arith.addf %85, %86 : vector<16x128xf32>
    %cst_40 = arith.constant 0.000000e+00 : f32
    %88 = vector.broadcast %cst_40 : f32 to vector<16x128xf32>
    %89 = arith.maximumf %87, %88 : vector<16x128xf32>
    %c2_41 = arith.constant 2 : index
    %c0_42 = arith.constant 0 : index
    %c0_43 = arith.constant 0 : index
    %90 = vector.load %arg5[%c2_41, %c0_42, %c0_43] : memref<4x16x128xf32, #tpu.memory_space<vmem>>, vector<1x16x128xf32>
    %91 = vector.shape_cast %90 : vector<1x16x128xf32> to vector<16x128xf32>
    %92 = vector.shape_cast %89 : vector<16x128xf32> to vector<1x16x128xf32>
    tpu.vector_store %arg5[%c2_41, %c0_42, %c0_43], %92 {strides = array<i32>} : memref<4x16x128xf32, #tpu.memory_space<vmem>>, vector<1x16x128xf32>,
    %93 = vector.broadcast %62 : vector<16x1xf32> to vector<16x128xf32>
    %94 = arith.mulf %44, %93 : vector<16x128xf32>
    %95 = vector.broadcast %65 : vector<16x1xf32> to vector<16x128xf32>
    %96 = arith.addf %94, %95 : vector<16x128xf32>
    %cst_44 = arith.constant 0.000000e+00 : f32
    %97 = vector.broadcast %cst_44 : f32 to vector<16x128xf32>
    %98 = arith.maximumf %96, %97 : vector<16x128xf32>
    %c3_45 = arith.constant 3 : index
    %c0_46 = arith.constant 0 : index
    %c0_47 = arith.constant 0 : index
    %99 = vector.load %arg5[%c3_45, %c0_46, %c0_47] : memref<4x16x128xf32, #tpu.memory_space<vmem>>, vector<1x16x128xf32>
    %100 = vector.shape_cast %99 : vector<1x16x128xf32> to vector<16x128xf32>
    %101 = vector.shape_cast %98 : vector<16x128xf32> to vector<1x16x128xf32>
    tpu.vector_store %arg5[%c3_45, %c0_46, %c0_47], %101 {strides = array<i32>} : memref<4x16x128xf32, #tpu.memory_space<vmem>>, vector<1x16x128xf32>,
    return
  }
}

module attributes {stable_mosaic.version = 11 : i64} {
  func.func @_dec_block_kernel(%arg0: memref<4x8x144xbf16, #tpu.memory_space<vmem>>, %arg1: memref<144x512xbf16, #tpu.memory_space<vmem>>, %arg2: memref<8x1xf32, #tpu.memory_space<vmem>>, %arg3: memref<8x1xf32, #tpu.memory_space<vmem>>, %arg4: memref<8x1xf32, #tpu.memory_space<vmem>>, %arg5: memref<4x8x512xf32, #tpu.memory_space<vmem>>) attributes {dimension_semantics = [], scalar_prefetch = 0 : i64, scratch_operands = 0 : i64, tpu.core_type = #tpu.core_type<tc>} {
    %c0 = arith.constant 0 : index
    %c0_0 = arith.constant 0 : index
    %0 = vector.load %arg1[%c0, %c0_0] : memref<144x512xbf16, #tpu.memory_space<vmem>>, vector<144x512xbf16>
    %c0_1 = arith.constant 0 : index
    %c0_2 = arith.constant 0 : index
    %1 = vector.load %arg2[%c0_1, %c0_2] : memref<8x1xf32, #tpu.memory_space<vmem>>, vector<8x1xf32>
    %cst = arith.constant 0.000000e+00 : f32
    %2 = vector.broadcast %cst : f32 to vector<8x1xf32>
    %cst_3 = arith.constant 0.000000e+00 : f32
    %3 = vector.broadcast %cst_3 : f32 to vector<8x1xf32>
    %c0_4 = arith.constant 0 : index
    %c0_5 = arith.constant 0 : index
    %c0_6 = arith.constant 0 : index
    %4 = vector.load %arg0[%c0_4, %c0_5, %c0_6] : memref<4x8x144xbf16, #tpu.memory_space<vmem>>, vector<1x8x144xbf16>
    %5 = vector.shape_cast %4 : vector<1x8x144xbf16> to vector<8x144xbf16>
    %cst_7 = arith.constant dense<0.000000e+00> : vector<8x512xf32>
    %6 = tpu.matmul %5, %0, %cst_7 {dimension_numbers = #tpu.dot_dimension_numbers<[1], [0], [0], [1], [0, 0, 1, 1], [], []>} : vector<8x144xbf16>, vector<144x512xbf16>, vector<8x512xf32> -> vector<8x512xf32>
    %7 = vector.broadcast %1 : vector<8x1xf32> to vector<8x512xf32>
    %8 = arith.addf %6, %7 : vector<8x512xf32>
    %cst_8 = arith.constant dense<0.000000e+00> : vector<8xf32>
    %9 = vector.multi_reduction <add>, %8, %cst_8 [1] : vector<8x512xf32> to vector<8xf32>
    %10 = vector.shape_cast %9 : vector<8xf32> to vector<8x1xf32>
    %11 = arith.addf %2, %10 : vector<8x1xf32>
    %12 = arith.mulf %8, %8 : vector<8x512xf32>
    %cst_9 = arith.constant dense<0.000000e+00> : vector<8xf32>
    %13 = vector.multi_reduction <add>, %12, %cst_9 [1] : vector<8x512xf32> to vector<8xf32>
    %14 = vector.shape_cast %13 : vector<8xf32> to vector<8x1xf32>
    %15 = arith.addf %3, %14 : vector<8x1xf32>
    %c1 = arith.constant 1 : index
    %c0_10 = arith.constant 0 : index
    %c0_11 = arith.constant 0 : index
    %16 = vector.load %arg0[%c1, %c0_10, %c0_11] : memref<4x8x144xbf16, #tpu.memory_space<vmem>>, vector<1x8x144xbf16>
    %17 = vector.shape_cast %16 : vector<1x8x144xbf16> to vector<8x144xbf16>
    %cst_12 = arith.constant dense<0.000000e+00> : vector<8x512xf32>
    %18 = tpu.matmul %17, %0, %cst_12 {dimension_numbers = #tpu.dot_dimension_numbers<[1], [0], [0], [1], [0, 0, 1, 1], [], []>} : vector<8x144xbf16>, vector<144x512xbf16>, vector<8x512xf32> -> vector<8x512xf32>
    %19 = vector.broadcast %1 : vector<8x1xf32> to vector<8x512xf32>
    %20 = arith.addf %18, %19 : vector<8x512xf32>
    %cst_13 = arith.constant dense<0.000000e+00> : vector<8xf32>
    %21 = vector.multi_reduction <add>, %20, %cst_13 [1] : vector<8x512xf32> to vector<8xf32>
    %22 = vector.shape_cast %21 : vector<8xf32> to vector<8x1xf32>
    %23 = arith.addf %11, %22 : vector<8x1xf32>
    %24 = arith.mulf %20, %20 : vector<8x512xf32>
    %cst_14 = arith.constant dense<0.000000e+00> : vector<8xf32>
    %25 = vector.multi_reduction <add>, %24, %cst_14 [1] : vector<8x512xf32> to vector<8xf32>
    %26 = vector.shape_cast %25 : vector<8xf32> to vector<8x1xf32>
    %27 = arith.addf %15, %26 : vector<8x1xf32>
    %c2 = arith.constant 2 : index
    %c0_15 = arith.constant 0 : index
    %c0_16 = arith.constant 0 : index
    %28 = vector.load %arg0[%c2, %c0_15, %c0_16] : memref<4x8x144xbf16, #tpu.memory_space<vmem>>, vector<1x8x144xbf16>
    %29 = vector.shape_cast %28 : vector<1x8x144xbf16> to vector<8x144xbf16>
    %cst_17 = arith.constant dense<0.000000e+00> : vector<8x512xf32>
    %30 = tpu.matmul %29, %0, %cst_17 {dimension_numbers = #tpu.dot_dimension_numbers<[1], [0], [0], [1], [0, 0, 1, 1], [], []>} : vector<8x144xbf16>, vector<144x512xbf16>, vector<8x512xf32> -> vector<8x512xf32>
    %31 = vector.broadcast %1 : vector<8x1xf32> to vector<8x512xf32>
    %32 = arith.addf %30, %31 : vector<8x512xf32>
    %cst_18 = arith.constant dense<0.000000e+00> : vector<8xf32>
    %33 = vector.multi_reduction <add>, %32, %cst_18 [1] : vector<8x512xf32> to vector<8xf32>
    %34 = vector.shape_cast %33 : vector<8xf32> to vector<8x1xf32>
    %35 = arith.addf %23, %34 : vector<8x1xf32>
    %36 = arith.mulf %32, %32 : vector<8x512xf32>
    %cst_19 = arith.constant dense<0.000000e+00> : vector<8xf32>
    %37 = vector.multi_reduction <add>, %36, %cst_19 [1] : vector<8x512xf32> to vector<8xf32>
    %38 = vector.shape_cast %37 : vector<8xf32> to vector<8x1xf32>
    %39 = arith.addf %27, %38 : vector<8x1xf32>
    %c3 = arith.constant 3 : index
    %c0_20 = arith.constant 0 : index
    %c0_21 = arith.constant 0 : index
    %40 = vector.load %arg0[%c3, %c0_20, %c0_21] : memref<4x8x144xbf16, #tpu.memory_space<vmem>>, vector<1x8x144xbf16>
    %41 = vector.shape_cast %40 : vector<1x8x144xbf16> to vector<8x144xbf16>
    %cst_22 = arith.constant dense<0.000000e+00> : vector<8x512xf32>
    %42 = tpu.matmul %41, %0, %cst_22 {dimension_numbers = #tpu.dot_dimension_numbers<[1], [0], [0], [1], [0, 0, 1, 1], [], []>} : vector<8x144xbf16>, vector<144x512xbf16>, vector<8x512xf32> -> vector<8x512xf32>
    %43 = vector.broadcast %1 : vector<8x1xf32> to vector<8x512xf32>
    %44 = arith.addf %42, %43 : vector<8x512xf32>
    %cst_23 = arith.constant dense<0.000000e+00> : vector<8xf32>
    %45 = vector.multi_reduction <add>, %44, %cst_23 [1] : vector<8x512xf32> to vector<8xf32>
    %46 = vector.shape_cast %45 : vector<8xf32> to vector<8x1xf32>
    %47 = arith.addf %35, %46 : vector<8x1xf32>
    %48 = arith.mulf %44, %44 : vector<8x512xf32>
    %cst_24 = arith.constant dense<0.000000e+00> : vector<8xf32>
    %49 = vector.multi_reduction <add>, %48, %cst_24 [1] : vector<8x512xf32> to vector<8xf32>
    %50 = vector.shape_cast %49 : vector<8xf32> to vector<8x1xf32>
    %51 = arith.addf %39, %50 : vector<8x1xf32>
    %cst_25 = arith.constant 2.048000e+03 : f32
    %52 = vector.broadcast %cst_25 : f32 to vector<8x1xf32>
    %53 = arith.divf %47, %52 : vector<8x1xf32>
    %cst_26 = arith.constant 2.048000e+03 : f32
    %54 = vector.broadcast %cst_26 : f32 to vector<8x1xf32>
    %55 = arith.divf %51, %54 : vector<8x1xf32>
    %56 = arith.mulf %53, %53 : vector<8x1xf32>
    %57 = arith.subf %55, %56 : vector<8x1xf32>
    %c0_27 = arith.constant 0 : index
    %c0_28 = arith.constant 0 : index
    %58 = vector.load %arg3[%c0_27, %c0_28] : memref<8x1xf32, #tpu.memory_space<vmem>>, vector<8x1xf32>
    %cst_29 = arith.constant 9.99999974E-6 : f32
    %59 = vector.broadcast %cst_29 : f32 to vector<8x1xf32>
    %60 = arith.addf %57, %59 : vector<8x1xf32>
    %61 = math.sqrt %60 : vector<8x1xf32>
    %62 = arith.divf %58, %61 : vector<8x1xf32>
    %c0_30 = arith.constant 0 : index
    %c0_31 = arith.constant 0 : index
    %63 = vector.load %arg4[%c0_30, %c0_31] : memref<8x1xf32, #tpu.memory_space<vmem>>, vector<8x1xf32>
    %64 = arith.mulf %53, %62 : vector<8x1xf32>
    %65 = arith.subf %63, %64 : vector<8x1xf32>
    %66 = vector.broadcast %62 : vector<8x1xf32> to vector<8x512xf32>
    %67 = arith.mulf %8, %66 : vector<8x512xf32>
    %68 = vector.broadcast %65 : vector<8x1xf32> to vector<8x512xf32>
    %69 = arith.addf %67, %68 : vector<8x512xf32>
    %cst_32 = arith.constant 0.000000e+00 : f32
    %70 = vector.broadcast %cst_32 : f32 to vector<8x512xf32>
    %71 = arith.maximumf %69, %70 : vector<8x512xf32>
    %c0_33 = arith.constant 0 : index
    %c0_34 = arith.constant 0 : index
    %c0_35 = arith.constant 0 : index
    %72 = vector.load %arg5[%c0_33, %c0_34, %c0_35] : memref<4x8x512xf32, #tpu.memory_space<vmem>>, vector<1x8x512xf32>
    %73 = vector.shape_cast %72 : vector<1x8x512xf32> to vector<8x512xf32>
    %74 = vector.shape_cast %71 : vector<8x512xf32> to vector<1x8x512xf32>
    tpu.vector_store %arg5[%c0_33, %c0_34, %c0_35], %74 {strides = array<i32>} : memref<4x8x512xf32, #tpu.memory_space<vmem>>, vector<1x8x512xf32>,
    %75 = vector.broadcast %62 : vector<8x1xf32> to vector<8x512xf32>
    %76 = arith.mulf %20, %75 : vector<8x512xf32>
    %77 = vector.broadcast %65 : vector<8x1xf32> to vector<8x512xf32>
    %78 = arith.addf %76, %77 : vector<8x512xf32>
    %cst_36 = arith.constant 0.000000e+00 : f32
    %79 = vector.broadcast %cst_36 : f32 to vector<8x512xf32>
    %80 = arith.maximumf %78, %79 : vector<8x512xf32>
    %c1_37 = arith.constant 1 : index
    %c0_38 = arith.constant 0 : index
    %c0_39 = arith.constant 0 : index
    %81 = vector.load %arg5[%c1_37, %c0_38, %c0_39] : memref<4x8x512xf32, #tpu.memory_space<vmem>>, vector<1x8x512xf32>
    %82 = vector.shape_cast %81 : vector<1x8x512xf32> to vector<8x512xf32>
    %83 = vector.shape_cast %80 : vector<8x512xf32> to vector<1x8x512xf32>
    tpu.vector_store %arg5[%c1_37, %c0_38, %c0_39], %83 {strides = array<i32>} : memref<4x8x512xf32, #tpu.memory_space<vmem>>, vector<1x8x512xf32>,
    %84 = vector.broadcast %62 : vector<8x1xf32> to vector<8x512xf32>
    %85 = arith.mulf %32, %84 : vector<8x512xf32>
    %86 = vector.broadcast %65 : vector<8x1xf32> to vector<8x512xf32>
    %87 = arith.addf %85, %86 : vector<8x512xf32>
    %cst_40 = arith.constant 0.000000e+00 : f32
    %88 = vector.broadcast %cst_40 : f32 to vector<8x512xf32>
    %89 = arith.maximumf %87, %88 : vector<8x512xf32>
    %c2_41 = arith.constant 2 : index
    %c0_42 = arith.constant 0 : index
    %c0_43 = arith.constant 0 : index
    %90 = vector.load %arg5[%c2_41, %c0_42, %c0_43] : memref<4x8x512xf32, #tpu.memory_space<vmem>>, vector<1x8x512xf32>
    %91 = vector.shape_cast %90 : vector<1x8x512xf32> to vector<8x512xf32>
    %92 = vector.shape_cast %89 : vector<8x512xf32> to vector<1x8x512xf32>
    tpu.vector_store %arg5[%c2_41, %c0_42, %c0_43], %92 {strides = array<i32>} : memref<4x8x512xf32, #tpu.memory_space<vmem>>, vector<1x8x512xf32>,
    %93 = vector.broadcast %62 : vector<8x1xf32> to vector<8x512xf32>
    %94 = arith.mulf %44, %93 : vector<8x512xf32>
    %95 = vector.broadcast %65 : vector<8x1xf32> to vector<8x512xf32>
    %96 = arith.addf %94, %95 : vector<8x512xf32>
    %cst_44 = arith.constant 0.000000e+00 : f32
    %97 = vector.broadcast %cst_44 : f32 to vector<8x512xf32>
    %98 = arith.maximumf %96, %97 : vector<8x512xf32>
    %c3_45 = arith.constant 3 : index
    %c0_46 = arith.constant 0 : index
    %c0_47 = arith.constant 0 : index
    %99 = vector.load %arg5[%c3_45, %c0_46, %c0_47] : memref<4x8x512xf32, #tpu.memory_space<vmem>>, vector<1x8x512xf32>
    %100 = vector.shape_cast %99 : vector<1x8x512xf32> to vector<8x512xf32>
    %101 = vector.shape_cast %98 : vector<8x512xf32> to vector<1x8x512xf32>
    tpu.vector_store %arg5[%c3_45, %c0_46, %c0_47], %101 {strides = array<i32>} : memref<4x8x512xf32, #tpu.memory_space<vmem>>, vector<1x8x512xf32>,
    return
  }
}

module attributes {stable_mosaic.version = 11 : i64} {
  func.func @_dec_final_kernel(%arg0: memref<4x72xbf16, #tpu.memory_space<vmem>>, %arg1: memref<72x2048xbf16, #tpu.memory_space<vmem>>, %arg2: memref<4x1xf32, #tpu.memory_space<vmem>>, %arg3: memref<4x2048xf32, #tpu.memory_space<vmem>>, %arg4: memref<4x2048xf32, #tpu.memory_space<vmem>>, %arg5: memref<1x1xf32, #tpu.memory_space<vmem>>) attributes {dimension_semantics = [], scalar_prefetch = 0 : i64, scratch_operands = 0 : i64, tpu.core_type = #tpu.core_type<tc>} {
    %c0 = arith.constant 0 : index
    %c0_0 = arith.constant 0 : index
    %0 = vector.load %arg0[%c0, %c0_0] : memref<4x72xbf16, #tpu.memory_space<vmem>>, vector<4x72xbf16>
    %c0_1 = arith.constant 0 : index
    %c0_2 = arith.constant 0 : index
    %1 = vector.load %arg1[%c0_1, %c0_2] : memref<72x2048xbf16, #tpu.memory_space<vmem>>, vector<72x2048xbf16>
    %cst = arith.constant dense<0.000000e+00> : vector<4x2048xf32>
    %2 = tpu.matmul %0, %1, %cst {dimension_numbers = #tpu.dot_dimension_numbers<[1], [0], [0], [1], [0, 0, 1, 1], [], []>} : vector<4x72xbf16>, vector<72x2048xbf16>, vector<4x2048xf32> -> vector<4x2048xf32>
    %c0_3 = arith.constant 0 : index
    %c0_4 = arith.constant 0 : index
    %3 = vector.load %arg2[%c0_3, %c0_4] : memref<4x1xf32, #tpu.memory_space<vmem>>, vector<4x1xf32>
    %4 = vector.broadcast %3 : vector<4x1xf32> to vector<4x2048xf32>
    %5 = arith.addf %2, %4 : vector<4x2048xf32>
    %6 = arith.negf %5 : vector<4x2048xf32>
    %7 = math.exp %6 : vector<4x2048xf32>
    %cst_5 = arith.constant 1.000000e+00 : f32
    %8 = vector.broadcast %cst_5 : f32 to vector<4x2048xf32>
    %9 = arith.addf %8, %7 : vector<4x2048xf32>
    %10 = arith.divf %8, %9 : vector<4x2048xf32>
    %c0_6 = arith.constant 0 : index
    %c0_7 = arith.constant 0 : index
    %11 = vector.load %arg4[%c0_6, %c0_7] : memref<4x2048xf32, #tpu.memory_space<vmem>>, vector<4x2048xf32>
    tpu.vector_store %arg4[%c0_6, %c0_7], %10 {strides = array<i32>} : memref<4x2048xf32, #tpu.memory_space<vmem>>, vector<4x2048xf32>,
    %c0_8 = arith.constant 0 : index
    %c0_9 = arith.constant 0 : index
    %12 = vector.load %arg3[%c0_8, %c0_9] : memref<4x2048xf32, #tpu.memory_space<vmem>>, vector<4x2048xf32>
    %cst_10 = arith.constant 1.000000e-15 : f32
    %13 = vector.broadcast %cst_10 : f32 to vector<4x2048xf32>
    %14 = arith.addf %10, %13 : vector<4x2048xf32>
    %15 = math.log %14 : vector<4x2048xf32>
    %16 = arith.mulf %12, %15 : vector<4x2048xf32>
    %cst_11 = arith.constant 1.000000e+00 : f32
    %17 = vector.broadcast %cst_11 : f32 to vector<4x2048xf32>
    %18 = arith.subf %17, %12 : vector<4x2048xf32>
    %cst_12 = arith.constant 1.000000e+00 : f32
    %19 = vector.broadcast %cst_12 : f32 to vector<4x2048xf32>
    %20 = arith.subf %19, %10 : vector<4x2048xf32>
    %cst_13 = arith.constant 1.000000e-15 : f32
    %21 = vector.broadcast %cst_13 : f32 to vector<4x2048xf32>
    %22 = arith.addf %20, %21 : vector<4x2048xf32>
    %23 = math.log %22 : vector<4x2048xf32>
    %24 = arith.mulf %18, %23 : vector<4x2048xf32>
    %25 = arith.addf %16, %24 : vector<4x2048xf32>
    %26 = vector.shape_cast %25 : vector<4x2048xf32> to vector<1x4x2048xf32>
    %cst_14 = arith.constant dense<0.000000e+00> : vector<1xf32>
    %27 = vector.multi_reduction <add>, %26, %cst_14 [1, 2] : vector<1x4x2048xf32> to vector<1xf32>
    %28 = vector.shape_cast %27 : vector<1xf32> to vector<1x1x1xf32>
    %29 = vector.extract %28[0, 0, 0] : f32 from vector<1x1x1xf32>
    %30 = vector.broadcast %29 : f32 to vector<1x1xf32>
    %c0_15 = arith.constant 0 : index
    %c0_16 = arith.constant 0 : index
    %31 = vector.load %arg5[%c0_15, %c0_16] : memref<1x1xf32, #tpu.memory_space<vmem>>, vector<1x1xf32>
    tpu.vector_store %arg5[%c0_15, %c0_16], %30 {strides = array<i32>} : memref<1x1xf32, #tpu.memory_space<vmem>>, vector<1x1xf32>,
    return
  }
}

</mosaic_0001>

<llo_original>
// kernel: vae_forward.9
$region0: #{vae_forward.9}
  #allocation0 [shape = 'u32[]', space=smem, size = 0x4, offset = 0x4, fixed_abs, tag = 'smem constant byte address 0x4 - core index']
  #allocation1 [shape = 'u32[72,128]{1,0:T(1,128)}', space=vmem, size = 0x9000, scoped, tag = 'internal scratch']
  %s0 = inlined_call_operand.vmem [shape: bf16[8,9], index: 0, kind: input, shape index: {}]
  %s1 = inlined_call_operand.vmem [shape: bf16[4,9,2048], index: 1, kind: input, shape index: {}]
  %s2 = inlined_call_operand.vmem [shape: f32[8,1], index: 2, kind: input, shape index: {}]
  %s3 = inlined_call_operand.vmem [shape: f32[8,1], index: 3, kind: input, shape index: {}]
  %s4 = inlined_call_operand.vmem [shape: f32[8,1], index: 4, kind: input, shape index: {}]
  %s5 = inlined_call_operand.vmem [shape: f32[8,2048], index: 5, kind: output, shape index: {}]
  %s6 = sld [smem:[#allocation0]]
  $region30: #{vae_forward.9} parent=0
    _
  %s8 = ssub.s32 1, %s6
  %s9 = scalar_select 0, %s8, %s6
  // Predicated region
  $region2: #{vae_forward.9} parent=0 // pred_check
    _
  $region3: #{vae_forward.9} parent=0 // pred_check_branch
    %11 = sbr.rel (0) target = $region5
  $region4: #{vae_forward.9} parent=0 // pred_region
    _
  $region5: #{vae_forward.9} parent=0 // pred_fallthru
    _
  // Predicated region
  $region6: #{vae_forward.9} parent=0 // pred_check
    _
  $region7: #{vae_forward.9} parent=0 // pred_check_branch
    %13 = sbr.rel (0) target = $region9
  $region8: #{vae_forward.9} parent=0 // pred_region
    _
  $region9: #{vae_forward.9} parent=0 // pred_fallthru
    _
  // Predicated region
  $region10: #{vae_forward.9} parent=0 // pred_check
    _
  $region11: #{vae_forward.9} parent=0 // pred_check_branch
    %15 = sbr.rel (0) target = $region13
  $region12: #{vae_forward.9} parent=0 // pred_region
    _
  $region13: #{vae_forward.9} parent=0 // pred_fallthru
    _
  // Predicated region
  $region14: #{vae_forward.9} parent=0 // pred_check
    _
  $region15: #{vae_forward.9} parent=0 // pred_check_branch
    %17 = sbr.rel (0) target = $region17
  $region16: #{vae_forward.9} parent=0 // pred_region
    _
  $region17: #{vae_forward.9} parent=0 // pred_fallthru
    _
  // Predicated region
  $region18: #{vae_forward.9} parent=0 // pred_check
    _
  $region19: #{vae_forward.9} parent=0 // pred_check_branch
    %19 = sbr.rel (0) target = $region21
  $region20: #{vae_forward.9} parent=0 // pred_region
    _
  $region21: #{vae_forward.9} parent=0 // pred_fallthru
    _
  %v21 = vld [vmem:[%s0] sm:$0xf]
  %v22 = vld [vmem:[%s2] sm:$0xff]
  %v23 = vld [vmem:[%s1] sm:$0xff]
  %v24 = vld [vmem:[%s1 + $0x8] sm:$0xff]
  %v25 = vld [vmem:[%s1 + $0x10] sm:$0xff]
  %v26 = vld [vmem:[%s1 + $0x18] sm:$0xff]
  %v27 = vld [vmem:[%s1 + $0x20] sm:$0xff]
  %v28 = vld [vmem:[%s1 + $0x28] sm:$0xff]
  %v29 = vld [vmem:[%s1 + $0x30] sm:$0xff]
  %v30 = vld [vmem:[%s1 + $0x38] sm:$0xff]
  %v31 = vld [vmem:[%s1 + $0x40] sm:$0x11]
  %v32 = vld [vmem:[%s1 + $0x48] sm:$0x11]
  %v33 = vld [vmem:[%s1 + $0x50] sm:$0x11]
  %v34 = vld [vmem:[%s1 + $0x58] sm:$0x11]
  %v35 = vld [vmem:[%s1 + $0x60] sm:$0x11]
  %v36 = vld [vmem:[%s1 + $0x68] sm:$0x11]
  %v37 = vld [vmem:[%s1 + $0x70] sm:$0x11]
  %v38 = vld [vmem:[%s1 + $0x78] sm:$0x11]
  %40 = vset.pattern.permute.xlu0 0
  %41 = vperm.xlu0 %40, %v22
  %v42 = vpop.permute.xlu0 %41
  %v60 = vunpack.c.l.b16 %v23
  %v61 = vunpack.c.h.b16 %v23
  %v62 = vunpack.c.l.b16 %v24
  %v63 = vunpack.c.h.b16 %v24
  %v64 = vunpack.c.l.b16 %v25
  %v65 = vunpack.c.h.b16 %v25
  %v66 = vunpack.c.l.b16 %v26
  %v67 = vunpack.c.h.b16 %v26
  %v68 = vunpack.c.l.b16 %v27
  %v69 = vunpack.c.h.b16 %v27
  %v70 = vunpack.c.l.b16 %v28
  %v71 = vunpack.c.h.b16 %v28
  %v72 = vunpack.c.l.b16 %v29
  %v73 = vunpack.c.h.b16 %v29
  %v74 = vunpack.c.l.b16 %v30
  %v75 = vunpack.c.h.b16 %v30
  %v76 = vunpack.c.l.b16 %v31
  %v77 = vunpack.c.h.b16 %v31
  %v78 = vunpack.c.l.b16 %v32
  %v79 = vunpack.c.h.b16 %v32
  %v80 = vunpack.c.l.b16 %v33
  %v81 = vunpack.c.h.b16 %v33
  %v82 = vunpack.c.l.b16 %v34
  %v83 = vunpack.c.h.b16 %v34
  %v84 = vunpack.c.l.b16 %v35
  %v85 = vunpack.c.h.b16 %v35
  %v86 = vunpack.c.l.b16 %v36
  %v87 = vunpack.c.h.b16 %v36
  %v88 = vunpack.c.l.b16 %v37
  %v89 = vunpack.c.h.b16 %v37
  %v90 = vunpack.c.l.b16 %v38
  %v91 = vunpack.c.h.b16 %v38
  %v92 = vpack.c.b16 %v76, %v60
  %v93 = vpack.c.b16 %v77, %v61
  %v94 = vpack.c.b16 %v78, %v62
  %v95 = vpack.c.b16 %v79, %v63
  %v96 = vpack.c.b16 %v80, %v64
  %v97 = vpack.c.b16 %v81, %v65
  %v98 = vpack.c.b16 %v82, %v66
  %v99 = vpack.c.b16 %v83, %v67
  %v100 = vpack.c.b16 %v84, %v68
  %v101 = vpack.c.b16 %v85, %v69
  %v102 = vpack.c.b16 %v86, %v70
  %v103 = vpack.c.b16 %v87, %v71
  %v104 = vpack.c.b16 %v88, %v72
  %v105 = vpack.c.b16 %v89, %v73
  %v106 = vpack.c.b16 %v90, %v74
  %v107 = vpack.c.b16 %v91, %v75
  %vm108 = vcmask 72704
  %v110 = vsel %vm108, %v21, 0
  %vm112 = vcmask 1043456
  %vm113 = vcmask 1044480
  %v114 = vsel %vm112, 4294967295, 65535
  %v115 = vsel %vm113, %v114, 0
  %v117 = vand.u32 %v92, %v115
  %v120 = vand.u32 %v93, %v115
  %v123 = vand.u32 %v94, %v115
  %v126 = vand.u32 %v95, %v115
  %v129 = vand.u32 %v96, %v115
  %v132 = vand.u32 %v97, %v115
  %v135 = vand.u32 %v98, %v115
  %v138 = vand.u32 %v99, %v115
  %v141 = vand.u32 %v100, %v115
  %v144 = vand.u32 %v101, %v115
  %v147 = vand.u32 %v102, %v115
  %v150 = vand.u32 %v103, %v115
  %v153 = vand.u32 %v104, %v115
  %v156 = vand.u32 %v105, %v115
  %v159 = vand.u32 %v106, %v115
  %v162 = vand.u32 %v107, %v115
  %164 = vmatpush.bf16.msra.mxu0 0
  %165 = vmatpush.bf16.msra.mxu0 0
  %166 = vmatpush.bf16.msra.mxu0 0
  %167 = vmatpush.bf16.msra.mxu0 0
  %168 = vmatpush.bf16.msra.mxu0 0
  %169 = vmatpush.bf16.msra.mxu0 0
  %170 = vmatpush.bf16.msra.mxu0 0
  %171 = vmatpush.bf16.msra.mxu0 %v117
  %172 = vmatmul.bf16.gmra.mxu0 %v110
  %v173 = vpop.f32.mrf.mxu0
  %v174 = vadd.f32 %v42, %v173
  %v175 = vpop.f32.mrf.mxu0
  %176 = vdwg.mxu0
  %177 = vmatpush.bf16.msra.mxu0 0
  %178 = vmatpush.bf16.msra.mxu0 0
  %179 = vmatpush.bf16.msra.mxu0 0
  %180 = vmatpush.bf16.msra.mxu0 0
  %181 = vmatpush.bf16.msra.mxu0 0
  %182 = vmatpush.bf16.msra.mxu0 0
  %183 = vmatpush.bf16.msra.mxu0 0
  %184 = vmatpush.bf16.msra.mxu0 %v120
  %185 = vmatmul.bf16.gmra.mxu0 %v110
  %v186 = vpop.f32.mrf.mxu0
  %v187 = vadd.f32 %v42, %v186
  %v188 = vpop.f32.mrf.mxu0
  %189 = vdwg.mxu0
  %190 = vmatpush.bf16.msra.mxu0 0
  %191 = vmatpush.bf16.msra.mxu0 0
  %192 = vmatpush.bf16.msra.mxu0 0
  %193 = vmatpush.bf16.msra.mxu0 0
  %194 = vmatpush.bf16.msra.mxu0 0
  %195 = vmatpush.bf16.msra.mxu0 0
  %196 = vmatpush.bf16.msra.mxu0 0
  %197 = vmatpush.bf16.msra.mxu0 %v123
  %198 = vmatmul.bf16.gmra.mxu0 %v110
  %v199 = vpop.f32.mrf.mxu0
  %v200 = vadd.f32 %v42, %v199
  %v201 = vpop.f32.mrf.mxu0
  %202 = vdwg.mxu0
  %203 = vmatpush.bf16.msra.mxu0 0
  %204 = vmatpush.bf16.msra.mxu0 0
  %205 = vmatpush.bf16.msra.mxu0 0
  %206 = vmatpush.bf16.msra.mxu0 0
  %207 = vmatpush.bf16.msra.mxu0 0
  %208 = vmatpush.bf16.msra.mxu0 0
  %209 = vmatpush.bf16.msra.mxu0 0
  %210 = vmatpush.bf16.msra.mxu0 %v126
  %211 = vmatmul.bf16.gmra.mxu0 %v110
  %v212 = vpop.f32.mrf.mxu0
  %v213 = vadd.f32 %v42, %v212
  %v214 = vpop.f32.mrf.mxu0
  %215 = vdwg.mxu0
  %216 = vmatpush.bf16.msra.mxu0 0
  %217 = vmatpush.bf16.msra.mxu0 0
  %218 = vmatpush.bf16.msra.mxu0 0
  %219 = vmatpush.bf16.msra.mxu0 0
  %220 = vmatpush.bf16.msra.mxu0 0
  %221 = vmatpush.bf16.msra.mxu0 0
  %222 = vmatpush.bf16.msra.mxu0 0
  %223 = vmatpush.bf16.msra.mxu0 %v129
  %224 = vmatmul.bf16.gmra.mxu0 %v110
  %v225 = vpop.f32.mrf.mxu0
  %v226 = vadd.f32 %v42, %v225
  %v227 = vpop.f32.mrf.mxu0
  %228 = vdwg.mxu0
  %229 = vmatpush.bf16.msra.mxu0 0
  %230 = vmatpush.bf16.msra.mxu0 0
  %231 = vmatpush.bf16.msra.mxu0 0
  %232 = vmatpush.bf16.msra.mxu0 0
  %233 = vmatpush.bf16.msra.mxu0 0
  %234 = vmatpush.bf16.msra.mxu0 0
  %235 = vmatpush.bf16.msra.mxu0 0
  %236 = vmatpush.bf16.msra.mxu0 %v132
  %237 = vmatmul.bf16.gmra.mxu0 %v110
  %v238 = vpop.f32.mrf.mxu0
  %v239 = vadd.f32 %v42, %v238
  %v240 = vpop.f32.mrf.mxu0
  %241 = vdwg.mxu0
  %242 = vmatpush.bf16.msra.mxu0 0
  %243 = vmatpush.bf16.msra.mxu0 0
  %244 = vmatpush.bf16.msra.mxu0 0
  %245 = vmatpush.bf16.msra.mxu0 0
  %246 = vmatpush.bf16.msra.mxu0 0
  %247 = vmatpush.bf16.msra.mxu0 0
  %248 = vmatpush.bf16.msra.mxu0 0
  %249 = vmatpush.bf16.msra.mxu0 %v135
  %250 = vmatmul.bf16.gmra.mxu0 %v110
  %v251 = vpop.f32.mrf.mxu0
  %v252 = vadd.f32 %v42, %v251
  %v253 = vpop.f32.mrf.mxu0
  %254 = vdwg.mxu0
  %255 = vmatpush.bf16.msra.mxu0 0
  %256 = vmatpush.bf16.msra.mxu0 0
  %257 = vmatpush.bf16.msra.mxu0 0
  %258 = vmatpush.bf16.msra.mxu0 0
  %259 = vmatpush.bf16.msra.mxu0 0
  %260 = vmatpush.bf16.msra.mxu0 0
  %261 = vmatpush.bf16.msra.mxu0 0
  %262 = vmatpush.bf16.msra.mxu0 %v138
  %263 = vmatmul.bf16.gmra.mxu0 %v110
  %v264 = vpop.f32.mrf.mxu0
  %v265 = vadd.f32 %v42, %v264
  %v266 = vpop.f32.mrf.mxu0
  %267 = vdwg.mxu0
  %268 = vmatpush.bf16.msra.mxu0 0
  %269 = vmatpush.bf16.msra.mxu0 0
  %270 = vmatpush.bf16.msra.mxu0 0
  %271 = vmatpush.bf16.msra.mxu0 0
  %272 = vmatpush.bf16.msra.mxu0 0
  %273 = vmatpush.bf16.msra.mxu0 0
  %274 = vmatpush.bf16.msra.mxu0 0
  %275 = vmatpush.bf16.msra.mxu0 %v141
  %276 = vmatmul.bf16.gmra.mxu0 %v110
  %v277 = vpop.f32.mrf.mxu0
  %v278 = vadd.f32 %v42, %v277
  %v279 = vpop.f32.mrf.mxu0
  %280 = vdwg.mxu0
  %281 = vmatpush.bf16.msra.mxu0 0
  %282 = vmatpush.bf16.msra.mxu0 0
  %283 = vmatpush.bf16.msra.mxu0 0
  %284 = vmatpush.bf16.msra.mxu0 0
  %285 = vmatpush.bf16.msra.mxu0 0
  %286 = vmatpush.bf16.msra.mxu0 0
  %287 = vmatpush.bf16.msra.mxu0 0
  %288 = vmatpush.bf16.msra.mxu0 %v144
  %289 = vmatmul.bf16.gmra.mxu0 %v110
  %v290 = vpop.f32.mrf.mxu0
  %v291 = vadd.f32 %v42, %v290
  %v292 = vpop.f32.mrf.mxu0
  %293 = vdwg.mxu0
  %294 = vmatpush.bf16.msra.mxu0 0
  %295 = vmatpush.bf16.msra.mxu0 0
  %296 = vmatpush.bf16.msra.mxu0 0
  %297 = vmatpush.bf16.msra.mxu0 0
  %298 = vmatpush.bf16.msra.mxu0 0
  %299 = vmatpush.bf16.msra.mxu0 0
  %300 = vmatpush.bf16.msra.mxu0 0
  %301 = vmatpush.bf16.msra.mxu0 %v147
  %302 = vmatmul.bf16.gmra.mxu0 %v110
  %v303 = vpop.f32.mrf.mxu0
  %v304 = vadd.f32 %v42, %v303
  %v305 = vpop.f32.mrf.mxu0
  %306 = vdwg.mxu0
  %307 = vmatpush.bf16.msra.mxu0 0
  %308 = vmatpush.bf16.msra.mxu0 0
  %309 = vmatpush.bf16.msra.mxu0 0
  %310 = vmatpush.bf16.msra.mxu0 0
  %311 = vmatpush.bf16.msra.mxu0 0
  %312 = vmatpush.bf16.msra.mxu0 0
  %313 = vmatpush.bf16.msra.mxu0 0
  %314 = vmatpush.bf16.msra.mxu0 %v150
  %315 = vmatmul.bf16.gmra.mxu0 %v110
  %v316 = vpop.f32.mrf.mxu0
  %v317 = vadd.f32 %v42, %v316
  %v318 = vpop.f32.mrf.mxu0
  %319 = vdwg.mxu0
  %320 = vmatpush.bf16.msra.mxu0 0
  %321 = vmatpush.bf16.msra.mxu0 0
  %322 = vmatpush.bf16.msra.mxu0 0
  %323 = vmatpush.bf16.msra.mxu0 0
  %324 = vmatpush.bf16.msra.mxu0 0
  %325 = vmatpush.bf16.msra.mxu0 0
  %326 = vmatpush.bf16.msra.mxu0 0
  %327 = vmatpush.bf16.msra.mxu0 %v153
  %328 = vmatmul.bf16.gmra.mxu0 %v110
  %v329 = vpop.f32.mrf.mxu0
  %v330 = vadd.f32 %v42, %v329
  %v331 = vpop.f32.mrf.mxu0
  %332 = vdwg.mxu0
  %333 = vmatpush.bf16.msra.mxu0 0
  %334 = vmatpush.bf16.msra.mxu0 0
  %335 = vmatpush.bf16.msra.mxu0 0
  %336 = vmatpush.bf16.msra.mxu0 0
  %337 = vmatpush.bf16.msra.mxu0 0
  %338 = vmatpush.bf16.msra.mxu0 0
  %339 = vmatpush.bf16.msra.mxu0 0
  %340 = vmatpush.bf16.msra.mxu0 %v156
  %341 = vmatmul.bf16.gmra.mxu0 %v110
  %v342 = vpop.f32.mrf.mxu0
  %v343 = vadd.f32 %v42, %v342
  %v344 = vpop.f32.mrf.mxu0
  %345 = vdwg.mxu0
  %346 = vmatpush.bf16.msra.mxu0 0
  %347 = vmatpush.bf16.msra.mxu0 0
  %348 = vmatpush.bf16.msra.mxu0 0
  %349 = vmatpush.bf16.msra.mxu0 0
  %350 = vmatpush.bf16.msra.mxu0 0
  %351 = vmatpush.bf16.msra.mxu0 0
  %352 = vmatpush.bf16.msra.mxu0 0
  %353 = vmatpush.bf16.msra.mxu0 %v159
  %354 = vmatmul.bf16.gmra.mxu0 %v110
  %v355 = vpop.f32.mrf.mxu0
  %v356 = vadd.f32 %v42, %v355
  %v357 = vpop.f32.mrf.mxu0
  %358 = vdwg.mxu0
  %359 = vmatpush.bf16.msra.mxu0 0
  %360 = vmatpush.bf16.msra.mxu0 0
  %361 = vmatpush.bf16.msra.mxu0 0
  %362 = vmatpush.bf16.msra.mxu0 0
  %363 = vmatpush.bf16.msra.mxu0 0
  %364 = vmatpush.bf16.msra.mxu0 0
  %365 = vmatpush.bf16.msra.mxu0 0
  %366 = vmatpush.bf16.msra.mxu0 %v162
  %367 = vmatmul.bf16.gmra.mxu0 %v110
  %v368 = vpop.f32.mrf.mxu0
  %v369 = vadd.f32 %v42, %v368
  %v370 = vpop.f32.mrf.mxu0
  %371 = vdwg.mxu0
  %v372 = vmul.f32 %v174, 0.25
  %v373 = vmul.f32 %v187, 0.25
  %v374 = vmul.f32 %v200, 0.25
  %v375 = vmul.f32 %v213, 0.25
  %v376 = vmul.f32 %v226, 0.25
  %v377 = vmul.f32 %v239, 0.25
  %v378 = vmul.f32 %v252, 0.25
  %v379 = vmul.f32 %v265, 0.25
  %v380 = vmul.f32 %v278, 0.25
  %v381 = vmul.f32 %v291, 0.25
  %v382 = vmul.f32 %v304, 0.25
  %v383 = vmul.f32 %v317, 0.25
  %v384 = vmul.f32 %v330, 0.25
  %v385 = vmul.f32 %v343, 0.25
  %v386 = vmul.f32 %v356, 0.25
  %v387 = vmul.f32 %v369, 0.25
  %v388 = vadd.f32 %v372, 0.0
  %v389 = vadd.f32 %v373, 0.0
  %v390 = vadd.f32 %v374, 0.0
  %v391 = vadd.f32 %v375, 0.0
  %v392 = vadd.f32 %v376, 0.0
  %v393 = vadd.f32 %v377, 0.0
  %v394 = vadd.f32 %v378, 0.0
  %v395 = vadd.f32 %v379, 0.0
  %v396 = vadd.f32 %v380, 0.0
  %v397 = vadd.f32 %v381, 0.0
  %v398 = vadd.f32 %v382, 0.0
  %v399 = vadd.f32 %v383, 0.0
  %v400 = vadd.f32 %v384, 0.0
  %v401 = vadd.f32 %v385, 0.0
  %v402 = vadd.f32 %v386, 0.0
  %v403 = vadd.f32 %v387, 0.0
  %v404 = vadd.f32 %v174, %v187
  %v405 = vadd.f32 %v404, %v200
  %v406 = vadd.f32 %v405, %v213
  %v407 = vadd.f32 %v406, %v226
  %v408 = vadd.f32 %v407, %v239
  %v409 = vadd.f32 %v408, %v252
  %v410 = vadd.f32 %v409, %v265
  %v411 = vadd.f32 %v410, %v278
  %v412 = vadd.f32 %v411, %v291
  %v413 = vadd.f32 %v412, %v304
  %v414 = vadd.f32 %v413, %v317
  %v415 = vadd.f32 %v414, %v330
  %v416 = vadd.f32 %v415, %v343
  %v417 = vadd.f32 %v416, %v356
  %v418 = vadd.f32 %v417, %v369
  %419 = vadd.xlane.f32.xlu0 %v418
  %v420 = vpop.xlane.xlu0 %419
  %v421 = vadd.f32 %v420, 0.0
  %v422 = vmul.f32 %v174, %v174
  %v423 = vmul.f32 %v187, %v187
  %v424 = vmul.f32 %v200, %v200
  %v425 = vmul.f32 %v213, %v213
  %v426 = vmul.f32 %v226, %v226
  %v427 = vmul.f32 %v239, %v239
  %v428 = vmul.f32 %v252, %v252
  %v429 = vmul.f32 %v265, %v265
  %v430 = vmul.f32 %v278, %v278
  %v431 = vmul.f32 %v291, %v291
  %v432 = vmul.f32 %v304, %v304
  %v433 = vmul.f32 %v317, %v317
  %v434 = vmul.f32 %v330, %v330
  %v435 = vmul.f32 %v343, %v343
  %v436 = vmul.f32 %v356, %v356
  %v437 = vmul.f32 %v369, %v369
  %v438 = vadd.f32 %v422, %v423
  %v439 = vadd.f32 %v438, %v424
  %v440 = vadd.f32 %v439, %v425
  %v441 = vadd.f32 %v440, %v426
  %v442 = vadd.f32 %v441, %v427
  %v443 = vadd.f32 %v442, %v428
  %v444 = vadd.f32 %v443, %v429
  %v445 = vadd.f32 %v444, %v430
  %v446 = vadd.f32 %v445, %v431
  %v447 = vadd.f32 %v446, %v432
  %v448 = vadd.f32 %v447, %v433
  %v449 = vadd.f32 %v448, %v434
  %v450 = vadd.f32 %v449, %v435
  %v451 = vadd.f32 %v450, %v436
  %v452 = vadd.f32 %v451, %v437
  %453 = vadd.xlane.f32.xlu0 %v452
  %v454 = vpop.xlane.xlu0 %453
  %v455 = vadd.f32 %v454, 0.0
  %s456 = scalar_lea.vmem %s1, 128
  %v457 = vld [vmem:[%s456] sm:$0xff]
  %v458 = vld [vmem:[%s456 + $0x8] sm:$0xff]
  %v459 = vld [vmem:[%s456 + $0x10] sm:$0xff]
  %v460 = vld [vmem:[%s456 + $0x18] sm:$0xff]
  %v461 = vld [vmem:[%s456 + $0x20] sm:$0xff]
  %v462 = vld [vmem:[%s456 + $0x28] sm:$0xff]
  %v463 = vld [vmem:[%s456 + $0x30] sm:$0xff]
  %v464 = vld [vmem:[%s456 + $0x38] sm:$0xff]
  %v465 = vld [vmem:[%s456 + $0x40] sm:$0x11]
  %v466 = vld [vmem:[%s456 + $0x48] sm:$0x11]
  %v467 = vld [vmem:[%s456 + $0x50] sm:$0x11]
  %v468 = vld [vmem:[%s456 + $0x58] sm:$0x11]
  %v469 = vld [vmem:[%s456 + $0x60] sm:$0x11]
  %v470 = vld [vmem:[%s456 + $0x68] sm:$0x11]
  %v471 = vld [vmem:[%s456 + $0x70] sm:$0x11]
  %v472 = vld [vmem:[%s456 + $0x78] sm:$0x11]
  %v489 = vunpack.c.l.b16 %v457
  %v490 = vunpack.c.h.b16 %v457
  %v491 = vunpack.c.l.b16 %v458
  %v492 = vunpack.c.h.b16 %v458
  %v493 = vunpack.c.l.b16 %v459
  %v494 = vunpack.c.h.b16 %v459
  %v495 = vunpack.c.l.b16 %v460
  %v496 = vunpack.c.h.b16 %v460
  %v497 = vunpack.c.l.b16 %v461
  %v498 = vunpack.c.h.b16 %v461
  %v499 = vunpack.c.l.b16 %v462
  %v500 = vunpack.c.h.b16 %v462
  %v501 = vunpack.c.l.b16 %v463
  %v502 = vunpack.c.h.b16 %v463
  %v503 = vunpack.c.l.b16 %v464
  %v504 = vunpack.c.h.b16 %v464
  %v505 = vunpack.c.l.b16 %v465
  %v506 = vunpack.c.h.b16 %v465
  %v507 = vunpack.c.l.b16 %v466
  %v508 = vunpack.c.h.b16 %v466
  %v509 = vunpack.c.l.b16 %v467
  %v510 = vunpack.c.h.b16 %v467
  %v511 = vunpack.c.l.b16 %v468
  %v512 = vunpack.c.h.b16 %v468
  %v513 = vunpack.c.l.b16 %v469
  %v514 = vunpack.c.h.b16 %v469
  %v515 = vunpack.c.l.b16 %v470
  %v516 = vunpack.c.h.b16 %v470
  %v517 = vunpack.c.l.b16 %v471
  %v518 = vunpack.c.h.b16 %v471
  %v519 = vunpack.c.l.b16 %v472
  %v520 = vunpack.c.h.b16 %v472
  %v521 = vpack.c.b16 %v505, %v489
  %v522 = vpack.c.b16 %v506, %v490
  %v523 = vpack.c.b16 %v507, %v491
  %v524 = vpack.c.b16 %v508, %v492
  %v525 = vpack.c.b16 %v509, %v493
  %v526 = vpack.c.b16 %v510, %v494
  %v527 = vpack.c.b16 %v511, %v495
  %v528 = vpack.c.b16 %v512, %v496
  %v529 = vpack.c.b16 %v513, %v497
  %v530 = vpack.c.b16 %v514, %v498
  %v531 = vpack.c.b16 %v515, %v499
  %v532 = vpack.c.b16 %v516, %v500
  %v533 = vpack.c.b16 %v517, %v501
  %v534 = vpack.c.b16 %v518, %v502
  %v535 = vpack.c.b16 %v519, %v503
  %v536 = vpack.c.b16 %v520, %v504
  %v538 = vand.u32 %v521, %v115
  %v541 = vand.u32 %v522, %v115
  %v544 = vand.u32 %v523, %v115
  %v547 = vand.u32 %v524, %v115
  %v550 = vand.u32 %v525, %v115
  %v553 = vand.u32 %v526, %v115
  %v556 = vand.u32 %v527, %v115
  %v559 = vand.u32 %v528, %v115
  %v562 = vand.u32 %v529, %v115
  %v565 = vand.u32 %v530, %v115
  %v568 = vand.u32 %v531, %v115
  %v571 = vand.u32 %v532, %v115
  %v574 = vand.u32 %v533, %v115
  %v577 = vand.u32 %v534, %v115
  %v580 = vand.u32 %v535, %v115
  %v583 = vand.u32 %v536, %v115
  %585 = vmatpush.bf16.msra.mxu0 0
  %586 = vmatpush.bf16.msra.mxu0 0
  %587 = vmatpush.bf16.msra.mxu0 0
  %588 = vmatpush.bf16.msra.mxu0 0
  %589 = vmatpush.bf16.msra.mxu0 0
  %590 = vmatpush.bf16.msra.mxu0 0
  %591 = vmatpush.bf16.msra.mxu0 0
  %592 = vmatpush.bf16.msra.mxu0 %v538
  %593 = vmatmul.bf16.gmra.mxu0 %v110
  %v594 = vpop.f32.mrf.mxu0
  %v595 = vadd.f32 %v42, %v594
  %v596 = vpop.f32.mrf.mxu0
  %597 = vdwg.mxu0
  %598 = vmatpush.bf16.msra.mxu0 0
  %599 = vmatpush.bf16.msra.mxu0 0
  %600 = vmatpush.bf16.msra.mxu0 0
  %601 = vmatpush.bf16.msra.mxu0 0
  %602 = vmatpush.bf16.msra.mxu0 0
  %603 = vmatpush.bf16.msra.mxu0 0
  %604 = vmatpush.bf16.msra.mxu0 0
  %605 = vmatpush.bf16.msra.mxu0 %v541
  %606 = vmatmul.bf16.gmra.mxu0 %v110
  %v607 = vpop.f32.mrf.mxu0
  %v608 = vadd.f32 %v42, %v607
  %v609 = vpop.f32.mrf.mxu0
  %610 = vdwg.mxu0
  %611 = vmatpush.bf16.msra.mxu0 0
  %612 = vmatpush.bf16.msra.mxu0 0
  %613 = vmatpush.bf16.msra.mxu0 0
  %614 = vmatpush.bf16.msra.mxu0 0
  %615 = vmatpush.bf16.msra.mxu0 0
  %616 = vmatpush.bf16.msra.mxu0 0
  %617 = vmatpush.bf16.msra.mxu0 0
  %618 = vmatpush.bf16.msra.mxu0 %v544
  %619 = vmatmul.bf16.gmra.mxu0 %v110
  %v620 = vpop.f32.mrf.mxu0
  %v621 = vadd.f32 %v42, %v620
  %v622 = vpop.f32.mrf.mxu0
  %623 = vdwg.mxu0
  %624 = vmatpush.bf16.msra.mxu0 0
  %625 = vmatpush.bf16.msra.mxu0 0
  %626 = vmatpush.bf16.msra.mxu0 0
  %627 = vmatpush.bf16.msra.mxu0 0
  %628 = vmatpush.bf16.msra.mxu0 0
  %629 = vmatpush.bf16.msra.mxu0 0
  %630 = vmatpush.bf16.msra.mxu0 0
  %631 = vmatpush.bf16.msra.mxu0 %v547
  %632 = vmatmul.bf16.gmra.mxu0 %v110
  %v633 = vpop.f32.mrf.mxu0
  %v634 = vadd.f32 %v42, %v633
  %v635 = vpop.f32.mrf.mxu0
  %636 = vdwg.mxu0
  %637 = vmatpush.bf16.msra.mxu0 0
  %638 = vmatpush.bf16.msra.mxu0 0
  %639 = vmatpush.bf16.msra.mxu0 0
  %640 = vmatpush.bf16.msra.mxu0 0
  %641 = vmatpush.bf16.msra.mxu0 0
  %642 = vmatpush.bf16.msra.mxu0 0
  %643 = vmatpush.bf16.msra.mxu0 0
  %644 = vmatpush.bf16.msra.mxu0 %v550
  %645 = vmatmul.bf16.gmra.mxu0 %v110
  %v646 = vpop.f32.mrf.mxu0
  %v647 = vadd.f32 %v42, %v646
  %v648 = vpop.f32.mrf.mxu0
  %649 = vdwg.mxu0
  %650 = vmatpush.bf16.msra.mxu0 0
  %651 = vmatpush.bf16.msra.mxu0 0
  %652 = vmatpush.bf16.msra.mxu0 0
  %653 = vmatpush.bf16.msra.mxu0 0
  %654 = vmatpush.bf16.msra.mxu0 0
  %655 = vmatpush.bf16.msra.mxu0 0
  %656 = vmatpush.bf16.msra.mxu0 0
  %657 = vmatpush.bf16.msra.mxu0 %v553
  %658 = vmatmul.bf16.gmra.mxu0 %v110
  %v659 = vpop.f32.mrf.mxu0
  %v660 = vadd.f32 %v42, %v659
  %v661 = vpop.f32.mrf.mxu0
  %662 = vdwg.mxu0
  %663 = vmatpush.bf16.msra.mxu0 0
  %664 = vmatpush.bf16.msra.mxu0 0
  %665 = vmatpush.bf16.msra.mxu0 0
  %666 = vmatpush.bf16.msra.mxu0 0
  %667 = vmatpush.bf16.msra.mxu0 0
  %668 = vmatpush.bf16.msra.mxu0 0
  %669 = vmatpush.bf16.msra.mxu0 0
  %670 = vmatpush.bf16.msra.mxu0 %v556
  %671 = vmatmul.bf16.gmra.mxu0 %v110
  %v672 = vpop.f32.mrf.mxu0
  %v673 = vadd.f32 %v42, %v672
  %v674 = vpop.f32.mrf.mxu0
  %675 = vdwg.mxu0
  %676 = vmatpush.bf16.msra.mxu0 0
  %677 = vmatpush.bf16.msra.mxu0 0
  %678 = vmatpush.bf16.msra.mxu0 0
  %679 = vmatpush.bf16.msra.mxu0 0
  %680 = vmatpush.bf16.msra.mxu0 0
  %681 = vmatpush.bf16.msra.mxu0 0
  %682 = vmatpush.bf16.msra.mxu0 0
  %683 = vmatpush.bf16.msra.mxu0 %v559
  %684 = vmatmul.bf16.gmra.mxu0 %v110
  %v685 = vpop.f32.mrf.mxu0
  %v686 = vadd.f32 %v42, %v685
  %v687 = vpop.f32.mrf.mxu0
  %688 = vdwg.mxu0
  %689 = vmatpush.bf16.msra.mxu0 0
  %690 = vmatpush.bf16.msra.mxu0 0
  %691 = vmatpush.bf16.msra.mxu0 0
  %692 = vmatpush.bf16.msra.mxu0 0
  %693 = vmatpush.bf16.msra.mxu0 0
  %694 = vmatpush.bf16.msra.mxu0 0
  %695 = vmatpush.bf16.msra.mxu0 0
  %696 = vmatpush.bf16.msra.mxu0 %v562
  %697 = vmatmul.bf16.gmra.mxu0 %v110
  %v698 = vpop.f32.mrf.mxu0
  %v699 = vadd.f32 %v42, %v698
  %v700 = vpop.f32.mrf.mxu0
  %701 = vdwg.mxu0
  %702 = vmatpush.bf16.msra.mxu0 0
  %703 = vmatpush.bf16.msra.mxu0 0
  %704 = vmatpush.bf16.msra.mxu0 0
  %705 = vmatpush.bf16.msra.mxu0 0
  %706 = vmatpush.bf16.msra.mxu0 0
  %707 = vmatpush.bf16.msra.mxu0 0
  %708 = vmatpush.bf16.msra.mxu0 0
  %709 = vmatpush.bf16.msra.mxu0 %v565
  %710 = vmatmul.bf16.gmra.mxu0 %v110
  %v711 = vpop.f32.mrf.mxu0
  %v712 = vadd.f32 %v42, %v711
  %v713 = vpop.f32.mrf.mxu0
  %714 = vdwg.mxu0
  %715 = vmatpush.bf16.msra.mxu0 0
  %716 = vmatpush.bf16.msra.mxu0 0
  %717 = vmatpush.bf16.msra.mxu0 0
  %718 = vmatpush.bf16.msra.mxu0 0
  %719 = vmatpush.bf16.msra.mxu0 0
  %720 = vmatpush.bf16.msra.mxu0 0
  %721 = vmatpush.bf16.msra.mxu0 0
  %722 = vmatpush.bf16.msra.mxu0 %v568
  %723 = vmatmul.bf16.gmra.mxu0 %v110
  %v724 = vpop.f32.mrf.mxu0
  %v725 = vadd.f32 %v42, %v724
  %v726 = vpop.f32.mrf.mxu0
  %727 = vdwg.mxu0
  %728 = vmatpush.bf16.msra.mxu0 0
  %729 = vmatpush.bf16.msra.mxu0 0
  %730 = vmatpush.bf16.msra.mxu0 0
  %731 = vmatpush.bf16.msra.mxu0 0
  %732 = vmatpush.bf16.msra.mxu0 0
  %733 = vmatpush.bf16.msra.mxu0 0
  %734 = vmatpush.bf16.msra.mxu0 0
  %735 = vmatpush.bf16.msra.mxu0 %v571
  %736 = vmatmul.bf16.gmra.mxu0 %v110
  %v737 = vpop.f32.mrf.mxu0
  %v738 = vadd.f32 %v42, %v737
  %v739 = vpop.f32.mrf.mxu0
  %740 = vdwg.mxu0
  %741 = vmatpush.bf16.msra.mxu0 0
  %742 = vmatpush.bf16.msra.mxu0 0
  %743 = vmatpush.bf16.msra.mxu0 0
  %744 = vmatpush.bf16.msra.mxu0 0
  %745 = vmatpush.bf16.msra.mxu0 0
  %746 = vmatpush.bf16.msra.mxu0 0
  %747 = vmatpush.bf16.msra.mxu0 0
  %748 = vmatpush.bf16.msra.mxu0 %v574
  %749 = vmatmul.bf16.gmra.mxu0 %v110
  %v750 = vpop.f32.mrf.mxu0
  %v751 = vadd.f32 %v42, %v750
  %v752 = vpop.f32.mrf.mxu0
  %753 = vdwg.mxu0
  %754 = vmatpush.bf16.msra.mxu0 0
  %755 = vmatpush.bf16.msra.mxu0 0
  %756 = vmatpush.bf16.msra.mxu0 0
  %757 = vmatpush.bf16.msra.mxu0 0
  %758 = vmatpush.bf16.msra.mxu0 0
  %759 = vmatpush.bf16.msra.mxu0 0
  %760 = vmatpush.bf16.msra.mxu0 0
  %761 = vmatpush.bf16.msra.mxu0 %v577
  %762 = vmatmul.bf16.gmra.mxu0 %v110
  %v763 = vpop.f32.mrf.mxu0
  %v764 = vadd.f32 %v42, %v763
  %v765 = vpop.f32.mrf.mxu0
  %766 = vdwg.mxu0
  %767 = vmatpush.bf16.msra.mxu0 0
  %768 = vmatpush.bf16.msra.mxu0 0
  %769 = vmatpush.bf16.msra.mxu0 0
  %770 = vmatpush.bf16.msra.mxu0 0
  %771 = vmatpush.bf16.msra.mxu0 0
  %772 = vmatpush.bf16.msra.mxu0 0
  %773 = vmatpush.bf16.msra.mxu0 0
  %774 = vmatpush.bf16.msra.mxu0 %v580
  %775 = vmatmul.bf16.gmra.mxu0 %v110
  %v776 = vpop.f32.mrf.mxu0
  %v777 = vadd.f32 %v42, %v776
  %v778 = vpop.f32.mrf.mxu0
  %779 = vdwg.mxu0
  %780 = vmatpush.bf16.msra.mxu0 0
  %781 = vmatpush.bf16.msra.mxu0 0
  %782 = vmatpush.bf16.msra.mxu0 0
  %783 = vmatpush.bf16.msra.mxu0 0
  %784 = vmatpush.bf16.msra.mxu0 0
  %785 = vmatpush.bf16.msra.mxu0 0
  %786 = vmatpush.bf16.msra.mxu0 0
  %787 = vmatpush.bf16.msra.mxu0 %v583
  %788 = vmatmul.bf16.gmra.mxu0 %v110
  %v789 = vpop.f32.mrf.mxu0
  %v790 = vadd.f32 %v42, %v789
  %v791 = vpop.f32.mrf.mxu0
  %792 = vdwg.mxu0
  %v793 = vmul.f32 %v595, 0.25
  %v794 = vmul.f32 %v608, 0.25
  %v795 = vmul.f32 %v621, 0.25
  %v796 = vmul.f32 %v634, 0.25
  %v797 = vmul.f32 %v647, 0.25
  %v798 = vmul.f32 %v660, 0.25
  %v799 = vmul.f32 %v673, 0.25
  %v800 = vmul.f32 %v686, 0.25
  %v801 = vmul.f32 %v699, 0.25
  %v802 = vmul.f32 %v712, 0.25
  %v803 = vmul.f32 %v725, 0.25
  %v804 = vmul.f32 %v738, 0.25
  %v805 = vmul.f32 %v751, 0.25
  %v806 = vmul.f32 %v764, 0.25
  %v807 = vmul.f32 %v777, 0.25
  %v808 = vmul.f32 %v790, 0.25
  %v809 = vadd.f32 %v388, %v793
  %v810 = vadd.f32 %v389, %v794
  %v811 = vadd.f32 %v390, %v795
  %v812 = vadd.f32 %v391, %v796
  %v813 = vadd.f32 %v392, %v797
  %v814 = vadd.f32 %v393, %v798
  %v815 = vadd.f32 %v394, %v799
  %v816 = vadd.f32 %v395, %v800
  %v817 = vadd.f32 %v396, %v801
  %v818 = vadd.f32 %v397, %v802
  %v819 = vadd.f32 %v398, %v803
  %v820 = vadd.f32 %v399, %v804
  %v821 = vadd.f32 %v400, %v805
  %v822 = vadd.f32 %v401, %v806
  %v823 = vadd.f32 %v402, %v807
  %v824 = vadd.f32 %v403, %v808
  %v825 = vadd.f32 %v595, %v608
  %v826 = vadd.f32 %v825, %v621
  %v827 = vadd.f32 %v826, %v634
  %v828 = vadd.f32 %v827, %v647
  %v829 = vadd.f32 %v828, %v660
  %v830 = vadd.f32 %v829, %v673
  %v831 = vadd.f32 %v830, %v686
  %v832 = vadd.f32 %v831, %v699
  %v833 = vadd.f32 %v832, %v712
  %v834 = vadd.f32 %v833, %v725
  %v835 = vadd.f32 %v834, %v738
  %v836 = vadd.f32 %v835, %v751
  %v837 = vadd.f32 %v836, %v764
  %v838 = vadd.f32 %v837, %v777
  %v839 = vadd.f32 %v838, %v790
  %840 = vadd.xlane.f32.xlu0 %v839
  %v841 = vpop.xlane.xlu0 %840
  %v842 = vadd.f32 %v421, %v841
  %v843 = vmul.f32 %v595, %v595
  %v844 = vmul.f32 %v608, %v608
  %v845 = vmul.f32 %v621, %v621
  %v846 = vmul.f32 %v634, %v634
  %v847 = vmul.f32 %v647, %v647
  %v848 = vmul.f32 %v660, %v660
  %v849 = vmul.f32 %v673, %v673
  %v850 = vmul.f32 %v686, %v686
  %v851 = vmul.f32 %v699, %v699
  %v852 = vmul.f32 %v712, %v712
  %v853 = vmul.f32 %v725, %v725
  %v854 = vmul.f32 %v738, %v738
  %v855 = vmul.f32 %v751, %v751
  %v856 = vmul.f32 %v764, %v764
  %v857 = vmul.f32 %v777, %v777
  %v858 = vmul.f32 %v790, %v790
  %v859 = vadd.f32 %v843, %v844
  %v860 = vadd.f32 %v859, %v845
  %v861 = vadd.f32 %v860, %v846
  %v862 = vadd.f32 %v861, %v847
  %v863 = vadd.f32 %v862, %v848
  %v864 = vadd.f32 %v863, %v849
  %v865 = vadd.f32 %v864, %v850
  %v866 = vadd.f32 %v865, %v851
  %v867 = vadd.f32 %v866, %v852
  %v868 = vadd.f32 %v867, %v853
  %v869 = vadd.f32 %v868, %v854
  %v870 = vadd.f32 %v869, %v855
  %v871 = vadd.f32 %v870, %v856
  %v872 = vadd.f32 %v871, %v857
  %v873 = vadd.f32 %v872, %v858
  %874 = vadd.xlane.f32.xlu0 %v873
  %v875 = vpop.xlane.xlu0 %874
  %v876 = vadd.f32 %v455, %v875
  %s877 = scalar_lea.vmem %s1, 256
  %v878 = vld [vmem:[%s877] sm:$0xff]
  %v879 = vld [vmem:[%s877 + $0x8] sm:$0xff]
  %v880 = vld [vmem:[%s877 + $0x10] sm:$0xff]
  %v881 = vld [vmem:[%s877 + $0x18] sm:$0xff]
  %v882 = vld [vmem:[%s877 + $0x20] sm:$0xff]
  %v883 = vld [vmem:[%s877 + $0x28] sm:$0xff]
  %v884 = vld [vmem:[%s877 + $0x30] sm:$0xff]
  %v885 = vld [vmem:[%s877 + $0x38] sm:$0xff]
  %v886 = vld [vmem:[%s877 + $0x40] sm:$0x11]
  %v887 = vld [vmem:[%s877 + $0x48] sm:$0x11]
  %v888 = vld [vmem:[%s877 + $0x50] sm:$0x11]
  %v889 = vld [vmem:[%s877 + $0x58] sm:$0x11]
  %v890 = vld [vmem:[%s877 + $0x60] sm:$0x11]
  %v891 = vld [vmem:[%s877 + $0x68] sm:$0x11]
  %v892 = vld [vmem:[%s877 + $0x70] sm:$0x11]
  %v893 = vld [vmem:[%s877 + $0x78] sm:$0x11]
  %v910 = vunpack.c.l.b16 %v878
  %v911 = vunpack.c.h.b16 %v878
  %v912 = vunpack.c.l.b16 %v879
  %v913 = vunpack.c.h.b16 %v879
  %v914 = vunpack.c.l.b16 %v880
  %v915 = vunpack.c.h.b16 %v880
  %v916 = vunpack.c.l.b16 %v881
  %v917 = vunpack.c.h.b16 %v881
  %v918 = vunpack.c.l.b16 %v882
  %v919 = vunpack.c.h.b16 %v882
  %v920 = vunpack.c.l.b16 %v883
  %v921 = vunpack.c.h.b16 %v883
  %v922 = vunpack.c.l.b16 %v884
  %v923 = vunpack.c.h.b16 %v884
  %v924 = vunpack.c.l.b16 %v885
  %v925 = vunpack.c.h.b16 %v885
  %v926 = vunpack.c.l.b16 %v886
  %v927 = vunpack.c.h.b16 %v886
  %v928 = vunpack.c.l.b16 %v887
  %v929 = vunpack.c.h.b16 %v887
  %v930 = vunpack.c.l.b16 %v888
  %v931 = vunpack.c.h.b16 %v888
  %v932 = vunpack.c.l.b16 %v889
  %v933 = vunpack.c.h.b16 %v889
  %v934 = vunpack.c.l.b16 %v890
  %v935 = vunpack.c.h.b16 %v890
  %v936 = vunpack.c.l.b16 %v891
  %v937 = vunpack.c.h.b16 %v891
  %v938 = vunpack.c.l.b16 %v892
  %v939 = vunpack.c.h.b16 %v892
  %v940 = vunpack.c.l.b16 %v893
  %v941 = vunpack.c.h.b16 %v893
  %v942 = vpack.c.b16 %v926, %v910
  %v943 = vpack.c.b16 %v927, %v911
  %v944 = vpack.c.b16 %v928, %v912
  %v945 = vpack.c.b16 %v929, %v913
  %v946 = vpack.c.b16 %v930, %v914
  %v947 = vpack.c.b16 %v931, %v915
  %v948 = vpack.c.b16 %v932, %v916
  %v949 = vpack.c.b16 %v933, %v917
  %v950 = vpack.c.b16 %v934, %v918
  %v951 = vpack.c.b16 %v935, %v919
  %v952 = vpack.c.b16 %v936, %v920
  %v953 = vpack.c.b16 %v937, %v921
  %v954 = vpack.c.b16 %v938, %v922
  %v955 = vpack.c.b16 %v939, %v923
  %v956 = vpack.c.b16 %v940, %v924
  %v957 = vpack.c.b16 %v941, %v925
  %v959 = vand.u32 %v942, %v115
  %v962 = vand.u32 %v943, %v115
  %v965 = vand.u32 %v944, %v115
  %v968 = vand.u32 %v945, %v115
  %v971 = vand.u32 %v946, %v115
  %v974 = vand.u32 %v947, %v115
  %v977 = vand.u32 %v948, %v115
  %v980 = vand.u32 %v949, %v115
  %v983 = vand.u32 %v950, %v115
  %v986 = vand.u32 %v951, %v115
  %v989 = vand.u32 %v952, %v115
  %v992 = vand.u32 %v953, %v115
  %v995 = vand.u32 %v954, %v115
  %v998 = vand.u32 %v955, %v115
  %v1001 = vand.u32 %v956, %v115
  %v1004 = vand.u32 %v957, %v115
  %1006 = vmatpush.bf16.msra.mxu0 0
  %1007 = vmatpush.bf16.msra.mxu0 0
  %1008 = vmatpush.bf16.msra.mxu0 0
  %1009 = vmatpush.bf16.msra.mxu0 0
  %1010 = vmatpush.bf16.msra.mxu0 0
  %1011 = vmatpush.bf16.msra.mxu0 0
  %1012 = vmatpush.bf16.msra.mxu0 0
  %1013 = vmatpush.bf16.msra.mxu0 %v959
  %1014 = vmatmul.bf16.gmra.mxu0 %v110
  %v1015 = vpop.f32.mrf.mxu0
  %v1016 = vadd.f32 %v42, %v1015
  %v1017 = vpop.f32.mrf.mxu0
  %1018 = vdwg.mxu0
  %1019 = vmatpush.bf16.msra.mxu0 0
  %1020 = vmatpush.bf16.msra.mxu0 0
  %1021 = vmatpush.bf16.msra.mxu0 0
  %1022 = vmatpush.bf16.msra.mxu0 0
  %1023 = vmatpush.bf16.msra.mxu0 0
  %1024 = vmatpush.bf16.msra.mxu0 0
  %1025 = vmatpush.bf16.msra.mxu0 0
  %1026 = vmatpush.bf16.msra.mxu0 %v962
  %1027 = vmatmul.bf16.gmra.mxu0 %v110
  %v1028 = vpop.f32.mrf.mxu0
  %v1029 = vadd.f32 %v42, %v1028
  %v1030 = vpop.f32.mrf.mxu0
  %1031 = vdwg.mxu0
  %1032 = vmatpush.bf16.msra.mxu0 0
  %1033 = vmatpush.bf16.msra.mxu0 0
  %1034 = vmatpush.bf16.msra.mxu0 0
  %1035 = vmatpush.bf16.msra.mxu0 0
  %1036 = vmatpush.bf16.msra.mxu0 0
  %1037 = vmatpush.bf16.msra.mxu0 0
  %1038 = vmatpush.bf16.msra.mxu0 0
  %1039 = vmatpush.bf16.msra.mxu0 %v965
  %1040 = vmatmul.bf16.gmra.mxu0 %v110
  %v1041 = vpop.f32.mrf.mxu0
  %v1042 = vadd.f32 %v42, %v1041
  %v1043 = vpop.f32.mrf.mxu0
  %1044 = vdwg.mxu0
  %1045 = vmatpush.bf16.msra.mxu0 0
  %1046 = vmatpush.bf16.msra.mxu0 0
  %1047 = vmatpush.bf16.msra.mxu0 0
  %1048 = vmatpush.bf16.msra.mxu0 0
  %1049 = vmatpush.bf16.msra.mxu0 0
  %1050 = vmatpush.bf16.msra.mxu0 0
  %1051 = vmatpush.bf16.msra.mxu0 0
  %1052 = vmatpush.bf16.msra.mxu0 %v968
  %1053 = vmatmul.bf16.gmra.mxu0 %v110
  %v1054 = vpop.f32.mrf.mxu0
  %v1055 = vadd.f32 %v42, %v1054
  %v1056 = vpop.f32.mrf.mxu0
  %1057 = vdwg.mxu0
  %1058 = vmatpush.bf16.msra.mxu0 0
  %1059 = vmatpush.bf16.msra.mxu0 0
  %1060 = vmatpush.bf16.msra.mxu0 0
  %1061 = vmatpush.bf16.msra.mxu0 0
  %1062 = vmatpush.bf16.msra.mxu0 0
  %1063 = vmatpush.bf16.msra.mxu0 0
  %1064 = vmatpush.bf16.msra.mxu0 0
  %1065 = vmatpush.bf16.msra.mxu0 %v971
  %1066 = vmatmul.bf16.gmra.mxu0 %v110
  %v1067 = vpop.f32.mrf.mxu0
  %v1068 = vadd.f32 %v42, %v1067
  %v1069 = vpop.f32.mrf.mxu0
  %1070 = vdwg.mxu0
  %1071 = vmatpush.bf16.msra.mxu0 0
  %1072 = vmatpush.bf16.msra.mxu0 0
  %1073 = vmatpush.bf16.msra.mxu0 0
  %1074 = vmatpush.bf16.msra.mxu0 0
  %1075 = vmatpush.bf16.msra.mxu0 0
  %1076 = vmatpush.bf16.msra.mxu0 0
  %1077 = vmatpush.bf16.msra.mxu0 0
  %1078 = vmatpush.bf16.msra.mxu0 %v974
  %1079 = vmatmul.bf16.gmra.mxu0 %v110
  %v1080 = vpop.f32.mrf.mxu0
  %v1081 = vadd.f32 %v42, %v1080
  %v1082 = vpop.f32.mrf.mxu0
  %1083 = vdwg.mxu0
  %1084 = vmatpush.bf16.msra.mxu0 0
  %1085 = vmatpush.bf16.msra.mxu0 0
  %1086 = vmatpush.bf16.msra.mxu0 0
  %1087 = vmatpush.bf16.msra.mxu0 0
  %1088 = vmatpush.bf16.msra.mxu0 0
  %1089 = vmatpush.bf16.msra.mxu0 0
  %1090 = vmatpush.bf16.msra.mxu0 0
  %1091 = vmatpush.bf16.msra.mxu0 %v977
  %1092 = vmatmul.bf16.gmra.mxu0 %v110
  %v1093 = vpop.f32.mrf.mxu0
  %v1094 = vadd.f32 %v42, %v1093
  %v1095 = vpop.f32.mrf.mxu0
  %1096 = vdwg.mxu0
  %1097 = vmatpush.bf16.msra.mxu0 0
  %1098 = vmatpush.bf16.msra.mxu0 0
  %1099 = vmatpush.bf16.msra.mxu0 0
  %1100 = vmatpush.bf16.msra.mxu0 0
  %1101 = vmatpush.bf16.msra.mxu0 0
  %1102 = vmatpush.bf16.msra.mxu0 0
  %1103 = vmatpush.bf16.msra.mxu0 0
  %1104 = vmatpush.bf16.msra.mxu0 %v980
  %1105 = vmatmul.bf16.gmra.mxu0 %v110
  %v1106 = vpop.f32.mrf.mxu0
  %v1107 = vadd.f32 %v42, %v1106
  %v1108 = vpop.f32.mrf.mxu0
  %1109 = vdwg.mxu0
  %1110 = vmatpush.bf16.msra.mxu0 0
  %1111 = vmatpush.bf16.msra.mxu0 0
  %1112 = vmatpush.bf16.msra.mxu0 0
  %1113 = vmatpush.bf16.msra.mxu0 0
  %1114 = vmatpush.bf16.msra.mxu0 0
  %1115 = vmatpush.bf16.msra.mxu0 0
  %1116 = vmatpush.bf16.msra.mxu0 0
  %1117 = vmatpush.bf16.msra.mxu0 %v983
  %1118 = vmatmul.bf16.gmra.mxu0 %v110
  %v1119 = vpop.f32.mrf.mxu0
  %v1120 = vadd.f32 %v42, %v1119
  %v1121 = vpop.f32.mrf.mxu0
  %1122 = vdwg.mxu0
  %1123 = vmatpush.bf16.msra.mxu0 0
  %1124 = vmatpush.bf16.msra.mxu0 0
  %1125 = vmatpush.bf16.msra.mxu0 0
  %1126 = vmatpush.bf16.msra.mxu0 0
  %1127 = vmatpush.bf16.msra.mxu0 0
  %1128 = vmatpush.bf16.msra.mxu0 0
  %1129 = vmatpush.bf16.msra.mxu0 0
  %1130 = vmatpush.bf16.msra.mxu0 %v986
  %1131 = vmatmul.bf16.gmra.mxu0 %v110
  %v1132 = vpop.f32.mrf.mxu0
  %v1133 = vadd.f32 %v42, %v1132
  %v1134 = vpop.f32.mrf.mxu0
  %1135 = vdwg.mxu0
  %1136 = vmatpush.bf16.msra.mxu0 0
  %1137 = vmatpush.bf16.msra.mxu0 0
  %1138 = vmatpush.bf16.msra.mxu0 0
  %1139 = vmatpush.bf16.msra.mxu0 0
  %1140 = vmatpush.bf16.msra.mxu0 0
  %1141 = vmatpush.bf16.msra.mxu0 0
  %1142 = vmatpush.bf16.msra.mxu0 0
  %1143 = vmatpush.bf16.msra.mxu0 %v989
  %1144 = vmatmul.bf16.gmra.mxu0 %v110
  %v1145 = vpop.f32.mrf.mxu0
  %v1146 = vadd.f32 %v42, %v1145
  %v1147 = vpop.f32.mrf.mxu0
  %1148 = vdwg.mxu0
  %1149 = vmatpush.bf16.msra.mxu0 0
  %1150 = vmatpush.bf16.msra.mxu0 0
  %1151 = vmatpush.bf16.msra.mxu0 0
  %1152 = vmatpush.bf16.msra.mxu0 0
  %1153 = vmatpush.bf16.msra.mxu0 0
  %1154 = vmatpush.bf16.msra.mxu0 0
  %1155 = vmatpush.bf16.msra.mxu0 0
  %1156 = vmatpush.bf16.msra.mxu0 %v992
  %1157 = vmatmul.bf16.gmra.mxu0 %v110
  %v1158 = vpop.f32.mrf.mxu0
  %v1159 = vadd.f32 %v42, %v1158
  %v1160 = vpop.f32.mrf.mxu0
  %1161 = vdwg.mxu0
  %1162 = vmatpush.bf16.msra.mxu0 0
  %1163 = vmatpush.bf16.msra.mxu0 0
  %1164 = vmatpush.bf16.msra.mxu0 0
  %1165 = vmatpush.bf16.msra.mxu0 0
  %1166 = vmatpush.bf16.msra.mxu0 0
  %1167 = vmatpush.bf16.msra.mxu0 0
  %1168 = vmatpush.bf16.msra.mxu0 0
  %1169 = vmatpush.bf16.msra.mxu0 %v995
  %1170 = vmatmul.bf16.gmra.mxu0 %v110
  %v1171 = vpop.f32.mrf.mxu0
  %v1172 = vadd.f32 %v42, %v1171
  %v1173 = vpop.f32.mrf.mxu0
  %1174 = vdwg.mxu0
  %1175 = vmatpush.bf16.msra.mxu0 0
  %1176 = vmatpush.bf16.msra.mxu0 0
  %1177 = vmatpush.bf16.msra.mxu0 0
  %1178 = vmatpush.bf16.msra.mxu0 0
  %1179 = vmatpush.bf16.msra.mxu0 0
  %1180 = vmatpush.bf16.msra.mxu0 0
  %1181 = vmatpush.bf16.msra.mxu0 0
  %1182 = vmatpush.bf16.msra.mxu0 %v998
  %1183 = vmatmul.bf16.gmra.mxu0 %v110
  %v1184 = vpop.f32.mrf.mxu0
  %v1185 = vadd.f32 %v42, %v1184
  %v1186 = vpop.f32.mrf.mxu0
  %1187 = vdwg.mxu0
  %1188 = vmatpush.bf16.msra.mxu0 0
  %1189 = vmatpush.bf16.msra.mxu0 0
  %1190 = vmatpush.bf16.msra.mxu0 0
  %1191 = vmatpush.bf16.msra.mxu0 0
  %1192 = vmatpush.bf16.msra.mxu0 0
  %1193 = vmatpush.bf16.msra.mxu0 0
  %1194 = vmatpush.bf16.msra.mxu0 0
  %1195 = vmatpush.bf16.msra.mxu0 %v1001
  %1196 = vmatmul.bf16.gmra.mxu0 %v110
  %v1197 = vpop.f32.mrf.mxu0
  %v1198 = vadd.f32 %v42, %v1197
  %v1199 = vpop.f32.mrf.mxu0
  %1200 = vdwg.mxu0
  %1201 = vmatpush.bf16.msra.mxu0 0
  %1202 = vmatpush.bf16.msra.mxu0 0
  %1203 = vmatpush.bf16.msra.mxu0 0
  %1204 = vmatpush.bf16.msra.mxu0 0
  %1205 = vmatpush.bf16.msra.mxu0 0
  %1206 = vmatpush.bf16.msra.mxu0 0
  %1207 = vmatpush.bf16.msra.mxu0 0
  %1208 = vmatpush.bf16.msra.mxu0 %v1004
  %1209 = vmatmul.bf16.gmra.mxu0 %v110
  %v1210 = vpop.f32.mrf.mxu0
  %v1211 = vadd.f32 %v42, %v1210
  %v1212 = vpop.f32.mrf.mxu0
  %1213 = vdwg.mxu0
  %v1214 = vmul.f32 %v1016, 0.25
  %v1215 = vmul.f32 %v1029, 0.25
  %v1216 = vmul.f32 %v1042, 0.25
  %v1217 = vmul.f32 %v1055, 0.25
  %v1218 = vmul.f32 %v1068, 0.25
  %v1219 = vmul.f32 %v1081, 0.25
  %v1220 = vmul.f32 %v1094, 0.25
  %v1221 = vmul.f32 %v1107, 0.25
  %v1222 = vmul.f32 %v1120, 0.25
  %v1223 = vmul.f32 %v1133, 0.25
  %v1224 = vmul.f32 %v1146, 0.25
  %v1225 = vmul.f32 %v1159, 0.25
  %v1226 = vmul.f32 %v1172, 0.25
  %v1227 = vmul.f32 %v1185, 0.25
  %v1228 = vmul.f32 %v1198, 0.25
  %v1229 = vmul.f32 %v1211, 0.25
  %v1230 = vadd.f32 %v809, %v1214
  %v1231 = vadd.f32 %v810, %v1215
  %v1232 = vadd.f32 %v811, %v1216
  %v1233 = vadd.f32 %v812, %v1217
  %v1234 = vadd.f32 %v813, %v1218
  %v1235 = vadd.f32 %v814, %v1219
  %v1236 = vadd.f32 %v815, %v1220
  %v1237 = vadd.f32 %v816, %v1221
  %v1238 = vadd.f32 %v817, %v1222
  %v1239 = vadd.f32 %v818, %v1223
  %v1240 = vadd.f32 %v819, %v1224
  %v1241 = vadd.f32 %v820, %v1225
  %v1242 = vadd.f32 %v821, %v1226
  %v1243 = vadd.f32 %v822, %v1227
  %v1244 = vadd.f32 %v823, %v1228
  %v1245 = vadd.f32 %v824, %v1229
  %v1246 = vadd.f32 %v1016, %v1029
  %v1247 = vadd.f32 %v1246, %v1042
  %v1248 = vadd.f32 %v1247, %v1055
  %v1249 = vadd.f32 %v1248, %v1068
  %v1250 = vadd.f32 %v1249, %v1081
  %v1251 = vadd.f32 %v1250, %v1094
  %v1252 = vadd.f32 %v1251, %v1107
  %v1253 = vadd.f32 %v1252, %v1120
  %v1254 = vadd.f32 %v1253, %v1133
  %v1255 = vadd.f32 %v1254, %v1146
  %v1256 = vadd.f32 %v1255, %v1159
  %v1257 = vadd.f32 %v1256, %v1172
  %v1258 = vadd.f32 %v1257, %v1185
  %v1259 = vadd.f32 %v1258, %v1198
  %v1260 = vadd.f32 %v1259, %v1211
  %1261 = vadd.xlane.f32.xlu0 %v1260
  %v1262 = vpop.xlane.xlu0 %1261
  %v1263 = vadd.f32 %v842, %v1262
  %v1264 = vmul.f32 %v1016, %v1016
  %v1265 = vmul.f32 %v1029, %v1029
  %v1266 = vmul.f32 %v1042, %v1042
  %v1267 = vmul.f32 %v1055, %v1055
  %v1268 = vmul.f32 %v1068, %v1068
  %v1269 = vmul.f32 %v1081, %v1081
  %v1270 = vmul.f32 %v1094, %v1094
  %v1271 = vmul.f32 %v1107, %v1107
  %v1272 = vmul.f32 %v1120, %v1120
  %v1273 = vmul.f32 %v1133, %v1133
  %v1274 = vmul.f32 %v1146, %v1146
  %v1275 = vmul.f32 %v1159, %v1159
  %v1276 = vmul.f32 %v1172, %v1172
  %v1277 = vmul.f32 %v1185, %v1185
  %v1278 = vmul.f32 %v1198, %v1198
  %v1279 = vmul.f32 %v1211, %v1211
  %v1280 = vadd.f32 %v1264, %v1265
  %v1281 = vadd.f32 %v1280, %v1266
  %v1282 = vadd.f32 %v1281, %v1267
  %v1283 = vadd.f32 %v1282, %v1268
  %v1284 = vadd.f32 %v1283, %v1269
  %v1285 = vadd.f32 %v1284, %v1270
  %v1286 = vadd.f32 %v1285, %v1271
  %v1287 = vadd.f32 %v1286, %v1272
  %v1288 = vadd.f32 %v1287, %v1273
  %v1289 = vadd.f32 %v1288, %v1274
  %v1290 = vadd.f32 %v1289, %v1275
  %v1291 = vadd.f32 %v1290, %v1276
  %v1292 = vadd.f32 %v1291, %v1277
  %v1293 = vadd.f32 %v1292, %v1278
  %v1294 = vadd.f32 %v1293, %v1279
  %1295 = vadd.xlane.f32.xlu0 %v1294
  %v1296 = vpop.xlane.xlu0 %1295
  %v1297 = vadd.f32 %v876, %v1296
  %s1298 = scalar_lea.vmem %s1, 384
  %v1299 = vld [vmem:[%s1298] sm:$0xff]
  %v1300 = vld [vmem:[%s1298 + $0x8] sm:$0xff]
  %v1301 = vld [vmem:[%s1298 + $0x10] sm:$0xff]
  %v1302 = vld [vmem:[%s1298 + $0x18] sm:$0xff]
  %v1303 = vld [vmem:[%s1298 + $0x20] sm:$0xff]
  %v1304 = vld [vmem:[%s1298 + $0x28] sm:$0xff]
  %v1305 = vld [vmem:[%s1298 + $0x30] sm:$0xff]
  %v1306 = vld [vmem:[%s1298 + $0x38] sm:$0xff]
  %v1307 = vld [vmem:[%s1298 + $0x40] sm:$0x11]
  %v1308 = vld [vmem:[%s1298 + $0x48] sm:$0x11]
  %v1309 = vld [vmem:[%s1298 + $0x50] sm:$0x11]
  %v1310 = vld [vmem:[%s1298 + $0x58] sm:$0x11]
  %v1311 = vld [vmem:[%s1298 + $0x60] sm:$0x11]
  %v1312 = vld [vmem:[%s1298 + $0x68] sm:$0x11]
  %v1313 = vld [vmem:[%s1298 + $0x70] sm:$0x11]
  %v1314 = vld [vmem:[%s1298 + $0x78] sm:$0x11]
  %v1331 = vunpack.c.l.b16 %v1299
  %v1332 = vunpack.c.h.b16 %v1299
  %v1333 = vunpack.c.l.b16 %v1300
  %v1334 = vunpack.c.h.b16 %v1300
  %v1335 = vunpack.c.l.b16 %v1301
  %v1336 = vunpack.c.h.b16 %v1301
  %v1337 = vunpack.c.l.b16 %v1302
  %v1338 = vunpack.c.h.b16 %v1302
  %v1339 = vunpack.c.l.b16 %v1303
  %v1340 = vunpack.c.h.b16 %v1303
  %v1341 = vunpack.c.l.b16 %v1304
  %v1342 = vunpack.c.h.b16 %v1304
  %v1343 = vunpack.c.l.b16 %v1305
  %v1344 = vunpack.c.h.b16 %v1305
  %v1345 = vunpack.c.l.b16 %v1306
  %v1346 = vunpack.c.h.b16 %v1306
  %v1347 = vunpack.c.l.b16 %v1307
  %v1348 = vunpack.c.h.b16 %v1307
  %v1349 = vunpack.c.l.b16 %v1308
  %v1350 = vunpack.c.h.b16 %v1308
  %v1351 = vunpack.c.l.b16 %v1309
  %v1352 = vunpack.c.h.b16 %v1309
  %v1353 = vunpack.c.l.b16 %v1310
  %v1354 = vunpack.c.h.b16 %v1310
  %v1355 = vunpack.c.l.b16 %v1311
  %v1356 = vunpack.c.h.b16 %v1311
  %v1357 = vunpack.c.l.b16 %v1312
  %v1358 = vunpack.c.h.b16 %v1312
  %v1359 = vunpack.c.l.b16 %v1313
  %v1360 = vunpack.c.h.b16 %v1313
  %v1361 = vunpack.c.l.b16 %v1314
  %v1362 = vunpack.c.h.b16 %v1314
  %v1363 = vpack.c.b16 %v1347, %v1331
  %v1364 = vpack.c.b16 %v1348, %v1332
  %v1365 = vpack.c.b16 %v1349, %v1333
  %v1366 = vpack.c.b16 %v1350, %v1334
  %v1367 = vpack.c.b16 %v1351, %v1335
  %v1368 = vpack.c.b16 %v1352, %v1336
  %v1369 = vpack.c.b16 %v1353, %v1337
  %v1370 = vpack.c.b16 %v1354, %v1338
  %v1371 = vpack.c.b16 %v1355, %v1339
  %v1372 = vpack.c.b16 %v1356, %v1340
  %v1373 = vpack.c.b16 %v1357, %v1341
  %v1374 = vpack.c.b16 %v1358, %v1342
  %v1375 = vpack.c.b16 %v1359, %v1343
  %v1376 = vpack.c.b16 %v1360, %v1344
  %v1377 = vpack.c.b16 %v1361, %v1345
  %v1378 = vpack.c.b16 %v1362, %v1346
  %v1380 = vand.u32 %v1363, %v115
  %v1383 = vand.u32 %v1364, %v115
  %v1386 = vand.u32 %v1365, %v115
  %v1389 = vand.u32 %v1366, %v115
  %v1392 = vand.u32 %v1367, %v115
  %v1395 = vand.u32 %v1368, %v115
  %v1398 = vand.u32 %v1369, %v115
  %v1401 = vand.u32 %v1370, %v115
  %v1404 = vand.u32 %v1371, %v115
  %v1407 = vand.u32 %v1372, %v115
  %v1410 = vand.u32 %v1373, %v115
  %v1413 = vand.u32 %v1374, %v115
  %v1416 = vand.u32 %v1375, %v115
  %v1419 = vand.u32 %v1376, %v115
  %v1422 = vand.u32 %v1377, %v115
  %v1425 = vand.u32 %v1378, %v115
  %1427 = vmatpush.bf16.msra.mxu0 0
  %1428 = vmatpush.bf16.msra.mxu0 0
  %1429 = vmatpush.bf16.msra.mxu0 0
  %1430 = vmatpush.bf16.msra.mxu0 0
  %1431 = vmatpush.bf16.msra.mxu0 0
  %1432 = vmatpush.bf16.msra.mxu0 0
  %1433 = vmatpush.bf16.msra.mxu0 0
  %1434 = vmatpush.bf16.msra.mxu0 %v1380
  %1435 = vmatmul.bf16.gmra.mxu0 %v110
  %v1436 = vpop.f32.mrf.mxu0
  %v1437 = vadd.f32 %v42, %v1436
  %v1438 = vpop.f32.mrf.mxu0
  %1439 = vdwg.mxu0
  %1440 = vmatpush.bf16.msra.mxu0 0
  %1441 = vmatpush.bf16.msra.mxu0 0
  %1442 = vmatpush.bf16.msra.mxu0 0
  %1443 = vmatpush.bf16.msra.mxu0 0
  %1444 = vmatpush.bf16.msra.mxu0 0
  %1445 = vmatpush.bf16.msra.mxu0 0
  %1446 = vmatpush.bf16.msra.mxu0 0
  %1447 = vmatpush.bf16.msra.mxu0 %v1383
  %1448 = vmatmul.bf16.gmra.mxu0 %v110
  %v1449 = vpop.f32.mrf.mxu0
  %v1450 = vadd.f32 %v42, %v1449
  %v1451 = vpop.f32.mrf.mxu0
  %1452 = vdwg.mxu0
  %1453 = vmatpush.bf16.msra.mxu0 0
  %1454 = vmatpush.bf16.msra.mxu0 0
  %1455 = vmatpush.bf16.msra.mxu0 0
  %1456 = vmatpush.bf16.msra.mxu0 0
  %1457 = vmatpush.bf16.msra.mxu0 0
  %1458 = vmatpush.bf16.msra.mxu0 0
  %1459 = vmatpush.bf16.msra.mxu0 0
  %1460 = vmatpush.bf16.msra.mxu0 %v1386
  %1461 = vmatmul.bf16.gmra.mxu0 %v110
  %v1462 = vpop.f32.mrf.mxu0
  %v1463 = vadd.f32 %v42, %v1462
  %v1464 = vpop.f32.mrf.mxu0
  %1465 = vdwg.mxu0
  %1466 = vmatpush.bf16.msra.mxu0 0
  %1467 = vmatpush.bf16.msra.mxu0 0
  %1468 = vmatpush.bf16.msra.mxu0 0
  %1469 = vmatpush.bf16.msra.mxu0 0
  %1470 = vmatpush.bf16.msra.mxu0 0
  %1471 = vmatpush.bf16.msra.mxu0 0
  %1472 = vmatpush.bf16.msra.mxu0 0
  %1473 = vmatpush.bf16.msra.mxu0 %v1389
  %1474 = vmatmul.bf16.gmra.mxu0 %v110
  %v1475 = vpop.f32.mrf.mxu0
  %v1476 = vadd.f32 %v42, %v1475
  %v1477 = vpop.f32.mrf.mxu0
  %1478 = vdwg.mxu0
  %1479 = vmatpush.bf16.msra.mxu0 0
  %1480 = vmatpush.bf16.msra.mxu0 0
  %1481 = vmatpush.bf16.msra.mxu0 0
  %1482 = vmatpush.bf16.msra.mxu0 0
  %1483 = vmatpush.bf16.msra.mxu0 0
  %1484 = vmatpush.bf16.msra.mxu0 0
  %1485 = vmatpush.bf16.msra.mxu0 0
  %1486 = vmatpush.bf16.msra.mxu0 %v1392
  %1487 = vmatmul.bf16.gmra.mxu0 %v110
  %v1488 = vpop.f32.mrf.mxu0
  %v1489 = vadd.f32 %v42, %v1488
  %v1490 = vpop.f32.mrf.mxu0
  %1491 = vdwg.mxu0
  %1492 = vmatpush.bf16.msra.mxu0 0
  %1493 = vmatpush.bf16.msra.mxu0 0
  %1494 = vmatpush.bf16.msra.mxu0 0
  %1495 = vmatpush.bf16.msra.mxu0 0
  %1496 = vmatpush.bf16.msra.mxu0 0
  %1497 = vmatpush.bf16.msra.mxu0 0
  %1498 = vmatpush.bf16.msra.mxu0 0
  %1499 = vmatpush.bf16.msra.mxu0 %v1395
  %1500 = vmatmul.bf16.gmra.mxu0 %v110
  %v1501 = vpop.f32.mrf.mxu0
  %v1502 = vadd.f32 %v42, %v1501
  %v1503 = vpop.f32.mrf.mxu0
  %1504 = vdwg.mxu0
  %1505 = vmatpush.bf16.msra.mxu0 0
  %1506 = vmatpush.bf16.msra.mxu0 0
  %1507 = vmatpush.bf16.msra.mxu0 0
  %1508 = vmatpush.bf16.msra.mxu0 0
  %1509 = vmatpush.bf16.msra.mxu0 0
  %1510 = vmatpush.bf16.msra.mxu0 0
  %1511 = vmatpush.bf16.msra.mxu0 0
  %1512 = vmatpush.bf16.msra.mxu0 %v1398
  %1513 = vmatmul.bf16.gmra.mxu0 %v110
  %v1514 = vpop.f32.mrf.mxu0
  %v1515 = vadd.f32 %v42, %v1514
  %v1516 = vpop.f32.mrf.mxu0
  %1517 = vdwg.mxu0
  %1518 = vmatpush.bf16.msra.mxu0 0
  %1519 = vmatpush.bf16.msra.mxu0 0
  %1520 = vmatpush.bf16.msra.mxu0 0
  %1521 = vmatpush.bf16.msra.mxu0 0
  %1522 = vmatpush.bf16.msra.mxu0 0
  %1523 = vmatpush.bf16.msra.mxu0 0
  %1524 = vmatpush.bf16.msra.mxu0 0
  %1525 = vmatpush.bf16.msra.mxu0 %v1401
  %1526 = vmatmul.bf16.gmra.mxu0 %v110
  %v1527 = vpop.f32.mrf.mxu0
  %v1528 = vadd.f32 %v42, %v1527
  %v1529 = vpop.f32.mrf.mxu0
  %1530 = vdwg.mxu0
  %1531 = vmatpush.bf16.msra.mxu0 0
  %1532 = vmatpush.bf16.msra.mxu0 0
  %1533 = vmatpush.bf16.msra.mxu0 0
  %1534 = vmatpush.bf16.msra.mxu0 0
  %1535 = vmatpush.bf16.msra.mxu0 0
  %1536 = vmatpush.bf16.msra.mxu0 0
  %1537 = vmatpush.bf16.msra.mxu0 0
  %1538 = vmatpush.bf16.msra.mxu0 %v1404
  %1539 = vmatmul.bf16.gmra.mxu0 %v110
  %v1540 = vpop.f32.mrf.mxu0
  %v1541 = vadd.f32 %v42, %v1540
  %v1542 = vpop.f32.mrf.mxu0
  %1543 = vdwg.mxu0
  %1544 = vmatpush.bf16.msra.mxu0 0
  %1545 = vmatpush.bf16.msra.mxu0 0
  %1546 = vmatpush.bf16.msra.mxu0 0
  %1547 = vmatpush.bf16.msra.mxu0 0
  %1548 = vmatpush.bf16.msra.mxu0 0
  %1549 = vmatpush.bf16.msra.mxu0 0
  %1550 = vmatpush.bf16.msra.mxu0 0
  %1551 = vmatpush.bf16.msra.mxu0 %v1407
  %1552 = vmatmul.bf16.gmra.mxu0 %v110
  %v1553 = vpop.f32.mrf.mxu0
  %v1554 = vadd.f32 %v42, %v1553
  %v1555 = vpop.f32.mrf.mxu0
  %1556 = vdwg.mxu0
  %1557 = vmatpush.bf16.msra.mxu0 0
  %1558 = vmatpush.bf16.msra.mxu0 0
  %1559 = vmatpush.bf16.msra.mxu0 0
  %1560 = vmatpush.bf16.msra.mxu0 0
  %1561 = vmatpush.bf16.msra.mxu0 0
  %1562 = vmatpush.bf16.msra.mxu0 0
  %1563 = vmatpush.bf16.msra.mxu0 0
  %1564 = vmatpush.bf16.msra.mxu0 %v1410
  %1565 = vmatmul.bf16.gmra.mxu0 %v110
  %v1566 = vpop.f32.mrf.mxu0
  %v1567 = vadd.f32 %v42, %v1566
  %v1568 = vpop.f32.mrf.mxu0
  %1569 = vdwg.mxu0
  %1570 = vmatpush.bf16.msra.mxu0 0
  %1571 = vmatpush.bf16.msra.mxu0 0
  %1572 = vmatpush.bf16.msra.mxu0 0
  %1573 = vmatpush.bf16.msra.mxu0 0
  %1574 = vmatpush.bf16.msra.mxu0 0
  %1575 = vmatpush.bf16.msra.mxu0 0
  %1576 = vmatpush.bf16.msra.mxu0 0
  %1577 = vmatpush.bf16.msra.mxu0 %v1413
  %1578 = vmatmul.bf16.gmra.mxu0 %v110
  %v1579 = vpop.f32.mrf.mxu0
  %v1580 = vadd.f32 %v42, %v1579
  %v1581 = vpop.f32.mrf.mxu0
  %1582 = vdwg.mxu0
  %1583 = vmatpush.bf16.msra.mxu0 0
  %1584 = vmatpush.bf16.msra.mxu0 0
  %1585 = vmatpush.bf16.msra.mxu0 0
  %1586 = vmatpush.bf16.msra.mxu0 0
  %1587 = vmatpush.bf16.msra.mxu0 0
  %1588 = vmatpush.bf16.msra.mxu0 0
  %1589 = vmatpush.bf16.msra.mxu0 0
  %1590 = vmatpush.bf16.msra.mxu0 %v1416
  %1591 = vmatmul.bf16.gmra.mxu0 %v110
  %v1592 = vpop.f32.mrf.mxu0
  %v1593 = vadd.f32 %v42, %v1592
  %v1594 = vpop.f32.mrf.mxu0
  %1595 = vdwg.mxu0
  %1596 = vmatpush.bf16.msra.mxu0 0
  %1597 = vmatpush.bf16.msra.mxu0 0
  %1598 = vmatpush.bf16.msra.mxu0 0
  %1599 = vmatpush.bf16.msra.mxu0 0
  %1600 = vmatpush.bf16.msra.mxu0 0
  %1601 = vmatpush.bf16.msra.mxu0 0
  %1602 = vmatpush.bf16.msra.mxu0 0
  %1603 = vmatpush.bf16.msra.mxu0 %v1419
  %1604 = vmatmul.bf16.gmra.mxu0 %v110
  %v1605 = vpop.f32.mrf.mxu0
  %v1606 = vadd.f32 %v42, %v1605
  %v1607 = vpop.f32.mrf.mxu0
  %1608 = vdwg.mxu0
  %1609 = vmatpush.bf16.msra.mxu0 0
  %1610 = vmatpush.bf16.msra.mxu0 0
  %1611 = vmatpush.bf16.msra.mxu0 0
  %1612 = vmatpush.bf16.msra.mxu0 0
  %1613 = vmatpush.bf16.msra.mxu0 0
  %1614 = vmatpush.bf16.msra.mxu0 0
  %1615 = vmatpush.bf16.msra.mxu0 0
  %1616 = vmatpush.bf16.msra.mxu0 %v1422
  %1617 = vmatmul.bf16.gmra.mxu0 %v110
  %v1618 = vpop.f32.mrf.mxu0
  %v1619 = vadd.f32 %v42, %v1618
  %v1620 = vpop.f32.mrf.mxu0
  %1621 = vdwg.mxu0
  %1622 = vmatpush.bf16.msra.mxu0 0
  %1623 = vmatpush.bf16.msra.mxu0 0
  %1624 = vmatpush.bf16.msra.mxu0 0
  %1625 = vmatpush.bf16.msra.mxu0 0
  %1626 = vmatpush.bf16.msra.mxu0 0
  %1627 = vmatpush.bf16.msra.mxu0 0
  %1628 = vmatpush.bf16.msra.mxu0 0
  %1629 = vmatpush.bf16.msra.mxu0 %v1425
  %1630 = vmatmul.bf16.gmra.mxu0 %v110
  %v1631 = vpop.f32.mrf.mxu0
  %v1632 = vadd.f32 %v42, %v1631
  %v1633 = vpop.f32.mrf.mxu0
  %1634 = vdwg.mxu0
  %v1635 = vmul.f32 %v1437, 0.25
  %v1636 = vmul.f32 %v1450, 0.25
  %v1637 = vmul.f32 %v1463, 0.25
  %v1638 = vmul.f32 %v1476, 0.25
  %v1639 = vmul.f32 %v1489, 0.25
  %v1640 = vmul.f32 %v1502, 0.25
  %v1641 = vmul.f32 %v1515, 0.25
  %v1642 = vmul.f32 %v1528, 0.25
  %v1643 = vmul.f32 %v1541, 0.25
  %v1644 = vmul.f32 %v1554, 0.25
  %v1645 = vmul.f32 %v1567, 0.25
  %v1646 = vmul.f32 %v1580, 0.25
  %v1647 = vmul.f32 %v1593, 0.25
  %v1648 = vmul.f32 %v1606, 0.25
  %v1649 = vmul.f32 %v1619, 0.25
  %v1650 = vmul.f32 %v1632, 0.25
  %v1651 = vadd.f32 %v1230, %v1635
  %v1652 = vadd.f32 %v1231, %v1636
  %v1653 = vadd.f32 %v1232, %v1637
  %v1654 = vadd.f32 %v1233, %v1638
  %v1655 = vadd.f32 %v1234, %v1639
  %v1656 = vadd.f32 %v1235, %v1640
  %v1657 = vadd.f32 %v1236, %v1641
  %v1658 = vadd.f32 %v1237, %v1642
  %v1659 = vadd.f32 %v1238, %v1643
  %v1660 = vadd.f32 %v1239, %v1644
  %v1661 = vadd.f32 %v1240, %v1645
  %v1662 = vadd.f32 %v1241, %v1646
  %v1663 = vadd.f32 %v1242, %v1647
  %v1664 = vadd.f32 %v1243, %v1648
  %v1665 = vadd.f32 %v1244, %v1649
  %v1666 = vadd.f32 %v1245, %v1650
  %v1667 = vadd.f32 %v1437, %v1450
  %v1668 = vadd.f32 %v1667, %v1463
  %v1669 = vadd.f32 %v1668, %v1476
  %v1670 = vadd.f32 %v1669, %v1489
  %v1671 = vadd.f32 %v1670, %v1502
  %v1672 = vadd.f32 %v1671, %v1515
  %v1673 = vadd.f32 %v1672, %v1528
  %v1674 = vadd.f32 %v1673, %v1541
  %v1675 = vadd.f32 %v1674, %v1554
  %v1676 = vadd.f32 %v1675, %v1567
  %v1677 = vadd.f32 %v1676, %v1580
  %v1678 = vadd.f32 %v1677, %v1593
  %v1679 = vadd.f32 %v1678, %v1606
  %v1680 = vadd.f32 %v1679, %v1619
  %v1681 = vadd.f32 %v1680, %v1632
  %1682 = vadd.xlane.f32.xlu0 %v1681
  %v1683 = vpop.xlane.xlu0 %1682
  %v1684 = vadd.f32 %v1263, %v1683
  %v1685 = vmul.f32 %v1437, %v1437
  %v1686 = vmul.f32 %v1450, %v1450
  %v1687 = vmul.f32 %v1463, %v1463
  %v1688 = vmul.f32 %v1476, %v1476
  %v1689 = vmul.f32 %v1489, %v1489
  %v1690 = vmul.f32 %v1502, %v1502
  %v1691 = vmul.f32 %v1515, %v1515
  %v1692 = vmul.f32 %v1528, %v1528
  %v1693 = vmul.f32 %v1541, %v1541
  %v1694 = vmul.f32 %v1554, %v1554
  %v1695 = vmul.f32 %v1567, %v1567
  %v1696 = vmul.f32 %v1580, %v1580
  %v1697 = vmul.f32 %v1593, %v1593
  %v1698 = vmul.f32 %v1606, %v1606
  %v1699 = vmul.f32 %v1619, %v1619
  %v1700 = vmul.f32 %v1632, %v1632
  %v1701 = vadd.f32 %v1685, %v1686
  %v1702 = vadd.f32 %v1701, %v1687
  %v1703 = vadd.f32 %v1702, %v1688
  %v1704 = vadd.f32 %v1703, %v1689
  %v1705 = vadd.f32 %v1704, %v1690
  %v1706 = vadd.f32 %v1705, %v1691
  %v1707 = vadd.f32 %v1706, %v1692
  %v1708 = vadd.f32 %v1707, %v1693
  %v1709 = vadd.f32 %v1708, %v1694
  %v1710 = vadd.f32 %v1709, %v1695
  %v1711 = vadd.f32 %v1710, %v1696
  %v1712 = vadd.f32 %v1711, %v1697
  %v1713 = vadd.f32 %v1712, %v1698
  %v1714 = vadd.f32 %v1713, %v1699
  %v1715 = vadd.f32 %v1714, %v1700
  %1716 = vadd.xlane.f32.xlu0 %v1715
  %v1717 = vpop.xlane.xlu0 %1716
  %v1718 = vadd.f32 %v1297, %v1717
  %v1719 = vrcp.pop 8192.0
  %v1720 = vmul.f32 8192.0, %v1719
  %v1721 = vsub.f32 1.0, %v1720
  %v1722 = vmul.f32 %v1719, %v1721
  %v1723 = vadd.f32 %v1719, %v1722
  %vm1724 = vweird.f32 %v1719
  %v1725 = vsel %vm1724, %v1719, %v1723
  %v1726 = vmul.f32 %v1684, %v1725
  %v1727 = vmul.f32 %v1718, %v1725
  %v1728 = vmul.f32 %v1726, %v1726
  %v1729 = vsub.f32 %v1727, %v1728
  %v1730 = vld [vmem:[%s3] sm:$0xff]
  %v1731 = vadd.f32 %v1729, 1e-05
  %v1732 = vrsqrt.pop %v1731
  %v1733 = vmul.f32 %v1732, %v1731
  %v1734 = vmul.f32 %v1733, %v1732
  %v1735 = vmul.f32 0.5, %v1734
  %v1736 = vsub.f32 1.5, %v1735
  %v1737 = vmul.f32 %v1732, %v1736
  %v1738 = vmul.f32 %v1731, %v1737
  %vm1739 = vcmp.eq.f32.partialorder %v1731, inf
  %v1740 = vsel %vm1739, %v1731, %v1738
  %vm1741 = vcmp.eq.f32.partialorder %v1731, 0.0
  %v1742 = vand.u32 %v1731, 2147483648
  %v1743 = vsel %vm1741, %v1742, %v1740
  %v1744 = vrcp.pop %v1743
  %v1745 = vmul.f32 %v1743, %v1744
  %v1746 = vsub.f32 1.0, %v1745
  %v1747 = vmul.f32 %v1744, %v1746
  %v1748 = vadd.f32 %v1744, %v1747
  %vm1749 = vweird.f32 %v1743
  %vm1750 = vweird.f32 %v1744
  %vm1751 = vmor %vm1749, %vm1750
  %v1752 = vsel %vm1751, %v1744, %v1748
  %v1753 = vand.u32 2147483647, %v1743
  %vm1754 = vcmp.eq.f32.partialorder %v1753, 8.507059e+37
  %v1755 = vand.u32 %v1743, 2147483648
  %v1756 = vor.u32 1.1754944e-38, %v1755
  %v1757 = vsel %vm1754, %v1756, %v1752
  %v1758 = vmul.f32 %v1730, %v1757
  %v1759 = vld [vmem:[%s4] sm:$0xff]
  %v1760 = vmul.f32 %v1726, %v1758
  %v1761 = vsub.f32 %v1759, %v1760
  %1763 = vset.pattern.permute.xlu0 0
  %1764 = vperm.xlu0 %1763, %v1758
  %v1765 = vpop.permute.xlu0 %1764
  %v1767 = vmul.f32 %v1651, %v1765
  %v1768 = vmul.f32 %v1652, %v1765
  %v1769 = vmul.f32 %v1653, %v1765
  %v1770 = vmul.f32 %v1654, %v1765
  %v1771 = vmul.f32 %v1655, %v1765
  %v1772 = vmul.f32 %v1656, %v1765
  %v1773 = vmul.f32 %v1657, %v1765
  %v1774 = vmul.f32 %v1658, %v1765
  %v1775 = vmul.f32 %v1659, %v1765
  %v1776 = vmul.f32 %v1660, %v1765
  %v1777 = vmul.f32 %v1661, %v1765
  %v1778 = vmul.f32 %v1662, %v1765
  %v1779 = vmul.f32 %v1663, %v1765
  %v1780 = vmul.f32 %v1664, %v1765
  %v1781 = vmul.f32 %v1665, %v1765
  %v1782 = vmul.f32 %v1666, %v1765
  %1784 = vset.pattern.permute.xlu0 0
  %1785 = vperm.xlu0 %1784, %v1761
  %v1786 = vpop.permute.xlu0 %1785
  %v1788 = vadd.f32 %v1767, %v1786
  %v1789 = vadd.f32 %v1768, %v1786
  %v1790 = vadd.f32 %v1769, %v1786
  %v1791 = vadd.f32 %v1770, %v1786
  %v1792 = vadd.f32 %v1771, %v1786
  %v1793 = vadd.f32 %v1772, %v1786
  %v1794 = vadd.f32 %v1773, %v1786
  %v1795 = vadd.f32 %v1774, %v1786
  %v1796 = vadd.f32 %v1775, %v1786
  %v1797 = vadd.f32 %v1776, %v1786
  %v1798 = vadd.f32 %v1777, %v1786
  %v1799 = vadd.f32 %v1778, %v1786
  %v1800 = vadd.f32 %v1779, %v1786
  %v1801 = vadd.f32 %v1780, %v1786
  %v1802 = vadd.f32 %v1781, %v1786
  %v1803 = vadd.f32 %v1782, %v1786
  %v1804 = vmax.f32 %v1788, 0.0
  %v1805 = vmax.f32 %v1789, 0.0
  %v1806 = vmax.f32 %v1790, 0.0
  %v1807 = vmax.f32 %v1791, 0.0
  %v1808 = vmax.f32 %v1792, 0.0
  %v1809 = vmax.f32 %v1793, 0.0
  %v1810 = vmax.f32 %v1794, 0.0
  %v1811 = vmax.f32 %v1795, 0.0
  %v1812 = vmax.f32 %v1796, 0.0
  %v1813 = vmax.f32 %v1797, 0.0
  %v1814 = vmax.f32 %v1798, 0.0
  %v1815 = vmax.f32 %v1799, 0.0
  %v1816 = vmax.f32 %v1800, 0.0
  %v1817 = vmax.f32 %v1801, 0.0
  %v1818 = vmax.f32 %v1802, 0.0
  %v1819 = vmax.f32 %v1803, 0.0
  %1820 = vst [vmem:[%s5] sm:$0xff] %v1804
  %1821 = vst [vmem:[%s5 + $0x8] sm:$0xff] %v1805
  %1822 = vst [vmem:[%s5 + $0x10] sm:$0xff] %v1806
  %1823 = vst [vmem:[%s5 + $0x18] sm:$0xff] %v1807
  %1824 = vst [vmem:[%s5 + $0x20] sm:$0xff] %v1808
  %1825 = vst [vmem:[%s5 + $0x28] sm:$0xff] %v1809
  %1826 = vst [vmem:[%s5 + $0x30] sm:$0xff] %v1810
  %1827 = vst [vmem:[%s5 + $0x38] sm:$0xff] %v1811
  %1828 = vst [vmem:[%s5 + $0x40] sm:$0xff] %v1812
  %1829 = vst [vmem:[%s5 + $0x48] sm:$0xff] %v1813
  %1830 = vst [vmem:[%s5 + $0x50] sm:$0xff] %v1814
  %1831 = vst [vmem:[%s5 + $0x58] sm:$0xff] %v1815
  %1832 = vst [vmem:[%s5 + $0x60] sm:$0xff] %v1816
  %1833 = vst [vmem:[%s5 + $0x68] sm:$0xff] %v1817
  %1834 = vst [vmem:[%s5 + $0x70] sm:$0xff] %v1818
  %1835 = vst [vmem:[%s5 + $0x78] sm:$0xff] %v1819
  // Predicated region
  $region22: #{vae_forward.9} parent=0 // pred_check
    _
  $region23: #{vae_forward.9} parent=0 // pred_check_branch
    %1837 = sbr.rel (0) target = $region25
  $region24: #{vae_forward.9} parent=0 // pred_region
    _
  $region25: #{vae_forward.9} parent=0 // pred_fallthru
    _
  // Predicated region
  $region26: #{vae_forward.9} parent=0 // pred_check
    _
  $region27: #{vae_forward.9} parent=0 // pred_check_branch
    %1839 = sbr.rel (0) target = $region29
  $region28: #{vae_forward.9} parent=0 // pred_region
    _
  $region29: #{vae_forward.9} parent=0 // pred_fallthru
    _

// kernel: vae_forward.10
$region0: #{vae_forward.10}
  #allocation0 [shape = 'u32[]', space=smem, size = 0x4, offset = 0x4, fixed_abs, tag = 'smem constant byte address 0x4 - core index']
  #allocation1 [shape = 'u32[72,128]{1,0:T(1,128)}', space=vmem, size = 0x9000, scoped, tag = 'internal scratch']
  %s0 = inlined_call_operand.vmem [shape: bf16[16,72], index: 0, kind: input, shape index: {}]
  %s1 = inlined_call_operand.vmem [shape: bf16[4,72,512], index: 1, kind: input, shape index: {}]
  %s2 = inlined_call_operand.vmem [shape: f32[16,1], index: 2, kind: input, shape index: {}]
  %s3 = inlined_call_operand.vmem [shape: f32[16,1], index: 3, kind: input, shape index: {}]
  %s4 = inlined_call_operand.vmem [shape: f32[16,1], index: 4, kind: input, shape index: {}]
  %s5 = inlined_call_operand.vmem [shape: f32[16,512], index: 5, kind: output, shape index: {}]
  %s6 = sld [smem:[#allocation0]]
  $region30: #{vae_forward.10} parent=0
    _
  %s8 = ssub.s32 1, %s6
  %s9 = scalar_select 0, %s8, %s6
  // Predicated region
  $region2: #{vae_forward.10} parent=0 // pred_check
    _
  $region3: #{vae_forward.10} parent=0 // pred_check_branch
    %11 = sbr.rel (0) target = $region5
  $region4: #{vae_forward.10} parent=0 // pred_region
    _
  $region5: #{vae_forward.10} parent=0 // pred_fallthru
    _
  // Predicated region
  $region6: #{vae_forward.10} parent=0 // pred_check
    _
  $region7: #{vae_forward.10} parent=0 // pred_check_branch
    %13 = sbr.rel (0) target = $region9
  $region8: #{vae_forward.10} parent=0 // pred_region
    _
  $region9: #{vae_forward.10} parent=0 // pred_fallthru
    _
  // Predicated region
  $region10: #{vae_forward.10} parent=0 // pred_check
    _
  $region11: #{vae_forward.10} parent=0 // pred_check_branch
    %15 = sbr.rel (0) target = $region13
  $region12: #{vae_forward.10} parent=0 // pred_region
    _
  $region13: #{vae_forward.10} parent=0 // pred_fallthru
    _
  // Predicated region
  $region14: #{vae_forward.10} parent=0 // pred_check
    _
  $region15: #{vae_forward.10} parent=0 // pred_check_branch
    %17 = sbr.rel (0) target = $region17
  $region16: #{vae_forward.10} parent=0 // pred_region
    _
  $region17: #{vae_forward.10} parent=0 // pred_fallthru
    _
  // Predicated region
  $region18: #{vae_forward.10} parent=0 // pred_check
    _
  $region19: #{vae_forward.10} parent=0 // pred_check_branch
    %19 = sbr.rel (0) target = $region21
  $region20: #{vae_forward.10} parent=0 // pred_region
    _
  $region21: #{vae_forward.10} parent=0 // pred_fallthru
    _
  %v21 = vld [vmem:[%s0] sm:$0xf]
  %v22 = vld [vmem:[%s0 + $0x4] sm:$0xf]
  %v23 = vld [vmem:[%s2] sm:$0xff]
  %v24 = vld [vmem:[%s2 + $0x8] sm:$0xff]
  %v25 = vld [vmem:[%s1] sm:$0xff]
  %v26 = vld [vmem:[%s1 + $0x8] sm:$0xff]
  %v27 = vld [vmem:[%s1 + $0x10] sm:$0xff]
  %v28 = vld [vmem:[%s1 + $0x18] sm:$0xff]
  %v29 = vld [vmem:[%s1 + $0x20] sm:$0xff]
  %v30 = vld [vmem:[%s1 + $0x28] sm:$0xff]
  %v31 = vld [vmem:[%s1 + $0x30] sm:$0xff]
  %v32 = vld [vmem:[%s1 + $0x38] sm:$0xff]
  %v33 = vld [vmem:[%s1 + $0x40] sm:$0xff]
  %v34 = vld [vmem:[%s1 + $0x48] sm:$0xff]
  %v35 = vld [vmem:[%s1 + $0x50] sm:$0xff]
  %v36 = vld [vmem:[%s1 + $0x58] sm:$0xff]
  %v37 = vld [vmem:[%s1 + $0x60] sm:$0xff]
  %v38 = vld [vmem:[%s1 + $0x68] sm:$0xff]
  %v39 = vld [vmem:[%s1 + $0x70] sm:$0xff]
  %v40 = vld [vmem:[%s1 + $0x78] sm:$0xff]
  %v41 = vld [vmem:[%s1 + $0x80] sm:$0xff]
  %v42 = vld [vmem:[%s1 + $0x88] sm:$0xff]
  %44 = vset.pattern.permute.xlu0 0
  %45 = vperm.xlu0 %44, %v23
  %v46 = vpop.permute.xlu0 %45
  %49 = vset.pattern.permute.xlu0 0
  %50 = vperm.xlu0 %49, %v24
  %v51 = vpop.permute.xlu0 %50
  %v55 = vunpack.c.l.b16 %v21
  %v56 = vunpack.c.l.b16 %v22
  %v57 = vpack.c.b16 %v56, %v55
  %v76 = vunpack.c.l.b16 %v25
  %v77 = vunpack.c.h.b16 %v25
  %v78 = vunpack.c.l.b16 %v26
  %v79 = vunpack.c.h.b16 %v26
  %v80 = vunpack.c.l.b16 %v27
  %v81 = vunpack.c.h.b16 %v27
  %v82 = vunpack.c.l.b16 %v28
  %v83 = vunpack.c.h.b16 %v28
  %v84 = vunpack.c.l.b16 %v29
  %v85 = vunpack.c.h.b16 %v29
  %v86 = vunpack.c.l.b16 %v30
  %v87 = vunpack.c.h.b16 %v30
  %v88 = vunpack.c.l.b16 %v31
  %v89 = vunpack.c.h.b16 %v31
  %v90 = vunpack.c.l.b16 %v32
  %v91 = vunpack.c.h.b16 %v32
  %v92 = vunpack.c.l.b16 %v33
  %v93 = vunpack.c.h.b16 %v33
  %v94 = vunpack.c.l.b16 %v34
  %v95 = vunpack.c.h.b16 %v34
  %v96 = vunpack.c.l.b16 %v35
  %v97 = vunpack.c.h.b16 %v35
  %v98 = vunpack.c.l.b16 %v36
  %v99 = vunpack.c.h.b16 %v36
  %v100 = vunpack.c.l.b16 %v37
  %v101 = vunpack.c.h.b16 %v37
  %v102 = vunpack.c.l.b16 %v38
  %v103 = vunpack.c.h.b16 %v38
  %v104 = vunpack.c.l.b16 %v39
  %v105 = vunpack.c.h.b16 %v39
  %v106 = vunpack.c.l.b16 %v40
  %v107 = vunpack.c.h.b16 %v40
  %v108 = vunpack.c.l.b16 %v41
  %v109 = vunpack.c.h.b16 %v41
  %v110 = vunpack.c.l.b16 %v42
  %v111 = vunpack.c.h.b16 %v42
  %v112 = vpack.c.b16 %v80, %v76
  %v113 = vpack.c.b16 %v81, %v77
  %v114 = vpack.c.b16 %v82, %v78
  %v115 = vpack.c.b16 %v83, %v79
  %v116 = vpack.c.b16 %v88, %v84
  %v117 = vpack.c.b16 %v89, %v85
  %v118 = vpack.c.b16 %v90, %v86
  %v119 = vpack.c.b16 %v91, %v87
  %v120 = vpack.c.b16 %v96, %v92
  %v121 = vpack.c.b16 %v97, %v93
  %v122 = vpack.c.b16 %v98, %v94
  %v123 = vpack.c.b16 %v99, %v95
  %v124 = vpack.c.b16 %v104, %v100
  %v125 = vpack.c.b16 %v105, %v101
  %v126 = vpack.c.b16 %v106, %v102
  %v127 = vpack.c.b16 %v107, %v103
  %v128 = vpack.c.b16 %v108, %v108
  %v129 = vpack.c.b16 %v109, %v109
  %v130 = vpack.c.b16 %v110, %v110
  %v131 = vpack.c.b16 %v111, %v111
  %vm148 = vcmask 588800
  %v150 = vsel %vm148, %v57, 0
  %vm152 = vcmask 1043456
  %v154 = vsel %vm152, %v128, 0
  %v157 = vsel %vm152, %v129, 0
  %v160 = vsel %vm152, %v130, 0
  %v163 = vsel %vm152, %v131, 0
  %165 = vmatpush.bf16.msra.mxu0 0
  %166 = vmatpush.bf16.msra.mxu0 0
  %167 = vmatpush.bf16.msra.mxu0 0
  %168 = vmatpush.bf16.msra.mxu0 %v154
  %169 = vmatpush.bf16.msra.mxu0 %v124
  %170 = vmatpush.bf16.msra.mxu0 %v120
  %171 = vmatpush.bf16.msra.mxu0 %v116
  %172 = vmatpush.bf16.msra.mxu0 %v112
  %173 = vmatmul.bf16.gmra.mxu0 %v150
  %v174 = vpop.f32.mrf.mxu0
  %v175 = vadd.f32 %v46, %v174
  %v176 = vpop.f32.mrf.mxu0
  %v177 = vadd.f32 %v51, %v176
  %178 = vdwg.mxu0
  %179 = vmatpush.bf16.msra.mxu0 0
  %180 = vmatpush.bf16.msra.mxu0 0
  %181 = vmatpush.bf16.msra.mxu0 0
  %182 = vmatpush.bf16.msra.mxu0 %v157
  %183 = vmatpush.bf16.msra.mxu0 %v125
  %184 = vmatpush.bf16.msra.mxu0 %v121
  %185 = vmatpush.bf16.msra.mxu0 %v117
  %186 = vmatpush.bf16.msra.mxu0 %v113
  %187 = vmatmul.bf16.gmra.mxu0 %v150
  %v188 = vpop.f32.mrf.mxu0
  %v189 = vadd.f32 %v46, %v188
  %v190 = vpop.f32.mrf.mxu0
  %v191 = vadd.f32 %v51, %v190
  %192 = vdwg.mxu0
  %193 = vmatpush.bf16.msra.mxu0 0
  %194 = vmatpush.bf16.msra.mxu0 0
  %195 = vmatpush.bf16.msra.mxu0 0
  %196 = vmatpush.bf16.msra.mxu0 %v160
  %197 = vmatpush.bf16.msra.mxu0 %v126
  %198 = vmatpush.bf16.msra.mxu0 %v122
  %199 = vmatpush.bf16.msra.mxu0 %v118
  %200 = vmatpush.bf16.msra.mxu0 %v114
  %201 = vmatmul.bf16.gmra.mxu0 %v150
  %v202 = vpop.f32.mrf.mxu0
  %v203 = vadd.f32 %v46, %v202
  %v204 = vpop.f32.mrf.mxu0
  %v205 = vadd.f32 %v51, %v204
  %206 = vdwg.mxu0
  %207 = vmatpush.bf16.msra.mxu0 0
  %208 = vmatpush.bf16.msra.mxu0 0
  %209 = vmatpush.bf16.msra.mxu0 0
  %210 = vmatpush.bf16.msra.mxu0 %v163
  %211 = vmatpush.bf16.msra.mxu0 %v127
  %212 = vmatpush.bf16.msra.mxu0 %v123
  %213 = vmatpush.bf16.msra.mxu0 %v119
  %214 = vmatpush.bf16.msra.mxu0 %v115
  %215 = vmatmul.bf16.gmra.mxu0 %v150
  %v216 = vpop.f32.mrf.mxu0
  %v217 = vadd.f32 %v46, %v216
  %v218 = vpop.f32.mrf.mxu0
  %v219 = vadd.f32 %v51, %v218
  %220 = vdwg.mxu0
  %v221 = vmul.f32 %v175, 0.25
  %v222 = vmul.f32 %v189, 0.25
  %v223 = vmul.f32 %v203, 0.25
  %v224 = vmul.f32 %v217, 0.25
  %v225 = vmul.f32 %v177, 0.25
  %v226 = vmul.f32 %v191, 0.25
  %v227 = vmul.f32 %v205, 0.25
  %v228 = vmul.f32 %v219, 0.25
  %v229 = vadd.f32 %v221, 0.0
  %v230 = vadd.f32 %v222, 0.0
  %v231 = vadd.f32 %v223, 0.0
  %v232 = vadd.f32 %v224, 0.0
  %v233 = vadd.f32 %v225, 0.0
  %v234 = vadd.f32 %v226, 0.0
  %v235 = vadd.f32 %v227, 0.0
  %v236 = vadd.f32 %v228, 0.0
  %v237 = vadd.f32 %v175, %v189
  %v238 = vadd.f32 %v237, %v203
  %v239 = vadd.f32 %v238, %v217
  %240 = vadd.xlane.f32.xlu0 %v239
  %v241 = vpop.xlane.xlu0 %240
  %v242 = vadd.f32 %v177, %v191
  %v243 = vadd.f32 %v242, %v205
  %v244 = vadd.f32 %v243, %v219
  %245 = vadd.xlane.f32.xlu0 %v244
  %v246 = vpop.xlane.xlu0 %245
  %v247 = vadd.f32 %v241, 0.0
  %v248 = vadd.f32 %v246, 0.0
  %v249 = vmul.f32 %v175, %v175
  %v250 = vmul.f32 %v189, %v189
  %v251 = vmul.f32 %v203, %v203
  %v252 = vmul.f32 %v217, %v217
  %v253 = vmul.f32 %v177, %v177
  %v254 = vmul.f32 %v191, %v191
  %v255 = vmul.f32 %v205, %v205
  %v256 = vmul.f32 %v219, %v219
  %v257 = vadd.f32 %v249, %v250
  %v258 = vadd.f32 %v257, %v251
  %v259 = vadd.f32 %v258, %v252
  %260 = vadd.xlane.f32.xlu0 %v259
  %v261 = vpop.xlane.xlu0 %260
  %v262 = vadd.f32 %v253, %v254
  %v263 = vadd.f32 %v262, %v255
  %v264 = vadd.f32 %v263, %v256
  %265 = vadd.xlane.f32.xlu0 %v264
  %v266 = vpop.xlane.xlu0 %265
  %v267 = vadd.f32 %v261, 0.0
  %v268 = vadd.f32 %v266, 0.0
  %s269 = scalar_lea.vmem %s1, 144
  %v270 = vld [vmem:[%s269] sm:$0xff]
  %v271 = vld [vmem:[%s269 + $0x8] sm:$0xff]
  %v272 = vld [vmem:[%s269 + $0x10] sm:$0xff]
  %v273 = vld [vmem:[%s269 + $0x18] sm:$0xff]
  %v274 = vld [vmem:[%s269 + $0x20] sm:$0xff]
  %v275 = vld [vmem:[%s269 + $0x28] sm:$0xff]
  %v276 = vld [vmem:[%s269 + $0x30] sm:$0xff]
  %v277 = vld [vmem:[%s269 + $0x38] sm:$0xff]
  %v278 = vld [vmem:[%s269 + $0x40] sm:$0xff]
  %v279 = vld [vmem:[%s269 + $0x48] sm:$0xff]
  %v280 = vld [vmem:[%s269 + $0x50] sm:$0xff]
  %v281 = vld [vmem:[%s269 + $0x58] sm:$0xff]
  %v282 = vld [vmem:[%s269 + $0x60] sm:$0xff]
  %v283 = vld [vmem:[%s269 + $0x68] sm:$0xff]
  %v284 = vld [vmem:[%s269 + $0x70] sm:$0xff]
  %v285 = vld [vmem:[%s269 + $0x78] sm:$0xff]
  %v286 = vld [vmem:[%s269 + $0x80] sm:$0xff]
  %v287 = vld [vmem:[%s269 + $0x88] sm:$0xff]
  %v306 = vunpack.c.l.b16 %v270
  %v307 = vunpack.c.h.b16 %v270
  %v308 = vunpack.c.l.b16 %v271
  %v309 = vunpack.c.h.b16 %v271
  %v310 = vunpack.c.l.b16 %v272
  %v311 = vunpack.c.h.b16 %v272
  %v312 = vunpack.c.l.b16 %v273
  %v313 = vunpack.c.h.b16 %v273
  %v314 = vunpack.c.l.b16 %v274
  %v315 = vunpack.c.h.b16 %v274
  %v316 = vunpack.c.l.b16 %v275
  %v317 = vunpack.c.h.b16 %v275
  %v318 = vunpack.c.l.b16 %v276
  %v319 = vunpack.c.h.b16 %v276
  %v320 = vunpack.c.l.b16 %v277
  %v321 = vunpack.c.h.b16 %v277
  %v322 = vunpack.c.l.b16 %v278
  %v323 = vunpack.c.h.b16 %v278
  %v324 = vunpack.c.l.b16 %v279
  %v325 = vunpack.c.h.b16 %v279
  %v326 = vunpack.c.l.b16 %v280
  %v327 = vunpack.c.h.b16 %v280
  %v328 = vunpack.c.l.b16 %v281
  %v329 = vunpack.c.h.b16 %v281
  %v330 = vunpack.c.l.b16 %v282
  %v331 = vunpack.c.h.b16 %v282
  %v332 = vunpack.c.l.b16 %v283
  %v333 = vunpack.c.h.b16 %v283
  %v334 = vunpack.c.l.b16 %v284
  %v335 = vunpack.c.h.b16 %v284
  %v336 = vunpack.c.l.b16 %v285
  %v337 = vunpack.c.h.b16 %v285
  %v338 = vunpack.c.l.b16 %v286
  %v339 = vunpack.c.h.b16 %v286
  %v340 = vunpack.c.l.b16 %v287
  %v341 = vunpack.c.h.b16 %v287
  %v342 = vpack.c.b16 %v310, %v306
  %v343 = vpack.c.b16 %v311, %v307
  %v344 = vpack.c.b16 %v312, %v308
  %v345 = vpack.c.b16 %v313, %v309
  %v346 = vpack.c.b16 %v318, %v314
  %v347 = vpack.c.b16 %v319, %v315
  %v348 = vpack.c.b16 %v320, %v316
  %v349 = vpack.c.b16 %v321, %v317
  %v350 = vpack.c.b16 %v326, %v322
  %v351 = vpack.c.b16 %v327, %v323
  %v352 = vpack.c.b16 %v328, %v324
  %v353 = vpack.c.b16 %v329, %v325
  %v354 = vpack.c.b16 %v334, %v330
  %v355 = vpack.c.b16 %v335, %v331
  %v356 = vpack.c.b16 %v336, %v332
  %v357 = vpack.c.b16 %v337, %v333
  %v358 = vpack.c.b16 %v338, %v338
  %v359 = vpack.c.b16 %v339, %v339
  %v360 = vpack.c.b16 %v340, %v340
  %v361 = vpack.c.b16 %v341, %v341
  %v379 = vsel %vm152, %v358, 0
  %v382 = vsel %vm152, %v359, 0
  %v385 = vsel %vm152, %v360, 0
  %v388 = vsel %vm152, %v361, 0
  %390 = vmatpush.bf16.msra.mxu0 0
  %391 = vmatpush.bf16.msra.mxu0 0
  %392 = vmatpush.bf16.msra.mxu0 0
  %393 = vmatpush.bf16.msra.mxu0 %v379
  %394 = vmatpush.bf16.msra.mxu0 %v354
  %395 = vmatpush.bf16.msra.mxu0 %v350
  %396 = vmatpush.bf16.msra.mxu0 %v346
  %397 = vmatpush.bf16.msra.mxu0 %v342
  %398 = vmatmul.bf16.gmra.mxu0 %v150
  %v399 = vpop.f32.mrf.mxu0
  %v400 = vadd.f32 %v46, %v399
  %v401 = vpop.f32.mrf.mxu0
  %v402 = vadd.f32 %v51, %v401
  %403 = vdwg.mxu0
  %404 = vmatpush.bf16.msra.mxu0 0
  %405 = vmatpush.bf16.msra.mxu0 0
  %406 = vmatpush.bf16.msra.mxu0 0
  %407 = vmatpush.bf16.msra.mxu0 %v382
  %408 = vmatpush.bf16.msra.mxu0 %v355
  %409 = vmatpush.bf16.msra.mxu0 %v351
  %410 = vmatpush.bf16.msra.mxu0 %v347
  %411 = vmatpush.bf16.msra.mxu0 %v343
  %412 = vmatmul.bf16.gmra.mxu0 %v150
  %v413 = vpop.f32.mrf.mxu0
  %v414 = vadd.f32 %v46, %v413
  %v415 = vpop.f32.mrf.mxu0
  %v416 = vadd.f32 %v51, %v415
  %417 = vdwg.mxu0
  %418 = vmatpush.bf16.msra.mxu0 0
  %419 = vmatpush.bf16.msra.mxu0 0
  %420 = vmatpush.bf16.msra.mxu0 0
  %421 = vmatpush.bf16.msra.mxu0 %v385
  %422 = vmatpush.bf16.msra.mxu0 %v356
  %423 = vmatpush.bf16.msra.mxu0 %v352
  %424 = vmatpush.bf16.msra.mxu0 %v348
  %425 = vmatpush.bf16.msra.mxu0 %v344
  %426 = vmatmul.bf16.gmra.mxu0 %v150
  %v427 = vpop.f32.mrf.mxu0
  %v428 = vadd.f32 %v46, %v427
  %v429 = vpop.f32.mrf.mxu0
  %v430 = vadd.f32 %v51, %v429
  %431 = vdwg.mxu0
  %432 = vmatpush.bf16.msra.mxu0 0
  %433 = vmatpush.bf16.msra.mxu0 0
  %434 = vmatpush.bf16.msra.mxu0 0
  %435 = vmatpush.bf16.msra.mxu0 %v388
  %436 = vmatpush.bf16.msra.mxu0 %v357
  %437 = vmatpush.bf16.msra.mxu0 %v353
  %438 = vmatpush.bf16.msra.mxu0 %v349
  %439 = vmatpush.bf16.msra.mxu0 %v345
  %440 = vmatmul.bf16.gmra.mxu0 %v150
  %v441 = vpop.f32.mrf.mxu0
  %v442 = vadd.f32 %v46, %v441
  %v443 = vpop.f32.mrf.mxu0
  %v444 = vadd.f32 %v51, %v443
  %445 = vdwg.mxu0
  %v446 = vmul.f32 %v400, 0.25
  %v447 = vmul.f32 %v414, 0.25
  %v448 = vmul.f32 %v428, 0.25
  %v449 = vmul.f32 %v442, 0.25
  %v450 = vmul.f32 %v402, 0.25
  %v451 = vmul.f32 %v416, 0.25
  %v452 = vmul.f32 %v430, 0.25
  %v453 = vmul.f32 %v444, 0.25
  %v454 = vadd.f32 %v229, %v446
  %v455 = vadd.f32 %v230, %v447
  %v456 = vadd.f32 %v231, %v448
  %v457 = vadd.f32 %v232, %v449
  %v458 = vadd.f32 %v233, %v450
  %v459 = vadd.f32 %v234, %v451
  %v460 = vadd.f32 %v235, %v452
  %v461 = vadd.f32 %v236, %v453
  %v462 = vadd.f32 %v400, %v414
  %v463 = vadd.f32 %v462, %v428
  %v464 = vadd.f32 %v463, %v442
  %465 = vadd.xlane.f32.xlu0 %v464
  %v466 = vpop.xlane.xlu0 %465
  %v467 = vadd.f32 %v402, %v416
  %v468 = vadd.f32 %v467, %v430
  %v469 = vadd.f32 %v468, %v444
  %470 = vadd.xlane.f32.xlu0 %v469
  %v471 = vpop.xlane.xlu0 %470
  %v472 = vadd.f32 %v247, %v466
  %v473 = vadd.f32 %v248, %v471
  %v474 = vmul.f32 %v400, %v400
  %v475 = vmul.f32 %v414, %v414
  %v476 = vmul.f32 %v428, %v428
  %v477 = vmul.f32 %v442, %v442
  %v478 = vmul.f32 %v402, %v402
  %v479 = vmul.f32 %v416, %v416
  %v480 = vmul.f32 %v430, %v430
  %v481 = vmul.f32 %v444, %v444
  %v482 = vadd.f32 %v474, %v475
  %v483 = vadd.f32 %v482, %v476
  %v484 = vadd.f32 %v483, %v477
  %485 = vadd.xlane.f32.xlu0 %v484
  %v486 = vpop.xlane.xlu0 %485
  %v487 = vadd.f32 %v478, %v479
  %v488 = vadd.f32 %v487, %v480
  %v489 = vadd.f32 %v488, %v481
  %490 = vadd.xlane.f32.xlu0 %v489
  %v491 = vpop.xlane.xlu0 %490
  %v492 = vadd.f32 %v267, %v486
  %v493 = vadd.f32 %v268, %v491
  %s494 = scalar_lea.vmem %s1, 288
  %v495 = vld [vmem:[%s494] sm:$0xff]
  %v496 = vld [vmem:[%s494 + $0x8] sm:$0xff]
  %v497 = vld [vmem:[%s494 + $0x10] sm:$0xff]
  %v498 = vld [vmem:[%s494 + $0x18] sm:$0xff]
  %v499 = vld [vmem:[%s494 + $0x20] sm:$0xff]
  %v500 = vld [vmem:[%s494 + $0x28] sm:$0xff]
  %v501 = vld [vmem:[%s494 + $0x30] sm:$0xff]
  %v502 = vld [vmem:[%s494 + $0x38] sm:$0xff]
  %v503 = vld [vmem:[%s494 + $0x40] sm:$0xff]
  %v504 = vld [vmem:[%s494 + $0x48] sm:$0xff]
  %v505 = vld [vmem:[%s494 + $0x50] sm:$0xff]
  %v506 = vld [vmem:[%s494 + $0x58] sm:$0xff]
  %v507 = vld [vmem:[%s494 + $0x60] sm:$0xff]
  %v508 = vld [vmem:[%s494 + $0x68] sm:$0xff]
  %v509 = vld [vmem:[%s494 + $0x70] sm:$0xff]
  %v510 = vld [vmem:[%s494 + $0x78] sm:$0xff]
  %v511 = vld [vmem:[%s494 + $0x80] sm:$0xff]
  %v512 = vld [vmem:[%s494 + $0x88] sm:$0xff]
  %v531 = vunpack.c.l.b16 %v495
  %v532 = vunpack.c.h.b16 %v495
  %v533 = vunpack.c.l.b16 %v496
  %v534 = vunpack.c.h.b16 %v496
  %v535 = vunpack.c.l.b16 %v497
  %v536 = vunpack.c.h.b16 %v497
  %v537 = vunpack.c.l.b16 %v498
  %v538 = vunpack.c.h.b16 %v498
  %v539 = vunpack.c.l.b16 %v499
  %v540 = vunpack.c.h.b16 %v499
  %v541 = vunpack.c.l.b16 %v500
  %v542 = vunpack.c.h.b16 %v500
  %v543 = vunpack.c.l.b16 %v501
  %v544 = vunpack.c.h.b16 %v501
  %v545 = vunpack.c.l.b16 %v502
  %v546 = vunpack.c.h.b16 %v502
  %v547 = vunpack.c.l.b16 %v503
  %v548 = vunpack.c.h.b16 %v503
  %v549 = vunpack.c.l.b16 %v504
  %v550 = vunpack.c.h.b16 %v504
  %v551 = vunpack.c.l.b16 %v505
  %v552 = vunpack.c.h.b16 %v505
  %v553 = vunpack.c.l.b16 %v506
  %v554 = vunpack.c.h.b16 %v506
  %v555 = vunpack.c.l.b16 %v507
  %v556 = vunpack.c.h.b16 %v507
  %v557 = vunpack.c.l.b16 %v508
  %v558 = vunpack.c.h.b16 %v508
  %v559 = vunpack.c.l.b16 %v509
  %v560 = vunpack.c.h.b16 %v509
  %v561 = vunpack.c.l.b16 %v510
  %v562 = vunpack.c.h.b16 %v510
  %v563 = vunpack.c.l.b16 %v511
  %v564 = vunpack.c.h.b16 %v511
  %v565 = vunpack.c.l.b16 %v512
  %v566 = vunpack.c.h.b16 %v512
  %v567 = vpack.c.b16 %v535, %v531
  %v568 = vpack.c.b16 %v536, %v532
  %v569 = vpack.c.b16 %v537, %v533
  %v570 = vpack.c.b16 %v538, %v534
  %v571 = vpack.c.b16 %v543, %v539
  %v572 = vpack.c.b16 %v544, %v540
  %v573 = vpack.c.b16 %v545, %v541
  %v574 = vpack.c.b16 %v546, %v542
  %v575 = vpack.c.b16 %v551, %v547
  %v576 = vpack.c.b16 %v552, %v548
  %v577 = vpack.c.b16 %v553, %v549
  %v578 = vpack.c.b16 %v554, %v550
  %v579 = vpack.c.b16 %v559, %v555
  %v580 = vpack.c.b16 %v560, %v556
  %v581 = vpack.c.b16 %v561, %v557
  %v582 = vpack.c.b16 %v562, %v558
  %v583 = vpack.c.b16 %v563, %v563
  %v584 = vpack.c.b16 %v564, %v564
  %v585 = vpack.c.b16 %v565, %v565
  %v586 = vpack.c.b16 %v566, %v566
  %v604 = vsel %vm152, %v583, 0
  %v607 = vsel %vm152, %v584, 0
  %v610 = vsel %vm152, %v585, 0
  %v613 = vsel %vm152, %v586, 0
  %615 = vmatpush.bf16.msra.mxu0 0
  %616 = vmatpush.bf16.msra.mxu0 0
  %617 = vmatpush.bf16.msra.mxu0 0
  %618 = vmatpush.bf16.msra.mxu0 %v604
  %619 = vmatpush.bf16.msra.mxu0 %v579
  %620 = vmatpush.bf16.msra.mxu0 %v575
  %621 = vmatpush.bf16.msra.mxu0 %v571
  %622 = vmatpush.bf16.msra.mxu0 %v567
  %623 = vmatmul.bf16.gmra.mxu0 %v150
  %v624 = vpop.f32.mrf.mxu0
  %v625 = vadd.f32 %v46, %v624
  %v626 = vpop.f32.mrf.mxu0
  %v627 = vadd.f32 %v51, %v626
  %628 = vdwg.mxu0
  %629 = vmatpush.bf16.msra.mxu0 0
  %630 = vmatpush.bf16.msra.mxu0 0
  %631 = vmatpush.bf16.msra.mxu0 0
  %632 = vmatpush.bf16.msra.mxu0 %v607
  %633 = vmatpush.bf16.msra.mxu0 %v580
  %634 = vmatpush.bf16.msra.mxu0 %v576
  %635 = vmatpush.bf16.msra.mxu0 %v572
  %636 = vmatpush.bf16.msra.mxu0 %v568
  %637 = vmatmul.bf16.gmra.mxu0 %v150
  %v638 = vpop.f32.mrf.mxu0
  %v639 = vadd.f32 %v46, %v638
  %v640 = vpop.f32.mrf.mxu0
  %v641 = vadd.f32 %v51, %v640
  %642 = vdwg.mxu0
  %643 = vmatpush.bf16.msra.mxu0 0
  %644 = vmatpush.bf16.msra.mxu0 0
  %645 = vmatpush.bf16.msra.mxu0 0
  %646 = vmatpush.bf16.msra.mxu0 %v610
  %647 = vmatpush.bf16.msra.mxu0 %v581
  %648 = vmatpush.bf16.msra.mxu0 %v577
  %649 = vmatpush.bf16.msra.mxu0 %v573
  %650 = vmatpush.bf16.msra.mxu0 %v569
  %651 = vmatmul.bf16.gmra.mxu0 %v150
  %v652 = vpop.f32.mrf.mxu0
  %v653 = vadd.f32 %v46, %v652
  %v654 = vpop.f32.mrf.mxu0
  %v655 = vadd.f32 %v51, %v654
  %656 = vdwg.mxu0
  %657 = vmatpush.bf16.msra.mxu0 0
  %658 = vmatpush.bf16.msra.mxu0 0
  %659 = vmatpush.bf16.msra.mxu0 0
  %660 = vmatpush.bf16.msra.mxu0 %v613
  %661 = vmatpush.bf16.msra.mxu0 %v582
  %662 = vmatpush.bf16.msra.mxu0 %v578
  %663 = vmatpush.bf16.msra.mxu0 %v574
  %664 = vmatpush.bf16.msra.mxu0 %v570
  %665 = vmatmul.bf16.gmra.mxu0 %v150
  %v666 = vpop.f32.mrf.mxu0
  %v667 = vadd.f32 %v46, %v666
  %v668 = vpop.f32.mrf.mxu0
  %v669 = vadd.f32 %v51, %v668
  %670 = vdwg.mxu0
  %v671 = vmul.f32 %v625, 0.25
  %v672 = vmul.f32 %v639, 0.25
  %v673 = vmul.f32 %v653, 0.25
  %v674 = vmul.f32 %v667, 0.25
  %v675 = vmul.f32 %v627, 0.25
  %v676 = vmul.f32 %v641, 0.25
  %v677 = vmul.f32 %v655, 0.25
  %v678 = vmul.f32 %v669, 0.25
  %v679 = vadd.f32 %v454, %v671
  %v680 = vadd.f32 %v455, %v672
  %v681 = vadd.f32 %v456, %v673
  %v682 = vadd.f32 %v457, %v674
  %v683 = vadd.f32 %v458, %v675
  %v684 = vadd.f32 %v459, %v676
  %v685 = vadd.f32 %v460, %v677
  %v686 = vadd.f32 %v461, %v678
  %v687 = vadd.f32 %v625, %v639
  %v688 = vadd.f32 %v687, %v653
  %v689 = vadd.f32 %v688, %v667
  %690 = vadd.xlane.f32.xlu0 %v689
  %v691 = vpop.xlane.xlu0 %690
  %v692 = vadd.f32 %v627, %v641
  %v693 = vadd.f32 %v692, %v655
  %v694 = vadd.f32 %v693, %v669
  %695 = vadd.xlane.f32.xlu0 %v694
  %v696 = vpop.xlane.xlu0 %695
  %v697 = vadd.f32 %v472, %v691
  %v698 = vadd.f32 %v473, %v696
  %v699 = vmul.f32 %v625, %v625
  %v700 = vmul.f32 %v639, %v639
  %v701 = vmul.f32 %v653, %v653
  %v702 = vmul.f32 %v667, %v667
  %v703 = vmul.f32 %v627, %v627
  %v704 = vmul.f32 %v641, %v641
  %v705 = vmul.f32 %v655, %v655
  %v706 = vmul.f32 %v669, %v669
  %v707 = vadd.f32 %v699, %v700
  %v708 = vadd.f32 %v707, %v701
  %v709 = vadd.f32 %v708, %v702
  %710 = vadd.xlane.f32.xlu0 %v709
  %v711 = vpop.xlane.xlu0 %710
  %v712 = vadd.f32 %v703, %v704
  %v713 = vadd.f32 %v712, %v705
  %v714 = vadd.f32 %v713, %v706
  %715 = vadd.xlane.f32.xlu0 %v714
  %v716 = vpop.xlane.xlu0 %715
  %v717 = vadd.f32 %v492, %v711
  %v718 = vadd.f32 %v493, %v716
  %s719 = scalar_lea.vmem %s1, 432
  %v720 = vld [vmem:[%s719] sm:$0xff]
  %v721 = vld [vmem:[%s719 + $0x8] sm:$0xff]
  %v722 = vld [vmem:[%s719 + $0x10] sm:$0xff]
  %v723 = vld [vmem:[%s719 + $0x18] sm:$0xff]
  %v724 = vld [vmem:[%s719 + $0x20] sm:$0xff]
  %v725 = vld [vmem:[%s719 + $0x28] sm:$0xff]
  %v726 = vld [vmem:[%s719 + $0x30] sm:$0xff]
  %v727 = vld [vmem:[%s719 + $0x38] sm:$0xff]
  %v728 = vld [vmem:[%s719 + $0x40] sm:$0xff]
  %v729 = vld [vmem:[%s719 + $0x48] sm:$0xff]
  %v730 = vld [vmem:[%s719 + $0x50] sm:$0xff]
  %v731 = vld [vmem:[%s719 + $0x58] sm:$0xff]
  %v732 = vld [vmem:[%s719 + $0x60] sm:$0xff]
  %v733 = vld [vmem:[%s719 + $0x68] sm:$0xff]
  %v734 = vld [vmem:[%s719 + $0x70] sm:$0xff]
  %v735 = vld [vmem:[%s719 + $0x78] sm:$0xff]
  %v736 = vld [vmem:[%s719 + $0x80] sm:$0xff]
  %v737 = vld [vmem:[%s719 + $0x88] sm:$0xff]
  %v756 = vunpack.c.l.b16 %v720
  %v757 = vunpack.c.h.b16 %v720
  %v758 = vunpack.c.l.b16 %v721
  %v759 = vunpack.c.h.b16 %v721
  %v760 = vunpack.c.l.b16 %v722
  %v761 = vunpack.c.h.b16 %v722
  %v762 = vunpack.c.l.b16 %v723
  %v763 = vunpack.c.h.b16 %v723
  %v764 = vunpack.c.l.b16 %v724
  %v765 = vunpack.c.h.b16 %v724
  %v766 = vunpack.c.l.b16 %v725
  %v767 = vunpack.c.h.b16 %v725
  %v768 = vunpack.c.l.b16 %v726
  %v769 = vunpack.c.h.b16 %v726
  %v770 = vunpack.c.l.b16 %v727
  %v771 = vunpack.c.h.b16 %v727
  %v772 = vunpack.c.l.b16 %v728
  %v773 = vunpack.c.h.b16 %v728
  %v774 = vunpack.c.l.b16 %v729
  %v775 = vunpack.c.h.b16 %v729
  %v776 = vunpack.c.l.b16 %v730
  %v777 = vunpack.c.h.b16 %v730
  %v778 = vunpack.c.l.b16 %v731
  %v779 = vunpack.c.h.b16 %v731
  %v780 = vunpack.c.l.b16 %v732
  %v781 = vunpack.c.h.b16 %v732
  %v782 = vunpack.c.l.b16 %v733
  %v783 = vunpack.c.h.b16 %v733
  %v784 = vunpack.c.l.b16 %v734
  %v785 = vunpack.c.h.b16 %v734
  %v786 = vunpack.c.l.b16 %v735
  %v787 = vunpack.c.h.b16 %v735
  %v788 = vunpack.c.l.b16 %v736
  %v789 = vunpack.c.h.b16 %v736
  %v790 = vunpack.c.l.b16 %v737
  %v791 = vunpack.c.h.b16 %v737
  %v792 = vpack.c.b16 %v760, %v756
  %v793 = vpack.c.b16 %v761, %v757
  %v794 = vpack.c.b16 %v762, %v758
  %v795 = vpack.c.b16 %v763, %v759
  %v796 = vpack.c.b16 %v768, %v764
  %v797 = vpack.c.b16 %v769, %v765
  %v798 = vpack.c.b16 %v770, %v766
  %v799 = vpack.c.b16 %v771, %v767
  %v800 = vpack.c.b16 %v776, %v772
  %v801 = vpack.c.b16 %v777, %v773
  %v802 = vpack.c.b16 %v778, %v774
  %v803 = vpack.c.b16 %v779, %v775
  %v804 = vpack.c.b16 %v784, %v780
  %v805 = vpack.c.b16 %v785, %v781
  %v806 = vpack.c.b16 %v786, %v782
  %v807 = vpack.c.b16 %v787, %v783
  %v808 = vpack.c.b16 %v788, %v788
  %v809 = vpack.c.b16 %v789, %v789
  %v810 = vpack.c.b16 %v790, %v790
  %v811 = vpack.c.b16 %v791, %v791
  %v829 = vsel %vm152, %v808, 0
  %v832 = vsel %vm152, %v809, 0
  %v835 = vsel %vm152, %v810, 0
  %v838 = vsel %vm152, %v811, 0
  %840 = vmatpush.bf16.msra.mxu0 0
  %841 = vmatpush.bf16.msra.mxu0 0
  %842 = vmatpush.bf16.msra.mxu0 0
  %843 = vmatpush.bf16.msra.mxu0 %v829
  %844 = vmatpush.bf16.msra.mxu0 %v804
  %845 = vmatpush.bf16.msra.mxu0 %v800
  %846 = vmatpush.bf16.msra.mxu0 %v796
  %847 = vmatpush.bf16.msra.mxu0 %v792
  %848 = vmatmul.bf16.gmra.mxu0 %v150
  %v849 = vpop.f32.mrf.mxu0
  %v850 = vadd.f32 %v46, %v849
  %v851 = vpop.f32.mrf.mxu0
  %v852 = vadd.f32 %v51, %v851
  %853 = vdwg.mxu0
  %854 = vmatpush.bf16.msra.mxu0 0
  %855 = vmatpush.bf16.msra.mxu0 0
  %856 = vmatpush.bf16.msra.mxu0 0
  %857 = vmatpush.bf16.msra.mxu0 %v832
  %858 = vmatpush.bf16.msra.mxu0 %v805
  %859 = vmatpush.bf16.msra.mxu0 %v801
  %860 = vmatpush.bf16.msra.mxu0 %v797
  %861 = vmatpush.bf16.msra.mxu0 %v793
  %862 = vmatmul.bf16.gmra.mxu0 %v150
  %v863 = vpop.f32.mrf.mxu0
  %v864 = vadd.f32 %v46, %v863
  %v865 = vpop.f32.mrf.mxu0
  %v866 = vadd.f32 %v51, %v865
  %867 = vdwg.mxu0
  %868 = vmatpush.bf16.msra.mxu0 0
  %869 = vmatpush.bf16.msra.mxu0 0
  %870 = vmatpush.bf16.msra.mxu0 0
  %871 = vmatpush.bf16.msra.mxu0 %v835
  %872 = vmatpush.bf16.msra.mxu0 %v806
  %873 = vmatpush.bf16.msra.mxu0 %v802
  %874 = vmatpush.bf16.msra.mxu0 %v798
  %875 = vmatpush.bf16.msra.mxu0 %v794
  %876 = vmatmul.bf16.gmra.mxu0 %v150
  %v877 = vpop.f32.mrf.mxu0
  %v878 = vadd.f32 %v46, %v877
  %v879 = vpop.f32.mrf.mxu0
  %v880 = vadd.f32 %v51, %v879
  %881 = vdwg.mxu0
  %882 = vmatpush.bf16.msra.mxu0 0
  %883 = vmatpush.bf16.msra.mxu0 0
  %884 = vmatpush.bf16.msra.mxu0 0
  %885 = vmatpush.bf16.msra.mxu0 %v838
  %886 = vmatpush.bf16.msra.mxu0 %v807
  %887 = vmatpush.bf16.msra.mxu0 %v803
  %888 = vmatpush.bf16.msra.mxu0 %v799
  %889 = vmatpush.bf16.msra.mxu0 %v795
  %890 = vmatmul.bf16.gmra.mxu0 %v150
  %v891 = vpop.f32.mrf.mxu0
  %v892 = vadd.f32 %v46, %v891
  %v893 = vpop.f32.mrf.mxu0
  %v894 = vadd.f32 %v51, %v893
  %895 = vdwg.mxu0
  %v896 = vmul.f32 %v850, 0.25
  %v897 = vmul.f32 %v864, 0.25
  %v898 = vmul.f32 %v878, 0.25
  %v899 = vmul.f32 %v892, 0.25
  %v900 = vmul.f32 %v852, 0.25
  %v901 = vmul.f32 %v866, 0.25
  %v902 = vmul.f32 %v880, 0.25
  %v903 = vmul.f32 %v894, 0.25
  %v904 = vadd.f32 %v679, %v896
  %v905 = vadd.f32 %v680, %v897
  %v906 = vadd.f32 %v681, %v898
  %v907 = vadd.f32 %v682, %v899
  %v908 = vadd.f32 %v683, %v900
  %v909 = vadd.f32 %v684, %v901
  %v910 = vadd.f32 %v685, %v902
  %v911 = vadd.f32 %v686, %v903
  %v912 = vadd.f32 %v850, %v864
  %v913 = vadd.f32 %v912, %v878
  %v914 = vadd.f32 %v913, %v892
  %915 = vadd.xlane.f32.xlu0 %v914
  %v916 = vpop.xlane.xlu0 %915
  %v917 = vadd.f32 %v852, %v866
  %v918 = vadd.f32 %v917, %v880
  %v919 = vadd.f32 %v918, %v894
  %920 = vadd.xlane.f32.xlu0 %v919
  %v921 = vpop.xlane.xlu0 %920
  %v922 = vadd.f32 %v697, %v916
  %v923 = vadd.f32 %v698, %v921
  %v924 = vmul.f32 %v850, %v850
  %v925 = vmul.f32 %v864, %v864
  %v926 = vmul.f32 %v878, %v878
  %v927 = vmul.f32 %v892, %v892
  %v928 = vmul.f32 %v852, %v852
  %v929 = vmul.f32 %v866, %v866
  %v930 = vmul.f32 %v880, %v880
  %v931 = vmul.f32 %v894, %v894
  %v932 = vadd.f32 %v924, %v925
  %v933 = vadd.f32 %v932, %v926
  %v934 = vadd.f32 %v933, %v927
  %935 = vadd.xlane.f32.xlu0 %v934
  %v936 = vpop.xlane.xlu0 %935
  %v937 = vadd.f32 %v928, %v929
  %v938 = vadd.f32 %v937, %v930
  %v939 = vadd.f32 %v938, %v931
  %940 = vadd.xlane.f32.xlu0 %v939
  %v941 = vpop.xlane.xlu0 %940
  %v942 = vadd.f32 %v717, %v936
  %v943 = vadd.f32 %v718, %v941
  %v944 = vrcp.pop 2048.0
  %v945 = vmul.f32 2048.0, %v944
  %v946 = vsub.f32 1.0, %v945
  %v947 = vmul.f32 %v944, %v946
  %v948 = vadd.f32 %v944, %v947
  %vm949 = vweird.f32 %v944
  %v950 = vsel %vm949, %v944, %v948
  %v951 = vmul.f32 %v922, %v950
  %v952 = vmul.f32 %v923, %v950
  %v953 = vmul.f32 %v942, %v950
  %v954 = vmul.f32 %v943, %v950
  %v955 = vmul.f32 %v951, %v951
  %v956 = vmul.f32 %v952, %v952
  %v957 = vsub.f32 %v953, %v955
  %v958 = vsub.f32 %v954, %v956
  %v959 = vld [vmem:[%s3] sm:$0xff]
  %v960 = vld [vmem:[%s3 + $0x8] sm:$0xff]
  %v961 = vadd.f32 %v957, 1e-05
  %v962 = vadd.f32 %v958, 1e-05
  %v963 = vrsqrt.pop %v961
  %v964 = vmul.f32 %v963, %v961
  %v965 = vmul.f32 %v964, %v963
  %v966 = vmul.f32 0.5, %v965
  %v967 = vsub.f32 1.5, %v966
  %v968 = vmul.f32 %v963, %v967
  %v969 = vmul.f32 %v961, %v968
  %vm970 = vcmp.eq.f32.partialorder %v961, inf
  %v971 = vsel %vm970, %v961, %v969
  %vm972 = vcmp.eq.f32.partialorder %v961, 0.0
  %v973 = vand.u32 %v961, 2147483648
  %v974 = vsel %vm972, %v973, %v971
  %v975 = vrsqrt.pop %v962
  %v976 = vmul.f32 %v975, %v962
  %v977 = vmul.f32 %v976, %v975
  %v978 = vmul.f32 0.5, %v977
  %v979 = vsub.f32 1.5, %v978
  %v980 = vmul.f32 %v975, %v979
  %v981 = vmul.f32 %v962, %v980
  %vm982 = vcmp.eq.f32.partialorder %v962, inf
  %v983 = vsel %vm982, %v962, %v981
  %vm984 = vcmp.eq.f32.partialorder %v962, 0.0
  %v985 = vand.u32 %v962, 2147483648
  %v986 = vsel %vm984, %v985, %v983
  %v987 = vrcp.pop %v974
  %v988 = vmul.f32 %v974, %v987
  %v989 = vsub.f32 1.0, %v988
  %v990 = vmul.f32 %v987, %v989
  %v991 = vadd.f32 %v987, %v990
  %vm992 = vweird.f32 %v974
  %vm993 = vweird.f32 %v987
  %vm994 = vmor %vm992, %vm993
  %v995 = vsel %vm994, %v987, %v991
  %v996 = vand.u32 2147483647, %v974
  %vm997 = vcmp.eq.f32.partialorder %v996, 8.507059e+37
  %v998 = vand.u32 %v974, 2147483648
  %v999 = vor.u32 1.1754944e-38, %v998
  %v1000 = vsel %vm997, %v999, %v995
  %v1001 = vmul.f32 %v959, %v1000
  %v1002 = vrcp.pop %v986
  %v1003 = vmul.f32 %v986, %v1002
  %v1004 = vsub.f32 1.0, %v1003
  %v1005 = vmul.f32 %v1002, %v1004
  %v1006 = vadd.f32 %v1002, %v1005
  %vm1007 = vweird.f32 %v986
  %vm1008 = vweird.f32 %v1002
  %vm1009 = vmor %vm1007, %vm1008
  %v1010 = vsel %vm1009, %v1002, %v1006
  %v1011 = vand.u32 2147483647, %v986
  %vm1012 = vcmp.eq.f32.partialorder %v1011, 8.507059e+37
  %v1013 = vand.u32 %v986, 2147483648
  %v1014 = vor.u32 1.1754944e-38, %v1013
  %v1015 = vsel %vm1012, %v1014, %v1010
  %v1016 = vmul.f32 %v960, %v1015
  %v1017 = vld [vmem:[%s4] sm:$0xff]
  %v1018 = vld [vmem:[%s4 + $0x8] sm:$0xff]
  %v1019 = vmul.f32 %v951, %v1001
  %v1020 = vmul.f32 %v952, %v1016
  %v1021 = vsub.f32 %v1017, %v1019
  %v1022 = vsub.f32 %v1018, %v1020
  %1024 = vset.pattern.permute.xlu0 0
  %1025 = vperm.xlu0 %1024, %v1001
  %v1026 = vpop.permute.xlu0 %1025
  %1029 = vset.pattern.permute.xlu0 0
  %1030 = vperm.xlu0 %1029, %v1016
  %v1031 = vpop.permute.xlu0 %1030
  %v1033 = vmul.f32 %v904, %v1026
  %v1034 = vmul.f32 %v905, %v1026
  %v1035 = vmul.f32 %v906, %v1026
  %v1036 = vmul.f32 %v907, %v1026
  %v1037 = vmul.f32 %v908, %v1031
  %v1038 = vmul.f32 %v909, %v1031
  %v1039 = vmul.f32 %v910, %v1031
  %v1040 = vmul.f32 %v911, %v1031
  %1042 = vset.pattern.permute.xlu0 0
  %1043 = vperm.xlu0 %1042, %v1021
  %v1044 = vpop.permute.xlu0 %1043
  %1047 = vset.pattern.permute.xlu0 0
  %1048 = vperm.xlu0 %1047, %v1022
  %v1049 = vpop.permute.xlu0 %1048
  %v1051 = vadd.f32 %v1033, %v1044
  %v1052 = vadd.f32 %v1034, %v1044
  %v1053 = vadd.f32 %v1035, %v1044
  %v1054 = vadd.f32 %v1036, %v1044
  %v1055 = vadd.f32 %v1037, %v1049
  %v1056 = vadd.f32 %v1038, %v1049
  %v1057 = vadd.f32 %v1039, %v1049
  %v1058 = vadd.f32 %v1040, %v1049
  %v1059 = vmax.f32 %v1051, 0.0
  %v1060 = vmax.f32 %v1052, 0.0
  %v1061 = vmax.f32 %v1053, 0.0
  %v1062 = vmax.f32 %v1054, 0.0
  %v1063 = vmax.f32 %v1055, 0.0
  %v1064 = vmax.f32 %v1056, 0.0
  %v1065 = vmax.f32 %v1057, 0.0
  %v1066 = vmax.f32 %v1058, 0.0
  %1067 = vst [vmem:[%s5] sm:$0xff] %v1059
  %1068 = vst [vmem:[%s5 + $0x8] sm:$0xff] %v1060
  %1069 = vst [vmem:[%s5 + $0x10] sm:$0xff] %v1061
  %1070 = vst [vmem:[%s5 + $0x18] sm:$0xff] %v1062
  %1071 = vst [vmem:[%s5 + $0x20] sm:$0xff] %v1063
  %1072 = vst [vmem:[%s5 + $0x28] sm:$0xff] %v1064
  %1073 = vst [vmem:[%s5 + $0x30] sm:$0xff] %v1065
  %1074 = vst [vmem:[%s5 + $0x38] sm:$0xff] %v1066
  // Predicated region
  $region22: #{vae_forward.10} parent=0 // pred_check
    _
  $region23: #{vae_forward.10} parent=0 // pred_check_branch
    %1076 = sbr.rel (0) target = $region25
  $region24: #{vae_forward.10} parent=0 // pred_region
    _
  $region25: #{vae_forward.10} parent=0 // pred_fallthru
    _
  // Predicated region
  $region26: #{vae_forward.10} parent=0 // pred_check
    _
  $region27: #{vae_forward.10} parent=0 // pred_check_branch
    %1078 = sbr.rel (0) target = $region29
  $region28: #{vae_forward.10} parent=0 // pred_region
    _
  $region29: #{vae_forward.10} parent=0 // pred_fallthru
    _

// kernel: vae_forward.11
$region0: #{vae_forward.11}
  #allocation0 [shape = 'u32[]', space=smem, size = 0x4, offset = 0x4, fixed_abs, tag = 'smem constant byte address 0x4 - core index']
  #allocation1 [shape = 'u32[72,128]{1,0:T(1,128)}', space=vmem, size = 0x9000, scoped, tag = 'internal scratch']
  %s0 = inlined_call_operand.vmem [shape: bf16[32,144], index: 0, kind: input, shape index: {}]
  %s1 = inlined_call_operand.vmem [shape: bf16[4,144,128], index: 1, kind: input, shape index: {}]
  %s2 = inlined_call_operand.vmem [shape: f32[32,1], index: 2, kind: input, shape index: {}]
  %s3 = inlined_call_operand.vmem [shape: f32[32,1], index: 3, kind: input, shape index: {}]
  %s4 = inlined_call_operand.vmem [shape: f32[32,1], index: 4, kind: input, shape index: {}]
  %s5 = inlined_call_operand.vmem [shape: f32[32,128], index: 5, kind: output, shape index: {}]
  %s6 = sld [smem:[#allocation0]]
  $region30: #{vae_forward.11} parent=0
    _
  %s8 = ssub.s32 1, %s6
  %s9 = scalar_select 0, %s8, %s6
  // Predicated region
  $region2: #{vae_forward.11} parent=0 // pred_check
    _
  $region3: #{vae_forward.11} parent=0 // pred_check_branch
    %11 = sbr.rel (0) target = $region5
  $region4: #{vae_forward.11} parent=0 // pred_region
    _
  $region5: #{vae_forward.11} parent=0 // pred_fallthru
    _
  // Predicated region
  $region6: #{vae_forward.11} parent=0 // pred_check
    _
  $region7: #{vae_forward.11} parent=0 // pred_check_branch
    %13 = sbr.rel (0) target = $region9
  $region8: #{vae_forward.11} parent=0 // pred_region
    _
  $region9: #{vae_forward.11} parent=0 // pred_fallthru
    _
  // Predicated region
  $region10: #{vae_forward.11} parent=0 // pred_check
    _
  $region11: #{vae_forward.11} parent=0 // pred_check_branch
    %15 = sbr.rel (0) target = $region13
  $region12: #{vae_forward.11} parent=0 // pred_region
    _
  $region13: #{vae_forward.11} parent=0 // pred_fallthru
    _
  // Predicated region
  $region14: #{vae_forward.11} parent=0 // pred_check
    _
  $region15: #{vae_forward.11} parent=0 // pred_check_branch
    %17 = sbr.rel (0) target = $region17
  $region16: #{vae_forward.11} parent=0 // pred_region
    _
  $region17: #{vae_forward.11} parent=0 // pred_fallthru
    _
  // Predicated region
  $region18: #{vae_forward.11} parent=0 // pred_check
    _
  $region19: #{vae_forward.11} parent=0 // pred_check_branch
    %19 = sbr.rel (0) target = $region21
  $region20: #{vae_forward.11} parent=0 // pred_region
    _
  $region21: #{vae_forward.11} parent=0 // pred_fallthru
    _
  %v21 = vld [vmem:[%s0] sm:$0xff]
  %v22 = vld [vmem:[%s0 + $0x8] sm:$0xff]
  %v23 = vld [vmem:[%s0 + $0x10] sm:$0xff]
  %v24 = vld [vmem:[%s0 + $0x18] sm:$0xff]
  %v25 = vld [vmem:[%s2] sm:$0xff]
  %v26 = vld [vmem:[%s2 + $0x8] sm:$0xff]
  %v27 = vld [vmem:[%s2 + $0x10] sm:$0xff]
  %v28 = vld [vmem:[%s2 + $0x18] sm:$0xff]
  %v29 = vld [vmem:[%s1] sm:$0xf]
  %v30 = vld [vmem:[%s1 + $0x4] sm:$0xf]
  %v31 = vld [vmem:[%s1 + $0x8] sm:$0xf]
  %v32 = vld [vmem:[%s1 + $0xc] sm:$0xf]
  %v33 = vld [vmem:[%s1 + $0x10] sm:$0xf]
  %v34 = vld [vmem:[%s1 + $0x14] sm:$0xf]
  %v35 = vld [vmem:[%s1 + $0x18] sm:$0xf]
  %v36 = vld [vmem:[%s1 + $0x1c] sm:$0xf]
  %v37 = vld [vmem:[%s1 + $0x20] sm:$0xf]
  %v38 = vld [vmem:[%s1 + $0x24] sm:$0xf]
  %v39 = vld [vmem:[%s1 + $0x28] sm:$0xf]
  %v40 = vld [vmem:[%s1 + $0x2c] sm:$0xf]
  %v41 = vld [vmem:[%s1 + $0x30] sm:$0xf]
  %v42 = vld [vmem:[%s1 + $0x34] sm:$0xf]
  %v43 = vld [vmem:[%s1 + $0x38] sm:$0xf]
  %v44 = vld [vmem:[%s1 + $0x3c] sm:$0xf]
  %v45 = vld [vmem:[%s1 + $0x40] sm:$0xf]
  %v46 = vld [vmem:[%s1 + $0x44] sm:$0xf]
  %48 = vset.pattern.permute.xlu0 0
  %49 = vperm.xlu0 %48, %v25
  %v50 = vpop.permute.xlu0 %49
  %53 = vset.pattern.permute.xlu0 0
  %54 = vperm.xlu0 %53, %v26
  %v55 = vpop.permute.xlu0 %54
  %58 = vset.pattern.permute.xlu0 0
  %59 = vperm.xlu0 %58, %v27
  %v60 = vpop.permute.xlu0 %59
  %63 = vset.pattern.permute.xlu0 0
  %64 = vperm.xlu0 %63, %v28
  %v65 = vpop.permute.xlu0 %64
  %v71 = vunpack.c.l.b16 %v21
  %v72 = vunpack.c.h.b16 %v21
  %v73 = vunpack.c.l.b16 %v22
  %v74 = vunpack.c.h.b16 %v22
  %v75 = vunpack.c.l.b16 %v23
  %v76 = vunpack.c.h.b16 %v23
  %v77 = vunpack.c.l.b16 %v24
  %v78 = vunpack.c.h.b16 %v24
  %v79 = vpack.c.b16 %v73, %v71
  %v80 = vpack.c.b16 %v74, %v72
  %v81 = vpack.c.b16 %v77, %v75
  %v82 = vpack.c.b16 %v78, %v76
  %v103 = vunpack.c.l.b16 %v29
  %v104 = vunpack.c.l.b16 %v30
  %v105 = vunpack.c.l.b16 %v31
  %v106 = vunpack.c.l.b16 %v32
  %v107 = vunpack.c.l.b16 %v33
  %v108 = vunpack.c.l.b16 %v34
  %v109 = vunpack.c.l.b16 %v35
  %v110 = vunpack.c.l.b16 %v36
  %v111 = vunpack.c.l.b16 %v37
  %v112 = vunpack.c.l.b16 %v38
  %v113 = vunpack.c.l.b16 %v39
  %v114 = vunpack.c.l.b16 %v40
  %v115 = vunpack.c.l.b16 %v41
  %v116 = vunpack.c.l.b16 %v42
  %v117 = vunpack.c.l.b16 %v43
  %v118 = vunpack.c.l.b16 %v44
  %v119 = vunpack.c.l.b16 %v45
  %v120 = vunpack.c.l.b16 %v46
  %v121 = vpack.c.b16 %v104, %v103
  %v122 = vpack.c.b16 %v106, %v105
  %v123 = vpack.c.b16 %v108, %v107
  %v124 = vpack.c.b16 %v110, %v109
  %v125 = vpack.c.b16 %v112, %v111
  %v126 = vpack.c.b16 %v114, %v113
  %v127 = vpack.c.b16 %v116, %v115
  %v128 = vpack.c.b16 %v118, %v117
  %v129 = vpack.c.b16 %v120, %v119
  %vm139 = vcmask 130048
  %v141 = vsel %vm139, %v80, 0
  %v144 = vsel %vm139, %v82, 0
  %146 = vmatpush.bf16.msra.mxu0 %v128
  %147 = vmatpush.bf16.msra.mxu0 %v127
  %148 = vmatpush.bf16.msra.mxu0 %v126
  %149 = vmatpush.bf16.msra.mxu0 %v125
  %150 = vmatpush.bf16.msra.mxu0 %v124
  %151 = vmatpush.bf16.msra.mxu0 %v123
  %152 = vmatpush.bf16.msra.mxu0 %v122
  %153 = vmatpush.bf16.msra.mxu0 %v121
  %154 = vmatmul.bf16.gmra.mxu0 %v79
  %v155 = vpop.f32.mrf.mxu0
  %v156 = vadd.f32 %v50, %v155
  %v157 = vpop.f32.mrf.mxu0
  %v158 = vadd.f32 %v55, %v157
  %159 = vmatmul.bf16.gmra.mxu0 %v81
  %v160 = vpop.f32.mrf.mxu0
  %v161 = vadd.f32 %v60, %v160
  %v162 = vpop.f32.mrf.mxu0
  %v163 = vadd.f32 %v65, %v162
  %164 = vdwg.mxu0
  %165 = vmatpush.bf16.msra.mxu0 0
  %166 = vmatpush.bf16.msra.mxu0 0
  %167 = vmatpush.bf16.msra.mxu0 0
  %168 = vmatpush.bf16.msra.mxu0 0
  %169 = vmatpush.bf16.msra.mxu0 0
  %170 = vmatpush.bf16.msra.mxu0 0
  %171 = vmatpush.bf16.msra.mxu0 0
  %172 = vmatpush.bf16.msra.mxu0 %v129
  %173 = vmatmul.bf16.gmra.mxu0 %v141
  %v174 = vpop.f32.mrf.mxu0
  %v175 = vadd.f32 %v156, %v174
  %v176 = vpop.f32.mrf.mxu0
  %v177 = vadd.f32 %v158, %v176
  %178 = vmatmul.bf16.gmra.mxu0 %v144
  %v179 = vpop.f32.mrf.mxu0
  %v180 = vadd.f32 %v161, %v179
  %v181 = vpop.f32.mrf.mxu0
  %v182 = vadd.f32 %v163, %v181
  %183 = vdwg.mxu0
  %v184 = vmul.f32 %v175, 0.25
  %v185 = vmul.f32 %v177, 0.25
  %v186 = vmul.f32 %v180, 0.25
  %v187 = vmul.f32 %v182, 0.25
  %v188 = vadd.f32 %v184, 0.0
  %v189 = vadd.f32 %v185, 0.0
  %v190 = vadd.f32 %v186, 0.0
  %v191 = vadd.f32 %v187, 0.0
  %192 = vadd.xlane.f32.xlu0 %v175
  %v193 = vpop.xlane.xlu0 %192
  %194 = vadd.xlane.f32.xlu0 %v177
  %v195 = vpop.xlane.xlu0 %194
  %196 = vadd.xlane.f32.xlu0 %v180
  %v197 = vpop.xlane.xlu0 %196
  %198 = vadd.xlane.f32.xlu0 %v182
  %v199 = vpop.xlane.xlu0 %198
  %v200 = vadd.f32 %v193, 0.0
  %v201 = vadd.f32 %v195, 0.0
  %v202 = vadd.f32 %v197, 0.0
  %v203 = vadd.f32 %v199, 0.0
  %v204 = vmul.f32 %v175, %v175
  %v205 = vmul.f32 %v177, %v177
  %v206 = vmul.f32 %v180, %v180
  %v207 = vmul.f32 %v182, %v182
  %208 = vadd.xlane.f32.xlu0 %v204
  %v209 = vpop.xlane.xlu0 %208
  %210 = vadd.xlane.f32.xlu0 %v205
  %v211 = vpop.xlane.xlu0 %210
  %212 = vadd.xlane.f32.xlu0 %v206
  %v213 = vpop.xlane.xlu0 %212
  %214 = vadd.xlane.f32.xlu0 %v207
  %v215 = vpop.xlane.xlu0 %214
  %v216 = vadd.f32 %v209, 0.0
  %v217 = vadd.f32 %v211, 0.0
  %v218 = vadd.f32 %v213, 0.0
  %v219 = vadd.f32 %v215, 0.0
  %s220 = scalar_lea.vmem %s1, 72
  %v221 = vld [vmem:[%s220] sm:$0xf]
  %v222 = vld [vmem:[%s220 + $0x4] sm:$0xf]
  %v223 = vld [vmem:[%s220 + $0x8] sm:$0xf]
  %v224 = vld [vmem:[%s220 + $0xc] sm:$0xf]
  %v225 = vld [vmem:[%s220 + $0x10] sm:$0xf]
  %v226 = vld [vmem:[%s220 + $0x14] sm:$0xf]
  %v227 = vld [vmem:[%s220 + $0x18] sm:$0xf]
  %v228 = vld [vmem:[%s220 + $0x1c] sm:$0xf]
  %v229 = vld [vmem:[%s220 + $0x20] sm:$0xf]
  %v230 = vld [vmem:[%s220 + $0x24] sm:$0xf]
  %v231 = vld [vmem:[%s220 + $0x28] sm:$0xf]
  %v232 = vld [vmem:[%s220 + $0x2c] sm:$0xf]
  %v233 = vld [vmem:[%s220 + $0x30] sm:$0xf]
  %v234 = vld [vmem:[%s220 + $0x34] sm:$0xf]
  %v235 = vld [vmem:[%s220 + $0x38] sm:$0xf]
  %v236 = vld [vmem:[%s220 + $0x3c] sm:$0xf]
  %v237 = vld [vmem:[%s220 + $0x40] sm:$0xf]
  %v238 = vld [vmem:[%s220 + $0x44] sm:$0xf]
  %v257 = vunpack.c.l.b16 %v221
  %v258 = vunpack.c.l.b16 %v222
  %v259 = vunpack.c.l.b16 %v223
  %v260 = vunpack.c.l.b16 %v224
  %v261 = vunpack.c.l.b16 %v225
  %v262 = vunpack.c.l.b16 %v226
  %v263 = vunpack.c.l.b16 %v227
  %v264 = vunpack.c.l.b16 %v228
  %v265 = vunpack.c.l.b16 %v229
  %v266 = vunpack.c.l.b16 %v230
  %v267 = vunpack.c.l.b16 %v231
  %v268 = vunpack.c.l.b16 %v232
  %v269 = vunpack.c.l.b16 %v233
  %v270 = vunpack.c.l.b16 %v234
  %v271 = vunpack.c.l.b16 %v235
  %v272 = vunpack.c.l.b16 %v236
  %v273 = vunpack.c.l.b16 %v237
  %v274 = vunpack.c.l.b16 %v238
  %v275 = vpack.c.b16 %v258, %v257
  %v276 = vpack.c.b16 %v260, %v259
  %v277 = vpack.c.b16 %v262, %v261
  %v278 = vpack.c.b16 %v264, %v263
  %v279 = vpack.c.b16 %v266, %v265
  %v280 = vpack.c.b16 %v268, %v267
  %v281 = vpack.c.b16 %v270, %v269
  %v282 = vpack.c.b16 %v272, %v271
  %v283 = vpack.c.b16 %v274, %v273
  %293 = vmatpush.bf16.msra.mxu0 %v282
  %294 = vmatpush.bf16.msra.mxu0 %v281
  %295 = vmatpush.bf16.msra.mxu0 %v280
  %296 = vmatpush.bf16.msra.mxu0 %v279
  %297 = vmatpush.bf16.msra.mxu0 %v278
  %298 = vmatpush.bf16.msra.mxu0 %v277
  %299 = vmatpush.bf16.msra.mxu0 %v276
  %300 = vmatpush.bf16.msra.mxu0 %v275
  %301 = vmatmul.bf16.gmra.mxu0 %v79
  %v302 = vpop.f32.mrf.mxu0
  %v303 = vadd.f32 %v50, %v302
  %v304 = vpop.f32.mrf.mxu0
  %v305 = vadd.f32 %v55, %v304
  %306 = vmatmul.bf16.gmra.mxu0 %v81
  %v307 = vpop.f32.mrf.mxu0
  %v308 = vadd.f32 %v60, %v307
  %v309 = vpop.f32.mrf.mxu0
  %v310 = vadd.f32 %v65, %v309
  %311 = vdwg.mxu0
  %312 = vmatpush.bf16.msra.mxu0 0
  %313 = vmatpush.bf16.msra.mxu0 0
  %314 = vmatpush.bf16.msra.mxu0 0
  %315 = vmatpush.bf16.msra.mxu0 0
  %316 = vmatpush.bf16.msra.mxu0 0
  %317 = vmatpush.bf16.msra.mxu0 0
  %318 = vmatpush.bf16.msra.mxu0 0
  %319 = vmatpush.bf16.msra.mxu0 %v283
  %320 = vmatmul.bf16.gmra.mxu0 %v141
  %v321 = vpop.f32.mrf.mxu0
  %v322 = vadd.f32 %v303, %v321
  %v323 = vpop.f32.mrf.mxu0
  %v324 = vadd.f32 %v305, %v323
  %325 = vmatmul.bf16.gmra.mxu0 %v144
  %v326 = vpop.f32.mrf.mxu0
  %v327 = vadd.f32 %v308, %v326
  %v328 = vpop.f32.mrf.mxu0
  %v329 = vadd.f32 %v310, %v328
  %330 = vdwg.mxu0
  %v331 = vmul.f32 %v322, 0.25
  %v332 = vmul.f32 %v324, 0.25
  %v333 = vmul.f32 %v327, 0.25
  %v334 = vmul.f32 %v329, 0.25
  %v335 = vadd.f32 %v188, %v331
  %v336 = vadd.f32 %v189, %v332
  %v337 = vadd.f32 %v190, %v333
  %v338 = vadd.f32 %v191, %v334
  %339 = vadd.xlane.f32.xlu0 %v322
  %v340 = vpop.xlane.xlu0 %339
  %341 = vadd.xlane.f32.xlu0 %v324
  %v342 = vpop.xlane.xlu0 %341
  %343 = vadd.xlane.f32.xlu0 %v327
  %v344 = vpop.xlane.xlu0 %343
  %345 = vadd.xlane.f32.xlu0 %v329
  %v346 = vpop.xlane.xlu0 %345
  %v347 = vadd.f32 %v200, %v340
  %v348 = vadd.f32 %v201, %v342
  %v349 = vadd.f32 %v202, %v344
  %v350 = vadd.f32 %v203, %v346
  %v351 = vmul.f32 %v322, %v322
  %v352 = vmul.f32 %v324, %v324
  %v353 = vmul.f32 %v327, %v327
  %v354 = vmul.f32 %v329, %v329
  %355 = vadd.xlane.f32.xlu0 %v351
  %v356 = vpop.xlane.xlu0 %355
  %357 = vadd.xlane.f32.xlu0 %v352
  %v358 = vpop.xlane.xlu0 %357
  %359 = vadd.xlane.f32.xlu0 %v353
  %v360 = vpop.xlane.xlu0 %359
  %361 = vadd.xlane.f32.xlu0 %v354
  %v362 = vpop.xlane.xlu0 %361
  %v363 = vadd.f32 %v216, %v356
  %v364 = vadd.f32 %v217, %v358
  %v365 = vadd.f32 %v218, %v360
  %v366 = vadd.f32 %v219, %v362
  %s367 = scalar_lea.vmem %s1, 144
  %v368 = vld [vmem:[%s367] sm:$0xf]
  %v369 = vld [vmem:[%s367 + $0x4] sm:$0xf]
  %v370 = vld [vmem:[%s367 + $0x8] sm:$0xf]
  %v371 = vld [vmem:[%s367 + $0xc] sm:$0xf]
  %v372 = vld [vmem:[%s367 + $0x10] sm:$0xf]
  %v373 = vld [vmem:[%s367 + $0x14] sm:$0xf]
  %v374 = vld [vmem:[%s367 + $0x18] sm:$0xf]
  %v375 = vld [vmem:[%s367 + $0x1c] sm:$0xf]
  %v376 = vld [vmem:[%s367 + $0x20] sm:$0xf]
  %v377 = vld [vmem:[%s367 + $0x24] sm:$0xf]
  %v378 = vld [vmem:[%s367 + $0x28] sm:$0xf]
  %v379 = vld [vmem:[%s367 + $0x2c] sm:$0xf]
  %v380 = vld [vmem:[%s367 + $0x30] sm:$0xf]
  %v381 = vld [vmem:[%s367 + $0x34] sm:$0xf]
  %v382 = vld [vmem:[%s367 + $0x38] sm:$0xf]
  %v383 = vld [vmem:[%s367 + $0x3c] sm:$0xf]
  %v384 = vld [vmem:[%s367 + $0x40] sm:$0xf]
  %v385 = vld [vmem:[%s367 + $0x44] sm:$0xf]
  %v404 = vunpack.c.l.b16 %v368
  %v405 = vunpack.c.l.b16 %v369
  %v406 = vunpack.c.l.b16 %v370
  %v407 = vunpack.c.l.b16 %v371
  %v408 = vunpack.c.l.b16 %v372
  %v409 = vunpack.c.l.b16 %v373
  %v410 = vunpack.c.l.b16 %v374
  %v411 = vunpack.c.l.b16 %v375
  %v412 = vunpack.c.l.b16 %v376
  %v413 = vunpack.c.l.b16 %v377
  %v414 = vunpack.c.l.b16 %v378
  %v415 = vunpack.c.l.b16 %v379
  %v416 = vunpack.c.l.b16 %v380
  %v417 = vunpack.c.l.b16 %v381
  %v418 = vunpack.c.l.b16 %v382
  %v419 = vunpack.c.l.b16 %v383
  %v420 = vunpack.c.l.b16 %v384
  %v421 = vunpack.c.l.b16 %v385
  %v422 = vpack.c.b16 %v405, %v404
  %v423 = vpack.c.b16 %v407, %v406
  %v424 = vpack.c.b16 %v409, %v408
  %v425 = vpack.c.b16 %v411, %v410
  %v426 = vpack.c.b16 %v413, %v412
  %v427 = vpack.c.b16 %v415, %v414
  %v428 = vpack.c.b16 %v417, %v416
  %v429 = vpack.c.b16 %v419, %v418
  %v430 = vpack.c.b16 %v421, %v420
  %440 = vmatpush.bf16.msra.mxu0 %v429
  %441 = vmatpush.bf16.msra.mxu0 %v428
  %442 = vmatpush.bf16.msra.mxu0 %v427
  %443 = vmatpush.bf16.msra.mxu0 %v426
  %444 = vmatpush.bf16.msra.mxu0 %v425
  %445 = vmatpush.bf16.msra.mxu0 %v424
  %446 = vmatpush.bf16.msra.mxu0 %v423
  %447 = vmatpush.bf16.msra.mxu0 %v422
  %448 = vmatmul.bf16.gmra.mxu0 %v79
  %v449 = vpop.f32.mrf.mxu0
  %v450 = vadd.f32 %v50, %v449
  %v451 = vpop.f32.mrf.mxu0
  %v452 = vadd.f32 %v55, %v451
  %453 = vmatmul.bf16.gmra.mxu0 %v81
  %v454 = vpop.f32.mrf.mxu0
  %v455 = vadd.f32 %v60, %v454
  %v456 = vpop.f32.mrf.mxu0
  %v457 = vadd.f32 %v65, %v456
  %458 = vdwg.mxu0
  %459 = vmatpush.bf16.msra.mxu0 0
  %460 = vmatpush.bf16.msra.mxu0 0
  %461 = vmatpush.bf16.msra.mxu0 0
  %462 = vmatpush.bf16.msra.mxu0 0
  %463 = vmatpush.bf16.msra.mxu0 0
  %464 = vmatpush.bf16.msra.mxu0 0
  %465 = vmatpush.bf16.msra.mxu0 0
  %466 = vmatpush.bf16.msra.mxu0 %v430
  %467 = vmatmul.bf16.gmra.mxu0 %v141
  %v468 = vpop.f32.mrf.mxu0
  %v469 = vadd.f32 %v450, %v468
  %v470 = vpop.f32.mrf.mxu0
  %v471 = vadd.f32 %v452, %v470
  %472 = vmatmul.bf16.gmra.mxu0 %v144
  %v473 = vpop.f32.mrf.mxu0
  %v474 = vadd.f32 %v455, %v473
  %v475 = vpop.f32.mrf.mxu0
  %v476 = vadd.f32 %v457, %v475
  %477 = vdwg.mxu0
  %v478 = vmul.f32 %v469, 0.25
  %v479 = vmul.f32 %v471, 0.25
  %v480 = vmul.f32 %v474, 0.25
  %v481 = vmul.f32 %v476, 0.25
  %v482 = vadd.f32 %v335, %v478
  %v483 = vadd.f32 %v336, %v479
  %v484 = vadd.f32 %v337, %v480
  %v485 = vadd.f32 %v338, %v481
  %486 = vadd.xlane.f32.xlu0 %v469
  %v487 = vpop.xlane.xlu0 %486
  %488 = vadd.xlane.f32.xlu0 %v471
  %v489 = vpop.xlane.xlu0 %488
  %490 = vadd.xlane.f32.xlu0 %v474
  %v491 = vpop.xlane.xlu0 %490
  %492 = vadd.xlane.f32.xlu0 %v476
  %v493 = vpop.xlane.xlu0 %492
  %v494 = vadd.f32 %v347, %v487
  %v495 = vadd.f32 %v348, %v489
  %v496 = vadd.f32 %v349, %v491
  %v497 = vadd.f32 %v350, %v493
  %v498 = vmul.f32 %v469, %v469
  %v499 = vmul.f32 %v471, %v471
  %v500 = vmul.f32 %v474, %v474
  %v501 = vmul.f32 %v476, %v476
  %502 = vadd.xlane.f32.xlu0 %v498
  %v503 = vpop.xlane.xlu0 %502
  %504 = vadd.xlane.f32.xlu0 %v499
  %v505 = vpop.xlane.xlu0 %504
  %506 = vadd.xlane.f32.xlu0 %v500
  %v507 = vpop.xlane.xlu0 %506
  %508 = vadd.xlane.f32.xlu0 %v501
  %v509 = vpop.xlane.xlu0 %508
  %v510 = vadd.f32 %v363, %v503
  %v511 = vadd.f32 %v364, %v505
  %v512 = vadd.f32 %v365, %v507
  %v513 = vadd.f32 %v366, %v509
  %s514 = scalar_lea.vmem %s1, 216
  %v515 = vld [vmem:[%s514] sm:$0xf]
  %v516 = vld [vmem:[%s514 + $0x4] sm:$0xf]
  %v517 = vld [vmem:[%s514 + $0x8] sm:$0xf]
  %v518 = vld [vmem:[%s514 + $0xc] sm:$0xf]
  %v519 = vld [vmem:[%s514 + $0x10] sm:$0xf]
  %v520 = vld [vmem:[%s514 + $0x14] sm:$0xf]
  %v521 = vld [vmem:[%s514 + $0x18] sm:$0xf]
  %v522 = vld [vmem:[%s514 + $0x1c] sm:$0xf]
  %v523 = vld [vmem:[%s514 + $0x20] sm:$0xf]
  %v524 = vld [vmem:[%s514 + $0x24] sm:$0xf]
  %v525 = vld [vmem:[%s514 + $0x28] sm:$0xf]
  %v526 = vld [vmem:[%s514 + $0x2c] sm:$0xf]
  %v527 = vld [vmem:[%s514 + $0x30] sm:$0xf]
  %v528 = vld [vmem:[%s514 + $0x34] sm:$0xf]
  %v529 = vld [vmem:[%s514 + $0x38] sm:$0xf]
  %v530 = vld [vmem:[%s514 + $0x3c] sm:$0xf]
  %v531 = vld [vmem:[%s514 + $0x40] sm:$0xf]
  %v532 = vld [vmem:[%s514 + $0x44] sm:$0xf]
  %v551 = vunpack.c.l.b16 %v515
  %v552 = vunpack.c.l.b16 %v516
  %v553 = vunpack.c.l.b16 %v517
  %v554 = vunpack.c.l.b16 %v518
  %v555 = vunpack.c.l.b16 %v519
  %v556 = vunpack.c.l.b16 %v520
  %v557 = vunpack.c.l.b16 %v521
  %v558 = vunpack.c.l.b16 %v522
  %v559 = vunpack.c.l.b16 %v523
  %v560 = vunpack.c.l.b16 %v524
  %v561 = vunpack.c.l.b16 %v525
  %v562 = vunpack.c.l.b16 %v526
  %v563 = vunpack.c.l.b16 %v527
  %v564 = vunpack.c.l.b16 %v528
  %v565 = vunpack.c.l.b16 %v529
  %v566 = vunpack.c.l.b16 %v530
  %v567 = vunpack.c.l.b16 %v531
  %v568 = vunpack.c.l.b16 %v532
  %v569 = vpack.c.b16 %v552, %v551
  %v570 = vpack.c.b16 %v554, %v553
  %v571 = vpack.c.b16 %v556, %v555
  %v572 = vpack.c.b16 %v558, %v557
  %v573 = vpack.c.b16 %v560, %v559
  %v574 = vpack.c.b16 %v562, %v561
  %v575 = vpack.c.b16 %v564, %v563
  %v576 = vpack.c.b16 %v566, %v565
  %v577 = vpack.c.b16 %v568, %v567
  %587 = vmatpush.bf16.msra.mxu0 %v576
  %588 = vmatpush.bf16.msra.mxu0 %v575
  %589 = vmatpush.bf16.msra.mxu0 %v574
  %590 = vmatpush.bf16.msra.mxu0 %v573
  %591 = vmatpush.bf16.msra.mxu0 %v572
  %592 = vmatpush.bf16.msra.mxu0 %v571
  %593 = vmatpush.bf16.msra.mxu0 %v570
  %594 = vmatpush.bf16.msra.mxu0 %v569
  %595 = vmatmul.bf16.gmra.mxu0 %v79
  %v596 = vpop.f32.mrf.mxu0
  %v597 = vadd.f32 %v50, %v596
  %v598 = vpop.f32.mrf.mxu0
  %v599 = vadd.f32 %v55, %v598
  %600 = vmatmul.bf16.gmra.mxu0 %v81
  %v601 = vpop.f32.mrf.mxu0
  %v602 = vadd.f32 %v60, %v601
  %v603 = vpop.f32.mrf.mxu0
  %v604 = vadd.f32 %v65, %v603
  %605 = vdwg.mxu0
  %606 = vmatpush.bf16.msra.mxu0 0
  %607 = vmatpush.bf16.msra.mxu0 0
  %608 = vmatpush.bf16.msra.mxu0 0
  %609 = vmatpush.bf16.msra.mxu0 0
  %610 = vmatpush.bf16.msra.mxu0 0
  %611 = vmatpush.bf16.msra.mxu0 0
  %612 = vmatpush.bf16.msra.mxu0 0
  %613 = vmatpush.bf16.msra.mxu0 %v577
  %614 = vmatmul.bf16.gmra.mxu0 %v141
  %v615 = vpop.f32.mrf.mxu0
  %v616 = vadd.f32 %v597, %v615
  %v617 = vpop.f32.mrf.mxu0
  %v618 = vadd.f32 %v599, %v617
  %619 = vmatmul.bf16.gmra.mxu0 %v144
  %v620 = vpop.f32.mrf.mxu0
  %v621 = vadd.f32 %v602, %v620
  %v622 = vpop.f32.mrf.mxu0
  %v623 = vadd.f32 %v604, %v622
  %624 = vdwg.mxu0
  %v625 = vmul.f32 %v616, 0.25
  %v626 = vmul.f32 %v618, 0.25
  %v627 = vmul.f32 %v621, 0.25
  %v628 = vmul.f32 %v623, 0.25
  %v629 = vadd.f32 %v482, %v625
  %v630 = vadd.f32 %v483, %v626
  %v631 = vadd.f32 %v484, %v627
  %v632 = vadd.f32 %v485, %v628
  %633 = vadd.xlane.f32.xlu0 %v616
  %v634 = vpop.xlane.xlu0 %633
  %635 = vadd.xlane.f32.xlu0 %v618
  %v636 = vpop.xlane.xlu0 %635
  %637 = vadd.xlane.f32.xlu0 %v621
  %v638 = vpop.xlane.xlu0 %637
  %639 = vadd.xlane.f32.xlu0 %v623
  %v640 = vpop.xlane.xlu0 %639
  %v641 = vadd.f32 %v494, %v634
  %v642 = vadd.f32 %v495, %v636
  %v643 = vadd.f32 %v496, %v638
  %v644 = vadd.f32 %v497, %v640
  %v645 = vmul.f32 %v616, %v616
  %v646 = vmul.f32 %v618, %v618
  %v647 = vmul.f32 %v621, %v621
  %v648 = vmul.f32 %v623, %v623
  %649 = vadd.xlane.f32.xlu0 %v645
  %v650 = vpop.xlane.xlu0 %649
  %651 = vadd.xlane.f32.xlu0 %v646
  %v652 = vpop.xlane.xlu0 %651
  %653 = vadd.xlane.f32.xlu0 %v647
  %v654 = vpop.xlane.xlu0 %653
  %655 = vadd.xlane.f32.xlu0 %v648
  %v656 = vpop.xlane.xlu0 %655
  %v657 = vadd.f32 %v510, %v650
  %v658 = vadd.f32 %v511, %v652
  %v659 = vadd.f32 %v512, %v654
  %v660 = vadd.f32 %v513, %v656
  %v661 = vrcp.pop 512.0
  %v662 = vmul.f32 512.0, %v661
  %v663 = vsub.f32 1.0, %v662
  %v664 = vmul.f32 %v661, %v663
  %v665 = vadd.f32 %v661, %v664
  %vm666 = vweird.f32 %v661
  %v667 = vsel %vm666, %v661, %v665
  %v668 = vmul.f32 %v641, %v667
  %v669 = vmul.f32 %v642, %v667
  %v670 = vmul.f32 %v643, %v667
  %v671 = vmul.f32 %v644, %v667
  %v672 = vmul.f32 %v657, %v667
  %v673 = vmul.f32 %v658, %v667
  %v674 = vmul.f32 %v659, %v667
  %v675 = vmul.f32 %v660, %v667
  %v676 = vmul.f32 %v668, %v668
  %v677 = vmul.f32 %v669, %v669
  %v678 = vmul.f32 %v670, %v670
  %v679 = vmul.f32 %v671, %v671
  %v680 = vsub.f32 %v672, %v676
  %v681 = vsub.f32 %v673, %v677
  %v682 = vsub.f32 %v674, %v678
  %v683 = vsub.f32 %v675, %v679
  %v684 = vld [vmem:[%s3] sm:$0xff]
  %v685 = vld [vmem:[%s3 + $0x8] sm:$0xff]
  %v686 = vld [vmem:[%s3 + $0x10] sm:$0xff]
  %v687 = vld [vmem:[%s3 + $0x18] sm:$0xff]
  %v688 = vadd.f32 %v680, 1e-05
  %v689 = vadd.f32 %v681, 1e-05
  %v690 = vadd.f32 %v682, 1e-05
  %v691 = vadd.f32 %v683, 1e-05
  %v692 = vrsqrt.pop %v688
  %v693 = vmul.f32 %v692, %v688
  %v694 = vmul.f32 %v693, %v692
  %v695 = vmul.f32 0.5, %v694
  %v696 = vsub.f32 1.5, %v695
  %v697 = vmul.f32 %v692, %v696
  %v698 = vmul.f32 %v688, %v697
  %vm699 = vcmp.eq.f32.partialorder %v688, inf
  %v700 = vsel %vm699, %v688, %v698
  %vm701 = vcmp.eq.f32.partialorder %v688, 0.0
  %v702 = vand.u32 %v688, 2147483648
  %v703 = vsel %vm701, %v702, %v700
  %v704 = vrsqrt.pop %v689
  %v705 = vmul.f32 %v704, %v689
  %v706 = vmul.f32 %v705, %v704
  %v707 = vmul.f32 0.5, %v706
  %v708 = vsub.f32 1.5, %v707
  %v709 = vmul.f32 %v704, %v708
  %v710 = vmul.f32 %v689, %v709
  %vm711 = vcmp.eq.f32.partialorder %v689, inf
  %v712 = vsel %vm711, %v689, %v710
  %vm713 = vcmp.eq.f32.partialorder %v689, 0.0
  %v714 = vand.u32 %v689, 2147483648
  %v715 = vsel %vm713, %v714, %v712
  %v716 = vrsqrt.pop %v690
  %v717 = vmul.f32 %v716, %v690
  %v718 = vmul.f32 %v717, %v716
  %v719 = vmul.f32 0.5, %v718
  %v720 = vsub.f32 1.5, %v719
  %v721 = vmul.f32 %v716, %v720
  %v722 = vmul.f32 %v690, %v721
  %vm723 = vcmp.eq.f32.partialorder %v690, inf
  %v724 = vsel %vm723, %v690, %v722
  %vm725 = vcmp.eq.f32.partialorder %v690, 0.0
  %v726 = vand.u32 %v690, 2147483648
  %v727 = vsel %vm725, %v726, %v724
  %v728 = vrsqrt.pop %v691
  %v729 = vmul.f32 %v728, %v691
  %v730 = vmul.f32 %v729, %v728
  %v731 = vmul.f32 0.5, %v730
  %v732 = vsub.f32 1.5, %v731
  %v733 = vmul.f32 %v728, %v732
  %v734 = vmul.f32 %v691, %v733
  %vm735 = vcmp.eq.f32.partialorder %v691, inf
  %v736 = vsel %vm735, %v691, %v734
  %vm737 = vcmp.eq.f32.partialorder %v691, 0.0
  %v738 = vand.u32 %v691, 2147483648
  %v739 = vsel %vm737, %v738, %v736
  %v740 = vrcp.pop %v703
  %v741 = vmul.f32 %v703, %v740
  %v742 = vsub.f32 1.0, %v741
  %v743 = vmul.f32 %v740, %v742
  %v744 = vadd.f32 %v740, %v743
  %vm745 = vweird.f32 %v703
  %vm746 = vweird.f32 %v740
  %vm747 = vmor %vm745, %vm746
  %v748 = vsel %vm747, %v740, %v744
  %v749 = vand.u32 2147483647, %v703
  %vm750 = vcmp.eq.f32.partialorder %v749, 8.507059e+37
  %v751 = vand.u32 %v703, 2147483648
  %v752 = vor.u32 1.1754944e-38, %v751
  %v753 = vsel %vm750, %v752, %v748
  %v754 = vmul.f32 %v684, %v753
  %v755 = vrcp.pop %v715
  %v756 = vmul.f32 %v715, %v755
  %v757 = vsub.f32 1.0, %v756
  %v758 = vmul.f32 %v755, %v757
  %v759 = vadd.f32 %v755, %v758
  %vm760 = vweird.f32 %v715
  %vm761 = vweird.f32 %v755
  %vm762 = vmor %vm760, %vm761
  %v763 = vsel %vm762, %v755, %v759
  %v764 = vand.u32 2147483647, %v715
  %vm765 = vcmp.eq.f32.partialorder %v764, 8.507059e+37
  %v766 = vand.u32 %v715, 2147483648
  %v767 = vor.u32 1.1754944e-38, %v766
  %v768 = vsel %vm765, %v767, %v763
  %v769 = vmul.f32 %v685, %v768
  %v770 = vrcp.pop %v727
  %v771 = vmul.f32 %v727, %v770
  %v772 = vsub.f32 1.0, %v771
  %v773 = vmul.f32 %v770, %v772
  %v774 = vadd.f32 %v770, %v773
  %vm775 = vweird.f32 %v727
  %vm776 = vweird.f32 %v770
  %vm777 = vmor %vm775, %vm776
  %v778 = vsel %vm777, %v770, %v774
  %v779 = vand.u32 2147483647, %v727
  %vm780 = vcmp.eq.f32.partialorder %v779, 8.507059e+37
  %v781 = vand.u32 %v727, 2147483648
  %v782 = vor.u32 1.1754944e-38, %v781
  %v783 = vsel %vm780, %v782, %v778
  %v784 = vmul.f32 %v686, %v783
  %v785 = vrcp.pop %v739
  %v786 = vmul.f32 %v739, %v785
  %v787 = vsub.f32 1.0, %v786
  %v788 = vmul.f32 %v785, %v787
  %v789 = vadd.f32 %v785, %v788
  %vm790 = vweird.f32 %v739
  %vm791 = vweird.f32 %v785
  %vm792 = vmor %vm790, %vm791
  %v793 = vsel %vm792, %v785, %v789
  %v794 = vand.u32 2147483647, %v739
  %vm795 = vcmp.eq.f32.partialorder %v794, 8.507059e+37
  %v796 = vand.u32 %v739, 2147483648
  %v797 = vor.u32 1.1754944e-38, %v796
  %v798 = vsel %vm795, %v797, %v793
  %v799 = vmul.f32 %v687, %v798
  %v800 = vld [vmem:[%s4] sm:$0xff]
  %v801 = vld [vmem:[%s4 + $0x8] sm:$0xff]
  %v802 = vld [vmem:[%s4 + $0x10] sm:$0xff]
  %v803 = vld [vmem:[%s4 + $0x18] sm:$0xff]
  %v804 = vmul.f32 %v668, %v754
  %v805 = vmul.f32 %v669, %v769
  %v806 = vmul.f32 %v670, %v784
  %v807 = vmul.f32 %v671, %v799
  %v808 = vsub.f32 %v800, %v804
  %v809 = vsub.f32 %v801, %v805
  %v810 = vsub.f32 %v802, %v806
  %v811 = vsub.f32 %v803, %v807
  %813 = vset.pattern.permute.xlu0 0
  %814 = vperm.xlu0 %813, %v754
  %v815 = vpop.permute.xlu0 %814
  %818 = vset.pattern.permute.xlu0 0
  %819 = vperm.xlu0 %818, %v769
  %v820 = vpop.permute.xlu0 %819
  %823 = vset.pattern.permute.xlu0 0
  %824 = vperm.xlu0 %823, %v784
  %v825 = vpop.permute.xlu0 %824
  %828 = vset.pattern.permute.xlu0 0
  %829 = vperm.xlu0 %828, %v799
  %v830 = vpop.permute.xlu0 %829
  %v832 = vmul.f32 %v629, %v815
  %v833 = vmul.f32 %v630, %v820
  %v834 = vmul.f32 %v631, %v825
  %v835 = vmul.f32 %v632, %v830
  %837 = vset.pattern.permute.xlu0 0
  %838 = vperm.xlu0 %837, %v808
  %v839 = vpop.permute.xlu0 %838
  %842 = vset.pattern.permute.xlu0 0
  %843 = vperm.xlu0 %842, %v809
  %v844 = vpop.permute.xlu0 %843
  %847 = vset.pattern.permute.xlu0 0
  %848 = vperm.xlu0 %847, %v810
  %v849 = vpop.permute.xlu0 %848
  %852 = vset.pattern.permute.xlu0 0
  %853 = vperm.xlu0 %852, %v811
  %v854 = vpop.permute.xlu0 %853
  %v856 = vadd.f32 %v832, %v839
  %v857 = vadd.f32 %v833, %v844
  %v858 = vadd.f32 %v834, %v849
  %v859 = vadd.f32 %v835, %v854
  %v860 = vmax.f32 %v856, 0.0
  %v861 = vmax.f32 %v857, 0.0
  %v862 = vmax.f32 %v858, 0.0
  %v863 = vmax.f32 %v859, 0.0
  %864 = vst [vmem:[%s5] sm:$0xff] %v860
  %865 = vst [vmem:[%s5 + $0x8] sm:$0xff] %v861
  %866 = vst [vmem:[%s5 + $0x10] sm:$0xff] %v862
  %867 = vst [vmem:[%s5 + $0x18] sm:$0xff] %v863
  // Predicated region
  $region22: #{vae_forward.11} parent=0 // pred_check
    _
  $region23: #{vae_forward.11} parent=0 // pred_check_branch
    %869 = sbr.rel (0) target = $region25
  $region24: #{vae_forward.11} parent=0 // pred_region
    _
  $region25: #{vae_forward.11} parent=0 // pred_fallthru
    _
  // Predicated region
  $region26: #{vae_forward.11} parent=0 // pred_check
    _
  $region27: #{vae_forward.11} parent=0 // pred_check_branch
    %871 = sbr.rel (0) target = $region29
  $region28: #{vae_forward.11} parent=0 // pred_region
    _
  $region29: #{vae_forward.11} parent=0 // pred_fallthru
    _

// kernel: vae_forward.12
$region0: #{vae_forward.12}
  #allocation0 [shape = 'u32[]', space=smem, size = 0x4, offset = 0x4, fixed_abs, tag = 'smem constant byte address 0x4 - core index']
  #allocation1 [shape = 'u32[72,128]{1,0:T(1,128)}', space=vmem, size = 0x9000, scoped, tag = 'internal scratch']
  %s0 = inlined_call_operand.vmem [shape: bf16[32,288], index: 0, kind: input, shape index: {}]
  %s1 = inlined_call_operand.vmem [shape: bf16[4,288,32], index: 1, kind: input, shape index: {}]
  %s2 = inlined_call_operand.vmem [shape: f32[32,1], index: 2, kind: input, shape index: {}]
  %s3 = inlined_call_operand.vmem [shape: f32[32,1], index: 3, kind: input, shape index: {}]
  %s4 = inlined_call_operand.vmem [shape: f32[32,1], index: 4, kind: input, shape index: {}]
  %s5 = inlined_call_operand.vmem [shape: f32[32,32], index: 5, kind: output, shape index: {}]
  %s6 = sld [smem:[#allocation0]]
  $region30: #{vae_forward.12} parent=0
    _
  %s8 = ssub.s32 1, %s6
  %s9 = scalar_select 0, %s8, %s6
  // Predicated region
  $region2: #{vae_forward.12} parent=0 // pred_check
    _
  $region3: #{vae_forward.12} parent=0 // pred_check_branch
    %11 = sbr.rel (0) target = $region5
  $region4: #{vae_forward.12} parent=0 // pred_region
    _
  $region5: #{vae_forward.12} parent=0 // pred_fallthru
    _
  // Predicated region
  $region6: #{vae_forward.12} parent=0 // pred_check
    _
  $region7: #{vae_forward.12} parent=0 // pred_check_branch
    %13 = sbr.rel (0) target = $region9
  $region8: #{vae_forward.12} parent=0 // pred_region
    _
  $region9: #{vae_forward.12} parent=0 // pred_fallthru
    _
  // Predicated region
  $region10: #{vae_forward.12} parent=0 // pred_check
    _
  $region11: #{vae_forward.12} parent=0 // pred_check_branch
    %15 = sbr.rel (0) target = $region13
  $region12: #{vae_forward.12} parent=0 // pred_region
    _
  $region13: #{vae_forward.12} parent=0 // pred_fallthru
    _
  // Predicated region
  $region14: #{vae_forward.12} parent=0 // pred_check
    _
  $region15: #{vae_forward.12} parent=0 // pred_check_branch
    %17 = sbr.rel (0) target = $region17
  $region16: #{vae_forward.12} parent=0 // pred_region
    _
  $region17: #{vae_forward.12} parent=0 // pred_fallthru
    _
  // Predicated region
  $region18: #{vae_forward.12} parent=0 // pred_check
    _
  $region19: #{vae_forward.12} parent=0 // pred_check_branch
    %19 = sbr.rel (0) target = $region21
  $region20: #{vae_forward.12} parent=0 // pred_region
    _
  $region21: #{vae_forward.12} parent=0 // pred_fallthru
    _
  %v21 = vld [vmem:[%s0] sm:$0xff]
  %v22 = vld [vmem:[%s0 + $0x8] sm:$0xf]
  %v23 = vld [vmem:[%s0 + $0xc] sm:$0xff]
  %v24 = vld [vmem:[%s0 + $0x14] sm:$0xf]
  %v25 = vld [vmem:[%s0 + $0x18] sm:$0xff]
  %v26 = vld [vmem:[%s0 + $0x20] sm:$0xf]
  %v27 = vld [vmem:[%s0 + $0x24] sm:$0xff]
  %v28 = vld [vmem:[%s0 + $0x2c] sm:$0xf]
  %v29 = vld [vmem:[%s2] sm:$0xff]
  %v30 = vld [vmem:[%s2 + $0x8] sm:$0xff]
  %v31 = vld [vmem:[%s2 + $0x10] sm:$0xff]
  %v32 = vld [vmem:[%s2 + $0x18] sm:$0xff]
  %v33 = vld [vmem:[%s1] sm:$0xf]
  %v34 = vld [vmem:[%s1 + $0x4] sm:$0xf]
  %v35 = vld [vmem:[%s1 + $0x8] sm:$0xf]
  %v36 = vld [vmem:[%s1 + $0xc] sm:$0xf]
  %v37 = vld [vmem:[%s1 + $0x10] sm:$0xf]
  %v38 = vld [vmem:[%s1 + $0x14] sm:$0xf]
  %v39 = vld [vmem:[%s1 + $0x18] sm:$0xf]
  %v40 = vld [vmem:[%s1 + $0x1c] sm:$0xf]
  %v41 = vld [vmem:[%s1 + $0x20] sm:$0xf]
  %v42 = vld [vmem:[%s1 + $0x24] sm:$0xf]
  %v43 = vld [vmem:[%s1 + $0x28] sm:$0xf]
  %v44 = vld [vmem:[%s1 + $0x2c] sm:$0xf]
  %v45 = vld [vmem:[%s1 + $0x30] sm:$0xf]
  %v46 = vld [vmem:[%s1 + $0x34] sm:$0xf]
  %v47 = vld [vmem:[%s1 + $0x38] sm:$0xf]
  %v48 = vld [vmem:[%s1 + $0x3c] sm:$0xf]
  %v49 = vld [vmem:[%s1 + $0x40] sm:$0xf]
  %v50 = vld [vmem:[%s1 + $0x44] sm:$0xf]
  %v51 = vld [vmem:[%s1 + $0x48] sm:$0xf]
  %v52 = vld [vmem:[%s1 + $0x4c] sm:$0xf]
  %v53 = vld [vmem:[%s1 + $0x50] sm:$0xf]
  %v54 = vld [vmem:[%s1 + $0x54] sm:$0xf]
  %v55 = vld [vmem:[%s1 + $0x58] sm:$0xf]
  %v56 = vld [vmem:[%s1 + $0x5c] sm:$0xf]
  %v57 = vld [vmem:[%s1 + $0x60] sm:$0xf]
  %v58 = vld [vmem:[%s1 + $0x64] sm:$0xf]
  %v59 = vld [vmem:[%s1 + $0x68] sm:$0xf]
  %v60 = vld [vmem:[%s1 + $0x6c] sm:$0xf]
  %v61 = vld [vmem:[%s1 + $0x70] sm:$0xf]
  %v62 = vld [vmem:[%s1 + $0x74] sm:$0xf]
  %v63 = vld [vmem:[%s1 + $0x78] sm:$0xf]
  %v64 = vld [vmem:[%s1 + $0x7c] sm:$0xf]
  %v65 = vld [vmem:[%s1 + $0x80] sm:$0xf]
  %v66 = vld [vmem:[%s1 + $0x84] sm:$0xf]
  %v67 = vld [vmem:[%s1 + $0x88] sm:$0xf]
  %v68 = vld [vmem:[%s1 + $0x8c] sm:$0xf]
  %70 = vset.pattern.permute.xlu0 0
  %71 = vperm.xlu0 %70, %v29
  %v72 = vpop.permute.xlu0 %71
  %75 = vset.pattern.permute.xlu0 0
  %76 = vperm.xlu0 %75, %v30
  %v77 = vpop.permute.xlu0 %76
  %80 = vset.pattern.permute.xlu0 0
  %81 = vperm.xlu0 %80, %v31
  %v82 = vpop.permute.xlu0 %81
  %85 = vset.pattern.permute.xlu0 0
  %86 = vperm.xlu0 %85, %v32
  %v87 = vpop.permute.xlu0 %86
  %v97 = vunpack.c.l.b16 %v21
  %v98 = vunpack.c.h.b16 %v21
  %v99 = vunpack.c.l.b16 %v22
  %v100 = vunpack.c.l.b16 %v23
  %v101 = vunpack.c.h.b16 %v23
  %v102 = vunpack.c.l.b16 %v24
  %v103 = vunpack.c.l.b16 %v25
  %v104 = vunpack.c.h.b16 %v25
  %v105 = vunpack.c.l.b16 %v26
  %v106 = vunpack.c.l.b16 %v27
  %v107 = vunpack.c.h.b16 %v27
  %v108 = vunpack.c.l.b16 %v28
  %v109 = vpack.c.b16 %v100, %v97
  %v110 = vpack.c.b16 %v101, %v98
  %v111 = vpack.c.b16 %v102, %v99
  %v112 = vpack.c.b16 %v106, %v103
  %v113 = vpack.c.b16 %v107, %v104
  %v114 = vpack.c.b16 %v108, %v105
  %v155 = vunpack.c.l.b16 %v33
  %v156 = vunpack.c.l.b16 %v34
  %v157 = vunpack.c.l.b16 %v35
  %v158 = vunpack.c.l.b16 %v36
  %v159 = vunpack.c.l.b16 %v37
  %v160 = vunpack.c.l.b16 %v38
  %v161 = vunpack.c.l.b16 %v39
  %v162 = vunpack.c.l.b16 %v40
  %v163 = vunpack.c.l.b16 %v41
  %v164 = vunpack.c.l.b16 %v42
  %v165 = vunpack.c.l.b16 %v43
  %v166 = vunpack.c.l.b16 %v44
  %v167 = vunpack.c.l.b16 %v45
  %v168 = vunpack.c.l.b16 %v46
  %v169 = vunpack.c.l.b16 %v47
  %v170 = vunpack.c.l.b16 %v48
  %v171 = vunpack.c.l.b16 %v49
  %v172 = vunpack.c.l.b16 %v50
  %v173 = vunpack.c.l.b16 %v51
  %v174 = vunpack.c.l.b16 %v52
  %v175 = vunpack.c.l.b16 %v53
  %v176 = vunpack.c.l.b16 %v54
  %v177 = vunpack.c.l.b16 %v55
  %v178 = vunpack.c.l.b16 %v56
  %v179 = vunpack.c.l.b16 %v57
  %v180 = vunpack.c.l.b16 %v58
  %v181 = vunpack.c.l.b16 %v59
  %v182 = vunpack.c.l.b16 %v60
  %v183 = vunpack.c.l.b16 %v61
  %v184 = vunpack.c.l.b16 %v62
  %v185 = vunpack.c.l.b16 %v63
  %v186 = vunpack.c.l.b16 %v64
  %v187 = vunpack.c.l.b16 %v65
  %v188 = vunpack.c.l.b16 %v66
  %v189 = vunpack.c.l.b16 %v67
  %v190 = vunpack.c.l.b16 %v68
  %v191 = vpack.c.b16 %v156, %v155
  %v192 = vpack.c.b16 %v158, %v157
  %v193 = vpack.c.b16 %v160, %v159
  %v194 = vpack.c.b16 %v162, %v161
  %v195 = vpack.c.b16 %v164, %v163
  %v196 = vpack.c.b16 %v166, %v165
  %v197 = vpack.c.b16 %v168, %v167
  %v198 = vpack.c.b16 %v170, %v169
  %v199 = vpack.c.b16 %v172, %v171
  %v200 = vpack.c.b16 %v174, %v173
  %v201 = vpack.c.b16 %v176, %v175
  %v202 = vpack.c.b16 %v178, %v177
  %v203 = vpack.c.b16 %v180, %v179
  %v204 = vpack.c.b16 %v182, %v181
  %v205 = vpack.c.b16 %v184, %v183
  %v206 = vpack.c.b16 %v186, %v185
  %v207 = vpack.c.b16 %v188, %v187
  %v208 = vpack.c.b16 %v190, %v189
  %vm227 = vcmask 261120
  %v229 = vsel %vm227, %v111, 0
  %v232 = vsel %vm227, %v114, 0
  %234 = vmatpush.bf16.msra.mxu0 %v198
  %235 = vmatpush.bf16.msra.mxu0 %v197
  %236 = vmatpush.bf16.msra.mxu0 %v196
  %237 = vmatpush.bf16.msra.mxu0 %v195
  %238 = vmatpush.bf16.msra.mxu0 %v194
  %239 = vmatpush.bf16.msra.mxu0 %v193
  %240 = vmatpush.bf16.msra.mxu0 %v192
  %241 = vmatpush.bf16.msra.mxu0 %v191
  %242 = vmatmul.bf16.gmra.mxu0 %v109
  %v243 = vpop.f32.mrf.mxu0
  %v244 = vadd.f32 %v72, %v243
  %v245 = vpop.f32.mrf.mxu0
  %v246 = vadd.f32 %v77, %v245
  %247 = vmatmul.bf16.gmra.mxu0 %v112
  %v248 = vpop.f32.mrf.mxu0
  %v249 = vadd.f32 %v82, %v248
  %v250 = vpop.f32.mrf.mxu0
  %v251 = vadd.f32 %v87, %v250
  %252 = vdwg.mxu0
  %253 = vmatpush.bf16.msra.mxu0 %v206
  %254 = vmatpush.bf16.msra.mxu0 %v205
  %255 = vmatpush.bf16.msra.mxu0 %v204
  %256 = vmatpush.bf16.msra.mxu0 %v203
  %257 = vmatpush.bf16.msra.mxu0 %v202
  %258 = vmatpush.bf16.msra.mxu0 %v201
  %259 = vmatpush.bf16.msra.mxu0 %v200
  %260 = vmatpush.bf16.msra.mxu0 %v199
  %261 = vmatmul.bf16.gmra.mxu0 %v110
  %v262 = vpop.f32.mrf.mxu0
  %v263 = vadd.f32 %v244, %v262
  %v264 = vpop.f32.mrf.mxu0
  %v265 = vadd.f32 %v246, %v264
  %266 = vmatmul.bf16.gmra.mxu0 %v113
  %v267 = vpop.f32.mrf.mxu0
  %v268 = vadd.f32 %v249, %v267
  %v269 = vpop.f32.mrf.mxu0
  %v270 = vadd.f32 %v251, %v269
  %271 = vdwg.mxu0
  %272 = vmatpush.bf16.msra.mxu0 0
  %273 = vmatpush.bf16.msra.mxu0 0
  %274 = vmatpush.bf16.msra.mxu0 0
  %275 = vmatpush.bf16.msra.mxu0 0
  %276 = vmatpush.bf16.msra.mxu0 0
  %277 = vmatpush.bf16.msra.mxu0 0
  %278 = vmatpush.bf16.msra.mxu0 %v208
  %279 = vmatpush.bf16.msra.mxu0 %v207
  %280 = vmatmul.bf16.gmra.mxu0 %v229
  %v281 = vpop.f32.mrf.mxu0
  %v282 = vadd.f32 %v263, %v281
  %v283 = vpop.f32.mrf.mxu0
  %v284 = vadd.f32 %v265, %v283
  %285 = vmatmul.bf16.gmra.mxu0 %v232
  %v286 = vpop.f32.mrf.mxu0
  %v287 = vadd.f32 %v268, %v286
  %v288 = vpop.f32.mrf.mxu0
  %v289 = vadd.f32 %v270, %v288
  %290 = vdwg.mxu0
  %v291 = vmul.f32 %v282, 0.25
  %v292 = vmul.f32 %v284, 0.25
  %v293 = vmul.f32 %v287, 0.25
  %v294 = vmul.f32 %v289, 0.25
  %v295 = vadd.f32 %v291, 0.0
  %v296 = vadd.f32 %v292, 0.0
  %v297 = vadd.f32 %v293, 0.0
  %v298 = vadd.f32 %v294, 0.0
  %v299 = vsel %vm227, %v282, 0.0
  %300 = vadd.xlane.f32.xlu0 %v299
  %v301 = vpop.xlane.xlu0 %300
  %v302 = vsel %vm227, %v284, 0.0
  %303 = vadd.xlane.f32.xlu0 %v302
  %v304 = vpop.xlane.xlu0 %303
  %v305 = vsel %vm227, %v287, 0.0
  %306 = vadd.xlane.f32.xlu0 %v305
  %v307 = vpop.xlane.xlu0 %306
  %v308 = vsel %vm227, %v289, 0.0
  %309 = vadd.xlane.f32.xlu0 %v308
  %v310 = vpop.xlane.xlu0 %309
  %v311 = vadd.f32 %v301, 0.0
  %v312 = vadd.f32 %v304, 0.0
  %v313 = vadd.f32 %v307, 0.0
  %v314 = vadd.f32 %v310, 0.0
  %v315 = vmul.f32 %v282, %v282
  %v316 = vmul.f32 %v284, %v284
  %v317 = vmul.f32 %v287, %v287
  %v318 = vmul.f32 %v289, %v289
  %v319 = vsel %vm227, %v315, 0.0
  %320 = vadd.xlane.f32.xlu0 %v319
  %v321 = vpop.xlane.xlu0 %320
  %v322 = vsel %vm227, %v316, 0.0
  %323 = vadd.xlane.f32.xlu0 %v322
  %v324 = vpop.xlane.xlu0 %323
  %v325 = vsel %vm227, %v317, 0.0
  %326 = vadd.xlane.f32.xlu0 %v325
  %v327 = vpop.xlane.xlu0 %326
  %v328 = vsel %vm227, %v318, 0.0
  %329 = vadd.xlane.f32.xlu0 %v328
  %v330 = vpop.xlane.xlu0 %329
  %v331 = vadd.f32 %v321, 0.0
  %v332 = vadd.f32 %v324, 0.0
  %v333 = vadd.f32 %v327, 0.0
  %v334 = vadd.f32 %v330, 0.0
  %s335 = scalar_lea.vmem %s1, 144
  %v336 = vld [vmem:[%s335] sm:$0xf]
  %v337 = vld [vmem:[%s335 + $0x4] sm:$0xf]
  %v338 = vld [vmem:[%s335 + $0x8] sm:$0xf]
  %v339 = vld [vmem:[%s335 + $0xc] sm:$0xf]
  %v340 = vld [vmem:[%s335 + $0x10] sm:$0xf]
  %v341 = vld [vmem:[%s335 + $0x14] sm:$0xf]
  %v342 = vld [vmem:[%s335 + $0x18] sm:$0xf]
  %v343 = vld [vmem:[%s335 + $0x1c] sm:$0xf]
  %v344 = vld [vmem:[%s335 + $0x20] sm:$0xf]
  %v345 = vld [vmem:[%s335 + $0x24] sm:$0xf]
  %v346 = vld [vmem:[%s335 + $0x28] sm:$0xf]
  %v347 = vld [vmem:[%s335 + $0x2c] sm:$0xf]
  %v348 = vld [vmem:[%s335 + $0x30] sm:$0xf]
  %v349 = vld [vmem:[%s335 + $0x34] sm:$0xf]
  %v350 = vld [vmem:[%s335 + $0x38] sm:$0xf]
  %v351 = vld [vmem:[%s335 + $0x3c] sm:$0xf]
  %v352 = vld [vmem:[%s335 + $0x40] sm:$0xf]
  %v353 = vld [vmem:[%s335 + $0x44] sm:$0xf]
  %v354 = vld [vmem:[%s335 + $0x48] sm:$0xf]
  %v355 = vld [vmem:[%s335 + $0x4c] sm:$0xf]
  %v356 = vld [vmem:[%s335 + $0x50] sm:$0xf]
  %v357 = vld [vmem:[%s335 + $0x54] sm:$0xf]
  %v358 = vld [vmem:[%s335 + $0x58] sm:$0xf]
  %v359 = vld [vmem:[%s335 + $0x5c] sm:$0xf]
  %v360 = vld [vmem:[%s335 + $0x60] sm:$0xf]
  %v361 = vld [vmem:[%s335 + $0x64] sm:$0xf]
  %v362 = vld [vmem:[%s335 + $0x68] sm:$0xf]
  %v363 = vld [vmem:[%s335 + $0x6c] sm:$0xf]
  %v364 = vld [vmem:[%s335 + $0x70] sm:$0xf]
  %v365 = vld [vmem:[%s335 + $0x74] sm:$0xf]
  %v366 = vld [vmem:[%s335 + $0x78] sm:$0xf]
  %v367 = vld [vmem:[%s335 + $0x7c] sm:$0xf]
  %v368 = vld [vmem:[%s335 + $0x80] sm:$0xf]
  %v369 = vld [vmem:[%s335 + $0x84] sm:$0xf]
  %v370 = vld [vmem:[%s335 + $0x88] sm:$0xf]
  %v371 = vld [vmem:[%s335 + $0x8c] sm:$0xf]
  %v408 = vunpack.c.l.b16 %v336
  %v409 = vunpack.c.l.b16 %v337
  %v410 = vunpack.c.l.b16 %v338
  %v411 = vunpack.c.l.b16 %v339
  %v412 = vunpack.c.l.b16 %v340
  %v413 = vunpack.c.l.b16 %v341
  %v414 = vunpack.c.l.b16 %v342
  %v415 = vunpack.c.l.b16 %v343
  %v416 = vunpack.c.l.b16 %v344
  %v417 = vunpack.c.l.b16 %v345
  %v418 = vunpack.c.l.b16 %v346
  %v419 = vunpack.c.l.b16 %v347
  %v420 = vunpack.c.l.b16 %v348
  %v421 = vunpack.c.l.b16 %v349
  %v422 = vunpack.c.l.b16 %v350
  %v423 = vunpack.c.l.b16 %v351
  %v424 = vunpack.c.l.b16 %v352
  %v425 = vunpack.c.l.b16 %v353
  %v426 = vunpack.c.l.b16 %v354
  %v427 = vunpack.c.l.b16 %v355
  %v428 = vunpack.c.l.b16 %v356
  %v429 = vunpack.c.l.b16 %v357
  %v430 = vunpack.c.l.b16 %v358
  %v431 = vunpack.c.l.b16 %v359
  %v432 = vunpack.c.l.b16 %v360
  %v433 = vunpack.c.l.b16 %v361
  %v434 = vunpack.c.l.b16 %v362
  %v435 = vunpack.c.l.b16 %v363
  %v436 = vunpack.c.l.b16 %v364
  %v437 = vunpack.c.l.b16 %v365
  %v438 = vunpack.c.l.b16 %v366
  %v439 = vunpack.c.l.b16 %v367
  %v440 = vunpack.c.l.b16 %v368
  %v441 = vunpack.c.l.b16 %v369
  %v442 = vunpack.c.l.b16 %v370
  %v443 = vunpack.c.l.b16 %v371
  %v444 = vpack.c.b16 %v409, %v408
  %v445 = vpack.c.b16 %v411, %v410
  %v446 = vpack.c.b16 %v413, %v412
  %v447 = vpack.c.b16 %v415, %v414
  %v448 = vpack.c.b16 %v417, %v416
  %v449 = vpack.c.b16 %v419, %v418
  %v450 = vpack.c.b16 %v421, %v420
  %v451 = vpack.c.b16 %v423, %v422
  %v452 = vpack.c.b16 %v425, %v424
  %v453 = vpack.c.b16 %v427, %v426
  %v454 = vpack.c.b16 %v429, %v428
  %v455 = vpack.c.b16 %v431, %v430
  %v456 = vpack.c.b16 %v433, %v432
  %v457 = vpack.c.b16 %v435, %v434
  %v458 = vpack.c.b16 %v437, %v436
  %v459 = vpack.c.b16 %v439, %v438
  %v460 = vpack.c.b16 %v441, %v440
  %v461 = vpack.c.b16 %v443, %v442
  %480 = vmatpush.bf16.msra.mxu0 %v451
  %481 = vmatpush.bf16.msra.mxu0 %v450
  %482 = vmatpush.bf16.msra.mxu0 %v449
  %483 = vmatpush.bf16.msra.mxu0 %v448
  %484 = vmatpush.bf16.msra.mxu0 %v447
  %485 = vmatpush.bf16.msra.mxu0 %v446
  %486 = vmatpush.bf16.msra.mxu0 %v445
  %487 = vmatpush.bf16.msra.mxu0 %v444
  %488 = vmatmul.bf16.gmra.mxu0 %v109
  %v489 = vpop.f32.mrf.mxu0
  %v490 = vadd.f32 %v72, %v489
  %v491 = vpop.f32.mrf.mxu0
  %v492 = vadd.f32 %v77, %v491
  %493 = vmatmul.bf16.gmra.mxu0 %v112
  %v494 = vpop.f32.mrf.mxu0
  %v495 = vadd.f32 %v82, %v494
  %v496 = vpop.f32.mrf.mxu0
  %v497 = vadd.f32 %v87, %v496
  %498 = vdwg.mxu0
  %499 = vmatpush.bf16.msra.mxu0 %v459
  %500 = vmatpush.bf16.msra.mxu0 %v458
  %501 = vmatpush.bf16.msra.mxu0 %v457
  %502 = vmatpush.bf16.msra.mxu0 %v456
  %503 = vmatpush.bf16.msra.mxu0 %v455
  %504 = vmatpush.bf16.msra.mxu0 %v454
  %505 = vmatpush.bf16.msra.mxu0 %v453
  %506 = vmatpush.bf16.msra.mxu0 %v452
  %507 = vmatmul.bf16.gmra.mxu0 %v110
  %v508 = vpop.f32.mrf.mxu0
  %v509 = vadd.f32 %v490, %v508
  %v510 = vpop.f32.mrf.mxu0
  %v511 = vadd.f32 %v492, %v510
  %512 = vmatmul.bf16.gmra.mxu0 %v113
  %v513 = vpop.f32.mrf.mxu0
  %v514 = vadd.f32 %v495, %v513
  %v515 = vpop.f32.mrf.mxu0
  %v516 = vadd.f32 %v497, %v515
  %517 = vdwg.mxu0
  %518 = vmatpush.bf16.msra.mxu0 0
  %519 = vmatpush.bf16.msra.mxu0 0
  %520 = vmatpush.bf16.msra.mxu0 0
  %521 = vmatpush.bf16.msra.mxu0 0
  %522 = vmatpush.bf16.msra.mxu0 0
  %523 = vmatpush.bf16.msra.mxu0 0
  %524 = vmatpush.bf16.msra.mxu0 %v461
  %525 = vmatpush.bf16.msra.mxu0 %v460
  %526 = vmatmul.bf16.gmra.mxu0 %v229
  %v527 = vpop.f32.mrf.mxu0
  %v528 = vadd.f32 %v509, %v527
  %v529 = vpop.f32.mrf.mxu0
  %v530 = vadd.f32 %v511, %v529
  %531 = vmatmul.bf16.gmra.mxu0 %v232
  %v532 = vpop.f32.mrf.mxu0
  %v533 = vadd.f32 %v514, %v532
  %v534 = vpop.f32.mrf.mxu0
  %v535 = vadd.f32 %v516, %v534
  %536 = vdwg.mxu0
  %v537 = vmul.f32 %v528, 0.25
  %v538 = vmul.f32 %v530, 0.25
  %v539 = vmul.f32 %v533, 0.25
  %v540 = vmul.f32 %v535, 0.25
  %v541 = vadd.f32 %v295, %v537
  %v542 = vadd.f32 %v296, %v538
  %v543 = vadd.f32 %v297, %v539
  %v544 = vadd.f32 %v298, %v540
  %v545 = vsel %vm227, %v528, 0.0
  %546 = vadd.xlane.f32.xlu0 %v545
  %v547 = vpop.xlane.xlu0 %546
  %v548 = vsel %vm227, %v530, 0.0
  %549 = vadd.xlane.f32.xlu0 %v548
  %v550 = vpop.xlane.xlu0 %549
  %v551 = vsel %vm227, %v533, 0.0
  %552 = vadd.xlane.f32.xlu0 %v551
  %v553 = vpop.xlane.xlu0 %552
  %v554 = vsel %vm227, %v535, 0.0
  %555 = vadd.xlane.f32.xlu0 %v554
  %v556 = vpop.xlane.xlu0 %555
  %v557 = vadd.f32 %v311, %v547
  %v558 = vadd.f32 %v312, %v550
  %v559 = vadd.f32 %v313, %v553
  %v560 = vadd.f32 %v314, %v556
  %v561 = vmul.f32 %v528, %v528
  %v562 = vmul.f32 %v530, %v530
  %v563 = vmul.f32 %v533, %v533
  %v564 = vmul.f32 %v535, %v535
  %v565 = vsel %vm227, %v561, 0.0
  %566 = vadd.xlane.f32.xlu0 %v565
  %v567 = vpop.xlane.xlu0 %566
  %v568 = vsel %vm227, %v562, 0.0
  %569 = vadd.xlane.f32.xlu0 %v568
  %v570 = vpop.xlane.xlu0 %569
  %v571 = vsel %vm227, %v563, 0.0
  %572 = vadd.xlane.f32.xlu0 %v571
  %v573 = vpop.xlane.xlu0 %572
  %v574 = vsel %vm227, %v564, 0.0
  %575 = vadd.xlane.f32.xlu0 %v574
  %v576 = vpop.xlane.xlu0 %575
  %v577 = vadd.f32 %v331, %v567
  %v578 = vadd.f32 %v332, %v570
  %v579 = vadd.f32 %v333, %v573
  %v580 = vadd.f32 %v334, %v576
  %s581 = scalar_lea.vmem %s1, 288
  %v582 = vld [vmem:[%s581] sm:$0xf]
  %v583 = vld [vmem:[%s581 + $0x4] sm:$0xf]
  %v584 = vld [vmem:[%s581 + $0x8] sm:$0xf]
  %v585 = vld [vmem:[%s581 + $0xc] sm:$0xf]
  %v586 = vld [vmem:[%s581 + $0x10] sm:$0xf]
  %v587 = vld [vmem:[%s581 + $0x14] sm:$0xf]
  %v588 = vld [vmem:[%s581 + $0x18] sm:$0xf]
  %v589 = vld [vmem:[%s581 + $0x1c] sm:$0xf]
  %v590 = vld [vmem:[%s581 + $0x20] sm:$0xf]
  %v591 = vld [vmem:[%s581 + $0x24] sm:$0xf]
  %v592 = vld [vmem:[%s581 + $0x28] sm:$0xf]
  %v593 = vld [vmem:[%s581 + $0x2c] sm:$0xf]
  %v594 = vld [vmem:[%s581 + $0x30] sm:$0xf]
  %v595 = vld [vmem:[%s581 + $0x34] sm:$0xf]
  %v596 = vld [vmem:[%s581 + $0x38] sm:$0xf]
  %v597 = vld [vmem:[%s581 + $0x3c] sm:$0xf]
  %v598 = vld [vmem:[%s581 + $0x40] sm:$0xf]
  %v599 = vld [vmem:[%s581 + $0x44] sm:$0xf]
  %v600 = vld [vmem:[%s581 + $0x48] sm:$0xf]
  %v601 = vld [vmem:[%s581 + $0x4c] sm:$0xf]
  %v602 = vld [vmem:[%s581 + $0x50] sm:$0xf]
  %v603 = vld [vmem:[%s581 + $0x54] sm:$0xf]
  %v604 = vld [vmem:[%s581 + $0x58] sm:$0xf]
  %v605 = vld [vmem:[%s581 + $0x5c] sm:$0xf]
  %v606 = vld [vmem:[%s581 + $0x60] sm:$0xf]
  %v607 = vld [vmem:[%s581 + $0x64] sm:$0xf]
  %v608 = vld [vmem:[%s581 + $0x68] sm:$0xf]
  %v609 = vld [vmem:[%s581 + $0x6c] sm:$0xf]
  %v610 = vld [vmem:[%s581 + $0x70] sm:$0xf]
  %v611 = vld [vmem:[%s581 + $0x74] sm:$0xf]
  %v612 = vld [vmem:[%s581 + $0x78] sm:$0xf]
  %v613 = vld [vmem:[%s581 + $0x7c] sm:$0xf]
  %v614 = vld [vmem:[%s581 + $0x80] sm:$0xf]
  %v615 = vld [vmem:[%s581 + $0x84] sm:$0xf]
  %v616 = vld [vmem:[%s581 + $0x88] sm:$0xf]
  %v617 = vld [vmem:[%s581 + $0x8c] sm:$0xf]
  %v654 = vunpack.c.l.b16 %v582
  %v655 = vunpack.c.l.b16 %v583
  %v656 = vunpack.c.l.b16 %v584
  %v657 = vunpack.c.l.b16 %v585
  %v658 = vunpack.c.l.b16 %v586
  %v659 = vunpack.c.l.b16 %v587
  %v660 = vunpack.c.l.b16 %v588
  %v661 = vunpack.c.l.b16 %v589
  %v662 = vunpack.c.l.b16 %v590
  %v663 = vunpack.c.l.b16 %v591
  %v664 = vunpack.c.l.b16 %v592
  %v665 = vunpack.c.l.b16 %v593
  %v666 = vunpack.c.l.b16 %v594
  %v667 = vunpack.c.l.b16 %v595
  %v668 = vunpack.c.l.b16 %v596
  %v669 = vunpack.c.l.b16 %v597
  %v670 = vunpack.c.l.b16 %v598
  %v671 = vunpack.c.l.b16 %v599
  %v672 = vunpack.c.l.b16 %v600
  %v673 = vunpack.c.l.b16 %v601
  %v674 = vunpack.c.l.b16 %v602
  %v675 = vunpack.c.l.b16 %v603
  %v676 = vunpack.c.l.b16 %v604
  %v677 = vunpack.c.l.b16 %v605
  %v678 = vunpack.c.l.b16 %v606
  %v679 = vunpack.c.l.b16 %v607
  %v680 = vunpack.c.l.b16 %v608
  %v681 = vunpack.c.l.b16 %v609
  %v682 = vunpack.c.l.b16 %v610
  %v683 = vunpack.c.l.b16 %v611
  %v684 = vunpack.c.l.b16 %v612
  %v685 = vunpack.c.l.b16 %v613
  %v686 = vunpack.c.l.b16 %v614
  %v687 = vunpack.c.l.b16 %v615
  %v688 = vunpack.c.l.b16 %v616
  %v689 = vunpack.c.l.b16 %v617
  %v690 = vpack.c.b16 %v655, %v654
  %v691 = vpack.c.b16 %v657, %v656
  %v692 = vpack.c.b16 %v659, %v658
  %v693 = vpack.c.b16 %v661, %v660
  %v694 = vpack.c.b16 %v663, %v662
  %v695 = vpack.c.b16 %v665, %v664
  %v696 = vpack.c.b16 %v667, %v666
  %v697 = vpack.c.b16 %v669, %v668
  %v698 = vpack.c.b16 %v671, %v670
  %v699 = vpack.c.b16 %v673, %v672
  %v700 = vpack.c.b16 %v675, %v674
  %v701 = vpack.c.b16 %v677, %v676
  %v702 = vpack.c.b16 %v679, %v678
  %v703 = vpack.c.b16 %v681, %v680
  %v704 = vpack.c.b16 %v683, %v682
  %v705 = vpack.c.b16 %v685, %v684
  %v706 = vpack.c.b16 %v687, %v686
  %v707 = vpack.c.b16 %v689, %v688
  %726 = vmatpush.bf16.msra.mxu0 %v697
  %727 = vmatpush.bf16.msra.mxu0 %v696
  %728 = vmatpush.bf16.msra.mxu0 %v695
  %729 = vmatpush.bf16.msra.mxu0 %v694
  %730 = vmatpush.bf16.msra.mxu0 %v693
  %731 = vmatpush.bf16.msra.mxu0 %v692
  %732 = vmatpush.bf16.msra.mxu0 %v691
  %733 = vmatpush.bf16.msra.mxu0 %v690
  %734 = vmatmul.bf16.gmra.mxu0 %v109
  %v735 = vpop.f32.mrf.mxu0
  %v736 = vadd.f32 %v72, %v735
  %v737 = vpop.f32.mrf.mxu0
  %v738 = vadd.f32 %v77, %v737
  %739 = vmatmul.bf16.gmra.mxu0 %v112
  %v740 = vpop.f32.mrf.mxu0
  %v741 = vadd.f32 %v82, %v740
  %v742 = vpop.f32.mrf.mxu0
  %v743 = vadd.f32 %v87, %v742
  %744 = vdwg.mxu0
  %745 = vmatpush.bf16.msra.mxu0 %v705
  %746 = vmatpush.bf16.msra.mxu0 %v704
  %747 = vmatpush.bf16.msra.mxu0 %v703
  %748 = vmatpush.bf16.msra.mxu0 %v702
  %749 = vmatpush.bf16.msra.mxu0 %v701
  %750 = vmatpush.bf16.msra.mxu0 %v700
  %751 = vmatpush.bf16.msra.mxu0 %v699
  %752 = vmatpush.bf16.msra.mxu0 %v698
  %753 = vmatmul.bf16.gmra.mxu0 %v110
  %v754 = vpop.f32.mrf.mxu0
  %v755 = vadd.f32 %v736, %v754
  %v756 = vpop.f32.mrf.mxu0
  %v757 = vadd.f32 %v738, %v756
  %758 = vmatmul.bf16.gmra.mxu0 %v113
  %v759 = vpop.f32.mrf.mxu0
  %v760 = vadd.f32 %v741, %v759
  %v761 = vpop.f32.mrf.mxu0
  %v762 = vadd.f32 %v743, %v761
  %763 = vdwg.mxu0
  %764 = vmatpush.bf16.msra.mxu0 0
  %765 = vmatpush.bf16.msra.mxu0 0
  %766 = vmatpush.bf16.msra.mxu0 0
  %767 = vmatpush.bf16.msra.mxu0 0
  %768 = vmatpush.bf16.msra.mxu0 0
  %769 = vmatpush.bf16.msra.mxu0 0
  %770 = vmatpush.bf16.msra.mxu0 %v707
  %771 = vmatpush.bf16.msra.mxu0 %v706
  %772 = vmatmul.bf16.gmra.mxu0 %v229
  %v773 = vpop.f32.mrf.mxu0
  %v774 = vadd.f32 %v755, %v773
  %v775 = vpop.f32.mrf.mxu0
  %v776 = vadd.f32 %v757, %v775
  %777 = vmatmul.bf16.gmra.mxu0 %v232
  %v778 = vpop.f32.mrf.mxu0
  %v779 = vadd.f32 %v760, %v778
  %v780 = vpop.f32.mrf.mxu0
  %v781 = vadd.f32 %v762, %v780
  %782 = vdwg.mxu0
  %v783 = vmul.f32 %v774, 0.25
  %v784 = vmul.f32 %v776, 0.25
  %v785 = vmul.f32 %v779, 0.25
  %v786 = vmul.f32 %v781, 0.25
  %v787 = vadd.f32 %v541, %v783
  %v788 = vadd.f32 %v542, %v784
  %v789 = vadd.f32 %v543, %v785
  %v790 = vadd.f32 %v544, %v786
  %v791 = vsel %vm227, %v774, 0.0
  %792 = vadd.xlane.f32.xlu0 %v791
  %v793 = vpop.xlane.xlu0 %792
  %v794 = vsel %vm227, %v776, 0.0
  %795 = vadd.xlane.f32.xlu0 %v794
  %v796 = vpop.xlane.xlu0 %795
  %v797 = vsel %vm227, %v779, 0.0
  %798 = vadd.xlane.f32.xlu0 %v797
  %v799 = vpop.xlane.xlu0 %798
  %v800 = vsel %vm227, %v781, 0.0
  %801 = vadd.xlane.f32.xlu0 %v800
  %v802 = vpop.xlane.xlu0 %801
  %v803 = vadd.f32 %v557, %v793
  %v804 = vadd.f32 %v558, %v796
  %v805 = vadd.f32 %v559, %v799
  %v806 = vadd.f32 %v560, %v802
  %v807 = vmul.f32 %v774, %v774
  %v808 = vmul.f32 %v776, %v776
  %v809 = vmul.f32 %v779, %v779
  %v810 = vmul.f32 %v781, %v781
  %v811 = vsel %vm227, %v807, 0.0
  %812 = vadd.xlane.f32.xlu0 %v811
  %v813 = vpop.xlane.xlu0 %812
  %v814 = vsel %vm227, %v808, 0.0
  %815 = vadd.xlane.f32.xlu0 %v814
  %v816 = vpop.xlane.xlu0 %815
  %v817 = vsel %vm227, %v809, 0.0
  %818 = vadd.xlane.f32.xlu0 %v817
  %v819 = vpop.xlane.xlu0 %818
  %v820 = vsel %vm227, %v810, 0.0
  %821 = vadd.xlane.f32.xlu0 %v820
  %v822 = vpop.xlane.xlu0 %821
  %v823 = vadd.f32 %v577, %v813
  %v824 = vadd.f32 %v578, %v816
  %v825 = vadd.f32 %v579, %v819
  %v826 = vadd.f32 %v580, %v822
  %s827 = scalar_lea.vmem %s1, 432
  %v828 = vld [vmem:[%s827] sm:$0xf]
  %v829 = vld [vmem:[%s827 + $0x4] sm:$0xf]
  %v830 = vld [vmem:[%s827 + $0x8] sm:$0xf]
  %v831 = vld [vmem:[%s827 + $0xc] sm:$0xf]
  %v832 = vld [vmem:[%s827 + $0x10] sm:$0xf]
  %v833 = vld [vmem:[%s827 + $0x14] sm:$0xf]
  %v834 = vld [vmem:[%s827 + $0x18] sm:$0xf]
  %v835 = vld [vmem:[%s827 + $0x1c] sm:$0xf]
  %v836 = vld [vmem:[%s827 + $0x20] sm:$0xf]
  %v837 = vld [vmem:[%s827 + $0x24] sm:$0xf]
  %v838 = vld [vmem:[%s827 + $0x28] sm:$0xf]
  %v839 = vld [vmem:[%s827 + $0x2c] sm:$0xf]
  %v840 = vld [vmem:[%s827 + $0x30] sm:$0xf]
  %v841 = vld [vmem:[%s827 + $0x34] sm:$0xf]
  %v842 = vld [vmem:[%s827 + $0x38] sm:$0xf]
  %v843 = vld [vmem:[%s827 + $0x3c] sm:$0xf]
  %v844 = vld [vmem:[%s827 + $0x40] sm:$0xf]
  %v845 = vld [vmem:[%s827 + $0x44] sm:$0xf]
  %v846 = vld [vmem:[%s827 + $0x48] sm:$0xf]
  %v847 = vld [vmem:[%s827 + $0x4c] sm:$0xf]
  %v848 = vld [vmem:[%s827 + $0x50] sm:$0xf]
  %v849 = vld [vmem:[%s827 + $0x54] sm:$0xf]
  %v850 = vld [vmem:[%s827 + $0x58] sm:$0xf]
  %v851 = vld [vmem:[%s827 + $0x5c] sm:$0xf]
  %v852 = vld [vmem:[%s827 + $0x60] sm:$0xf]
  %v853 = vld [vmem:[%s827 + $0x64] sm:$0xf]
  %v854 = vld [vmem:[%s827 + $0x68] sm:$0xf]
  %v855 = vld [vmem:[%s827 + $0x6c] sm:$0xf]
  %v856 = vld [vmem:[%s827 + $0x70] sm:$0xf]
  %v857 = vld [vmem:[%s827 + $0x74] sm:$0xf]
  %v858 = vld [vmem:[%s827 + $0x78] sm:$0xf]
  %v859 = vld [vmem:[%s827 + $0x7c] sm:$0xf]
  %v860 = vld [vmem:[%s827 + $0x80] sm:$0xf]
  %v861 = vld [vmem:[%s827 + $0x84] sm:$0xf]
  %v862 = vld [vmem:[%s827 + $0x88] sm:$0xf]
  %v863 = vld [vmem:[%s827 + $0x8c] sm:$0xf]
  %v900 = vunpack.c.l.b16 %v828
  %v901 = vunpack.c.l.b16 %v829
  %v902 = vunpack.c.l.b16 %v830
  %v903 = vunpack.c.l.b16 %v831
  %v904 = vunpack.c.l.b16 %v832
  %v905 = vunpack.c.l.b16 %v833
  %v906 = vunpack.c.l.b16 %v834
  %v907 = vunpack.c.l.b16 %v835
  %v908 = vunpack.c.l.b16 %v836
  %v909 = vunpack.c.l.b16 %v837
  %v910 = vunpack.c.l.b16 %v838
  %v911 = vunpack.c.l.b16 %v839
  %v912 = vunpack.c.l.b16 %v840
  %v913 = vunpack.c.l.b16 %v841
  %v914 = vunpack.c.l.b16 %v842
  %v915 = vunpack.c.l.b16 %v843
  %v916 = vunpack.c.l.b16 %v844
  %v917 = vunpack.c.l.b16 %v845
  %v918 = vunpack.c.l.b16 %v846
  %v919 = vunpack.c.l.b16 %v847
  %v920 = vunpack.c.l.b16 %v848
  %v921 = vunpack.c.l.b16 %v849
  %v922 = vunpack.c.l.b16 %v850
  %v923 = vunpack.c.l.b16 %v851
  %v924 = vunpack.c.l.b16 %v852
  %v925 = vunpack.c.l.b16 %v853
  %v926 = vunpack.c.l.b16 %v854
  %v927 = vunpack.c.l.b16 %v855
  %v928 = vunpack.c.l.b16 %v856
  %v929 = vunpack.c.l.b16 %v857
  %v930 = vunpack.c.l.b16 %v858
  %v931 = vunpack.c.l.b16 %v859
  %v932 = vunpack.c.l.b16 %v860
  %v933 = vunpack.c.l.b16 %v861
  %v934 = vunpack.c.l.b16 %v862
  %v935 = vunpack.c.l.b16 %v863
  %v936 = vpack.c.b16 %v901, %v900
  %v937 = vpack.c.b16 %v903, %v902
  %v938 = vpack.c.b16 %v905, %v904
  %v939 = vpack.c.b16 %v907, %v906
  %v940 = vpack.c.b16 %v909, %v908
  %v941 = vpack.c.b16 %v911, %v910
  %v942 = vpack.c.b16 %v913, %v912
  %v943 = vpack.c.b16 %v915, %v914
  %v944 = vpack.c.b16 %v917, %v916
  %v945 = vpack.c.b16 %v919, %v918
  %v946 = vpack.c.b16 %v921, %v920
  %v947 = vpack.c.b16 %v923, %v922
  %v948 = vpack.c.b16 %v925, %v924
  %v949 = vpack.c.b16 %v927, %v926
  %v950 = vpack.c.b16 %v929, %v928
  %v951 = vpack.c.b16 %v931, %v930
  %v952 = vpack.c.b16 %v933, %v932
  %v953 = vpack.c.b16 %v935, %v934
  %972 = vmatpush.bf16.msra.mxu0 %v943
  %973 = vmatpush.bf16.msra.mxu0 %v942
  %974 = vmatpush.bf16.msra.mxu0 %v941
  %975 = vmatpush.bf16.msra.mxu0 %v940
  %976 = vmatpush.bf16.msra.mxu0 %v939
  %977 = vmatpush.bf16.msra.mxu0 %v938
  %978 = vmatpush.bf16.msra.mxu0 %v937
  %979 = vmatpush.bf16.msra.mxu0 %v936
  %980 = vmatmul.bf16.gmra.mxu0 %v109
  %v981 = vpop.f32.mrf.mxu0
  %v982 = vadd.f32 %v72, %v981
  %v983 = vpop.f32.mrf.mxu0
  %v984 = vadd.f32 %v77, %v983
  %985 = vmatmul.bf16.gmra.mxu0 %v112
  %v986 = vpop.f32.mrf.mxu0
  %v987 = vadd.f32 %v82, %v986
  %v988 = vpop.f32.mrf.mxu0
  %v989 = vadd.f32 %v87, %v988
  %990 = vdwg.mxu0
  %991 = vmatpush.bf16.msra.mxu0 %v951
  %992 = vmatpush.bf16.msra.mxu0 %v950
  %993 = vmatpush.bf16.msra.mxu0 %v949
  %994 = vmatpush.bf16.msra.mxu0 %v948
  %995 = vmatpush.bf16.msra.mxu0 %v947
  %996 = vmatpush.bf16.msra.mxu0 %v946
  %997 = vmatpush.bf16.msra.mxu0 %v945
  %998 = vmatpush.bf16.msra.mxu0 %v944
  %999 = vmatmul.bf16.gmra.mxu0 %v110
  %v1000 = vpop.f32.mrf.mxu0
  %v1001 = vadd.f32 %v982, %v1000
  %v1002 = vpop.f32.mrf.mxu0
  %v1003 = vadd.f32 %v984, %v1002
  %1004 = vmatmul.bf16.gmra.mxu0 %v113
  %v1005 = vpop.f32.mrf.mxu0
  %v1006 = vadd.f32 %v987, %v1005
  %v1007 = vpop.f32.mrf.mxu0
  %v1008 = vadd.f32 %v989, %v1007
  %1009 = vdwg.mxu0
  %1010 = vmatpush.bf16.msra.mxu0 0
  %1011 = vmatpush.bf16.msra.mxu0 0
  %1012 = vmatpush.bf16.msra.mxu0 0
  %1013 = vmatpush.bf16.msra.mxu0 0
  %1014 = vmatpush.bf16.msra.mxu0 0
  %1015 = vmatpush.bf16.msra.mxu0 0
  %1016 = vmatpush.bf16.msra.mxu0 %v953
  %1017 = vmatpush.bf16.msra.mxu0 %v952
  %1018 = vmatmul.bf16.gmra.mxu0 %v229
  %v1019 = vpop.f32.mrf.mxu0
  %v1020 = vadd.f32 %v1001, %v1019
  %v1021 = vpop.f32.mrf.mxu0
  %v1022 = vadd.f32 %v1003, %v1021
  %1023 = vmatmul.bf16.gmra.mxu0 %v232
  %v1024 = vpop.f32.mrf.mxu0
  %v1025 = vadd.f32 %v1006, %v1024
  %v1026 = vpop.f32.mrf.mxu0
  %v1027 = vadd.f32 %v1008, %v1026
  %1028 = vdwg.mxu0
  %v1029 = vmul.f32 %v1020, 0.25
  %v1030 = vmul.f32 %v1022, 0.25
  %v1031 = vmul.f32 %v1025, 0.25
  %v1032 = vmul.f32 %v1027, 0.25
  %v1033 = vadd.f32 %v787, %v1029
  %v1034 = vadd.f32 %v788, %v1030
  %v1035 = vadd.f32 %v789, %v1031
  %v1036 = vadd.f32 %v790, %v1032
  %v1037 = vsel %vm227, %v1020, 0.0
  %1038 = vadd.xlane.f32.xlu0 %v1037
  %v1039 = vpop.xlane.xlu0 %1038
  %v1040 = vsel %vm227, %v1022, 0.0
  %1041 = vadd.xlane.f32.xlu0 %v1040
  %v1042 = vpop.xlane.xlu0 %1041
  %v1043 = vsel %vm227, %v1025, 0.0
  %1044 = vadd.xlane.f32.xlu0 %v1043
  %v1045 = vpop.xlane.xlu0 %1044
  %v1046 = vsel %vm227, %v1027, 0.0
  %1047 = vadd.xlane.f32.xlu0 %v1046
  %v1048 = vpop.xlane.xlu0 %1047
  %v1049 = vadd.f32 %v803, %v1039
  %v1050 = vadd.f32 %v804, %v1042
  %v1051 = vadd.f32 %v805, %v1045
  %v1052 = vadd.f32 %v806, %v1048
  %v1053 = vmul.f32 %v1020, %v1020
  %v1054 = vmul.f32 %v1022, %v1022
  %v1055 = vmul.f32 %v1025, %v1025
  %v1056 = vmul.f32 %v1027, %v1027
  %v1057 = vsel %vm227, %v1053, 0.0
  %1058 = vadd.xlane.f32.xlu0 %v1057
  %v1059 = vpop.xlane.xlu0 %1058
  %v1060 = vsel %vm227, %v1054, 0.0
  %1061 = vadd.xlane.f32.xlu0 %v1060
  %v1062 = vpop.xlane.xlu0 %1061
  %v1063 = vsel %vm227, %v1055, 0.0
  %1064 = vadd.xlane.f32.xlu0 %v1063
  %v1065 = vpop.xlane.xlu0 %1064
  %v1066 = vsel %vm227, %v1056, 0.0
  %1067 = vadd.xlane.f32.xlu0 %v1066
  %v1068 = vpop.xlane.xlu0 %1067
  %v1069 = vadd.f32 %v823, %v1059
  %v1070 = vadd.f32 %v824, %v1062
  %v1071 = vadd.f32 %v825, %v1065
  %v1072 = vadd.f32 %v826, %v1068
  %v1073 = vrcp.pop 128.0
  %v1074 = vmul.f32 128.0, %v1073
  %v1075 = vsub.f32 1.0, %v1074
  %v1076 = vmul.f32 %v1073, %v1075
  %v1077 = vadd.f32 %v1073, %v1076
  %vm1078 = vweird.f32 %v1073
  %v1079 = vsel %vm1078, %v1073, %v1077
  %v1080 = vmul.f32 %v1049, %v1079
  %v1081 = vmul.f32 %v1050, %v1079
  %v1082 = vmul.f32 %v1051, %v1079
  %v1083 = vmul.f32 %v1052, %v1079
  %v1084 = vmul.f32 %v1069, %v1079
  %v1085 = vmul.f32 %v1070, %v1079
  %v1086 = vmul.f32 %v1071, %v1079
  %v1087 = vmul.f32 %v1072, %v1079
  %v1088 = vmul.f32 %v1080, %v1080
  %v1089 = vmul.f32 %v1081, %v1081
  %v1090 = vmul.f32 %v1082, %v1082
  %v1091 = vmul.f32 %v1083, %v1083
  %v1092 = vsub.f32 %v1084, %v1088
  %v1093 = vsub.f32 %v1085, %v1089
  %v1094 = vsub.f32 %v1086, %v1090
  %v1095 = vsub.f32 %v1087, %v1091
  %v1096 = vld [vmem:[%s3] sm:$0xff]
  %v1097 = vld [vmem:[%s3 + $0x8] sm:$0xff]
  %v1098 = vld [vmem:[%s3 + $0x10] sm:$0xff]
  %v1099 = vld [vmem:[%s3 + $0x18] sm:$0xff]
  %v1100 = vadd.f32 %v1092, 1e-05
  %v1101 = vadd.f32 %v1093, 1e-05
  %v1102 = vadd.f32 %v1094, 1e-05
  %v1103 = vadd.f32 %v1095, 1e-05
  %v1104 = vrsqrt.pop %v1100
  %v1105 = vmul.f32 %v1104, %v1100
  %v1106 = vmul.f32 %v1105, %v1104
  %v1107 = vmul.f32 0.5, %v1106
  %v1108 = vsub.f32 1.5, %v1107
  %v1109 = vmul.f32 %v1104, %v1108
  %v1110 = vmul.f32 %v1100, %v1109
  %vm1111 = vcmp.eq.f32.partialorder %v1100, inf
  %v1112 = vsel %vm1111, %v1100, %v1110
  %vm1113 = vcmp.eq.f32.partialorder %v1100, 0.0
  %v1114 = vand.u32 %v1100, 2147483648
  %v1115 = vsel %vm1113, %v1114, %v1112
  %v1116 = vrsqrt.pop %v1101
  %v1117 = vmul.f32 %v1116, %v1101
  %v1118 = vmul.f32 %v1117, %v1116
  %v1119 = vmul.f32 0.5, %v1118
  %v1120 = vsub.f32 1.5, %v1119
  %v1121 = vmul.f32 %v1116, %v1120
  %v1122 = vmul.f32 %v1101, %v1121
  %vm1123 = vcmp.eq.f32.partialorder %v1101, inf
  %v1124 = vsel %vm1123, %v1101, %v1122
  %vm1125 = vcmp.eq.f32.partialorder %v1101, 0.0
  %v1126 = vand.u32 %v1101, 2147483648
  %v1127 = vsel %vm1125, %v1126, %v1124
  %v1128 = vrsqrt.pop %v1102
  %v1129 = vmul.f32 %v1128, %v1102
  %v1130 = vmul.f32 %v1129, %v1128
  %v1131 = vmul.f32 0.5, %v1130
  %v1132 = vsub.f32 1.5, %v1131
  %v1133 = vmul.f32 %v1128, %v1132
  %v1134 = vmul.f32 %v1102, %v1133
  %vm1135 = vcmp.eq.f32.partialorder %v1102, inf
  %v1136 = vsel %vm1135, %v1102, %v1134
  %vm1137 = vcmp.eq.f32.partialorder %v1102, 0.0
  %v1138 = vand.u32 %v1102, 2147483648
  %v1139 = vsel %vm1137, %v1138, %v1136
  %v1140 = vrsqrt.pop %v1103
  %v1141 = vmul.f32 %v1140, %v1103
  %v1142 = vmul.f32 %v1141, %v1140
  %v1143 = vmul.f32 0.5, %v1142
  %v1144 = vsub.f32 1.5, %v1143
  %v1145 = vmul.f32 %v1140, %v1144
  %v1146 = vmul.f32 %v1103, %v1145
  %vm1147 = vcmp.eq.f32.partialorder %v1103, inf
  %v1148 = vsel %vm1147, %v1103, %v1146
  %vm1149 = vcmp.eq.f32.partialorder %v1103, 0.0
  %v1150 = vand.u32 %v1103, 2147483648
  %v1151 = vsel %vm1149, %v1150, %v1148
  %v1152 = vrcp.pop %v1115
  %v1153 = vmul.f32 %v1115, %v1152
  %v1154 = vsub.f32 1.0, %v1153
  %v1155 = vmul.f32 %v1152, %v1154
  %v1156 = vadd.f32 %v1152, %v1155
  %vm1157 = vweird.f32 %v1115
  %vm1158 = vweird.f32 %v1152
  %vm1159 = vmor %vm1157, %vm1158
  %v1160 = vsel %vm1159, %v1152, %v1156
  %v1161 = vand.u32 2147483647, %v1115
  %vm1162 = vcmp.eq.f32.partialorder %v1161, 8.507059e+37
  %v1163 = vand.u32 %v1115, 2147483648
  %v1164 = vor.u32 1.1754944e-38, %v1163
  %v1165 = vsel %vm1162, %v1164, %v1160
  %v1166 = vmul.f32 %v1096, %v1165
  %v1167 = vrcp.pop %v1127
  %v1168 = vmul.f32 %v1127, %v1167
  %v1169 = vsub.f32 1.0, %v1168
  %v1170 = vmul.f32 %v1167, %v1169
  %v1171 = vadd.f32 %v1167, %v1170
  %vm1172 = vweird.f32 %v1127
  %vm1173 = vweird.f32 %v1167
  %vm1174 = vmor %vm1172, %vm1173
  %v1175 = vsel %vm1174, %v1167, %v1171
  %v1176 = vand.u32 2147483647, %v1127
  %vm1177 = vcmp.eq.f32.partialorder %v1176, 8.507059e+37
  %v1178 = vand.u32 %v1127, 2147483648
  %v1179 = vor.u32 1.1754944e-38, %v1178
  %v1180 = vsel %vm1177, %v1179, %v1175
  %v1181 = vmul.f32 %v1097, %v1180
  %v1182 = vrcp.pop %v1139
  %v1183 = vmul.f32 %v1139, %v1182
  %v1184 = vsub.f32 1.0, %v1183
  %v1185 = vmul.f32 %v1182, %v1184
  %v1186 = vadd.f32 %v1182, %v1185
  %vm1187 = vweird.f32 %v1139
  %vm1188 = vweird.f32 %v1182
  %vm1189 = vmor %vm1187, %vm1188
  %v1190 = vsel %vm1189, %v1182, %v1186
  %v1191 = vand.u32 2147483647, %v1139
  %vm1192 = vcmp.eq.f32.partialorder %v1191, 8.507059e+37
  %v1193 = vand.u32 %v1139, 2147483648
  %v1194 = vor.u32 1.1754944e-38, %v1193
  %v1195 = vsel %vm1192, %v1194, %v1190
  %v1196 = vmul.f32 %v1098, %v1195
  %v1197 = vrcp.pop %v1151
  %v1198 = vmul.f32 %v1151, %v1197
  %v1199 = vsub.f32 1.0, %v1198
  %v1200 = vmul.f32 %v1197, %v1199
  %v1201 = vadd.f32 %v1197, %v1200
  %vm1202 = vweird.f32 %v1151
  %vm1203 = vweird.f32 %v1197
  %vm1204 = vmor %vm1202, %vm1203
  %v1205 = vsel %vm1204, %v1197, %v1201
  %v1206 = vand.u32 2147483647, %v1151
  %vm1207 = vcmp.eq.f32.partialorder %v1206, 8.507059e+37
  %v1208 = vand.u32 %v1151, 2147483648
  %v1209 = vor.u32 1.1754944e-38, %v1208
  %v1210 = vsel %vm1207, %v1209, %v1205
  %v1211 = vmul.f32 %v1099, %v1210
  %v1212 = vld [vmem:[%s4] sm:$0xff]
  %v1213 = vld [vmem:[%s4 + $0x8] sm:$0xff]
  %v1214 = vld [vmem:[%s4 + $0x10] sm:$0xff]
  %v1215 = vld [vmem:[%s4 + $0x18] sm:$0xff]
  %v1216 = vmul.f32 %v1080, %v1166
  %v1217 = vmul.f32 %v1081, %v1181
  %v1218 = vmul.f32 %v1082, %v1196
  %v1219 = vmul.f32 %v1083, %v1211
  %v1220 = vsub.f32 %v1212, %v1216
  %v1221 = vsub.f32 %v1213, %v1217
  %v1222 = vsub.f32 %v1214, %v1218
  %v1223 = vsub.f32 %v1215, %v1219
  %1225 = vset.pattern.permute.xlu0 0
  %1226 = vperm.xlu0 %1225, %v1166
  %v1227 = vpop.permute.xlu0 %1226
  %1230 = vset.pattern.permute.xlu0 0
  %1231 = vperm.xlu0 %1230, %v1181
  %v1232 = vpop.permute.xlu0 %1231
  %1235 = vset.pattern.permute.xlu0 0
  %1236 = vperm.xlu0 %1235, %v1196
  %v1237 = vpop.permute.xlu0 %1236
  %1240 = vset.pattern.permute.xlu0 0
  %1241 = vperm.xlu0 %1240, %v1211
  %v1242 = vpop.permute.xlu0 %1241
  %v1244 = vmul.f32 %v1033, %v1227
  %v1245 = vmul.f32 %v1034, %v1232
  %v1246 = vmul.f32 %v1035, %v1237
  %v1247 = vmul.f32 %v1036, %v1242
  %1249 = vset.pattern.permute.xlu0 0
  %1250 = vperm.xlu0 %1249, %v1220
  %v1251 = vpop.permute.xlu0 %1250
  %1254 = vset.pattern.permute.xlu0 0
  %1255 = vperm.xlu0 %1254, %v1221
  %v1256 = vpop.permute.xlu0 %1255
  %1259 = vset.pattern.permute.xlu0 0
  %1260 = vperm.xlu0 %1259, %v1222
  %v1261 = vpop.permute.xlu0 %1260
  %1264 = vset.pattern.permute.xlu0 0
  %1265 = vperm.xlu0 %1264, %v1223
  %v1266 = vpop.permute.xlu0 %1265
  %v1268 = vadd.f32 %v1244, %v1251
  %v1269 = vadd.f32 %v1245, %v1256
  %v1270 = vadd.f32 %v1246, %v1261
  %v1271 = vadd.f32 %v1247, %v1266
  %v1272 = vmax.f32 %v1268, 0.0
  %v1273 = vmax.f32 %v1269, 0.0
  %v1274 = vmax.f32 %v1270, 0.0
  %v1275 = vmax.f32 %v1271, 0.0
  %1276 = vst.msk [vmem:[%s5] sm:$0xff] %vm227, %v1272
  %1277 = vst.msk [vmem:[%s5 + $0x8] sm:$0xff] %vm227, %v1273
  %1278 = vst.msk [vmem:[%s5 + $0x10] sm:$0xff] %vm227, %v1274
  %1279 = vst.msk [vmem:[%s5 + $0x18] sm:$0xff] %vm227, %v1275
  // Predicated region
  $region22: #{vae_forward.12} parent=0 // pred_check
    _
  $region23: #{vae_forward.12} parent=0 // pred_check_branch
    %1281 = sbr.rel (0) target = $region25
  $region24: #{vae_forward.12} parent=0 // pred_region
    _
  $region25: #{vae_forward.12} parent=0 // pred_fallthru
    _
  // Predicated region
  $region26: #{vae_forward.12} parent=0 // pred_check
    _
  $region27: #{vae_forward.12} parent=0 // pred_check_branch
    %1283 = sbr.rel (0) target = $region29
  $region28: #{vae_forward.12} parent=0 // pred_region
    _
  $region29: #{vae_forward.12} parent=0 // pred_fallthru
    _

// kernel: vae_forward.13
$region0: #{vae_forward.13}
  #allocation0 [shape = 'u32[]', space=smem, size = 0x4, offset = 0x4, fixed_abs, tag = 'smem constant byte address 0x4 - core index']
  #allocation1 [shape = 'u32[72,128]{1,0:T(1,128)}', space=vmem, size = 0x9000, scoped, tag = 'internal scratch']
  %s0 = inlined_call_operand.vmem [shape: bf16[2,32,288], index: 0, kind: input, shape index: {}]
  %s1 = inlined_call_operand.vmem [shape: bf16[288,32], index: 1, kind: input, shape index: {}]
  %s2 = inlined_call_operand.vmem [shape: f32[2,32,1], index: 2, kind: input, shape index: {}]
  %s3 = inlined_call_operand.vmem [shape: f32[32,32], index: 3, kind: input, shape index: {}]
  %s4 = inlined_call_operand.vmem [shape: f32[32,32], index: 4, kind: output, shape index: {0}]
  %s5 = inlined_call_operand.hbm [shape: f32[1,1], index: 5, kind: output, shape index: {1}]
  %6 = xla_tuple %s4, %s5
  %s7 = sld [smem:[#allocation0]]
  $region34: #{vae_forward.13} parent=0
    _
  %s9 = ssub.s32 1, %s7
  %s10 = scalar_select 0, %s9, %s7
  $region1: #{vae_forward.13} parent=0
    #allocation2 [shape = 'u8[512]{0}', space=vmem, size = 0x400, scoped, tag = 'output window, operand 1, single buffered']
    #allocation3 [shape = 's32[1]{0}', space=sflag, size = 0x4, scoped, tag = 'scoped memory for vae_forward.13']
    %11 = vsyncpa [#allocation3], 0
    // Predicated region
    $region2: #{vae_forward.13} parent=1 // pred_check
      _
    $region3: #{vae_forward.13} parent=1 // pred_check_branch
      %13 = sbr.rel (0) target = $region5
    $region4: #{vae_forward.13} parent=1 // pred_region
      _
    $region5: #{vae_forward.13} parent=1 // pred_fallthru
      _
    // Predicated region
    $region6: #{vae_forward.13} parent=1 // pred_check
      _
    $region7: #{vae_forward.13} parent=1 // pred_check_branch
      %15 = sbr.rel (0) target = $region9
    $region8: #{vae_forward.13} parent=1 // pred_region
      _
    $region9: #{vae_forward.13} parent=1 // pred_fallthru
      _
    // Predicated region
    $region10: #{vae_forward.13} parent=1 // pred_check
      _
    $region11: #{vae_forward.13} parent=1 // pred_check_branch
      %17 = sbr.rel (0) target = $region13
    $region12: #{vae_forward.13} parent=1 // pred_region
      _
    $region13: #{vae_forward.13} parent=1 // pred_fallthru
      _
    // Predicated region
    $region14: #{vae_forward.13} parent=1 // pred_check
      _
    $region15: #{vae_forward.13} parent=1 // pred_check_branch
      %19 = sbr.rel (0) target = $region17
    $region16: #{vae_forward.13} parent=1 // pred_region
      _
    $region17: #{vae_forward.13} parent=1 // pred_fallthru
      _
    %v21 = vld [vmem:[%s1] sm:$0xf]
    %v22 = vld [vmem:[%s1 + $0x4] sm:$0xf]
    %v23 = vld [vmem:[%s1 + $0x8] sm:$0xf]
    %v24 = vld [vmem:[%s1 + $0xc] sm:$0xf]
    %v25 = vld [vmem:[%s1 + $0x10] sm:$0xf]
    %v26 = vld [vmem:[%s1 + $0x14] sm:$0xf]
    %v27 = vld [vmem:[%s1 + $0x18] sm:$0xf]
    %v28 = vld [vmem:[%s1 + $0x1c] sm:$0xf]
    %v29 = vld [vmem:[%s1 + $0x20] sm:$0xf]
    %v30 = vld [vmem:[%s1 + $0x24] sm:$0xf]
    %v31 = vld [vmem:[%s1 + $0x28] sm:$0xf]
    %v32 = vld [vmem:[%s1 + $0x2c] sm:$0xf]
    %v33 = vld [vmem:[%s1 + $0x30] sm:$0xf]
    %v34 = vld [vmem:[%s1 + $0x34] sm:$0xf]
    %v35 = vld [vmem:[%s1 + $0x38] sm:$0xf]
    %v36 = vld [vmem:[%s1 + $0x3c] sm:$0xf]
    %v37 = vld [vmem:[%s1 + $0x40] sm:$0xf]
    %v38 = vld [vmem:[%s1 + $0x44] sm:$0xf]
    %v39 = vld [vmem:[%s1 + $0x48] sm:$0xf]
    %v40 = vld [vmem:[%s1 + $0x4c] sm:$0xf]
    %v41 = vld [vmem:[%s1 + $0x50] sm:$0xf]
    %v42 = vld [vmem:[%s1 + $0x54] sm:$0xf]
    %v43 = vld [vmem:[%s1 + $0x58] sm:$0xf]
    %v44 = vld [vmem:[%s1 + $0x5c] sm:$0xf]
    %v45 = vld [vmem:[%s1 + $0x60] sm:$0xf]
    %v46 = vld [vmem:[%s1 + $0x64] sm:$0xf]
    %v47 = vld [vmem:[%s1 + $0x68] sm:$0xf]
    %v48 = vld [vmem:[%s1 + $0x6c] sm:$0xf]
    %v49 = vld [vmem:[%s1 + $0x70] sm:$0xf]
    %v50 = vld [vmem:[%s1 + $0x74] sm:$0xf]
    %v51 = vld [vmem:[%s1 + $0x78] sm:$0xf]
    %v52 = vld [vmem:[%s1 + $0x7c] sm:$0xf]
    %v53 = vld [vmem:[%s1 + $0x80] sm:$0xf]
    %v54 = vld [vmem:[%s1 + $0x84] sm:$0xf]
    %v55 = vld [vmem:[%s1 + $0x88] sm:$0xf]
    %v56 = vld [vmem:[%s1 + $0x8c] sm:$0xf]
    %v57 = vld [vmem:[%s0] sm:$0xff]
    %v58 = vld [vmem:[%s0 + $0x8] sm:$0xf]
    %v59 = vld [vmem:[%s0 + $0xc] sm:$0xff]
    %v60 = vld [vmem:[%s0 + $0x14] sm:$0xf]
    %v61 = vld [vmem:[%s0 + $0x18] sm:$0xff]
    %v62 = vld [vmem:[%s0 + $0x20] sm:$0xf]
    %v63 = vld [vmem:[%s0 + $0x24] sm:$0xff]
    %v64 = vld [vmem:[%s0 + $0x2c] sm:$0xf]
    %v65 = vld [vmem:[%s2] sm:$0xff]
    %v66 = vld [vmem:[%s2 + $0x8] sm:$0xff]
    %v67 = vld [vmem:[%s2 + $0x10] sm:$0xff]
    %v68 = vld [vmem:[%s2 + $0x18] sm:$0xff]
    %70 = vset.pattern.permute.xlu0 0
    %71 = vperm.xlu0 %70, %v65
    %v72 = vpop.permute.xlu0 %71
    %75 = vset.pattern.permute.xlu0 0
    %76 = vperm.xlu0 %75, %v66
    %v77 = vpop.permute.xlu0 %76
    %80 = vset.pattern.permute.xlu0 0
    %81 = vperm.xlu0 %80, %v67
    %v82 = vpop.permute.xlu0 %81
    %85 = vset.pattern.permute.xlu0 0
    %86 = vperm.xlu0 %85, %v68
    %v87 = vpop.permute.xlu0 %86
    %v97 = vunpack.c.l.b16 %v57
    %v98 = vunpack.c.h.b16 %v57
    %v99 = vunpack.c.l.b16 %v58
    %v100 = vunpack.c.l.b16 %v59
    %v101 = vunpack.c.h.b16 %v59
    %v102 = vunpack.c.l.b16 %v60
    %v103 = vunpack.c.l.b16 %v61
    %v104 = vunpack.c.h.b16 %v61
    %v105 = vunpack.c.l.b16 %v62
    %v106 = vunpack.c.l.b16 %v63
    %v107 = vunpack.c.h.b16 %v63
    %v108 = vunpack.c.l.b16 %v64
    %v109 = vpack.c.b16 %v100, %v97
    %v110 = vpack.c.b16 %v101, %v98
    %v111 = vpack.c.b16 %v102, %v99
    %v112 = vpack.c.b16 %v106, %v103
    %v113 = vpack.c.b16 %v107, %v104
    %v114 = vpack.c.b16 %v108, %v105
    %v155 = vunpack.c.l.b16 %v21
    %v156 = vunpack.c.l.b16 %v22
    %v157 = vunpack.c.l.b16 %v23
    %v158 = vunpack.c.l.b16 %v24
    %v159 = vunpack.c.l.b16 %v25
    %v160 = vunpack.c.l.b16 %v26
    %v161 = vunpack.c.l.b16 %v27
    %v162 = vunpack.c.l.b16 %v28
    %v163 = vunpack.c.l.b16 %v29
    %v164 = vunpack.c.l.b16 %v30
    %v165 = vunpack.c.l.b16 %v31
    %v166 = vunpack.c.l.b16 %v32
    %v167 = vunpack.c.l.b16 %v33
    %v168 = vunpack.c.l.b16 %v34
    %v169 = vunpack.c.l.b16 %v35
    %v170 = vunpack.c.l.b16 %v36
    %v171 = vunpack.c.l.b16 %v37
    %v172 = vunpack.c.l.b16 %v38
    %v173 = vunpack.c.l.b16 %v39
    %v174 = vunpack.c.l.b16 %v40
    %v175 = vunpack.c.l.b16 %v41
    %v176 = vunpack.c.l.b16 %v42
    %v177 = vunpack.c.l.b16 %v43
    %v178 = vunpack.c.l.b16 %v44
    %v179 = vunpack.c.l.b16 %v45
    %v180 = vunpack.c.l.b16 %v46
    %v181 = vunpack.c.l.b16 %v47
    %v182 = vunpack.c.l.b16 %v48
    %v183 = vunpack.c.l.b16 %v49
    %v184 = vunpack.c.l.b16 %v50
    %v185 = vunpack.c.l.b16 %v51
    %v186 = vunpack.c.l.b16 %v52
    %v187 = vunpack.c.l.b16 %v53
    %v188 = vunpack.c.l.b16 %v54
    %v189 = vunpack.c.l.b16 %v55
    %v190 = vunpack.c.l.b16 %v56
    %v191 = vpack.c.b16 %v156, %v155
    %v192 = vpack.c.b16 %v158, %v157
    %v193 = vpack.c.b16 %v160, %v159
    %v194 = vpack.c.b16 %v162, %v161
    %v195 = vpack.c.b16 %v164, %v163
    %v196 = vpack.c.b16 %v166, %v165
    %v197 = vpack.c.b16 %v168, %v167
    %v198 = vpack.c.b16 %v170, %v169
    %v199 = vpack.c.b16 %v172, %v171
    %v200 = vpack.c.b16 %v174, %v173
    %v201 = vpack.c.b16 %v176, %v175
    %v202 = vpack.c.b16 %v178, %v177
    %v203 = vpack.c.b16 %v180, %v179
    %v204 = vpack.c.b16 %v182, %v181
    %v205 = vpack.c.b16 %v184, %v183
    %v206 = vpack.c.b16 %v186, %v185
    %v207 = vpack.c.b16 %v188, %v187
    %v208 = vpack.c.b16 %v190, %v189
    %vm227 = vcmask 261120
    %v229 = vsel %vm227, %v111, 0
    %v232 = vsel %vm227, %v114, 0
    %234 = vmatpush.bf16.msra.mxu0 %v198
    %235 = vmatpush.bf16.msra.mxu0 %v197
    %236 = vmatpush.bf16.msra.mxu0 %v196
    %237 = vmatpush.bf16.msra.mxu0 %v195
    %238 = vmatpush.bf16.msra.mxu0 %v194
    %239 = vmatpush.bf16.msra.mxu0 %v193
    %240 = vmatpush.bf16.msra.mxu0 %v192
    %241 = vmatpush.bf16.msra.mxu0 %v191
    %242 = vmatmul.bf16.gmra.mxu0 %v109
    %v243 = vpop.f32.mrf.mxu0
    %v244 = vadd.f32 %v72, %v243
    %v245 = vpop.f32.mrf.mxu0
    %v246 = vadd.f32 %v77, %v245
    %247 = vmatmul.bf16.gmra.mxu0 %v112
    %v248 = vpop.f32.mrf.mxu0
    %v249 = vadd.f32 %v82, %v248
    %v250 = vpop.f32.mrf.mxu0
    %v251 = vadd.f32 %v87, %v250
    %252 = vdwg.mxu0
    %253 = vmatpush.bf16.msra.mxu0 %v206
    %254 = vmatpush.bf16.msra.mxu0 %v205
    %255 = vmatpush.bf16.msra.mxu0 %v204
    %256 = vmatpush.bf16.msra.mxu0 %v203
    %257 = vmatpush.bf16.msra.mxu0 %v202
    %258 = vmatpush.bf16.msra.mxu0 %v201
    %259 = vmatpush.bf16.msra.mxu0 %v200
    %260 = vmatpush.bf16.msra.mxu0 %v199
    %261 = vmatmul.bf16.gmra.mxu0 %v110
    %v262 = vpop.f32.mrf.mxu0
    %v263 = vadd.f32 %v244, %v262
    %v264 = vpop.f32.mrf.mxu0
    %v265 = vadd.f32 %v246, %v264
    %266 = vmatmul.bf16.gmra.mxu0 %v113
    %v267 = vpop.f32.mrf.mxu0
    %v268 = vadd.f32 %v249, %v267
    %v269 = vpop.f32.mrf.mxu0
    %v270 = vadd.f32 %v251, %v269
    %271 = vdwg.mxu0
    %272 = vmatpush.bf16.msra.mxu0 0
    %273 = vmatpush.bf16.msra.mxu0 0
    %274 = vmatpush.bf16.msra.mxu0 0
    %275 = vmatpush.bf16.msra.mxu0 0
    %276 = vmatpush.bf16.msra.mxu0 0
    %277 = vmatpush.bf16.msra.mxu0 0
    %278 = vmatpush.bf16.msra.mxu0 %v208
    %279 = vmatpush.bf16.msra.mxu0 %v207
    %280 = vmatmul.bf16.gmra.mxu0 %v229
    %v281 = vpop.f32.mrf.mxu0
    %v282 = vadd.f32 %v263, %v281
    %v283 = vpop.f32.mrf.mxu0
    %v284 = vadd.f32 %v265, %v283
    %285 = vmatmul.bf16.gmra.mxu0 %v232
    %v286 = vpop.f32.mrf.mxu0
    %v287 = vadd.f32 %v268, %v286
    %v288 = vpop.f32.mrf.mxu0
    %v289 = vadd.f32 %v270, %v288
    %290 = vdwg.mxu0
    %s291 = scalar_lea.vmem %s0, 48
    %v292 = vld [vmem:[%s291] sm:$0xff]
    %v293 = vld [vmem:[%s291 + $0x8] sm:$0xf]
    %v294 = vld [vmem:[%s291 + $0xc] sm:$0xff]
    %v295 = vld [vmem:[%s291 + $0x14] sm:$0xf]
    %v296 = vld [vmem:[%s291 + $0x18] sm:$0xff]
    %v297 = vld [vmem:[%s291 + $0x20] sm:$0xf]
    %v298 = vld [vmem:[%s291 + $0x24] sm:$0xff]
    %v299 = vld [vmem:[%s291 + $0x2c] sm:$0xf]
    %s300 = scalar_lea.vmem %s2, 32
    %v301 = vld [vmem:[%s300] sm:$0xff]
    %v302 = vld [vmem:[%s300 + $0x8] sm:$0xff]
    %v303 = vld [vmem:[%s300 + $0x10] sm:$0xff]
    %v304 = vld [vmem:[%s300 + $0x18] sm:$0xff]
    %306 = vset.pattern.permute.xlu0 0
    %307 = vperm.xlu0 %306, %v301
    %v308 = vpop.permute.xlu0 %307
    %311 = vset.pattern.permute.xlu0 0
    %312 = vperm.xlu0 %311, %v302
    %v313 = vpop.permute.xlu0 %312
    %316 = vset.pattern.permute.xlu0 0
    %317 = vperm.xlu0 %316, %v303
    %v318 = vpop.permute.xlu0 %317
    %321 = vset.pattern.permute.xlu0 0
    %322 = vperm.xlu0 %321, %v304
    %v323 = vpop.permute.xlu0 %322
    %v333 = vunpack.c.l.b16 %v292
    %v334 = vunpack.c.h.b16 %v292
    %v335 = vunpack.c.l.b16 %v293
    %v336 = vunpack.c.l.b16 %v294
    %v337 = vunpack.c.h.b16 %v294
    %v338 = vunpack.c.l.b16 %v295
    %v339 = vunpack.c.l.b16 %v296
    %v340 = vunpack.c.h.b16 %v296
    %v341 = vunpack.c.l.b16 %v297
    %v342 = vunpack.c.l.b16 %v298
    %v343 = vunpack.c.h.b16 %v298
    %v344 = vunpack.c.l.b16 %v299
    %v345 = vpack.c.b16 %v336, %v333
    %v346 = vpack.c.b16 %v337, %v334
    %v347 = vpack.c.b16 %v338, %v335
    %v348 = vpack.c.b16 %v342, %v339
    %v349 = vpack.c.b16 %v343, %v340
    %v350 = vpack.c.b16 %v344, %v341
    %v356 = vsel %vm227, %v347, 0
    %v359 = vsel %vm227, %v350, 0
    %361 = vmatpush.bf16.msra.mxu0 %v198
    %362 = vmatpush.bf16.msra.mxu0 %v197
    %363 = vmatpush.bf16.msra.mxu0 %v196
    %364 = vmatpush.bf16.msra.mxu0 %v195
    %365 = vmatpush.bf16.msra.mxu0 %v194
    %366 = vmatpush.bf16.msra.mxu0 %v193
    %367 = vmatpush.bf16.msra.mxu0 %v192
    %368 = vmatpush.bf16.msra.mxu0 %v191
    %369 = vmatmul.bf16.gmra.mxu0 %v345
    %v370 = vpop.f32.mrf.mxu0
    %v371 = vadd.f32 %v308, %v370
    %v372 = vpop.f32.mrf.mxu0
    %v373 = vadd.f32 %v313, %v372
    %374 = vmatmul.bf16.gmra.mxu0 %v348
    %v375 = vpop.f32.mrf.mxu0
    %v376 = vadd.f32 %v318, %v375
    %v377 = vpop.f32.mrf.mxu0
    %v378 = vadd.f32 %v323, %v377
    %379 = vdwg.mxu0
    %380 = vmatpush.bf16.msra.mxu0 %v206
    %381 = vmatpush.bf16.msra.mxu0 %v205
    %382 = vmatpush.bf16.msra.mxu0 %v204
    %383 = vmatpush.bf16.msra.mxu0 %v203
    %384 = vmatpush.bf16.msra.mxu0 %v202
    %385 = vmatpush.bf16.msra.mxu0 %v201
    %386 = vmatpush.bf16.msra.mxu0 %v200
    %387 = vmatpush.bf16.msra.mxu0 %v199
    %388 = vmatmul.bf16.gmra.mxu0 %v346
    %v389 = vpop.f32.mrf.mxu0
    %v390 = vadd.f32 %v371, %v389
    %v391 = vpop.f32.mrf.mxu0
    %v392 = vadd.f32 %v373, %v391
    %393 = vmatmul.bf16.gmra.mxu0 %v349
    %v394 = vpop.f32.mrf.mxu0
    %v395 = vadd.f32 %v376, %v394
    %v396 = vpop.f32.mrf.mxu0
    %v397 = vadd.f32 %v378, %v396
    %398 = vdwg.mxu0
    %399 = vmatpush.bf16.msra.mxu0 0
    %400 = vmatpush.bf16.msra.mxu0 0
    %401 = vmatpush.bf16.msra.mxu0 0
    %402 = vmatpush.bf16.msra.mxu0 0
    %403 = vmatpush.bf16.msra.mxu0 0
    %404 = vmatpush.bf16.msra.mxu0 0
    %405 = vmatpush.bf16.msra.mxu0 %v208
    %406 = vmatpush.bf16.msra.mxu0 %v207
    %407 = vmatmul.bf16.gmra.mxu0 %v356
    %v408 = vpop.f32.mrf.mxu0
    %v409 = vadd.f32 %v390, %v408
    %v410 = vpop.f32.mrf.mxu0
    %v411 = vadd.f32 %v392, %v410
    %412 = vmatmul.bf16.gmra.mxu0 %v359
    %v413 = vpop.f32.mrf.mxu0
    %v414 = vadd.f32 %v395, %v413
    %v415 = vpop.f32.mrf.mxu0
    %v416 = vadd.f32 %v397, %v415
    %417 = vdwg.mxu0
    %v418 = vld [vmem:[%s3] sm:$0xff]
    %v419 = vld [vmem:[%s3 + $0x8] sm:$0xff]
    %v420 = vld [vmem:[%s3 + $0x10] sm:$0xff]
    %v421 = vld [vmem:[%s3 + $0x18] sm:$0xff]
    %v422 = vmul.f32 %v409, 0.5
    %v423 = vmul.f32 %v411, 0.5
    %v424 = vmul.f32 %v414, 0.5
    %v425 = vmul.f32 %v416, 0.5
    %v426 = vmul.f32 %v422, 1.442695
    %v427 = vpow.pop %v426
    %v428 = vmul.f32 %v423, 1.442695
    %v429 = vpow.pop %v428
    %v430 = vmul.f32 %v424, 1.442695
    %v431 = vpow.pop %v430
    %v432 = vmul.f32 %v425, 1.442695
    %v433 = vpow.pop %v432
    %v434 = vmul.f32 %v418, %v427
    %v435 = vmul.f32 %v419, %v429
    %v436 = vmul.f32 %v420, %v431
    %v437 = vmul.f32 %v421, %v433
    %v438 = vadd.f32 %v282, %v434
    %v439 = vadd.f32 %v284, %v435
    %v440 = vadd.f32 %v287, %v436
    %v441 = vadd.f32 %v289, %v437
    %442 = vst.msk [vmem:[%s4] sm:$0xff] %vm227, %v438
    %443 = vst.msk [vmem:[%s4 + $0x8] sm:$0xff] %vm227, %v439
    %444 = vst.msk [vmem:[%s4 + $0x10] sm:$0xff] %vm227, %v440
    %445 = vst.msk [vmem:[%s4 + $0x18] sm:$0xff] %vm227, %v441
    %v446 = vadd.f32 %v409, 1.0
    %v447 = vadd.f32 %v411, 1.0
    %v448 = vadd.f32 %v414, 1.0
    %v449 = vadd.f32 %v416, 1.0
    %v450 = vmul.f32 %v282, %v282
    %v451 = vmul.f32 %v284, %v284
    %v452 = vmul.f32 %v287, %v287
    %v453 = vmul.f32 %v289, %v289
    %v454 = vsub.f32 %v446, %v450
    %v455 = vsub.f32 %v447, %v451
    %v456 = vsub.f32 %v448, %v452
    %v457 = vsub.f32 %v449, %v453
    %v458 = vmul.f32 %v409, 1.442695
    %v459 = vpow.pop %v458
    %v460 = vmul.f32 %v411, 1.442695
    %v461 = vpow.pop %v460
    %v462 = vmul.f32 %v414, 1.442695
    %v463 = vpow.pop %v462
    %v464 = vmul.f32 %v416, 1.442695
    %v465 = vpow.pop %v464
    %v466 = vsub.f32 %v454, %v459
    %v467 = vsub.f32 %v455, %v461
    %v468 = vsub.f32 %v456, %v463
    %v469 = vsub.f32 %v457, %v465
    %v470 = vsel %vm227, %v466, 0.0
    %v471 = vsel %vm227, %v467, 0.0
    %v472 = vadd.f32 %v470, %v471
    %v473 = vsel %vm227, %v468, 0.0
    %v474 = vadd.f32 %v472, %v473
    %v475 = vsel %vm227, %v469, 0.0
    %v476 = vadd.f32 %v474, %v475
    %477 = vadd.xlane.f32.xlu0 %v476
    %v478 = vpop.xlane.xlu0 %477
    %v479 = vrot.slane %v478, 4
    %v480 = vadd.f32 %v478, %v479
    %v481 = vrot.slane %v480, 2
    %v482 = vadd.f32 %v480, %v481
    %v483 = vrot.slane %v482, 1
    %v484 = vadd.f32 %v482, %v483
    %s485 = vtos %v484
    %v486 = vstv %s485
    %vm487 = vcmask 0
    %488 = vst.msk [vmem:[#allocation2] sm:$0x1] %vm487, %v486
    // Predicated region
    $region18: #{vae_forward.13} parent=1 // pred_check
      _
    $region19: #{vae_forward.13} parent=1 // pred_check_branch
      %490 = sbr.rel (0) target = $region21
    $region20: #{vae_forward.13} parent=1 // pred_region
      _
    $region21: #{vae_forward.13} parent=1 // pred_fallthru
      _
    // Predicated region
    $region22: #{vae_forward.13} parent=1 // pred_check
      _
    $region23: #{vae_forward.13} parent=1 // pred_check_branch
      %492 = sbr.rel (0) target = $region25
    $region24: #{vae_forward.13} parent=1 // pred_region
      %494 = vsyncadd [#allocation3], 0
      %s496 = sshll.u32 [#allocation2], 4
      %s497 = int_to_ptr.vmem [resolvable:$true] %s496
      %s498 = sshll.u32 %s5, 4
      %s499 = int_to_ptr.hbm [resolvable:$true] %s498
      %501 = dma.vmem_to_hbm [thread:$0]  %s497, 16, %s499, [#allocation3]
    $region25: #{vae_forward.13} parent=1 // pred_fallthru
      _
    // Predicated region
    $region26: #{vae_forward.13} parent=1 // pred_check
      _
    $region27: #{vae_forward.13} parent=1 // pred_check_branch
      %503 = sbr.rel (0) target = $region29
    $region28: #{vae_forward.13} parent=1 // pred_region
      _
    $region29: #{vae_forward.13} parent=1 // pred_fallthru
      _
    // Predicated region
    $region30: #{vae_forward.13} parent=1 // pred_check
      _
    $region31: #{vae_forward.13} parent=1 // pred_check_branch
      %505 = sbr.rel (0) target = $region33
    $region32: #{vae_forward.13} parent=1 // pred_region
      %507 = dma.done [#allocation3], 16
    $region33: #{vae_forward.13} parent=1 // pred_fallthru
      _
    %508 = vsyncpa [#allocation3], 1

// kernel: vae_forward.14
$region0: #{vae_forward.14}
  #allocation0 [shape = 'u32[]', space=smem, size = 0x4, offset = 0x4, fixed_abs, tag = 'smem constant byte address 0x4 - core index']
  #allocation1 [shape = 'u32[72,128]{1,0:T(1,128)}', space=vmem, size = 0x9000, scoped, tag = 'internal scratch']
  %s0 = inlined_call_operand.vmem [shape: bf16[4,32,288], index: 0, kind: input, shape index: {}]
  %s1 = inlined_call_operand.vmem [shape: bf16[288,32], index: 1, kind: input, shape index: {}]
  %s2 = inlined_call_operand.vmem [shape: f32[32,1], index: 2, kind: input, shape index: {}]
  %s3 = inlined_call_operand.vmem [shape: f32[32,1], index: 3, kind: input, shape index: {}]
  %s4 = inlined_call_operand.vmem [shape: f32[32,1], index: 4, kind: input, shape index: {}]
  %s5 = inlined_call_operand.vmem [shape: f32[4,32,32], index: 5, kind: output, shape index: {}]
  %s6 = sld [smem:[#allocation0]]
  $region30: #{vae_forward.14} parent=0
    _
  %s8 = ssub.s32 1, %s6
  %s9 = scalar_select 0, %s8, %s6
  // Predicated region
  $region2: #{vae_forward.14} parent=0 // pred_check
    _
  $region3: #{vae_forward.14} parent=0 // pred_check_branch
    %11 = sbr.rel (0) target = $region5
  $region4: #{vae_forward.14} parent=0 // pred_region
    _
  $region5: #{vae_forward.14} parent=0 // pred_fallthru
    _
  // Predicated region
  $region6: #{vae_forward.14} parent=0 // pred_check
    _
  $region7: #{vae_forward.14} parent=0 // pred_check_branch
    %13 = sbr.rel (0) target = $region9
  $region8: #{vae_forward.14} parent=0 // pred_region
    _
  $region9: #{vae_forward.14} parent=0 // pred_fallthru
    _
  // Predicated region
  $region10: #{vae_forward.14} parent=0 // pred_check
    _
  $region11: #{vae_forward.14} parent=0 // pred_check_branch
    %15 = sbr.rel (0) target = $region13
  $region12: #{vae_forward.14} parent=0 // pred_region
    _
  $region13: #{vae_forward.14} parent=0 // pred_fallthru
    _
  // Predicated region
  $region14: #{vae_forward.14} parent=0 // pred_check
    _
  $region15: #{vae_forward.14} parent=0 // pred_check_branch
    %17 = sbr.rel (0) target = $region17
  $region16: #{vae_forward.14} parent=0 // pred_region
    _
  $region17: #{vae_forward.14} parent=0 // pred_fallthru
    _
  // Predicated region
  $region18: #{vae_forward.14} parent=0 // pred_check
    _
  $region19: #{vae_forward.14} parent=0 // pred_check_branch
    %19 = sbr.rel (0) target = $region21
  $region20: #{vae_forward.14} parent=0 // pred_region
    _
  $region21: #{vae_forward.14} parent=0 // pred_fallthru
    _
  %v21 = vld [vmem:[%s1] sm:$0xf]
  %v22 = vld [vmem:[%s1 + $0x4] sm:$0xf]
  %v23 = vld [vmem:[%s1 + $0x8] sm:$0xf]
  %v24 = vld [vmem:[%s1 + $0xc] sm:$0xf]
  %v25 = vld [vmem:[%s1 + $0x10] sm:$0xf]
  %v26 = vld [vmem:[%s1 + $0x14] sm:$0xf]
  %v27 = vld [vmem:[%s1 + $0x18] sm:$0xf]
  %v28 = vld [vmem:[%s1 + $0x1c] sm:$0xf]
  %v29 = vld [vmem:[%s1 + $0x20] sm:$0xf]
  %v30 = vld [vmem:[%s1 + $0x24] sm:$0xf]
  %v31 = vld [vmem:[%s1 + $0x28] sm:$0xf]
  %v32 = vld [vmem:[%s1 + $0x2c] sm:$0xf]
  %v33 = vld [vmem:[%s1 + $0x30] sm:$0xf]
  %v34 = vld [vmem:[%s1 + $0x34] sm:$0xf]
  %v35 = vld [vmem:[%s1 + $0x38] sm:$0xf]
  %v36 = vld [vmem:[%s1 + $0x3c] sm:$0xf]
  %v37 = vld [vmem:[%s1 + $0x40] sm:$0xf]
  %v38 = vld [vmem:[%s1 + $0x44] sm:$0xf]
  %v39 = vld [vmem:[%s1 + $0x48] sm:$0xf]
  %v40 = vld [vmem:[%s1 + $0x4c] sm:$0xf]
  %v41 = vld [vmem:[%s1 + $0x50] sm:$0xf]
  %v42 = vld [vmem:[%s1 + $0x54] sm:$0xf]
  %v43 = vld [vmem:[%s1 + $0x58] sm:$0xf]
  %v44 = vld [vmem:[%s1 + $0x5c] sm:$0xf]
  %v45 = vld [vmem:[%s1 + $0x60] sm:$0xf]
  %v46 = vld [vmem:[%s1 + $0x64] sm:$0xf]
  %v47 = vld [vmem:[%s1 + $0x68] sm:$0xf]
  %v48 = vld [vmem:[%s1 + $0x6c] sm:$0xf]
  %v49 = vld [vmem:[%s1 + $0x70] sm:$0xf]
  %v50 = vld [vmem:[%s1 + $0x74] sm:$0xf]
  %v51 = vld [vmem:[%s1 + $0x78] sm:$0xf]
  %v52 = vld [vmem:[%s1 + $0x7c] sm:$0xf]
  %v53 = vld [vmem:[%s1 + $0x80] sm:$0xf]
  %v54 = vld [vmem:[%s1 + $0x84] sm:$0xf]
  %v55 = vld [vmem:[%s1 + $0x88] sm:$0xf]
  %v56 = vld [vmem:[%s1 + $0x8c] sm:$0xf]
  %v57 = vld [vmem:[%s2] sm:$0xff]
  %v58 = vld [vmem:[%s2 + $0x8] sm:$0xff]
  %v59 = vld [vmem:[%s2 + $0x10] sm:$0xff]
  %v60 = vld [vmem:[%s2 + $0x18] sm:$0xff]
  %v61 = vld [vmem:[%s0] sm:$0xff]
  %v62 = vld [vmem:[%s0 + $0x8] sm:$0xf]
  %v63 = vld [vmem:[%s0 + $0xc] sm:$0xff]
  %v64 = vld [vmem:[%s0 + $0x14] sm:$0xf]
  %v65 = vld [vmem:[%s0 + $0x18] sm:$0xff]
  %v66 = vld [vmem:[%s0 + $0x20] sm:$0xf]
  %v67 = vld [vmem:[%s0 + $0x24] sm:$0xff]
  %v68 = vld [vmem:[%s0 + $0x2c] sm:$0xf]
  %70 = vset.pattern.permute.xlu0 0
  %71 = vperm.xlu0 %70, %v57
  %v72 = vpop.permute.xlu0 %71
  %75 = vset.pattern.permute.xlu0 0
  %76 = vperm.xlu0 %75, %v58
  %v77 = vpop.permute.xlu0 %76
  %80 = vset.pattern.permute.xlu0 0
  %81 = vperm.xlu0 %80, %v59
  %v82 = vpop.permute.xlu0 %81
  %85 = vset.pattern.permute.xlu0 0
  %86 = vperm.xlu0 %85, %v60
  %v87 = vpop.permute.xlu0 %86
  %v97 = vunpack.c.l.b16 %v61
  %v98 = vunpack.c.h.b16 %v61
  %v99 = vunpack.c.l.b16 %v62
  %v100 = vunpack.c.l.b16 %v63
  %v101 = vunpack.c.h.b16 %v63
  %v102 = vunpack.c.l.b16 %v64
  %v103 = vunpack.c.l.b16 %v65
  %v104 = vunpack.c.h.b16 %v65
  %v105 = vunpack.c.l.b16 %v66
  %v106 = vunpack.c.l.b16 %v67
  %v107 = vunpack.c.h.b16 %v67
  %v108 = vunpack.c.l.b16 %v68
  %v109 = vpack.c.b16 %v100, %v97
  %v110 = vpack.c.b16 %v101, %v98
  %v111 = vpack.c.b16 %v102, %v99
  %v112 = vpack.c.b16 %v106, %v103
  %v113 = vpack.c.b16 %v107, %v104
  %v114 = vpack.c.b16 %v108, %v105
  %v155 = vunpack.c.l.b16 %v21
  %v156 = vunpack.c.l.b16 %v22
  %v157 = vunpack.c.l.b16 %v23
  %v158 = vunpack.c.l.b16 %v24
  %v159 = vunpack.c.l.b16 %v25
  %v160 = vunpack.c.l.b16 %v26
  %v161 = vunpack.c.l.b16 %v27
  %v162 = vunpack.c.l.b16 %v28
  %v163 = vunpack.c.l.b16 %v29
  %v164 = vunpack.c.l.b16 %v30
  %v165 = vunpack.c.l.b16 %v31
  %v166 = vunpack.c.l.b16 %v32
  %v167 = vunpack.c.l.b16 %v33
  %v168 = vunpack.c.l.b16 %v34
  %v169 = vunpack.c.l.b16 %v35
  %v170 = vunpack.c.l.b16 %v36
  %v171 = vunpack.c.l.b16 %v37
  %v172 = vunpack.c.l.b16 %v38
  %v173 = vunpack.c.l.b16 %v39
  %v174 = vunpack.c.l.b16 %v40
  %v175 = vunpack.c.l.b16 %v41
  %v176 = vunpack.c.l.b16 %v42
  %v177 = vunpack.c.l.b16 %v43
  %v178 = vunpack.c.l.b16 %v44
  %v179 = vunpack.c.l.b16 %v45
  %v180 = vunpack.c.l.b16 %v46
  %v181 = vunpack.c.l.b16 %v47
  %v182 = vunpack.c.l.b16 %v48
  %v183 = vunpack.c.l.b16 %v49
  %v184 = vunpack.c.l.b16 %v50
  %v185 = vunpack.c.l.b16 %v51
  %v186 = vunpack.c.l.b16 %v52
  %v187 = vunpack.c.l.b16 %v53
  %v188 = vunpack.c.l.b16 %v54
  %v189 = vunpack.c.l.b16 %v55
  %v190 = vunpack.c.l.b16 %v56
  %v191 = vpack.c.b16 %v156, %v155
  %v192 = vpack.c.b16 %v158, %v157
  %v193 = vpack.c.b16 %v160, %v159
  %v194 = vpack.c.b16 %v162, %v161
  %v195 = vpack.c.b16 %v164, %v163
  %v196 = vpack.c.b16 %v166, %v165
  %v197 = vpack.c.b16 %v168, %v167
  %v198 = vpack.c.b16 %v170, %v169
  %v199 = vpack.c.b16 %v172, %v171
  %v200 = vpack.c.b16 %v174, %v173
  %v201 = vpack.c.b16 %v176, %v175
  %v202 = vpack.c.b16 %v178, %v177
  %v203 = vpack.c.b16 %v180, %v179
  %v204 = vpack.c.b16 %v182, %v181
  %v205 = vpack.c.b16 %v184, %v183
  %v206 = vpack.c.b16 %v186, %v185
  %v207 = vpack.c.b16 %v188, %v187
  %v208 = vpack.c.b16 %v190, %v189
  %vm227 = vcmask 261120
  %v229 = vsel %vm227, %v111, 0
  %v232 = vsel %vm227, %v114, 0
  %234 = vmatpush.bf16.msra.mxu0 %v198
  %235 = vmatpush.bf16.msra.mxu0 %v197
  %236 = vmatpush.bf16.msra.mxu0 %v196
  %237 = vmatpush.bf16.msra.mxu0 %v195
  %238 = vmatpush.bf16.msra.mxu0 %v194
  %239 = vmatpush.bf16.msra.mxu0 %v193
  %240 = vmatpush.bf16.msra.mxu0 %v192
  %241 = vmatpush.bf16.msra.mxu0 %v191
  %242 = vmatmul.bf16.gmra.mxu0 %v109
  %v243 = vpop.f32.mrf.mxu0
  %v244 = vadd.f32 %v72, %v243
  %v245 = vpop.f32.mrf.mxu0
  %v246 = vadd.f32 %v77, %v245
  %247 = vmatmul.bf16.gmra.mxu0 %v112
  %v248 = vpop.f32.mrf.mxu0
  %v249 = vadd.f32 %v82, %v248
  %v250 = vpop.f32.mrf.mxu0
  %v251 = vadd.f32 %v87, %v250
  %252 = vdwg.mxu0
  %253 = vmatpush.bf16.msra.mxu0 %v206
  %254 = vmatpush.bf16.msra.mxu0 %v205
  %255 = vmatpush.bf16.msra.mxu0 %v204
  %256 = vmatpush.bf16.msra.mxu0 %v203
  %257 = vmatpush.bf16.msra.mxu0 %v202
  %258 = vmatpush.bf16.msra.mxu0 %v201
  %259 = vmatpush.bf16.msra.mxu0 %v200
  %260 = vmatpush.bf16.msra.mxu0 %v199
  %261 = vmatmul.bf16.gmra.mxu0 %v110
  %v262 = vpop.f32.mrf.mxu0
  %v263 = vadd.f32 %v244, %v262
  %v264 = vpop.f32.mrf.mxu0
  %v265 = vadd.f32 %v246, %v264
  %266 = vmatmul.bf16.gmra.mxu0 %v113
  %v267 = vpop.f32.mrf.mxu0
  %v268 = vadd.f32 %v249, %v267
  %v269 = vpop.f32.mrf.mxu0
  %v270 = vadd.f32 %v251, %v269
  %271 = vdwg.mxu0
  %272 = vmatpush.bf16.msra.mxu0 0
  %273 = vmatpush.bf16.msra.mxu0 0
  %274 = vmatpush.bf16.msra.mxu0 0
  %275 = vmatpush.bf16.msra.mxu0 0
  %276 = vmatpush.bf16.msra.mxu0 0
  %277 = vmatpush.bf16.msra.mxu0 0
  %278 = vmatpush.bf16.msra.mxu0 %v208
  %279 = vmatpush.bf16.msra.mxu0 %v207
  %280 = vmatmul.bf16.gmra.mxu0 %v229
  %v281 = vpop.f32.mrf.mxu0
  %v282 = vadd.f32 %v263, %v281
  %v283 = vpop.f32.mrf.mxu0
  %v284 = vadd.f32 %v265, %v283
  %285 = vmatmul.bf16.gmra.mxu0 %v232
  %v286 = vpop.f32.mrf.mxu0
  %v287 = vadd.f32 %v268, %v286
  %v288 = vpop.f32.mrf.mxu0
  %v289 = vadd.f32 %v270, %v288
  %290 = vdwg.mxu0
  %v291 = vsel %vm227, %v282, 0.0
  %292 = vadd.xlane.f32.xlu0 %v291
  %v293 = vpop.xlane.xlu0 %292
  %v294 = vsel %vm227, %v284, 0.0
  %295 = vadd.xlane.f32.xlu0 %v294
  %v296 = vpop.xlane.xlu0 %295
  %v297 = vsel %vm227, %v287, 0.0
  %298 = vadd.xlane.f32.xlu0 %v297
  %v299 = vpop.xlane.xlu0 %298
  %v300 = vsel %vm227, %v289, 0.0
  %301 = vadd.xlane.f32.xlu0 %v300
  %v302 = vpop.xlane.xlu0 %301
  %v303 = vadd.f32 %v293, 0.0
  %v304 = vadd.f32 %v296, 0.0
  %v305 = vadd.f32 %v299, 0.0
  %v306 = vadd.f32 %v302, 0.0
  %v307 = vmul.f32 %v282, %v282
  %v308 = vmul.f32 %v284, %v284
  %v309 = vmul.f32 %v287, %v287
  %v310 = vmul.f32 %v289, %v289
  %v311 = vsel %vm227, %v307, 0.0
  %312 = vadd.xlane.f32.xlu0 %v311
  %v313 = vpop.xlane.xlu0 %312
  %v314 = vsel %vm227, %v308, 0.0
  %315 = vadd.xlane.f32.xlu0 %v314
  %v316 = vpop.xlane.xlu0 %315
  %v317 = vsel %vm227, %v309, 0.0
  %318 = vadd.xlane.f32.xlu0 %v317
  %v319 = vpop.xlane.xlu0 %318
  %v320 = vsel %vm227, %v310, 0.0
  %321 = vadd.xlane.f32.xlu0 %v320
  %v322 = vpop.xlane.xlu0 %321
  %v323 = vadd.f32 %v313, 0.0
  %v324 = vadd.f32 %v316, 0.0
  %v325 = vadd.f32 %v319, 0.0
  %v326 = vadd.f32 %v322, 0.0
  %s327 = scalar_lea.vmem %s0, 48
  %v328 = vld [vmem:[%s327] sm:$0xff]
  %v329 = vld [vmem:[%s327 + $0x8] sm:$0xf]
  %v330 = vld [vmem:[%s327 + $0xc] sm:$0xff]
  %v331 = vld [vmem:[%s327 + $0x14] sm:$0xf]
  %v332 = vld [vmem:[%s327 + $0x18] sm:$0xff]
  %v333 = vld [vmem:[%s327 + $0x20] sm:$0xf]
  %v334 = vld [vmem:[%s327 + $0x24] sm:$0xff]
  %v335 = vld [vmem:[%s327 + $0x2c] sm:$0xf]
  %v344 = vunpack.c.l.b16 %v328
  %v345 = vunpack.c.h.b16 %v328
  %v346 = vunpack.c.l.b16 %v329
  %v347 = vunpack.c.l.b16 %v330
  %v348 = vunpack.c.h.b16 %v330
  %v349 = vunpack.c.l.b16 %v331
  %v350 = vunpack.c.l.b16 %v332
  %v351 = vunpack.c.h.b16 %v332
  %v352 = vunpack.c.l.b16 %v333
  %v353 = vunpack.c.l.b16 %v334
  %v354 = vunpack.c.h.b16 %v334
  %v355 = vunpack.c.l.b16 %v335
  %v356 = vpack.c.b16 %v347, %v344
  %v357 = vpack.c.b16 %v348, %v345
  %v358 = vpack.c.b16 %v349, %v346
  %v359 = vpack.c.b16 %v353, %v350
  %v360 = vpack.c.b16 %v354, %v351
  %v361 = vpack.c.b16 %v355, %v352
  %v367 = vsel %vm227, %v358, 0
  %v370 = vsel %vm227, %v361, 0
  %372 = vmatpush.bf16.msra.mxu0 %v198
  %373 = vmatpush.bf16.msra.mxu0 %v197
  %374 = vmatpush.bf16.msra.mxu0 %v196
  %375 = vmatpush.bf16.msra.mxu0 %v195
  %376 = vmatpush.bf16.msra.mxu0 %v194
  %377 = vmatpush.bf16.msra.mxu0 %v193
  %378 = vmatpush.bf16.msra.mxu0 %v192
  %379 = vmatpush.bf16.msra.mxu0 %v191
  %380 = vmatmul.bf16.gmra.mxu0 %v356
  %v381 = vpop.f32.mrf.mxu0
  %v382 = vadd.f32 %v72, %v381
  %v383 = vpop.f32.mrf.mxu0
  %v384 = vadd.f32 %v77, %v383
  %385 = vmatmul.bf16.gmra.mxu0 %v359
  %v386 = vpop.f32.mrf.mxu0
  %v387 = vadd.f32 %v82, %v386
  %v388 = vpop.f32.mrf.mxu0
  %v389 = vadd.f32 %v87, %v388
  %390 = vdwg.mxu0
  %391 = vmatpush.bf16.msra.mxu0 %v206
  %392 = vmatpush.bf16.msra.mxu0 %v205
  %393 = vmatpush.bf16.msra.mxu0 %v204
  %394 = vmatpush.bf16.msra.mxu0 %v203
  %395 = vmatpush.bf16.msra.mxu0 %v202
  %396 = vmatpush.bf16.msra.mxu0 %v201
  %397 = vmatpush.bf16.msra.mxu0 %v200
  %398 = vmatpush.bf16.msra.mxu0 %v199
  %399 = vmatmul.bf16.gmra.mxu0 %v357
  %v400 = vpop.f32.mrf.mxu0
  %v401 = vadd.f32 %v382, %v400
  %v402 = vpop.f32.mrf.mxu0
  %v403 = vadd.f32 %v384, %v402
  %404 = vmatmul.bf16.gmra.mxu0 %v360
  %v405 = vpop.f32.mrf.mxu0
  %v406 = vadd.f32 %v387, %v405
  %v407 = vpop.f32.mrf.mxu0
  %v408 = vadd.f32 %v389, %v407
  %409 = vdwg.mxu0
  %410 = vmatpush.bf16.msra.mxu0 0
  %411 = vmatpush.bf16.msra.mxu0 0
  %412 = vmatpush.bf16.msra.mxu0 0
  %413 = vmatpush.bf16.msra.mxu0 0
  %414 = vmatpush.bf16.msra.mxu0 0
  %415 = vmatpush.bf16.msra.mxu0 0
  %416 = vmatpush.bf16.msra.mxu0 %v208
  %417 = vmatpush.bf16.msra.mxu0 %v207
  %418 = vmatmul.bf16.gmra.mxu0 %v367
  %v419 = vpop.f32.mrf.mxu0
  %v420 = vadd.f32 %v401, %v419
  %v421 = vpop.f32.mrf.mxu0
  %v422 = vadd.f32 %v403, %v421
  %423 = vmatmul.bf16.gmra.mxu0 %v370
  %v424 = vpop.f32.mrf.mxu0
  %v425 = vadd.f32 %v406, %v424
  %v426 = vpop.f32.mrf.mxu0
  %v427 = vadd.f32 %v408, %v426
  %428 = vdwg.mxu0
  %v429 = vsel %vm227, %v420, 0.0
  %430 = vadd.xlane.f32.xlu0 %v429
  %v431 = vpop.xlane.xlu0 %430
  %v432 = vsel %vm227, %v422, 0.0
  %433 = vadd.xlane.f32.xlu0 %v432
  %v434 = vpop.xlane.xlu0 %433
  %v435 = vsel %vm227, %v425, 0.0
  %436 = vadd.xlane.f32.xlu0 %v435
  %v437 = vpop.xlane.xlu0 %436
  %v438 = vsel %vm227, %v427, 0.0
  %439 = vadd.xlane.f32.xlu0 %v438
  %v440 = vpop.xlane.xlu0 %439
  %v441 = vadd.f32 %v303, %v431
  %v442 = vadd.f32 %v304, %v434
  %v443 = vadd.f32 %v305, %v437
  %v444 = vadd.f32 %v306, %v440
  %v445 = vmul.f32 %v420, %v420
  %v446 = vmul.f32 %v422, %v422
  %v447 = vmul.f32 %v425, %v425
  %v448 = vmul.f32 %v427, %v427
  %v449 = vsel %vm227, %v445, 0.0
  %450 = vadd.xlane.f32.xlu0 %v449
  %v451 = vpop.xlane.xlu0 %450
  %v452 = vsel %vm227, %v446, 0.0
  %453 = vadd.xlane.f32.xlu0 %v452
  %v454 = vpop.xlane.xlu0 %453
  %v455 = vsel %vm227, %v447, 0.0
  %456 = vadd.xlane.f32.xlu0 %v455
  %v457 = vpop.xlane.xlu0 %456
  %v458 = vsel %vm227, %v448, 0.0
  %459 = vadd.xlane.f32.xlu0 %v458
  %v460 = vpop.xlane.xlu0 %459
  %v461 = vadd.f32 %v323, %v451
  %v462 = vadd.f32 %v324, %v454
  %v463 = vadd.f32 %v325, %v457
  %v464 = vadd.f32 %v326, %v460
  %s465 = scalar_lea.vmem %s0, 96
  %v466 = vld [vmem:[%s465] sm:$0xff]
  %v467 = vld [vmem:[%s465 + $0x8] sm:$0xf]
  %v468 = vld [vmem:[%s465 + $0xc] sm:$0xff]
  %v469 = vld [vmem:[%s465 + $0x14] sm:$0xf]
  %v470 = vld [vmem:[%s465 + $0x18] sm:$0xff]
  %v471 = vld [vmem:[%s465 + $0x20] sm:$0xf]
  %v472 = vld [vmem:[%s465 + $0x24] sm:$0xff]
  %v473 = vld [vmem:[%s465 + $0x2c] sm:$0xf]
  %v482 = vunpack.c.l.b16 %v466
  %v483 = vunpack.c.h.b16 %v466
  %v484 = vunpack.c.l.b16 %v467
  %v485 = vunpack.c.l.b16 %v468
  %v486 = vunpack.c.h.b16 %v468
  %v487 = vunpack.c.l.b16 %v469
  %v488 = vunpack.c.l.b16 %v470
  %v489 = vunpack.c.h.b16 %v470
  %v490 = vunpack.c.l.b16 %v471
  %v491 = vunpack.c.l.b16 %v472
  %v492 = vunpack.c.h.b16 %v472
  %v493 = vunpack.c.l.b16 %v473
  %v494 = vpack.c.b16 %v485, %v482
  %v495 = vpack.c.b16 %v486, %v483
  %v496 = vpack.c.b16 %v487, %v484
  %v497 = vpack.c.b16 %v491, %v488
  %v498 = vpack.c.b16 %v492, %v489
  %v499 = vpack.c.b16 %v493, %v490
  %v505 = vsel %vm227, %v496, 0
  %v508 = vsel %vm227, %v499, 0
  %510 = vmatpush.bf16.msra.mxu0 %v198
  %511 = vmatpush.bf16.msra.mxu0 %v197
  %512 = vmatpush.bf16.msra.mxu0 %v196
  %513 = vmatpush.bf16.msra.mxu0 %v195
  %514 = vmatpush.bf16.msra.mxu0 %v194
  %515 = vmatpush.bf16.msra.mxu0 %v193
  %516 = vmatpush.bf16.msra.mxu0 %v192
  %517 = vmatpush.bf16.msra.mxu0 %v191
  %518 = vmatmul.bf16.gmra.mxu0 %v494
  %v519 = vpop.f32.mrf.mxu0
  %v520 = vadd.f32 %v72, %v519
  %v521 = vpop.f32.mrf.mxu0
  %v522 = vadd.f32 %v77, %v521
  %523 = vmatmul.bf16.gmra.mxu0 %v497
  %v524 = vpop.f32.mrf.mxu0
  %v525 = vadd.f32 %v82, %v524
  %v526 = vpop.f32.mrf.mxu0
  %v527 = vadd.f32 %v87, %v526
  %528 = vdwg.mxu0
  %529 = vmatpush.bf16.msra.mxu0 %v206
  %530 = vmatpush.bf16.msra.mxu0 %v205
  %531 = vmatpush.bf16.msra.mxu0 %v204
  %532 = vmatpush.bf16.msra.mxu0 %v203
  %533 = vmatpush.bf16.msra.mxu0 %v202
  %534 = vmatpush.bf16.msra.mxu0 %v201
  %535 = vmatpush.bf16.msra.mxu0 %v200
  %536 = vmatpush.bf16.msra.mxu0 %v199
  %537 = vmatmul.bf16.gmra.mxu0 %v495
  %v538 = vpop.f32.mrf.mxu0
  %v539 = vadd.f32 %v520, %v538
  %v540 = vpop.f32.mrf.mxu0
  %v541 = vadd.f32 %v522, %v540
  %542 = vmatmul.bf16.gmra.mxu0 %v498
  %v543 = vpop.f32.mrf.mxu0
  %v544 = vadd.f32 %v525, %v543
  %v545 = vpop.f32.mrf.mxu0
  %v546 = vadd.f32 %v527, %v545
  %547 = vdwg.mxu0
  %548 = vmatpush.bf16.msra.mxu0 0
  %549 = vmatpush.bf16.msra.mxu0 0
  %550 = vmatpush.bf16.msra.mxu0 0
  %551 = vmatpush.bf16.msra.mxu0 0
  %552 = vmatpush.bf16.msra.mxu0 0
  %553 = vmatpush.bf16.msra.mxu0 0
  %554 = vmatpush.bf16.msra.mxu0 %v208
  %555 = vmatpush.bf16.msra.mxu0 %v207
  %556 = vmatmul.bf16.gmra.mxu0 %v505
  %v557 = vpop.f32.mrf.mxu0
  %v558 = vadd.f32 %v539, %v557
  %v559 = vpop.f32.mrf.mxu0
  %v560 = vadd.f32 %v541, %v559
  %561 = vmatmul.bf16.gmra.mxu0 %v508
  %v562 = vpop.f32.mrf.mxu0
  %v563 = vadd.f32 %v544, %v562
  %v564 = vpop.f32.mrf.mxu0
  %v565 = vadd.f32 %v546, %v564
  %566 = vdwg.mxu0
  %v567 = vsel %vm227, %v558, 0.0
  %568 = vadd.xlane.f32.xlu0 %v567
  %v569 = vpop.xlane.xlu0 %568
  %v570 = vsel %vm227, %v560, 0.0
  %571 = vadd.xlane.f32.xlu0 %v570
  %v572 = vpop.xlane.xlu0 %571
  %v573 = vsel %vm227, %v563, 0.0
  %574 = vadd.xlane.f32.xlu0 %v573
  %v575 = vpop.xlane.xlu0 %574
  %v576 = vsel %vm227, %v565, 0.0
  %577 = vadd.xlane.f32.xlu0 %v576
  %v578 = vpop.xlane.xlu0 %577
  %v579 = vadd.f32 %v441, %v569
  %v580 = vadd.f32 %v442, %v572
  %v581 = vadd.f32 %v443, %v575
  %v582 = vadd.f32 %v444, %v578
  %v583 = vmul.f32 %v558, %v558
  %v584 = vmul.f32 %v560, %v560
  %v585 = vmul.f32 %v563, %v563
  %v586 = vmul.f32 %v565, %v565
  %v587 = vsel %vm227, %v583, 0.0
  %588 = vadd.xlane.f32.xlu0 %v587
  %v589 = vpop.xlane.xlu0 %588
  %v590 = vsel %vm227, %v584, 0.0
  %591 = vadd.xlane.f32.xlu0 %v590
  %v592 = vpop.xlane.xlu0 %591
  %v593 = vsel %vm227, %v585, 0.0
  %594 = vadd.xlane.f32.xlu0 %v593
  %v595 = vpop.xlane.xlu0 %594
  %v596 = vsel %vm227, %v586, 0.0
  %597 = vadd.xlane.f32.xlu0 %v596
  %v598 = vpop.xlane.xlu0 %597
  %v599 = vadd.f32 %v461, %v589
  %v600 = vadd.f32 %v462, %v592
  %v601 = vadd.f32 %v463, %v595
  %v602 = vadd.f32 %v464, %v598
  %s603 = scalar_lea.vmem %s0, 144
  %v604 = vld [vmem:[%s603] sm:$0xff]
  %v605 = vld [vmem:[%s603 + $0x8] sm:$0xf]
  %v606 = vld [vmem:[%s603 + $0xc] sm:$0xff]
  %v607 = vld [vmem:[%s603 + $0x14] sm:$0xf]
  %v608 = vld [vmem:[%s603 + $0x18] sm:$0xff]
  %v609 = vld [vmem:[%s603 + $0x20] sm:$0xf]
  %v610 = vld [vmem:[%s603 + $0x24] sm:$0xff]
  %v611 = vld [vmem:[%s603 + $0x2c] sm:$0xf]
  %v620 = vunpack.c.l.b16 %v604
  %v621 = vunpack.c.h.b16 %v604
  %v622 = vunpack.c.l.b16 %v605
  %v623 = vunpack.c.l.b16 %v606
  %v624 = vunpack.c.h.b16 %v606
  %v625 = vunpack.c.l.b16 %v607
  %v626 = vunpack.c.l.b16 %v608
  %v627 = vunpack.c.h.b16 %v608
  %v628 = vunpack.c.l.b16 %v609
  %v629 = vunpack.c.l.b16 %v610
  %v630 = vunpack.c.h.b16 %v610
  %v631 = vunpack.c.l.b16 %v611
  %v632 = vpack.c.b16 %v623, %v620
  %v633 = vpack.c.b16 %v624, %v621
  %v634 = vpack.c.b16 %v625, %v622
  %v635 = vpack.c.b16 %v629, %v626
  %v636 = vpack.c.b16 %v630, %v627
  %v637 = vpack.c.b16 %v631, %v628
  %v643 = vsel %vm227, %v634, 0
  %v646 = vsel %vm227, %v637, 0
  %648 = vmatpush.bf16.msra.mxu0 %v198
  %649 = vmatpush.bf16.msra.mxu0 %v197
  %650 = vmatpush.bf16.msra.mxu0 %v196
  %651 = vmatpush.bf16.msra.mxu0 %v195
  %652 = vmatpush.bf16.msra.mxu0 %v194
  %653 = vmatpush.bf16.msra.mxu0 %v193
  %654 = vmatpush.bf16.msra.mxu0 %v192
  %655 = vmatpush.bf16.msra.mxu0 %v191
  %656 = vmatmul.bf16.gmra.mxu0 %v632
  %v657 = vpop.f32.mrf.mxu0
  %v658 = vadd.f32 %v72, %v657
  %v659 = vpop.f32.mrf.mxu0
  %v660 = vadd.f32 %v77, %v659
  %661 = vmatmul.bf16.gmra.mxu0 %v635
  %v662 = vpop.f32.mrf.mxu0
  %v663 = vadd.f32 %v82, %v662
  %v664 = vpop.f32.mrf.mxu0
  %v665 = vadd.f32 %v87, %v664
  %666 = vdwg.mxu0
  %667 = vmatpush.bf16.msra.mxu0 %v206
  %668 = vmatpush.bf16.msra.mxu0 %v205
  %669 = vmatpush.bf16.msra.mxu0 %v204
  %670 = vmatpush.bf16.msra.mxu0 %v203
  %671 = vmatpush.bf16.msra.mxu0 %v202
  %672 = vmatpush.bf16.msra.mxu0 %v201
  %673 = vmatpush.bf16.msra.mxu0 %v200
  %674 = vmatpush.bf16.msra.mxu0 %v199
  %675 = vmatmul.bf16.gmra.mxu0 %v633
  %v676 = vpop.f32.mrf.mxu0
  %v677 = vadd.f32 %v658, %v676
  %v678 = vpop.f32.mrf.mxu0
  %v679 = vadd.f32 %v660, %v678
  %680 = vmatmul.bf16.gmra.mxu0 %v636
  %v681 = vpop.f32.mrf.mxu0
  %v682 = vadd.f32 %v663, %v681
  %v683 = vpop.f32.mrf.mxu0
  %v684 = vadd.f32 %v665, %v683
  %685 = vdwg.mxu0
  %686 = vmatpush.bf16.msra.mxu0 0
  %687 = vmatpush.bf16.msra.mxu0 0
  %688 = vmatpush.bf16.msra.mxu0 0
  %689 = vmatpush.bf16.msra.mxu0 0
  %690 = vmatpush.bf16.msra.mxu0 0
  %691 = vmatpush.bf16.msra.mxu0 0
  %692 = vmatpush.bf16.msra.mxu0 %v208
  %693 = vmatpush.bf16.msra.mxu0 %v207
  %694 = vmatmul.bf16.gmra.mxu0 %v643
  %v695 = vpop.f32.mrf.mxu0
  %v696 = vadd.f32 %v677, %v695
  %v697 = vpop.f32.mrf.mxu0
  %v698 = vadd.f32 %v679, %v697
  %699 = vmatmul.bf16.gmra.mxu0 %v646
  %v700 = vpop.f32.mrf.mxu0
  %v701 = vadd.f32 %v682, %v700
  %v702 = vpop.f32.mrf.mxu0
  %v703 = vadd.f32 %v684, %v702
  %704 = vdwg.mxu0
  %v705 = vsel %vm227, %v696, 0.0
  %706 = vadd.xlane.f32.xlu0 %v705
  %v707 = vpop.xlane.xlu0 %706
  %v708 = vsel %vm227, %v698, 0.0
  %709 = vadd.xlane.f32.xlu0 %v708
  %v710 = vpop.xlane.xlu0 %709
  %v711 = vsel %vm227, %v701, 0.0
  %712 = vadd.xlane.f32.xlu0 %v711
  %v713 = vpop.xlane.xlu0 %712
  %v714 = vsel %vm227, %v703, 0.0
  %715 = vadd.xlane.f32.xlu0 %v714
  %v716 = vpop.xlane.xlu0 %715
  %v717 = vadd.f32 %v579, %v707
  %v718 = vadd.f32 %v580, %v710
  %v719 = vadd.f32 %v581, %v713
  %v720 = vadd.f32 %v582, %v716
  %v721 = vmul.f32 %v696, %v696
  %v722 = vmul.f32 %v698, %v698
  %v723 = vmul.f32 %v701, %v701
  %v724 = vmul.f32 %v703, %v703
  %v725 = vsel %vm227, %v721, 0.0
  %726 = vadd.xlane.f32.xlu0 %v725
  %v727 = vpop.xlane.xlu0 %726
  %v728 = vsel %vm227, %v722, 0.0
  %729 = vadd.xlane.f32.xlu0 %v728
  %v730 = vpop.xlane.xlu0 %729
  %v731 = vsel %vm227, %v723, 0.0
  %732 = vadd.xlane.f32.xlu0 %v731
  %v733 = vpop.xlane.xlu0 %732
  %v734 = vsel %vm227, %v724, 0.0
  %735 = vadd.xlane.f32.xlu0 %v734
  %v736 = vpop.xlane.xlu0 %735
  %v737 = vadd.f32 %v599, %v727
  %v738 = vadd.f32 %v600, %v730
  %v739 = vadd.f32 %v601, %v733
  %v740 = vadd.f32 %v602, %v736
  %v741 = vrcp.pop 128.0
  %v742 = vmul.f32 128.0, %v741
  %v743 = vsub.f32 1.0, %v742
  %v744 = vmul.f32 %v741, %v743
  %v745 = vadd.f32 %v741, %v744
  %vm746 = vweird.f32 %v741
  %v747 = vsel %vm746, %v741, %v745
  %v748 = vmul.f32 %v717, %v747
  %v749 = vmul.f32 %v718, %v747
  %v750 = vmul.f32 %v719, %v747
  %v751 = vmul.f32 %v720, %v747
  %v752 = vmul.f32 %v737, %v747
  %v753 = vmul.f32 %v738, %v747
  %v754 = vmul.f32 %v739, %v747
  %v755 = vmul.f32 %v740, %v747
  %v756 = vmul.f32 %v748, %v748
  %v757 = vmul.f32 %v749, %v749
  %v758 = vmul.f32 %v750, %v750
  %v759 = vmul.f32 %v751, %v751
  %v760 = vsub.f32 %v752, %v756
  %v761 = vsub.f32 %v753, %v757
  %v762 = vsub.f32 %v754, %v758
  %v763 = vsub.f32 %v755, %v759
  %v764 = vld [vmem:[%s3] sm:$0xff]
  %v765 = vld [vmem:[%s3 + $0x8] sm:$0xff]
  %v766 = vld [vmem:[%s3 + $0x10] sm:$0xff]
  %v767 = vld [vmem:[%s3 + $0x18] sm:$0xff]
  %v768 = vadd.f32 %v760, 1e-05
  %v769 = vadd.f32 %v761, 1e-05
  %v770 = vadd.f32 %v762, 1e-05
  %v771 = vadd.f32 %v763, 1e-05
  %v772 = vrsqrt.pop %v768
  %v773 = vmul.f32 %v772, %v768
  %v774 = vmul.f32 %v773, %v772
  %v775 = vmul.f32 0.5, %v774
  %v776 = vsub.f32 1.5, %v775
  %v777 = vmul.f32 %v772, %v776
  %v778 = vmul.f32 %v768, %v777
  %vm779 = vcmp.eq.f32.partialorder %v768, inf
  %v780 = vsel %vm779, %v768, %v778
  %vm781 = vcmp.eq.f32.partialorder %v768, 0.0
  %v782 = vand.u32 %v768, 2147483648
  %v783 = vsel %vm781, %v782, %v780
  %v784 = vrsqrt.pop %v769
  %v785 = vmul.f32 %v784, %v769
  %v786 = vmul.f32 %v785, %v784
  %v787 = vmul.f32 0.5, %v786
  %v788 = vsub.f32 1.5, %v787
  %v789 = vmul.f32 %v784, %v788
  %v790 = vmul.f32 %v769, %v789
  %vm791 = vcmp.eq.f32.partialorder %v769, inf
  %v792 = vsel %vm791, %v769, %v790
  %vm793 = vcmp.eq.f32.partialorder %v769, 0.0
  %v794 = vand.u32 %v769, 2147483648
  %v795 = vsel %vm793, %v794, %v792
  %v796 = vrsqrt.pop %v770
  %v797 = vmul.f32 %v796, %v770
  %v798 = vmul.f32 %v797, %v796
  %v799 = vmul.f32 0.5, %v798
  %v800 = vsub.f32 1.5, %v799
  %v801 = vmul.f32 %v796, %v800
  %v802 = vmul.f32 %v770, %v801
  %vm803 = vcmp.eq.f32.partialorder %v770, inf
  %v804 = vsel %vm803, %v770, %v802
  %vm805 = vcmp.eq.f32.partialorder %v770, 0.0
  %v806 = vand.u32 %v770, 2147483648
  %v807 = vsel %vm805, %v806, %v804
  %v808 = vrsqrt.pop %v771
  %v809 = vmul.f32 %v808, %v771
  %v810 = vmul.f32 %v809, %v808
  %v811 = vmul.f32 0.5, %v810
  %v812 = vsub.f32 1.5, %v811
  %v813 = vmul.f32 %v808, %v812
  %v814 = vmul.f32 %v771, %v813
  %vm815 = vcmp.eq.f32.partialorder %v771, inf
  %v816 = vsel %vm815, %v771, %v814
  %vm817 = vcmp.eq.f32.partialorder %v771, 0.0
  %v818 = vand.u32 %v771, 2147483648
  %v819 = vsel %vm817, %v818, %v816
  %v820 = vrcp.pop %v783
  %v821 = vmul.f32 %v783, %v820
  %v822 = vsub.f32 1.0, %v821
  %v823 = vmul.f32 %v820, %v822
  %v824 = vadd.f32 %v820, %v823
  %vm825 = vweird.f32 %v783
  %vm826 = vweird.f32 %v820
  %vm827 = vmor %vm825, %vm826
  %v828 = vsel %vm827, %v820, %v824
  %v829 = vand.u32 2147483647, %v783
  %vm830 = vcmp.eq.f32.partialorder %v829, 8.507059e+37
  %v831 = vand.u32 %v783, 2147483648
  %v832 = vor.u32 1.1754944e-38, %v831
  %v833 = vsel %vm830, %v832, %v828
  %v834 = vmul.f32 %v764, %v833
  %v835 = vrcp.pop %v795
  %v836 = vmul.f32 %v795, %v835
  %v837 = vsub.f32 1.0, %v836
  %v838 = vmul.f32 %v835, %v837
  %v839 = vadd.f32 %v835, %v838
  %vm840 = vweird.f32 %v795
  %vm841 = vweird.f32 %v835
  %vm842 = vmor %vm840, %vm841
  %v843 = vsel %vm842, %v835, %v839
  %v844 = vand.u32 2147483647, %v795
  %vm845 = vcmp.eq.f32.partialorder %v844, 8.507059e+37
  %v846 = vand.u32 %v795, 2147483648
  %v847 = vor.u32 1.1754944e-38, %v846
  %v848 = vsel %vm845, %v847, %v843
  %v849 = vmul.f32 %v765, %v848
  %v850 = vrcp.pop %v807
  %v851 = vmul.f32 %v807, %v850
  %v852 = vsub.f32 1.0, %v851
  %v853 = vmul.f32 %v850, %v852
  %v854 = vadd.f32 %v850, %v853
  %vm855 = vweird.f32 %v807
  %vm856 = vweird.f32 %v850
  %vm857 = vmor %vm855, %vm856
  %v858 = vsel %vm857, %v850, %v854
  %v859 = vand.u32 2147483647, %v807
  %vm860 = vcmp.eq.f32.partialorder %v859, 8.507059e+37
  %v861 = vand.u32 %v807, 2147483648
  %v862 = vor.u32 1.1754944e-38, %v861
  %v863 = vsel %vm860, %v862, %v858
  %v864 = vmul.f32 %v766, %v863
  %v865 = vrcp.pop %v819
  %v866 = vmul.f32 %v819, %v865
  %v867 = vsub.f32 1.0, %v866
  %v868 = vmul.f32 %v865, %v867
  %v869 = vadd.f32 %v865, %v868
  %vm870 = vweird.f32 %v819
  %vm871 = vweird.f32 %v865
  %vm872 = vmor %vm870, %vm871
  %v873 = vsel %vm872, %v865, %v869
  %v874 = vand.u32 2147483647, %v819
  %vm875 = vcmp.eq.f32.partialorder %v874, 8.507059e+37
  %v876 = vand.u32 %v819, 2147483648
  %v877 = vor.u32 1.1754944e-38, %v876
  %v878 = vsel %vm875, %v877, %v873
  %v879 = vmul.f32 %v767, %v878
  %v880 = vld [vmem:[%s4] sm:$0xff]
  %v881 = vld [vmem:[%s4 + $0x8] sm:$0xff]
  %v882 = vld [vmem:[%s4 + $0x10] sm:$0xff]
  %v883 = vld [vmem:[%s4 + $0x18] sm:$0xff]
  %v884 = vmul.f32 %v748, %v834
  %v885 = vmul.f32 %v749, %v849
  %v886 = vmul.f32 %v750, %v864
  %v887 = vmul.f32 %v751, %v879
  %v888 = vsub.f32 %v880, %v884
  %v889 = vsub.f32 %v881, %v885
  %v890 = vsub.f32 %v882, %v886
  %v891 = vsub.f32 %v883, %v887
  %893 = vset.pattern.permute.xlu0 0
  %894 = vperm.xlu0 %893, %v834
  %v895 = vpop.permute.xlu0 %894
  %898 = vset.pattern.permute.xlu0 0
  %899 = vperm.xlu0 %898, %v849
  %v900 = vpop.permute.xlu0 %899
  %903 = vset.pattern.permute.xlu0 0
  %904 = vperm.xlu0 %903, %v864
  %v905 = vpop.permute.xlu0 %904
  %908 = vset.pattern.permute.xlu0 0
  %909 = vperm.xlu0 %908, %v879
  %v910 = vpop.permute.xlu0 %909
  %v912 = vmul.f32 %v282, %v895
  %v913 = vmul.f32 %v284, %v900
  %v914 = vmul.f32 %v287, %v905
  %v915 = vmul.f32 %v289, %v910
  %917 = vset.pattern.permute.xlu0 0
  %918 = vperm.xlu0 %917, %v888
  %v919 = vpop.permute.xlu0 %918
  %922 = vset.pattern.permute.xlu0 0
  %923 = vperm.xlu0 %922, %v889
  %v924 = vpop.permute.xlu0 %923
  %927 = vset.pattern.permute.xlu0 0
  %928 = vperm.xlu0 %927, %v890
  %v929 = vpop.permute.xlu0 %928
  %932 = vset.pattern.permute.xlu0 0
  %933 = vperm.xlu0 %932, %v891
  %v934 = vpop.permute.xlu0 %933
  %v936 = vadd.f32 %v912, %v919
  %v937 = vadd.f32 %v913, %v924
  %v938 = vadd.f32 %v914, %v929
  %v939 = vadd.f32 %v915, %v934
  %v940 = vmax.f32 %v936, 0.0
  %v941 = vmax.f32 %v937, 0.0
  %v942 = vmax.f32 %v938, 0.0
  %v943 = vmax.f32 %v939, 0.0
  %944 = vst.msk [vmem:[%s5] sm:$0xff] %vm227, %v940
  %945 = vst.msk [vmem:[%s5 + $0x8] sm:$0xff] %vm227, %v941
  %946 = vst.msk [vmem:[%s5 + $0x10] sm:$0xff] %vm227, %v942
  %947 = vst.msk [vmem:[%s5 + $0x18] sm:$0xff] %vm227, %v943
  %v948 = vmul.f32 %v420, %v895
  %v949 = vmul.f32 %v422, %v900
  %v950 = vmul.f32 %v425, %v905
  %v951 = vmul.f32 %v427, %v910
  %v952 = vadd.f32 %v948, %v919
  %v953 = vadd.f32 %v949, %v924
  %v954 = vadd.f32 %v950, %v929
  %v955 = vadd.f32 %v951, %v934
  %v956 = vmax.f32 %v952, 0.0
  %v957 = vmax.f32 %v953, 0.0
  %v958 = vmax.f32 %v954, 0.0
  %v959 = vmax.f32 %v955, 0.0
  %s960 = scalar_lea.vmem %s5, 32
  %961 = vst.msk [vmem:[%s960] sm:$0xff] %vm227, %v956
  %962 = vst.msk [vmem:[%s960 + $0x8] sm:$0xff] %vm227, %v957
  %963 = vst.msk [vmem:[%s960 + $0x10] sm:$0xff] %vm227, %v958
  %964 = vst.msk [vmem:[%s960 + $0x18] sm:$0xff] %vm227, %v959
  %v965 = vmul.f32 %v558, %v895
  %v966 = vmul.f32 %v560, %v900
  %v967 = vmul.f32 %v563, %v905
  %v968 = vmul.f32 %v565, %v910
  %v969 = vadd.f32 %v965, %v919
  %v970 = vadd.f32 %v966, %v924
  %v971 = vadd.f32 %v967, %v929
  %v972 = vadd.f32 %v968, %v934
  %v973 = vmax.f32 %v969, 0.0
  %v974 = vmax.f32 %v970, 0.0
  %v975 = vmax.f32 %v971, 0.0
  %v976 = vmax.f32 %v972, 0.0
  %s977 = scalar_lea.vmem %s5, 64
  %978 = vst.msk [vmem:[%s977] sm:$0xff] %vm227, %v973
  %979 = vst.msk [vmem:[%s977 + $0x8] sm:$0xff] %vm227, %v974
  %980 = vst.msk [vmem:[%s977 + $0x10] sm:$0xff] %vm227, %v975
  %981 = vst.msk [vmem:[%s977 + $0x18] sm:$0xff] %vm227, %v976
  %v982 = vmul.f32 %v696, %v895
  %v983 = vmul.f32 %v698, %v900
  %v984 = vmul.f32 %v701, %v905
  %v985 = vmul.f32 %v703, %v910
  %v986 = vadd.f32 %v982, %v919
  %v987 = vadd.f32 %v983, %v924
  %v988 = vadd.f32 %v984, %v929
  %v989 = vadd.f32 %v985, %v934
  %v990 = vmax.f32 %v986, 0.0
  %v991 = vmax.f32 %v987, 0.0
  %v992 = vmax.f32 %v988, 0.0
  %v993 = vmax.f32 %v989, 0.0
  %s994 = scalar_lea.vmem %s5, 96
  %995 = vst.msk [vmem:[%s994] sm:$0xff] %vm227, %v990
  %996 = vst.msk [vmem:[%s994 + $0x8] sm:$0xff] %vm227, %v991
  %997 = vst.msk [vmem:[%s994 + $0x10] sm:$0xff] %vm227, %v992
  %998 = vst.msk [vmem:[%s994 + $0x18] sm:$0xff] %vm227, %v993
  // Predicated region
  $region22: #{vae_forward.14} parent=0 // pred_check
    _
  $region23: #{vae_forward.14} parent=0 // pred_check_branch
    %1000 = sbr.rel (0) target = $region25
  $region24: #{vae_forward.14} parent=0 // pred_region
    _
  $region25: #{vae_forward.14} parent=0 // pred_fallthru
    _
  // Predicated region
  $region26: #{vae_forward.14} parent=0 // pred_check
    _
  $region27: #{vae_forward.14} parent=0 // pred_check_branch
    %1002 = sbr.rel (0) target = $region29
  $region28: #{vae_forward.14} parent=0 // pred_region
    _
  $region29: #{vae_forward.14} parent=0 // pred_fallthru
    _

// kernel: vae_forward.15
$region0: #{vae_forward.15}
  #allocation0 [shape = 'u32[]', space=smem, size = 0x4, offset = 0x4, fixed_abs, tag = 'smem constant byte address 0x4 - core index']
  #allocation1 [shape = 'u32[72,128]{1,0:T(1,128)}', space=vmem, size = 0x9000, scoped, tag = 'internal scratch']
  %s0 = inlined_call_operand.vmem [shape: bf16[4,16,288], index: 0, kind: input, shape index: {}]
  %s1 = inlined_call_operand.vmem [shape: bf16[288,128], index: 1, kind: input, shape index: {}]
  %s2 = inlined_call_operand.vmem [shape: f32[16,1], index: 2, kind: input, shape index: {}]
  %s3 = inlined_call_operand.vmem [shape: f32[16,1], index: 3, kind: input, shape index: {}]
  %s4 = inlined_call_operand.vmem [shape: f32[16,1], index: 4, kind: input, shape index: {}]
  %s5 = inlined_call_operand.vmem [shape: f32[4,16,128], index: 5, kind: output, shape index: {}]
  %s6 = sld [smem:[#allocation0]]
  $region30: #{vae_forward.15} parent=0
    _
  %s8 = ssub.s32 1, %s6
  %s9 = scalar_select 0, %s8, %s6
  // Predicated region
  $region2: #{vae_forward.15} parent=0 // pred_check
    _
  $region3: #{vae_forward.15} parent=0 // pred_check_branch
    %11 = sbr.rel (0) target = $region5
  $region4: #{vae_forward.15} parent=0 // pred_region
    _
  $region5: #{vae_forward.15} parent=0 // pred_fallthru
    _
  // Predicated region
  $region6: #{vae_forward.15} parent=0 // pred_check
    _
  $region7: #{vae_forward.15} parent=0 // pred_check_branch
    %13 = sbr.rel (0) target = $region9
  $region8: #{vae_forward.15} parent=0 // pred_region
    _
  $region9: #{vae_forward.15} parent=0 // pred_fallthru
    _
  // Predicated region
  $region10: #{vae_forward.15} parent=0 // pred_check
    _
  $region11: #{vae_forward.15} parent=0 // pred_check_branch
    %15 = sbr.rel (0) target = $region13
  $region12: #{vae_forward.15} parent=0 // pred_region
    _
  $region13: #{vae_forward.15} parent=0 // pred_fallthru
    _
  // Predicated region
  $region14: #{vae_forward.15} parent=0 // pred_check
    _
  $region15: #{vae_forward.15} parent=0 // pred_check_branch
    %17 = sbr.rel (0) target = $region17
  $region16: #{vae_forward.15} parent=0 // pred_region
    _
  $region17: #{vae_forward.15} parent=0 // pred_fallthru
    _
  // Predicated region
  $region18: #{vae_forward.15} parent=0 // pred_check
    _
  $region19: #{vae_forward.15} parent=0 // pred_check_branch
    %19 = sbr.rel (0) target = $region21
  $region20: #{vae_forward.15} parent=0 // pred_region
    _
  $region21: #{vae_forward.15} parent=0 // pred_fallthru
    _
  %v21 = vld [vmem:[%s1] sm:$0xf]
  %v22 = vld [vmem:[%s1 + $0x4] sm:$0xf]
  %v23 = vld [vmem:[%s1 + $0x8] sm:$0xf]
  %v24 = vld [vmem:[%s1 + $0xc] sm:$0xf]
  %v25 = vld [vmem:[%s1 + $0x10] sm:$0xf]
  %v26 = vld [vmem:[%s1 + $0x14] sm:$0xf]
  %v27 = vld [vmem:[%s1 + $0x18] sm:$0xf]
  %v28 = vld [vmem:[%s1 + $0x1c] sm:$0xf]
  %v29 = vld [vmem:[%s1 + $0x20] sm:$0xf]
  %v30 = vld [vmem:[%s1 + $0x24] sm:$0xf]
  %v31 = vld [vmem:[%s1 + $0x28] sm:$0xf]
  %v32 = vld [vmem:[%s1 + $0x2c] sm:$0xf]
  %v33 = vld [vmem:[%s1 + $0x30] sm:$0xf]
  %v34 = vld [vmem:[%s1 + $0x34] sm:$0xf]
  %v35 = vld [vmem:[%s1 + $0x38] sm:$0xf]
  %v36 = vld [vmem:[%s1 + $0x3c] sm:$0xf]
  %v37 = vld [vmem:[%s1 + $0x40] sm:$0xf]
  %v38 = vld [vmem:[%s1 + $0x44] sm:$0xf]
  %v39 = vld [vmem:[%s1 + $0x48] sm:$0xf]
  %v40 = vld [vmem:[%s1 + $0x4c] sm:$0xf]
  %v41 = vld [vmem:[%s1 + $0x50] sm:$0xf]
  %v42 = vld [vmem:[%s1 + $0x54] sm:$0xf]
  %v43 = vld [vmem:[%s1 + $0x58] sm:$0xf]
  %v44 = vld [vmem:[%s1 + $0x5c] sm:$0xf]
  %v45 = vld [vmem:[%s1 + $0x60] sm:$0xf]
  %v46 = vld [vmem:[%s1 + $0x64] sm:$0xf]
  %v47 = vld [vmem:[%s1 + $0x68] sm:$0xf]
  %v48 = vld [vmem:[%s1 + $0x6c] sm:$0xf]
  %v49 = vld [vmem:[%s1 + $0x70] sm:$0xf]
  %v50 = vld [vmem:[%s1 + $0x74] sm:$0xf]
  %v51 = vld [vmem:[%s1 + $0x78] sm:$0xf]
  %v52 = vld [vmem:[%s1 + $0x7c] sm:$0xf]
  %v53 = vld [vmem:[%s1 + $0x80] sm:$0xf]
  %v54 = vld [vmem:[%s1 + $0x84] sm:$0xf]
  %v55 = vld [vmem:[%s1 + $0x88] sm:$0xf]
  %v56 = vld [vmem:[%s1 + $0x8c] sm:$0xf]
  %v57 = vld [vmem:[%s2] sm:$0xff]
  %v58 = vld [vmem:[%s2 + $0x8] sm:$0xff]
  %v59 = vld [vmem:[%s0] sm:$0xff]
  %v60 = vld [vmem:[%s0 + $0x8] sm:$0xf]
  %v61 = vld [vmem:[%s0 + $0xc] sm:$0xff]
  %v62 = vld [vmem:[%s0 + $0x14] sm:$0xf]
  %64 = vset.pattern.permute.xlu0 0
  %65 = vperm.xlu0 %64, %v57
  %v66 = vpop.permute.xlu0 %65
  %69 = vset.pattern.permute.xlu0 0
  %70 = vperm.xlu0 %69, %v58
  %v71 = vpop.permute.xlu0 %70
  %v77 = vunpack.c.l.b16 %v59
  %v78 = vunpack.c.h.b16 %v59
  %v79 = vunpack.c.l.b16 %v60
  %v80 = vunpack.c.l.b16 %v61
  %v81 = vunpack.c.h.b16 %v61
  %v82 = vunpack.c.l.b16 %v62
  %v83 = vpack.c.b16 %v80, %v77
  %v84 = vpack.c.b16 %v81, %v78
  %v85 = vpack.c.b16 %v82, %v79
  %v124 = vunpack.c.l.b16 %v21
  %v125 = vunpack.c.l.b16 %v22
  %v126 = vunpack.c.l.b16 %v23
  %v127 = vunpack.c.l.b16 %v24
  %v128 = vunpack.c.l.b16 %v25
  %v129 = vunpack.c.l.b16 %v26
  %v130 = vunpack.c.l.b16 %v27
  %v131 = vunpack.c.l.b16 %v28
  %v132 = vunpack.c.l.b16 %v29
  %v133 = vunpack.c.l.b16 %v30
  %v134 = vunpack.c.l.b16 %v31
  %v135 = vunpack.c.l.b16 %v32
  %v136 = vunpack.c.l.b16 %v33
  %v137 = vunpack.c.l.b16 %v34
  %v138 = vunpack.c.l.b16 %v35
  %v139 = vunpack.c.l.b16 %v36
  %v140 = vunpack.c.l.b16 %v37
  %v141 = vunpack.c.l.b16 %v38
  %v142 = vunpack.c.l.b16 %v39
  %v143 = vunpack.c.l.b16 %v40
  %v144 = vunpack.c.l.b16 %v41
  %v145 = vunpack.c.l.b16 %v42
  %v146 = vunpack.c.l.b16 %v43
  %v147 = vunpack.c.l.b16 %v44
  %v148 = vunpack.c.l.b16 %v45
  %v149 = vunpack.c.l.b16 %v46
  %v150 = vunpack.c.l.b16 %v47
  %v151 = vunpack.c.l.b16 %v48
  %v152 = vunpack.c.l.b16 %v49
  %v153 = vunpack.c.l.b16 %v50
  %v154 = vunpack.c.l.b16 %v51
  %v155 = vunpack.c.l.b16 %v52
  %v156 = vunpack.c.l.b16 %v53
  %v157 = vunpack.c.l.b16 %v54
  %v158 = vunpack.c.l.b16 %v55
  %v159 = vunpack.c.l.b16 %v56
  %v160 = vpack.c.b16 %v125, %v124
  %v161 = vpack.c.b16 %v127, %v126
  %v162 = vpack.c.b16 %v129, %v128
  %v163 = vpack.c.b16 %v131, %v130
  %v164 = vpack.c.b16 %v133, %v132
  %v165 = vpack.c.b16 %v135, %v134
  %v166 = vpack.c.b16 %v137, %v136
  %v167 = vpack.c.b16 %v139, %v138
  %v168 = vpack.c.b16 %v141, %v140
  %v169 = vpack.c.b16 %v143, %v142
  %v170 = vpack.c.b16 %v145, %v144
  %v171 = vpack.c.b16 %v147, %v146
  %v172 = vpack.c.b16 %v149, %v148
  %v173 = vpack.c.b16 %v151, %v150
  %v174 = vpack.c.b16 %v153, %v152
  %v175 = vpack.c.b16 %v155, %v154
  %v176 = vpack.c.b16 %v157, %v156
  %v177 = vpack.c.b16 %v159, %v158
  %vm196 = vcmask 261120
  %v198 = vsel %vm196, %v85, 0
  %200 = vmatpush.bf16.msra.mxu0 %v167
  %201 = vmatpush.bf16.msra.mxu0 %v166
  %202 = vmatpush.bf16.msra.mxu0 %v165
  %203 = vmatpush.bf16.msra.mxu0 %v164
  %204 = vmatpush.bf16.msra.mxu0 %v163
  %205 = vmatpush.bf16.msra.mxu0 %v162
  %206 = vmatpush.bf16.msra.mxu0 %v161
  %207 = vmatpush.bf16.msra.mxu0 %v160
  %208 = vmatmul.bf16.gmra.mxu0 %v83
  %v209 = vpop.f32.mrf.mxu0
  %v210 = vadd.f32 %v66, %v209
  %v211 = vpop.f32.mrf.mxu0
  %v212 = vadd.f32 %v71, %v211
  %213 = vdwg.mxu0
  %214 = vmatpush.bf16.msra.mxu0 %v175
  %215 = vmatpush.bf16.msra.mxu0 %v174
  %216 = vmatpush.bf16.msra.mxu0 %v173
  %217 = vmatpush.bf16.msra.mxu0 %v172
  %218 = vmatpush.bf16.msra.mxu0 %v171
  %219 = vmatpush.bf16.msra.mxu0 %v170
  %220 = vmatpush.bf16.msra.mxu0 %v169
  %221 = vmatpush.bf16.msra.mxu0 %v168
  %222 = vmatmul.bf16.gmra.mxu0 %v84
  %v223 = vpop.f32.mrf.mxu0
  %v224 = vadd.f32 %v210, %v223
  %v225 = vpop.f32.mrf.mxu0
  %v226 = vadd.f32 %v212, %v225
  %227 = vdwg.mxu0
  %228 = vmatpush.bf16.msra.mxu0 0
  %229 = vmatpush.bf16.msra.mxu0 0
  %230 = vmatpush.bf16.msra.mxu0 0
  %231 = vmatpush.bf16.msra.mxu0 0
  %232 = vmatpush.bf16.msra.mxu0 0
  %233 = vmatpush.bf16.msra.mxu0 0
  %234 = vmatpush.bf16.msra.mxu0 %v177
  %235 = vmatpush.bf16.msra.mxu0 %v176
  %236 = vmatmul.bf16.gmra.mxu0 %v198
  %v237 = vpop.f32.mrf.mxu0
  %v238 = vadd.f32 %v224, %v237
  %v239 = vpop.f32.mrf.mxu0
  %v240 = vadd.f32 %v226, %v239
  %241 = vdwg.mxu0
  %242 = vadd.xlane.f32.xlu0 %v238
  %v243 = vpop.xlane.xlu0 %242
  %244 = vadd.xlane.f32.xlu0 %v240
  %v245 = vpop.xlane.xlu0 %244
  %v246 = vadd.f32 %v243, 0.0
  %v247 = vadd.f32 %v245, 0.0
  %v248 = vmul.f32 %v238, %v238
  %v249 = vmul.f32 %v240, %v240
  %250 = vadd.xlane.f32.xlu0 %v248
  %v251 = vpop.xlane.xlu0 %250
  %252 = vadd.xlane.f32.xlu0 %v249
  %v253 = vpop.xlane.xlu0 %252
  %v254 = vadd.f32 %v251, 0.0
  %v255 = vadd.f32 %v253, 0.0
  %s256 = scalar_lea.vmem %s0, 24
  %v257 = vld [vmem:[%s256] sm:$0xff]
  %v258 = vld [vmem:[%s256 + $0x8] sm:$0xf]
  %v259 = vld [vmem:[%s256 + $0xc] sm:$0xff]
  %v260 = vld [vmem:[%s256 + $0x14] sm:$0xf]
  %v265 = vunpack.c.l.b16 %v257
  %v266 = vunpack.c.h.b16 %v257
  %v267 = vunpack.c.l.b16 %v258
  %v268 = vunpack.c.l.b16 %v259
  %v269 = vunpack.c.h.b16 %v259
  %v270 = vunpack.c.l.b16 %v260
  %v271 = vpack.c.b16 %v268, %v265
  %v272 = vpack.c.b16 %v269, %v266
  %v273 = vpack.c.b16 %v270, %v267
  %v277 = vsel %vm196, %v273, 0
  %279 = vmatpush.bf16.msra.mxu0 %v167
  %280 = vmatpush.bf16.msra.mxu0 %v166
  %281 = vmatpush.bf16.msra.mxu0 %v165
  %282 = vmatpush.bf16.msra.mxu0 %v164
  %283 = vmatpush.bf16.msra.mxu0 %v163
  %284 = vmatpush.bf16.msra.mxu0 %v162
  %285 = vmatpush.bf16.msra.mxu0 %v161
  %286 = vmatpush.bf16.msra.mxu0 %v160
  %287 = vmatmul.bf16.gmra.mxu0 %v271
  %v288 = vpop.f32.mrf.mxu0
  %v289 = vadd.f32 %v66, %v288
  %v290 = vpop.f32.mrf.mxu0
  %v291 = vadd.f32 %v71, %v290
  %292 = vdwg.mxu0
  %293 = vmatpush.bf16.msra.mxu0 %v175
  %294 = vmatpush.bf16.msra.mxu0 %v174
  %295 = vmatpush.bf16.msra.mxu0 %v173
  %296 = vmatpush.bf16.msra.mxu0 %v172
  %297 = vmatpush.bf16.msra.mxu0 %v171
  %298 = vmatpush.bf16.msra.mxu0 %v170
  %299 = vmatpush.bf16.msra.mxu0 %v169
  %300 = vmatpush.bf16.msra.mxu0 %v168
  %301 = vmatmul.bf16.gmra.mxu0 %v272
  %v302 = vpop.f32.mrf.mxu0
  %v303 = vadd.f32 %v289, %v302
  %v304 = vpop.f32.mrf.mxu0
  %v305 = vadd.f32 %v291, %v304
  %306 = vdwg.mxu0
  %307 = vmatpush.bf16.msra.mxu0 0
  %308 = vmatpush.bf16.msra.mxu0 0
  %309 = vmatpush.bf16.msra.mxu0 0
  %310 = vmatpush.bf16.msra.mxu0 0
  %311 = vmatpush.bf16.msra.mxu0 0
  %312 = vmatpush.bf16.msra.mxu0 0
  %313 = vmatpush.bf16.msra.mxu0 %v177
  %314 = vmatpush.bf16.msra.mxu0 %v176
  %315 = vmatmul.bf16.gmra.mxu0 %v277
  %v316 = vpop.f32.mrf.mxu0
  %v317 = vadd.f32 %v303, %v316
  %v318 = vpop.f32.mrf.mxu0
  %v319 = vadd.f32 %v305, %v318
  %320 = vdwg.mxu0
  %321 = vadd.xlane.f32.xlu0 %v317
  %v322 = vpop.xlane.xlu0 %321
  %323 = vadd.xlane.f32.xlu0 %v319
  %v324 = vpop.xlane.xlu0 %323
  %v325 = vadd.f32 %v246, %v322
  %v326 = vadd.f32 %v247, %v324
  %v327 = vmul.f32 %v317, %v317
  %v328 = vmul.f32 %v319, %v319
  %329 = vadd.xlane.f32.xlu0 %v327
  %v330 = vpop.xlane.xlu0 %329
  %331 = vadd.xlane.f32.xlu0 %v328
  %v332 = vpop.xlane.xlu0 %331
  %v333 = vadd.f32 %v254, %v330
  %v334 = vadd.f32 %v255, %v332
  %s335 = scalar_lea.vmem %s0, 48
  %v336 = vld [vmem:[%s335] sm:$0xff]
  %v337 = vld [vmem:[%s335 + $0x8] sm:$0xf]
  %v338 = vld [vmem:[%s335 + $0xc] sm:$0xff]
  %v339 = vld [vmem:[%s335 + $0x14] sm:$0xf]
  %v344 = vunpack.c.l.b16 %v336
  %v345 = vunpack.c.h.b16 %v336
  %v346 = vunpack.c.l.b16 %v337
  %v347 = vunpack.c.l.b16 %v338
  %v348 = vunpack.c.h.b16 %v338
  %v349 = vunpack.c.l.b16 %v339
  %v350 = vpack.c.b16 %v347, %v344
  %v351 = vpack.c.b16 %v348, %v345
  %v352 = vpack.c.b16 %v349, %v346
  %v356 = vsel %vm196, %v352, 0
  %358 = vmatpush.bf16.msra.mxu0 %v167
  %359 = vmatpush.bf16.msra.mxu0 %v166
  %360 = vmatpush.bf16.msra.mxu0 %v165
  %361 = vmatpush.bf16.msra.mxu0 %v164
  %362 = vmatpush.bf16.msra.mxu0 %v163
  %363 = vmatpush.bf16.msra.mxu0 %v162
  %364 = vmatpush.bf16.msra.mxu0 %v161
  %365 = vmatpush.bf16.msra.mxu0 %v160
  %366 = vmatmul.bf16.gmra.mxu0 %v350
  %v367 = vpop.f32.mrf.mxu0
  %v368 = vadd.f32 %v66, %v367
  %v369 = vpop.f32.mrf.mxu0
  %v370 = vadd.f32 %v71, %v369
  %371 = vdwg.mxu0
  %372 = vmatpush.bf16.msra.mxu0 %v175
  %373 = vmatpush.bf16.msra.mxu0 %v174
  %374 = vmatpush.bf16.msra.mxu0 %v173
  %375 = vmatpush.bf16.msra.mxu0 %v172
  %376 = vmatpush.bf16.msra.mxu0 %v171
  %377 = vmatpush.bf16.msra.mxu0 %v170
  %378 = vmatpush.bf16.msra.mxu0 %v169
  %379 = vmatpush.bf16.msra.mxu0 %v168
  %380 = vmatmul.bf16.gmra.mxu0 %v351
  %v381 = vpop.f32.mrf.mxu0
  %v382 = vadd.f32 %v368, %v381
  %v383 = vpop.f32.mrf.mxu0
  %v384 = vadd.f32 %v370, %v383
  %385 = vdwg.mxu0
  %386 = vmatpush.bf16.msra.mxu0 0
  %387 = vmatpush.bf16.msra.mxu0 0
  %388 = vmatpush.bf16.msra.mxu0 0
  %389 = vmatpush.bf16.msra.mxu0 0
  %390 = vmatpush.bf16.msra.mxu0 0
  %391 = vmatpush.bf16.msra.mxu0 0
  %392 = vmatpush.bf16.msra.mxu0 %v177
  %393 = vmatpush.bf16.msra.mxu0 %v176
  %394 = vmatmul.bf16.gmra.mxu0 %v356
  %v395 = vpop.f32.mrf.mxu0
  %v396 = vadd.f32 %v382, %v395
  %v397 = vpop.f32.mrf.mxu0
  %v398 = vadd.f32 %v384, %v397
  %399 = vdwg.mxu0
  %400 = vadd.xlane.f32.xlu0 %v396
  %v401 = vpop.xlane.xlu0 %400
  %402 = vadd.xlane.f32.xlu0 %v398
  %v403 = vpop.xlane.xlu0 %402
  %v404 = vadd.f32 %v325, %v401
  %v405 = vadd.f32 %v326, %v403
  %v406 = vmul.f32 %v396, %v396
  %v407 = vmul.f32 %v398, %v398
  %408 = vadd.xlane.f32.xlu0 %v406
  %v409 = vpop.xlane.xlu0 %408
  %410 = vadd.xlane.f32.xlu0 %v407
  %v411 = vpop.xlane.xlu0 %410
  %v412 = vadd.f32 %v333, %v409
  %v413 = vadd.f32 %v334, %v411
  %s414 = scalar_lea.vmem %s0, 72
  %v415 = vld [vmem:[%s414] sm:$0xff]
  %v416 = vld [vmem:[%s414 + $0x8] sm:$0xf]
  %v417 = vld [vmem:[%s414 + $0xc] sm:$0xff]
  %v418 = vld [vmem:[%s414 + $0x14] sm:$0xf]
  %v423 = vunpack.c.l.b16 %v415
  %v424 = vunpack.c.h.b16 %v415
  %v425 = vunpack.c.l.b16 %v416
  %v426 = vunpack.c.l.b16 %v417
  %v427 = vunpack.c.h.b16 %v417
  %v428 = vunpack.c.l.b16 %v418
  %v429 = vpack.c.b16 %v426, %v423
  %v430 = vpack.c.b16 %v427, %v424
  %v431 = vpack.c.b16 %v428, %v425
  %v435 = vsel %vm196, %v431, 0
  %437 = vmatpush.bf16.msra.mxu0 %v167
  %438 = vmatpush.bf16.msra.mxu0 %v166
  %439 = vmatpush.bf16.msra.mxu0 %v165
  %440 = vmatpush.bf16.msra.mxu0 %v164
  %441 = vmatpush.bf16.msra.mxu0 %v163
  %442 = vmatpush.bf16.msra.mxu0 %v162
  %443 = vmatpush.bf16.msra.mxu0 %v161
  %444 = vmatpush.bf16.msra.mxu0 %v160
  %445 = vmatmul.bf16.gmra.mxu0 %v429
  %v446 = vpop.f32.mrf.mxu0
  %v447 = vadd.f32 %v66, %v446
  %v448 = vpop.f32.mrf.mxu0
  %v449 = vadd.f32 %v71, %v448
  %450 = vdwg.mxu0
  %451 = vmatpush.bf16.msra.mxu0 %v175
  %452 = vmatpush.bf16.msra.mxu0 %v174
  %453 = vmatpush.bf16.msra.mxu0 %v173
  %454 = vmatpush.bf16.msra.mxu0 %v172
  %455 = vmatpush.bf16.msra.mxu0 %v171
  %456 = vmatpush.bf16.msra.mxu0 %v170
  %457 = vmatpush.bf16.msra.mxu0 %v169
  %458 = vmatpush.bf16.msra.mxu0 %v168
  %459 = vmatmul.bf16.gmra.mxu0 %v430
  %v460 = vpop.f32.mrf.mxu0
  %v461 = vadd.f32 %v447, %v460
  %v462 = vpop.f32.mrf.mxu0
  %v463 = vadd.f32 %v449, %v462
  %464 = vdwg.mxu0
  %465 = vmatpush.bf16.msra.mxu0 0
  %466 = vmatpush.bf16.msra.mxu0 0
  %467 = vmatpush.bf16.msra.mxu0 0
  %468 = vmatpush.bf16.msra.mxu0 0
  %469 = vmatpush.bf16.msra.mxu0 0
  %470 = vmatpush.bf16.msra.mxu0 0
  %471 = vmatpush.bf16.msra.mxu0 %v177
  %472 = vmatpush.bf16.msra.mxu0 %v176
  %473 = vmatmul.bf16.gmra.mxu0 %v435
  %v474 = vpop.f32.mrf.mxu0
  %v475 = vadd.f32 %v461, %v474
  %v476 = vpop.f32.mrf.mxu0
  %v477 = vadd.f32 %v463, %v476
  %478 = vdwg.mxu0
  %479 = vadd.xlane.f32.xlu0 %v475
  %v480 = vpop.xlane.xlu0 %479
  %481 = vadd.xlane.f32.xlu0 %v477
  %v482 = vpop.xlane.xlu0 %481
  %v483 = vadd.f32 %v404, %v480
  %v484 = vadd.f32 %v405, %v482
  %v485 = vmul.f32 %v475, %v475
  %v486 = vmul.f32 %v477, %v477
  %487 = vadd.xlane.f32.xlu0 %v485
  %v488 = vpop.xlane.xlu0 %487
  %489 = vadd.xlane.f32.xlu0 %v486
  %v490 = vpop.xlane.xlu0 %489
  %v491 = vadd.f32 %v412, %v488
  %v492 = vadd.f32 %v413, %v490
  %v493 = vrcp.pop 512.0
  %v494 = vmul.f32 512.0, %v493
  %v495 = vsub.f32 1.0, %v494
  %v496 = vmul.f32 %v493, %v495
  %v497 = vadd.f32 %v493, %v496
  %vm498 = vweird.f32 %v493
  %v499 = vsel %vm498, %v493, %v497
  %v500 = vmul.f32 %v483, %v499
  %v501 = vmul.f32 %v484, %v499
  %v502 = vmul.f32 %v491, %v499
  %v503 = vmul.f32 %v492, %v499
  %v504 = vmul.f32 %v500, %v500
  %v505 = vmul.f32 %v501, %v501
  %v506 = vsub.f32 %v502, %v504
  %v507 = vsub.f32 %v503, %v505
  %v508 = vld [vmem:[%s3] sm:$0xff]
  %v509 = vld [vmem:[%s3 + $0x8] sm:$0xff]
  %v510 = vadd.f32 %v506, 1e-05
  %v511 = vadd.f32 %v507, 1e-05
  %v512 = vrsqrt.pop %v510
  %v513 = vmul.f32 %v512, %v510
  %v514 = vmul.f32 %v513, %v512
  %v515 = vmul.f32 0.5, %v514
  %v516 = vsub.f32 1.5, %v515
  %v517 = vmul.f32 %v512, %v516
  %v518 = vmul.f32 %v510, %v517
  %vm519 = vcmp.eq.f32.partialorder %v510, inf
  %v520 = vsel %vm519, %v510, %v518
  %vm521 = vcmp.eq.f32.partialorder %v510, 0.0
  %v522 = vand.u32 %v510, 2147483648
  %v523 = vsel %vm521, %v522, %v520
  %v524 = vrsqrt.pop %v511
  %v525 = vmul.f32 %v524, %v511
  %v526 = vmul.f32 %v525, %v524
  %v527 = vmul.f32 0.5, %v526
  %v528 = vsub.f32 1.5, %v527
  %v529 = vmul.f32 %v524, %v528
  %v530 = vmul.f32 %v511, %v529
  %vm531 = vcmp.eq.f32.partialorder %v511, inf
  %v532 = vsel %vm531, %v511, %v530
  %vm533 = vcmp.eq.f32.partialorder %v511, 0.0
  %v534 = vand.u32 %v511, 2147483648
  %v535 = vsel %vm533, %v534, %v532
  %v536 = vrcp.pop %v523
  %v537 = vmul.f32 %v523, %v536
  %v538 = vsub.f32 1.0, %v537
  %v539 = vmul.f32 %v536, %v538
  %v540 = vadd.f32 %v536, %v539
  %vm541 = vweird.f32 %v523
  %vm542 = vweird.f32 %v536
  %vm543 = vmor %vm541, %vm542
  %v544 = vsel %vm543, %v536, %v540
  %v545 = vand.u32 2147483647, %v523
  %vm546 = vcmp.eq.f32.partialorder %v545, 8.507059e+37
  %v547 = vand.u32 %v523, 2147483648
  %v548 = vor.u32 1.1754944e-38, %v547
  %v549 = vsel %vm546, %v548, %v544
  %v550 = vmul.f32 %v508, %v549
  %v551 = vrcp.pop %v535
  %v552 = vmul.f32 %v535, %v551
  %v553 = vsub.f32 1.0, %v552
  %v554 = vmul.f32 %v551, %v553
  %v555 = vadd.f32 %v551, %v554
  %vm556 = vweird.f32 %v535
  %vm557 = vweird.f32 %v551
  %vm558 = vmor %vm556, %vm557
  %v559 = vsel %vm558, %v551, %v555
  %v560 = vand.u32 2147483647, %v535
  %vm561 = vcmp.eq.f32.partialorder %v560, 8.507059e+37
  %v562 = vand.u32 %v535, 2147483648
  %v563 = vor.u32 1.1754944e-38, %v562
  %v564 = vsel %vm561, %v563, %v559
  %v565 = vmul.f32 %v509, %v564
  %v566 = vld [vmem:[%s4] sm:$0xff]
  %v567 = vld [vmem:[%s4 + $0x8] sm:$0xff]
  %v568 = vmul.f32 %v500, %v550
  %v569 = vmul.f32 %v501, %v565
  %v570 = vsub.f32 %v566, %v568
  %v571 = vsub.f32 %v567, %v569
  %573 = vset.pattern.permute.xlu0 0
  %574 = vperm.xlu0 %573, %v550
  %v575 = vpop.permute.xlu0 %574
  %578 = vset.pattern.permute.xlu0 0
  %579 = vperm.xlu0 %578, %v565
  %v580 = vpop.permute.xlu0 %579
  %v582 = vmul.f32 %v238, %v575
  %v583 = vmul.f32 %v240, %v580
  %585 = vset.pattern.permute.xlu0 0
  %586 = vperm.xlu0 %585, %v570
  %v587 = vpop.permute.xlu0 %586
  %590 = vset.pattern.permute.xlu0 0
  %591 = vperm.xlu0 %590, %v571
  %v592 = vpop.permute.xlu0 %591
  %v594 = vadd.f32 %v582, %v587
  %v595 = vadd.f32 %v583, %v592
  %v596 = vmax.f32 %v594, 0.0
  %v597 = vmax.f32 %v595, 0.0
  %598 = vst [vmem:[%s5] sm:$0xff] %v596
  %599 = vst [vmem:[%s5 + $0x8] sm:$0xff] %v597
  %v600 = vmul.f32 %v317, %v575
  %v601 = vmul.f32 %v319, %v580
  %v602 = vadd.f32 %v600, %v587
  %v603 = vadd.f32 %v601, %v592
  %v604 = vmax.f32 %v602, 0.0
  %v605 = vmax.f32 %v603, 0.0
  %s606 = scalar_lea.vmem %s5, 16
  %607 = vst [vmem:[%s606] sm:$0xff] %v604
  %608 = vst [vmem:[%s606 + $0x8] sm:$0xff] %v605
  %v609 = vmul.f32 %v396, %v575
  %v610 = vmul.f32 %v398, %v580
  %v611 = vadd.f32 %v609, %v587
  %v612 = vadd.f32 %v610, %v592
  %v613 = vmax.f32 %v611, 0.0
  %v614 = vmax.f32 %v612, 0.0
  %s615 = scalar_lea.vmem %s5, 32
  %616 = vst [vmem:[%s615] sm:$0xff] %v613
  %617 = vst [vmem:[%s615 + $0x8] sm:$0xff] %v614
  %v618 = vmul.f32 %v475, %v575
  %v619 = vmul.f32 %v477, %v580
  %v620 = vadd.f32 %v618, %v587
  %v621 = vadd.f32 %v619, %v592
  %v622 = vmax.f32 %v620, 0.0
  %v623 = vmax.f32 %v621, 0.0
  %s624 = scalar_lea.vmem %s5, 48
  %625 = vst [vmem:[%s624] sm:$0xff] %v622
  %626 = vst [vmem:[%s624 + $0x8] sm:$0xff] %v623
  // Predicated region
  $region22: #{vae_forward.15} parent=0 // pred_check
    _
  $region23: #{vae_forward.15} parent=0 // pred_check_branch
    %628 = sbr.rel (0) target = $region25
  $region24: #{vae_forward.15} parent=0 // pred_region
    _
  $region25: #{vae_forward.15} parent=0 // pred_fallthru
    _
  // Predicated region
  $region26: #{vae_forward.15} parent=0 // pred_check
    _
  $region27: #{vae_forward.15} parent=0 // pred_check_branch
    %630 = sbr.rel (0) target = $region29
  $region28: #{vae_forward.15} parent=0 // pred_region
    _
  $region29: #{vae_forward.15} parent=0 // pred_fallthru
    _

// kernel: vae_forward.16
$region0: #{vae_forward.16}
  #allocation0 [shape = 'u32[]', space=smem, size = 0x4, offset = 0x4, fixed_abs, tag = 'smem constant byte address 0x4 - core index']
  #allocation1 [shape = 'u32[72,128]{1,0:T(1,128)}', space=vmem, size = 0x9000, scoped, tag = 'internal scratch']
  %s0 = inlined_call_operand.vmem [shape: bf16[4,8,144], index: 0, kind: input, shape index: {}]
  %s1 = inlined_call_operand.vmem [shape: bf16[144,512], index: 1, kind: input, shape index: {}]
  %s2 = inlined_call_operand.vmem [shape: f32[8,1], index: 2, kind: input, shape index: {}]
  %s3 = inlined_call_operand.vmem [shape: f32[8,1], index: 3, kind: input, shape index: {}]
  %s4 = inlined_call_operand.vmem [shape: f32[8,1], index: 4, kind: input, shape index: {}]
  %s5 = inlined_call_operand.vmem [shape: f32[4,8,512], index: 5, kind: output, shape index: {}]
  %s6 = sld [smem:[#allocation0]]
  $region30: #{vae_forward.16} parent=0
    _
  %s8 = ssub.s32 1, %s6
  %s9 = scalar_select 0, %s8, %s6
  // Predicated region
  $region2: #{vae_forward.16} parent=0 // pred_check
    _
  $region3: #{vae_forward.16} parent=0 // pred_check_branch
    %11 = sbr.rel (0) target = $region5
  $region4: #{vae_forward.16} parent=0 // pred_region
    _
  $region5: #{vae_forward.16} parent=0 // pred_fallthru
    _
  // Predicated region
  $region6: #{vae_forward.16} parent=0 // pred_check
    _
  $region7: #{vae_forward.16} parent=0 // pred_check_branch
    %13 = sbr.rel (0) target = $region9
  $region8: #{vae_forward.16} parent=0 // pred_region
    _
  $region9: #{vae_forward.16} parent=0 // pred_fallthru
    _
  // Predicated region
  $region10: #{vae_forward.16} parent=0 // pred_check
    _
  $region11: #{vae_forward.16} parent=0 // pred_check_branch
    %15 = sbr.rel (0) target = $region13
  $region12: #{vae_forward.16} parent=0 // pred_region
    _
  $region13: #{vae_forward.16} parent=0 // pred_fallthru
    _
  // Predicated region
  $region14: #{vae_forward.16} parent=0 // pred_check
    _
  $region15: #{vae_forward.16} parent=0 // pred_check_branch
    %17 = sbr.rel (0) target = $region17
  $region16: #{vae_forward.16} parent=0 // pred_region
    _
  $region17: #{vae_forward.16} parent=0 // pred_fallthru
    _
  // Predicated region
  $region18: #{vae_forward.16} parent=0 // pred_check
    _
  $region19: #{vae_forward.16} parent=0 // pred_check_branch
    %19 = sbr.rel (0) target = $region21
  $region20: #{vae_forward.16} parent=0 // pred_region
    _
  $region21: #{vae_forward.16} parent=0 // pred_fallthru
    _
  %v21 = vld [vmem:[%s1] sm:$0xff]
  %v22 = vld [vmem:[%s1 + $0x8] sm:$0xff]
  %v23 = vld [vmem:[%s1 + $0x10] sm:$0xff]
  %v24 = vld [vmem:[%s1 + $0x18] sm:$0xff]
  %v25 = vld [vmem:[%s1 + $0x20] sm:$0xff]
  %v26 = vld [vmem:[%s1 + $0x28] sm:$0xff]
  %v27 = vld [vmem:[%s1 + $0x30] sm:$0xff]
  %v28 = vld [vmem:[%s1 + $0x38] sm:$0xff]
  %v29 = vld [vmem:[%s1 + $0x40] sm:$0xff]
  %v30 = vld [vmem:[%s1 + $0x48] sm:$0xff]
  %v31 = vld [vmem:[%s1 + $0x50] sm:$0xff]
  %v32 = vld [vmem:[%s1 + $0x58] sm:$0xff]
  %v33 = vld [vmem:[%s1 + $0x60] sm:$0xff]
  %v34 = vld [vmem:[%s1 + $0x68] sm:$0xff]
  %v35 = vld [vmem:[%s1 + $0x70] sm:$0xff]
  %v36 = vld [vmem:[%s1 + $0x78] sm:$0xff]
  %v37 = vld [vmem:[%s1 + $0x80] sm:$0xff]
  %v38 = vld [vmem:[%s1 + $0x88] sm:$0xff]
  %v39 = vld [vmem:[%s1 + $0x90] sm:$0xff]
  %v40 = vld [vmem:[%s1 + $0x98] sm:$0xff]
  %v41 = vld [vmem:[%s1 + $0xa0] sm:$0xff]
  %v42 = vld [vmem:[%s1 + $0xa8] sm:$0xff]
  %v43 = vld [vmem:[%s1 + $0xb0] sm:$0xff]
  %v44 = vld [vmem:[%s1 + $0xb8] sm:$0xff]
  %v45 = vld [vmem:[%s1 + $0xc0] sm:$0xff]
  %v46 = vld [vmem:[%s1 + $0xc8] sm:$0xff]
  %v47 = vld [vmem:[%s1 + $0xd0] sm:$0xff]
  %v48 = vld [vmem:[%s1 + $0xd8] sm:$0xff]
  %v49 = vld [vmem:[%s1 + $0xe0] sm:$0xff]
  %v50 = vld [vmem:[%s1 + $0xe8] sm:$0xff]
  %v51 = vld [vmem:[%s1 + $0xf0] sm:$0xff]
  %v52 = vld [vmem:[%s1 + $0xf8] sm:$0xff]
  %v53 = vld [vmem:[%s1 + $0x100] sm:$0xff]
  %v54 = vld [vmem:[%s1 + $0x108] sm:$0xff]
  %v55 = vld [vmem:[%s1 + $0x110] sm:$0xff]
  %v56 = vld [vmem:[%s1 + $0x118] sm:$0xff]
  %v57 = vld [vmem:[%s2] sm:$0xff]
  %v58 = vld [vmem:[%s0] sm:$0xff]
  %60 = vset.pattern.permute.xlu0 0
  %61 = vperm.xlu0 %60, %v57
  %v62 = vpop.permute.xlu0 %61
  %v65 = vunpack.c.l.b16 %v58
  %v66 = vunpack.c.h.b16 %v58
  %v67 = vpack.c.b16 %v65, %v65
  %v68 = vpack.c.b16 %v66, %v66
  %v106 = vunpack.c.l.b16 %v21
  %v107 = vunpack.c.h.b16 %v21
  %v108 = vunpack.c.l.b16 %v22
  %v109 = vunpack.c.h.b16 %v22
  %v110 = vunpack.c.l.b16 %v23
  %v111 = vunpack.c.h.b16 %v23
  %v112 = vunpack.c.l.b16 %v24
  %v113 = vunpack.c.h.b16 %v24
  %v114 = vunpack.c.l.b16 %v25
  %v115 = vunpack.c.h.b16 %v25
  %v116 = vunpack.c.l.b16 %v26
  %v117 = vunpack.c.h.b16 %v26
  %v118 = vunpack.c.l.b16 %v27
  %v119 = vunpack.c.h.b16 %v27
  %v120 = vunpack.c.l.b16 %v28
  %v121 = vunpack.c.h.b16 %v28
  %v122 = vunpack.c.l.b16 %v29
  %v123 = vunpack.c.h.b16 %v29
  %v124 = vunpack.c.l.b16 %v30
  %v125 = vunpack.c.h.b16 %v30
  %v126 = vunpack.c.l.b16 %v31
  %v127 = vunpack.c.h.b16 %v31
  %v128 = vunpack.c.l.b16 %v32
  %v129 = vunpack.c.h.b16 %v32
  %v130 = vunpack.c.l.b16 %v33
  %v131 = vunpack.c.h.b16 %v33
  %v132 = vunpack.c.l.b16 %v34
  %v133 = vunpack.c.h.b16 %v34
  %v134 = vunpack.c.l.b16 %v35
  %v135 = vunpack.c.h.b16 %v35
  %v136 = vunpack.c.l.b16 %v36
  %v137 = vunpack.c.h.b16 %v36
  %v138 = vunpack.c.l.b16 %v37
  %v139 = vunpack.c.h.b16 %v37
  %v140 = vunpack.c.l.b16 %v38
  %v141 = vunpack.c.h.b16 %v38
  %v142 = vunpack.c.l.b16 %v39
  %v143 = vunpack.c.h.b16 %v39
  %v144 = vunpack.c.l.b16 %v40
  %v145 = vunpack.c.h.b16 %v40
  %v146 = vunpack.c.l.b16 %v41
  %v147 = vunpack.c.h.b16 %v41
  %v148 = vunpack.c.l.b16 %v42
  %v149 = vunpack.c.h.b16 %v42
  %v150 = vunpack.c.l.b16 %v43
  %v151 = vunpack.c.h.b16 %v43
  %v152 = vunpack.c.l.b16 %v44
  %v153 = vunpack.c.h.b16 %v44
  %v154 = vunpack.c.l.b16 %v45
  %v155 = vunpack.c.h.b16 %v45
  %v156 = vunpack.c.l.b16 %v46
  %v157 = vunpack.c.h.b16 %v46
  %v158 = vunpack.c.l.b16 %v47
  %v159 = vunpack.c.h.b16 %v47
  %v160 = vunpack.c.l.b16 %v48
  %v161 = vunpack.c.h.b16 %v48
  %v162 = vunpack.c.l.b16 %v49
  %v163 = vunpack.c.h.b16 %v49
  %v164 = vunpack.c.l.b16 %v50
  %v165 = vunpack.c.h.b16 %v50
  %v166 = vunpack.c.l.b16 %v51
  %v167 = vunpack.c.h.b16 %v51
  %v168 = vunpack.c.l.b16 %v52
  %v169 = vunpack.c.h.b16 %v52
  %v170 = vunpack.c.l.b16 %v53
  %v171 = vunpack.c.h.b16 %v53
  %v172 = vunpack.c.l.b16 %v54
  %v173 = vunpack.c.h.b16 %v54
  %v174 = vunpack.c.l.b16 %v55
  %v175 = vunpack.c.h.b16 %v55
  %v176 = vunpack.c.l.b16 %v56
  %v177 = vunpack.c.h.b16 %v56
  %v178 = vpack.c.b16 %v110, %v106
  %v179 = vpack.c.b16 %v111, %v107
  %v180 = vpack.c.b16 %v112, %v108
  %v181 = vpack.c.b16 %v113, %v109
  %v182 = vpack.c.b16 %v118, %v114
  %v183 = vpack.c.b16 %v119, %v115
  %v184 = vpack.c.b16 %v120, %v116
  %v185 = vpack.c.b16 %v121, %v117
  %v186 = vpack.c.b16 %v126, %v122
  %v187 = vpack.c.b16 %v127, %v123
  %v188 = vpack.c.b16 %v128, %v124
  %v189 = vpack.c.b16 %v129, %v125
  %v190 = vpack.c.b16 %v134, %v130
  %v191 = vpack.c.b16 %v135, %v131
  %v192 = vpack.c.b16 %v136, %v132
  %v193 = vpack.c.b16 %v137, %v133
  %v194 = vpack.c.b16 %v142, %v138
  %v195 = vpack.c.b16 %v143, %v139
  %v196 = vpack.c.b16 %v144, %v140
  %v197 = vpack.c.b16 %v145, %v141
  %v198 = vpack.c.b16 %v150, %v146
  %v199 = vpack.c.b16 %v151, %v147
  %v200 = vpack.c.b16 %v152, %v148
  %v201 = vpack.c.b16 %v153, %v149
  %v202 = vpack.c.b16 %v158, %v154
  %v203 = vpack.c.b16 %v159, %v155
  %v204 = vpack.c.b16 %v160, %v156
  %v205 = vpack.c.b16 %v161, %v157
  %v206 = vpack.c.b16 %v166, %v162
  %v207 = vpack.c.b16 %v167, %v163
  %v208 = vpack.c.b16 %v168, %v164
  %v209 = vpack.c.b16 %v169, %v165
  %v210 = vpack.c.b16 %v174, %v170
  %v211 = vpack.c.b16 %v175, %v171
  %v212 = vpack.c.b16 %v176, %v172
  %v213 = vpack.c.b16 %v177, %v173
  %vm250 = vcmask 130048
  %v252 = vsel %vm250, %v68, 0
  %254 = vmatpush.bf16.msra.mxu0 %v206
  %255 = vmatpush.bf16.msra.mxu0 %v202
  %256 = vmatpush.bf16.msra.mxu0 %v198
  %257 = vmatpush.bf16.msra.mxu0 %v194
  %258 = vmatpush.bf16.msra.mxu0 %v190
  %259 = vmatpush.bf16.msra.mxu0 %v186
  %260 = vmatpush.bf16.msra.mxu0 %v182
  %261 = vmatpush.bf16.msra.mxu0 %v178
  %262 = vmatmul.bf16.gmra.mxu0 %v67
  %v263 = vpop.f32.mrf.mxu0
  %v264 = vadd.f32 %v62, %v263
  %v265 = vpop.f32.mrf.mxu0
  %266 = vdwg.mxu0
  %267 = vmatpush.bf16.msra.mxu0 0
  %268 = vmatpush.bf16.msra.mxu0 0
  %269 = vmatpush.bf16.msra.mxu0 0
  %270 = vmatpush.bf16.msra.mxu0 0
  %271 = vmatpush.bf16.msra.mxu0 0
  %272 = vmatpush.bf16.msra.mxu0 0
  %273 = vmatpush.bf16.msra.mxu0 0
  %274 = vmatpush.bf16.msra.mxu0 %v210
  %275 = vmatmul.bf16.gmra.mxu0 %v252
  %v276 = vpop.f32.mrf.mxu0
  %v277 = vadd.f32 %v264, %v276
  %v278 = vpop.f32.mrf.mxu0
  %279 = vdwg.mxu0
  %280 = vmatpush.bf16.msra.mxu0 %v207
  %281 = vmatpush.bf16.msra.mxu0 %v203
  %282 = vmatpush.bf16.msra.mxu0 %v199
  %283 = vmatpush.bf16.msra.mxu0 %v195
  %284 = vmatpush.bf16.msra.mxu0 %v191
  %285 = vmatpush.bf16.msra.mxu0 %v187
  %286 = vmatpush.bf16.msra.mxu0 %v183
  %287 = vmatpush.bf16.msra.mxu0 %v179
  %288 = vmatmul.bf16.gmra.mxu0 %v67
  %v289 = vpop.f32.mrf.mxu0
  %v290 = vadd.f32 %v62, %v289
  %v291 = vpop.f32.mrf.mxu0
  %292 = vdwg.mxu0
  %293 = vmatpush.bf16.msra.mxu0 0
  %294 = vmatpush.bf16.msra.mxu0 0
  %295 = vmatpush.bf16.msra.mxu0 0
  %296 = vmatpush.bf16.msra.mxu0 0
  %297 = vmatpush.bf16.msra.mxu0 0
  %298 = vmatpush.bf16.msra.mxu0 0
  %299 = vmatpush.bf16.msra.mxu0 0
  %300 = vmatpush.bf16.msra.mxu0 %v211
  %301 = vmatmul.bf16.gmra.mxu0 %v252
  %v302 = vpop.f32.mrf.mxu0
  %v303 = vadd.f32 %v290, %v302
  %v304 = vpop.f32.mrf.mxu0
  %305 = vdwg.mxu0
  %306 = vmatpush.bf16.msra.mxu0 %v208
  %307 = vmatpush.bf16.msra.mxu0 %v204
  %308 = vmatpush.bf16.msra.mxu0 %v200
  %309 = vmatpush.bf16.msra.mxu0 %v196
  %310 = vmatpush.bf16.msra.mxu0 %v192
  %311 = vmatpush.bf16.msra.mxu0 %v188
  %312 = vmatpush.bf16.msra.mxu0 %v184
  %313 = vmatpush.bf16.msra.mxu0 %v180
  %314 = vmatmul.bf16.gmra.mxu0 %v67
  %v315 = vpop.f32.mrf.mxu0
  %v316 = vadd.f32 %v62, %v315
  %v317 = vpop.f32.mrf.mxu0
  %318 = vdwg.mxu0
  %319 = vmatpush.bf16.msra.mxu0 0
  %320 = vmatpush.bf16.msra.mxu0 0
  %321 = vmatpush.bf16.msra.mxu0 0
  %322 = vmatpush.bf16.msra.mxu0 0
  %323 = vmatpush.bf16.msra.mxu0 0
  %324 = vmatpush.bf16.msra.mxu0 0
  %325 = vmatpush.bf16.msra.mxu0 0
  %326 = vmatpush.bf16.msra.mxu0 %v212
  %327 = vmatmul.bf16.gmra.mxu0 %v252
  %v328 = vpop.f32.mrf.mxu0
  %v329 = vadd.f32 %v316, %v328
  %v330 = vpop.f32.mrf.mxu0
  %331 = vdwg.mxu0
  %332 = vmatpush.bf16.msra.mxu0 %v209
  %333 = vmatpush.bf16.msra.mxu0 %v205
  %334 = vmatpush.bf16.msra.mxu0 %v201
  %335 = vmatpush.bf16.msra.mxu0 %v197
  %336 = vmatpush.bf16.msra.mxu0 %v193
  %337 = vmatpush.bf16.msra.mxu0 %v189
  %338 = vmatpush.bf16.msra.mxu0 %v185
  %339 = vmatpush.bf16.msra.mxu0 %v181
  %340 = vmatmul.bf16.gmra.mxu0 %v67
  %v341 = vpop.f32.mrf.mxu0
  %v342 = vadd.f32 %v62, %v341
  %v343 = vpop.f32.mrf.mxu0
  %344 = vdwg.mxu0
  %345 = vmatpush.bf16.msra.mxu0 0
  %346 = vmatpush.bf16.msra.mxu0 0
  %347 = vmatpush.bf16.msra.mxu0 0
  %348 = vmatpush.bf16.msra.mxu0 0
  %349 = vmatpush.bf16.msra.mxu0 0
  %350 = vmatpush.bf16.msra.mxu0 0
  %351 = vmatpush.bf16.msra.mxu0 0
  %352 = vmatpush.bf16.msra.mxu0 %v213
  %353 = vmatmul.bf16.gmra.mxu0 %v252
  %v354 = vpop.f32.mrf.mxu0
  %v355 = vadd.f32 %v342, %v354
  %v356 = vpop.f32.mrf.mxu0
  %357 = vdwg.mxu0
  %v358 = vadd.f32 %v277, %v303
  %v359 = vadd.f32 %v358, %v329
  %v360 = vadd.f32 %v359, %v355
  %361 = vadd.xlane.f32.xlu0 %v360
  %v362 = vpop.xlane.xlu0 %361
  %v363 = vadd.f32 %v362, 0.0
  %v364 = vmul.f32 %v277, %v277
  %v365 = vmul.f32 %v303, %v303
  %v366 = vmul.f32 %v329, %v329
  %v367 = vmul.f32 %v355, %v355
  %v368 = vadd.f32 %v364, %v365
  %v369 = vadd.f32 %v368, %v366
  %v370 = vadd.f32 %v369, %v367
  %371 = vadd.xlane.f32.xlu0 %v370
  %v372 = vpop.xlane.xlu0 %371
  %v373 = vadd.f32 %v372, 0.0
  %s374 = scalar_lea.vmem %s0, 8
  %v375 = vld [vmem:[%s374] sm:$0xff]
  %v377 = vunpack.c.l.b16 %v375
  %v378 = vunpack.c.h.b16 %v375
  %v379 = vpack.c.b16 %v377, %v377
  %v380 = vpack.c.b16 %v378, %v378
  %v383 = vsel %vm250, %v380, 0
  %385 = vmatpush.bf16.msra.mxu0 %v206
  %386 = vmatpush.bf16.msra.mxu0 %v202
  %387 = vmatpush.bf16.msra.mxu0 %v198
  %388 = vmatpush.bf16.msra.mxu0 %v194
  %389 = vmatpush.bf16.msra.mxu0 %v190
  %390 = vmatpush.bf16.msra.mxu0 %v186
  %391 = vmatpush.bf16.msra.mxu0 %v182
  %392 = vmatpush.bf16.msra.mxu0 %v178
  %393 = vmatmul.bf16.gmra.mxu0 %v379
  %v394 = vpop.f32.mrf.mxu0
  %v395 = vadd.f32 %v62, %v394
  %v396 = vpop.f32.mrf.mxu0
  %397 = vdwg.mxu0
  %398 = vmatpush.bf16.msra.mxu0 0
  %399 = vmatpush.bf16.msra.mxu0 0
  %400 = vmatpush.bf16.msra.mxu0 0
  %401 = vmatpush.bf16.msra.mxu0 0
  %402 = vmatpush.bf16.msra.mxu0 0
  %403 = vmatpush.bf16.msra.mxu0 0
  %404 = vmatpush.bf16.msra.mxu0 0
  %405 = vmatpush.bf16.msra.mxu0 %v210
  %406 = vmatmul.bf16.gmra.mxu0 %v383
  %v407 = vpop.f32.mrf.mxu0
  %v408 = vadd.f32 %v395, %v407
  %v409 = vpop.f32.mrf.mxu0
  %410 = vdwg.mxu0
  %411 = vmatpush.bf16.msra.mxu0 %v207
  %412 = vmatpush.bf16.msra.mxu0 %v203
  %413 = vmatpush.bf16.msra.mxu0 %v199
  %414 = vmatpush.bf16.msra.mxu0 %v195
  %415 = vmatpush.bf16.msra.mxu0 %v191
  %416 = vmatpush.bf16.msra.mxu0 %v187
  %417 = vmatpush.bf16.msra.mxu0 %v183
  %418 = vmatpush.bf16.msra.mxu0 %v179
  %419 = vmatmul.bf16.gmra.mxu0 %v379
  %v420 = vpop.f32.mrf.mxu0
  %v421 = vadd.f32 %v62, %v420
  %v422 = vpop.f32.mrf.mxu0
  %423 = vdwg.mxu0
  %424 = vmatpush.bf16.msra.mxu0 0
  %425 = vmatpush.bf16.msra.mxu0 0
  %426 = vmatpush.bf16.msra.mxu0 0
  %427 = vmatpush.bf16.msra.mxu0 0
  %428 = vmatpush.bf16.msra.mxu0 0
  %429 = vmatpush.bf16.msra.mxu0 0
  %430 = vmatpush.bf16.msra.mxu0 0
  %431 = vmatpush.bf16.msra.mxu0 %v211
  %432 = vmatmul.bf16.gmra.mxu0 %v383
  %v433 = vpop.f32.mrf.mxu0
  %v434 = vadd.f32 %v421, %v433
  %v435 = vpop.f32.mrf.mxu0
  %436 = vdwg.mxu0
  %437 = vmatpush.bf16.msra.mxu0 %v208
  %438 = vmatpush.bf16.msra.mxu0 %v204
  %439 = vmatpush.bf16.msra.mxu0 %v200
  %440 = vmatpush.bf16.msra.mxu0 %v196
  %441 = vmatpush.bf16.msra.mxu0 %v192
  %442 = vmatpush.bf16.msra.mxu0 %v188
  %443 = vmatpush.bf16.msra.mxu0 %v184
  %444 = vmatpush.bf16.msra.mxu0 %v180
  %445 = vmatmul.bf16.gmra.mxu0 %v379
  %v446 = vpop.f32.mrf.mxu0
  %v447 = vadd.f32 %v62, %v446
  %v448 = vpop.f32.mrf.mxu0
  %449 = vdwg.mxu0
  %450 = vmatpush.bf16.msra.mxu0 0
  %451 = vmatpush.bf16.msra.mxu0 0
  %452 = vmatpush.bf16.msra.mxu0 0
  %453 = vmatpush.bf16.msra.mxu0 0
  %454 = vmatpush.bf16.msra.mxu0 0
  %455 = vmatpush.bf16.msra.mxu0 0
  %456 = vmatpush.bf16.msra.mxu0 0
  %457 = vmatpush.bf16.msra.mxu0 %v212
  %458 = vmatmul.bf16.gmra.mxu0 %v383
  %v459 = vpop.f32.mrf.mxu0
  %v460 = vadd.f32 %v447, %v459
  %v461 = vpop.f32.mrf.mxu0
  %462 = vdwg.mxu0
  %463 = vmatpush.bf16.msra.mxu0 %v209
  %464 = vmatpush.bf16.msra.mxu0 %v205
  %465 = vmatpush.bf16.msra.mxu0 %v201
  %466 = vmatpush.bf16.msra.mxu0 %v197
  %467 = vmatpush.bf16.msra.mxu0 %v193
  %468 = vmatpush.bf16.msra.mxu0 %v189
  %469 = vmatpush.bf16.msra.mxu0 %v185
  %470 = vmatpush.bf16.msra.mxu0 %v181
  %471 = vmatmul.bf16.gmra.mxu0 %v379
  %v472 = vpop.f32.mrf.mxu0
  %v473 = vadd.f32 %v62, %v472
  %v474 = vpop.f32.mrf.mxu0
  %475 = vdwg.mxu0
  %476 = vmatpush.bf16.msra.mxu0 0
  %477 = vmatpush.bf16.msra.mxu0 0
  %478 = vmatpush.bf16.msra.mxu0 0
  %479 = vmatpush.bf16.msra.mxu0 0
  %480 = vmatpush.bf16.msra.mxu0 0
  %481 = vmatpush.bf16.msra.mxu0 0
  %482 = vmatpush.bf16.msra.mxu0 0
  %483 = vmatpush.bf16.msra.mxu0 %v213
  %484 = vmatmul.bf16.gmra.mxu0 %v383
  %v485 = vpop.f32.mrf.mxu0
  %v486 = vadd.f32 %v473, %v485
  %v487 = vpop.f32.mrf.mxu0
  %488 = vdwg.mxu0
  %v489 = vadd.f32 %v408, %v434
  %v490 = vadd.f32 %v489, %v460
  %v491 = vadd.f32 %v490, %v486
  %492 = vadd.xlane.f32.xlu0 %v491
  %v493 = vpop.xlane.xlu0 %492
  %v494 = vadd.f32 %v363, %v493
  %v495 = vmul.f32 %v408, %v408
  %v496 = vmul.f32 %v434, %v434
  %v497 = vmul.f32 %v460, %v460
  %v498 = vmul.f32 %v486, %v486
  %v499 = vadd.f32 %v495, %v496
  %v500 = vadd.f32 %v499, %v497
  %v501 = vadd.f32 %v500, %v498
  %502 = vadd.xlane.f32.xlu0 %v501
  %v503 = vpop.xlane.xlu0 %502
  %v504 = vadd.f32 %v373, %v503
  %s505 = scalar_lea.vmem %s0, 16
  %v506 = vld [vmem:[%s505] sm:$0xff]
  %v508 = vunpack.c.l.b16 %v506
  %v509 = vunpack.c.h.b16 %v506
  %v510 = vpack.c.b16 %v508, %v508
  %v511 = vpack.c.b16 %v509, %v509
  %v514 = vsel %vm250, %v511, 0
  %516 = vmatpush.bf16.msra.mxu0 %v206
  %517 = vmatpush.bf16.msra.mxu0 %v202
  %518 = vmatpush.bf16.msra.mxu0 %v198
  %519 = vmatpush.bf16.msra.mxu0 %v194
  %520 = vmatpush.bf16.msra.mxu0 %v190
  %521 = vmatpush.bf16.msra.mxu0 %v186
  %522 = vmatpush.bf16.msra.mxu0 %v182
  %523 = vmatpush.bf16.msra.mxu0 %v178
  %524 = vmatmul.bf16.gmra.mxu0 %v510
  %v525 = vpop.f32.mrf.mxu0
  %v526 = vadd.f32 %v62, %v525
  %v527 = vpop.f32.mrf.mxu0
  %528 = vdwg.mxu0
  %529 = vmatpush.bf16.msra.mxu0 0
  %530 = vmatpush.bf16.msra.mxu0 0
  %531 = vmatpush.bf16.msra.mxu0 0
  %532 = vmatpush.bf16.msra.mxu0 0
  %533 = vmatpush.bf16.msra.mxu0 0
  %534 = vmatpush.bf16.msra.mxu0 0
  %535 = vmatpush.bf16.msra.mxu0 0
  %536 = vmatpush.bf16.msra.mxu0 %v210
  %537 = vmatmul.bf16.gmra.mxu0 %v514
  %v538 = vpop.f32.mrf.mxu0
  %v539 = vadd.f32 %v526, %v538
  %v540 = vpop.f32.mrf.mxu0
  %541 = vdwg.mxu0
  %542 = vmatpush.bf16.msra.mxu0 %v207
  %543 = vmatpush.bf16.msra.mxu0 %v203
  %544 = vmatpush.bf16.msra.mxu0 %v199
  %545 = vmatpush.bf16.msra.mxu0 %v195
  %546 = vmatpush.bf16.msra.mxu0 %v191
  %547 = vmatpush.bf16.msra.mxu0 %v187
  %548 = vmatpush.bf16.msra.mxu0 %v183
  %549 = vmatpush.bf16.msra.mxu0 %v179
  %550 = vmatmul.bf16.gmra.mxu0 %v510
  %v551 = vpop.f32.mrf.mxu0
  %v552 = vadd.f32 %v62, %v551
  %v553 = vpop.f32.mrf.mxu0
  %554 = vdwg.mxu0
  %555 = vmatpush.bf16.msra.mxu0 0
  %556 = vmatpush.bf16.msra.mxu0 0
  %557 = vmatpush.bf16.msra.mxu0 0
  %558 = vmatpush.bf16.msra.mxu0 0
  %559 = vmatpush.bf16.msra.mxu0 0
  %560 = vmatpush.bf16.msra.mxu0 0
  %561 = vmatpush.bf16.msra.mxu0 0
  %562 = vmatpush.bf16.msra.mxu0 %v211
  %563 = vmatmul.bf16.gmra.mxu0 %v514
  %v564 = vpop.f32.mrf.mxu0
  %v565 = vadd.f32 %v552, %v564
  %v566 = vpop.f32.mrf.mxu0
  %567 = vdwg.mxu0
  %568 = vmatpush.bf16.msra.mxu0 %v208
  %569 = vmatpush.bf16.msra.mxu0 %v204
  %570 = vmatpush.bf16.msra.mxu0 %v200
  %571 = vmatpush.bf16.msra.mxu0 %v196
  %572 = vmatpush.bf16.msra.mxu0 %v192
  %573 = vmatpush.bf16.msra.mxu0 %v188
  %574 = vmatpush.bf16.msra.mxu0 %v184
  %575 = vmatpush.bf16.msra.mxu0 %v180
  %576 = vmatmul.bf16.gmra.mxu0 %v510
  %v577 = vpop.f32.mrf.mxu0
  %v578 = vadd.f32 %v62, %v577
  %v579 = vpop.f32.mrf.mxu0
  %580 = vdwg.mxu0
  %581 = vmatpush.bf16.msra.mxu0 0
  %582 = vmatpush.bf16.msra.mxu0 0
  %583 = vmatpush.bf16.msra.mxu0 0
  %584 = vmatpush.bf16.msra.mxu0 0
  %585 = vmatpush.bf16.msra.mxu0 0
  %586 = vmatpush.bf16.msra.mxu0 0
  %587 = vmatpush.bf16.msra.mxu0 0
  %588 = vmatpush.bf16.msra.mxu0 %v212
  %589 = vmatmul.bf16.gmra.mxu0 %v514
  %v590 = vpop.f32.mrf.mxu0
  %v591 = vadd.f32 %v578, %v590
  %v592 = vpop.f32.mrf.mxu0
  %593 = vdwg.mxu0
  %594 = vmatpush.bf16.msra.mxu0 %v209
  %595 = vmatpush.bf16.msra.mxu0 %v205
  %596 = vmatpush.bf16.msra.mxu0 %v201
  %597 = vmatpush.bf16.msra.mxu0 %v197
  %598 = vmatpush.bf16.msra.mxu0 %v193
  %599 = vmatpush.bf16.msra.mxu0 %v189
  %600 = vmatpush.bf16.msra.mxu0 %v185
  %601 = vmatpush.bf16.msra.mxu0 %v181
  %602 = vmatmul.bf16.gmra.mxu0 %v510
  %v603 = vpop.f32.mrf.mxu0
  %v604 = vadd.f32 %v62, %v603
  %v605 = vpop.f32.mrf.mxu0
  %606 = vdwg.mxu0
  %607 = vmatpush.bf16.msra.mxu0 0
  %608 = vmatpush.bf16.msra.mxu0 0
  %609 = vmatpush.bf16.msra.mxu0 0
  %610 = vmatpush.bf16.msra.mxu0 0
  %611 = vmatpush.bf16.msra.mxu0 0
  %612 = vmatpush.bf16.msra.mxu0 0
  %613 = vmatpush.bf16.msra.mxu0 0
  %614 = vmatpush.bf16.msra.mxu0 %v213
  %615 = vmatmul.bf16.gmra.mxu0 %v514
  %v616 = vpop.f32.mrf.mxu0
  %v617 = vadd.f32 %v604, %v616
  %v618 = vpop.f32.mrf.mxu0
  %619 = vdwg.mxu0
  %v620 = vadd.f32 %v539, %v565
  %v621 = vadd.f32 %v620, %v591
  %v622 = vadd.f32 %v621, %v617
  %623 = vadd.xlane.f32.xlu0 %v622
  %v624 = vpop.xlane.xlu0 %623
  %v625 = vadd.f32 %v494, %v624
  %v626 = vmul.f32 %v539, %v539
  %v627 = vmul.f32 %v565, %v565
  %v628 = vmul.f32 %v591, %v591
  %v629 = vmul.f32 %v617, %v617
  %v630 = vadd.f32 %v626, %v627
  %v631 = vadd.f32 %v630, %v628
  %v632 = vadd.f32 %v631, %v629
  %633 = vadd.xlane.f32.xlu0 %v632
  %v634 = vpop.xlane.xlu0 %633
  %v635 = vadd.f32 %v504, %v634
  %s636 = scalar_lea.vmem %s0, 24
  %v637 = vld [vmem:[%s636] sm:$0xff]
  %v639 = vunpack.c.l.b16 %v637
  %v640 = vunpack.c.h.b16 %v637
  %v641 = vpack.c.b16 %v639, %v639
  %v642 = vpack.c.b16 %v640, %v640
  %v645 = vsel %vm250, %v642, 0
  %647 = vmatpush.bf16.msra.mxu0 %v206
  %648 = vmatpush.bf16.msra.mxu0 %v202
  %649 = vmatpush.bf16.msra.mxu0 %v198
  %650 = vmatpush.bf16.msra.mxu0 %v194
  %651 = vmatpush.bf16.msra.mxu0 %v190
  %652 = vmatpush.bf16.msra.mxu0 %v186
  %653 = vmatpush.bf16.msra.mxu0 %v182
  %654 = vmatpush.bf16.msra.mxu0 %v178
  %655 = vmatmul.bf16.gmra.mxu0 %v641
  %v656 = vpop.f32.mrf.mxu0
  %v657 = vadd.f32 %v62, %v656
  %v658 = vpop.f32.mrf.mxu0
  %659 = vdwg.mxu0
  %660 = vmatpush.bf16.msra.mxu0 0
  %661 = vmatpush.bf16.msra.mxu0 0
  %662 = vmatpush.bf16.msra.mxu0 0
  %663 = vmatpush.bf16.msra.mxu0 0
  %664 = vmatpush.bf16.msra.mxu0 0
  %665 = vmatpush.bf16.msra.mxu0 0
  %666 = vmatpush.bf16.msra.mxu0 0
  %667 = vmatpush.bf16.msra.mxu0 %v210
  %668 = vmatmul.bf16.gmra.mxu0 %v645
  %v669 = vpop.f32.mrf.mxu0
  %v670 = vadd.f32 %v657, %v669
  %v671 = vpop.f32.mrf.mxu0
  %672 = vdwg.mxu0
  %673 = vmatpush.bf16.msra.mxu0 %v207
  %674 = vmatpush.bf16.msra.mxu0 %v203
  %675 = vmatpush.bf16.msra.mxu0 %v199
  %676 = vmatpush.bf16.msra.mxu0 %v195
  %677 = vmatpush.bf16.msra.mxu0 %v191
  %678 = vmatpush.bf16.msra.mxu0 %v187
  %679 = vmatpush.bf16.msra.mxu0 %v183
  %680 = vmatpush.bf16.msra.mxu0 %v179
  %681 = vmatmul.bf16.gmra.mxu0 %v641
  %v682 = vpop.f32.mrf.mxu0
  %v683 = vadd.f32 %v62, %v682
  %v684 = vpop.f32.mrf.mxu0
  %685 = vdwg.mxu0
  %686 = vmatpush.bf16.msra.mxu0 0
  %687 = vmatpush.bf16.msra.mxu0 0
  %688 = vmatpush.bf16.msra.mxu0 0
  %689 = vmatpush.bf16.msra.mxu0 0
  %690 = vmatpush.bf16.msra.mxu0 0
  %691 = vmatpush.bf16.msra.mxu0 0
  %692 = vmatpush.bf16.msra.mxu0 0
  %693 = vmatpush.bf16.msra.mxu0 %v211
  %694 = vmatmul.bf16.gmra.mxu0 %v645
  %v695 = vpop.f32.mrf.mxu0
  %v696 = vadd.f32 %v683, %v695
  %v697 = vpop.f32.mrf.mxu0
  %698 = vdwg.mxu0
  %699 = vmatpush.bf16.msra.mxu0 %v208
  %700 = vmatpush.bf16.msra.mxu0 %v204
  %701 = vmatpush.bf16.msra.mxu0 %v200
  %702 = vmatpush.bf16.msra.mxu0 %v196
  %703 = vmatpush.bf16.msra.mxu0 %v192
  %704 = vmatpush.bf16.msra.mxu0 %v188
  %705 = vmatpush.bf16.msra.mxu0 %v184
  %706 = vmatpush.bf16.msra.mxu0 %v180
  %707 = vmatmul.bf16.gmra.mxu0 %v641
  %v708 = vpop.f32.mrf.mxu0
  %v709 = vadd.f32 %v62, %v708
  %v710 = vpop.f32.mrf.mxu0
  %711 = vdwg.mxu0
  %712 = vmatpush.bf16.msra.mxu0 0
  %713 = vmatpush.bf16.msra.mxu0 0
  %714 = vmatpush.bf16.msra.mxu0 0
  %715 = vmatpush.bf16.msra.mxu0 0
  %716 = vmatpush.bf16.msra.mxu0 0
  %717 = vmatpush.bf16.msra.mxu0 0
  %718 = vmatpush.bf16.msra.mxu0 0
  %719 = vmatpush.bf16.msra.mxu0 %v212
  %720 = vmatmul.bf16.gmra.mxu0 %v645
  %v721 = vpop.f32.mrf.mxu0
  %v722 = vadd.f32 %v709, %v721
  %v723 = vpop.f32.mrf.mxu0
  %724 = vdwg.mxu0
  %725 = vmatpush.bf16.msra.mxu0 %v209
  %726 = vmatpush.bf16.msra.mxu0 %v205
  %727 = vmatpush.bf16.msra.mxu0 %v201
  %728 = vmatpush.bf16.msra.mxu0 %v197
  %729 = vmatpush.bf16.msra.mxu0 %v193
  %730 = vmatpush.bf16.msra.mxu0 %v189
  %731 = vmatpush.bf16.msra.mxu0 %v185
  %732 = vmatpush.bf16.msra.mxu0 %v181
  %733 = vmatmul.bf16.gmra.mxu0 %v641
  %v734 = vpop.f32.mrf.mxu0
  %v735 = vadd.f32 %v62, %v734
  %v736 = vpop.f32.mrf.mxu0
  %737 = vdwg.mxu0
  %738 = vmatpush.bf16.msra.mxu0 0
  %739 = vmatpush.bf16.msra.mxu0 0
  %740 = vmatpush.bf16.msra.mxu0 0
  %741 = vmatpush.bf16.msra.mxu0 0
  %742 = vmatpush.bf16.msra.mxu0 0
  %743 = vmatpush.bf16.msra.mxu0 0
  %744 = vmatpush.bf16.msra.mxu0 0
  %745 = vmatpush.bf16.msra.mxu0 %v213
  %746 = vmatmul.bf16.gmra.mxu0 %v645
  %v747 = vpop.f32.mrf.mxu0
  %v748 = vadd.f32 %v735, %v747
  %v749 = vpop.f32.mrf.mxu0
  %750 = vdwg.mxu0
  %v751 = vadd.f32 %v670, %v696
  %v752 = vadd.f32 %v751, %v722
  %v753 = vadd.f32 %v752, %v748
  %754 = vadd.xlane.f32.xlu0 %v753
  %v755 = vpop.xlane.xlu0 %754
  %v756 = vadd.f32 %v625, %v755
  %v757 = vmul.f32 %v670, %v670
  %v758 = vmul.f32 %v696, %v696
  %v759 = vmul.f32 %v722, %v722
  %v760 = vmul.f32 %v748, %v748
  %v761 = vadd.f32 %v757, %v758
  %v762 = vadd.f32 %v761, %v759
  %v763 = vadd.f32 %v762, %v760
  %764 = vadd.xlane.f32.xlu0 %v763
  %v765 = vpop.xlane.xlu0 %764
  %v766 = vadd.f32 %v635, %v765
  %v767 = vrcp.pop 2048.0
  %v768 = vmul.f32 2048.0, %v767
  %v769 = vsub.f32 1.0, %v768
  %v770 = vmul.f32 %v767, %v769
  %v771 = vadd.f32 %v767, %v770
  %vm772 = vweird.f32 %v767
  %v773 = vsel %vm772, %v767, %v771
  %v774 = vmul.f32 %v756, %v773
  %v775 = vmul.f32 %v766, %v773
  %v776 = vmul.f32 %v774, %v774
  %v777 = vsub.f32 %v775, %v776
  %v778 = vld [vmem:[%s3] sm:$0xff]
  %v779 = vadd.f32 %v777, 1e-05
  %v780 = vrsqrt.pop %v779
  %v781 = vmul.f32 %v780, %v779
  %v782 = vmul.f32 %v781, %v780
  %v783 = vmul.f32 0.5, %v782
  %v784 = vsub.f32 1.5, %v783
  %v785 = vmul.f32 %v780, %v784
  %v786 = vmul.f32 %v779, %v785
  %vm787 = vcmp.eq.f32.partialorder %v779, inf
  %v788 = vsel %vm787, %v779, %v786
  %vm789 = vcmp.eq.f32.partialorder %v779, 0.0
  %v790 = vand.u32 %v779, 2147483648
  %v791 = vsel %vm789, %v790, %v788
  %v792 = vrcp.pop %v791
  %v793 = vmul.f32 %v791, %v792
  %v794 = vsub.f32 1.0, %v793
  %v795 = vmul.f32 %v792, %v794
  %v796 = vadd.f32 %v792, %v795
  %vm797 = vweird.f32 %v791
  %vm798 = vweird.f32 %v792
  %vm799 = vmor %vm797, %vm798
  %v800 = vsel %vm799, %v792, %v796
  %v801 = vand.u32 2147483647, %v791
  %vm802 = vcmp.eq.f32.partialorder %v801, 8.507059e+37
  %v803 = vand.u32 %v791, 2147483648
  %v804 = vor.u32 1.1754944e-38, %v803
  %v805 = vsel %vm802, %v804, %v800
  %v806 = vmul.f32 %v778, %v805
  %v807 = vld [vmem:[%s4] sm:$0xff]
  %v808 = vmul.f32 %v774, %v806
  %v809 = vsub.f32 %v807, %v808
  %811 = vset.pattern.permute.xlu0 0
  %812 = vperm.xlu0 %811, %v806
  %v813 = vpop.permute.xlu0 %812
  %v815 = vmul.f32 %v277, %v813
  %v816 = vmul.f32 %v303, %v813
  %v817 = vmul.f32 %v329, %v813
  %v818 = vmul.f32 %v355, %v813
  %820 = vset.pattern.permute.xlu0 0
  %821 = vperm.xlu0 %820, %v809
  %v822 = vpop.permute.xlu0 %821
  %v824 = vadd.f32 %v815, %v822
  %v825 = vadd.f32 %v816, %v822
  %v826 = vadd.f32 %v817, %v822
  %v827 = vadd.f32 %v818, %v822
  %v828 = vmax.f32 %v824, 0.0
  %v829 = vmax.f32 %v825, 0.0
  %v830 = vmax.f32 %v826, 0.0
  %v831 = vmax.f32 %v827, 0.0
  %832 = vst [vmem:[%s5] sm:$0xff] %v828
  %833 = vst [vmem:[%s5 + $0x8] sm:$0xff] %v829
  %834 = vst [vmem:[%s5 + $0x10] sm:$0xff] %v830
  %835 = vst [vmem:[%s5 + $0x18] sm:$0xff] %v831
  %v836 = vmul.f32 %v408, %v813
  %v837 = vmul.f32 %v434, %v813
  %v838 = vmul.f32 %v460, %v813
  %v839 = vmul.f32 %v486, %v813
  %v840 = vadd.f32 %v836, %v822
  %v841 = vadd.f32 %v837, %v822
  %v842 = vadd.f32 %v838, %v822
  %v843 = vadd.f32 %v839, %v822
  %v844 = vmax.f32 %v840, 0.0
  %v845 = vmax.f32 %v841, 0.0
  %v846 = vmax.f32 %v842, 0.0
  %v847 = vmax.f32 %v843, 0.0
  %s848 = scalar_lea.vmem %s5, 32
  %849 = vst [vmem:[%s848] sm:$0xff] %v844
  %850 = vst [vmem:[%s848 + $0x8] sm:$0xff] %v845
  %851 = vst [vmem:[%s848 + $0x10] sm:$0xff] %v846
  %852 = vst [vmem:[%s848 + $0x18] sm:$0xff] %v847
  %v853 = vmul.f32 %v539, %v813
  %v854 = vmul.f32 %v565, %v813
  %v855 = vmul.f32 %v591, %v813
  %v856 = vmul.f32 %v617, %v813
  %v857 = vadd.f32 %v853, %v822
  %v858 = vadd.f32 %v854, %v822
  %v859 = vadd.f32 %v855, %v822
  %v860 = vadd.f32 %v856, %v822
  %v861 = vmax.f32 %v857, 0.0
  %v862 = vmax.f32 %v858, 0.0
  %v863 = vmax.f32 %v859, 0.0
  %v864 = vmax.f32 %v860, 0.0
  %s865 = scalar_lea.vmem %s5, 64
  %866 = vst [vmem:[%s865] sm:$0xff] %v861
  %867 = vst [vmem:[%s865 + $0x8] sm:$0xff] %v862
  %868 = vst [vmem:[%s865 + $0x10] sm:$0xff] %v863
  %869 = vst [vmem:[%s865 + $0x18] sm:$0xff] %v864
  %v870 = vmul.f32 %v670, %v813
  %v871 = vmul.f32 %v696, %v813
  %v872 = vmul.f32 %v722, %v813
  %v873 = vmul.f32 %v748, %v813
  %v874 = vadd.f32 %v870, %v822
  %v875 = vadd.f32 %v871, %v822
  %v876 = vadd.f32 %v872, %v822
  %v877 = vadd.f32 %v873, %v822
  %v878 = vmax.f32 %v874, 0.0
  %v879 = vmax.f32 %v875, 0.0
  %v880 = vmax.f32 %v876, 0.0
  %v881 = vmax.f32 %v877, 0.0
  %s882 = scalar_lea.vmem %s5, 96
  %883 = vst [vmem:[%s882] sm:$0xff] %v878
  %884 = vst [vmem:[%s882 + $0x8] sm:$0xff] %v879
  %885 = vst [vmem:[%s882 + $0x10] sm:$0xff] %v880
  %886 = vst [vmem:[%s882 + $0x18] sm:$0xff] %v881
  // Predicated region
  $region22: #{vae_forward.16} parent=0 // pred_check
    _
  $region23: #{vae_forward.16} parent=0 // pred_check_branch
    %888 = sbr.rel (0) target = $region25
  $region24: #{vae_forward.16} parent=0 // pred_region
    _
  $region25: #{vae_forward.16} parent=0 // pred_fallthru
    _
  // Predicated region
  $region26: #{vae_forward.16} parent=0 // pred_check
    _
  $region27: #{vae_forward.16} parent=0 // pred_check_branch
    %890 = sbr.rel (0) target = $region29
  $region28: #{vae_forward.16} parent=0 // pred_region
    _
  $region29: #{vae_forward.16} parent=0 // pred_fallthru
    _

// kernel: tile.7
$region0: #{tile.7}
  #allocation0 [shape = 's32[1]{0}', space=sflag, size = 0x4, scoped, tag = 'scoped memory for tile.7']
  %s0 = inlined_call_operand.<no memory space> [shape: f32[], index: 0, kind: input, shape index: {}]
  %s1 = inlined_call_operand.vmem [shape: f32[4,1], index: 1, kind: output, shape index: {}]
  %v2 = vstv %s0
  %3 = vst [vmem:[%s1] sm:$0xf] %v2

// kernel: vae_forward.17
$region0: #{vae_forward.17}
  #allocation0 [shape = 'u32[]', space=smem, size = 0x4, offset = 0x4, fixed_abs, tag = 'smem constant byte address 0x4 - core index']
  #allocation1 [shape = 'u32[72,128]{1,0:T(1,128)}', space=vmem, size = 0x9000, scoped, tag = 'internal scratch']
  %s0 = inlined_call_operand.vmem [shape: bf16[4,72], index: 0, kind: input, shape index: {}]
  %s1 = inlined_call_operand.vmem [shape: bf16[72,2048], index: 1, kind: input, shape index: {}]
  %s2 = inlined_call_operand.vmem [shape: f32[4,1], index: 2, kind: input, shape index: {}]
  %s3 = inlined_call_operand.vmem [shape: f32[4,2048], index: 3, kind: input, shape index: {}]
  %s4 = inlined_call_operand.vmem [shape: f32[4,2048], index: 4, kind: output, shape index: {0}]
  %s5 = inlined_call_operand.hbm [shape: f32[1,1], index: 5, kind: output, shape index: {1}]
  %6 = xla_tuple %s4, %s5
  %s7 = sld [smem:[#allocation0]]
  $region34: #{vae_forward.17} parent=0
    _
  %s9 = ssub.s32 1, %s7
  %s10 = scalar_select 0, %s9, %s7
  $region1: #{vae_forward.17} parent=0
    #allocation2 [shape = 'u8[512]{0}', space=vmem, size = 0x400, scoped, tag = 'output window, operand 1, single buffered']
    #allocation3 [shape = 's32[1]{0}', space=sflag, size = 0x4, scoped, tag = 'scoped memory for vae_forward.17']
    %11 = vsyncpa [#allocation3], 0
    // Predicated region
    $region2: #{vae_forward.17} parent=1 // pred_check
      _
    $region3: #{vae_forward.17} parent=1 // pred_check_branch
      %13 = sbr.rel (0) target = $region5
    $region4: #{vae_forward.17} parent=1 // pred_region
      _
    $region5: #{vae_forward.17} parent=1 // pred_fallthru
      _
    // Predicated region
    $region6: #{vae_forward.17} parent=1 // pred_check
      _
    $region7: #{vae_forward.17} parent=1 // pred_check_branch
      %15 = sbr.rel (0) target = $region9
    $region8: #{vae_forward.17} parent=1 // pred_region
      _
    $region9: #{vae_forward.17} parent=1 // pred_fallthru
      _
    // Predicated region
    $region10: #{vae_forward.17} parent=1 // pred_check
      _
    $region11: #{vae_forward.17} parent=1 // pred_check_branch
      %17 = sbr.rel (0) target = $region13
    $region12: #{vae_forward.17} parent=1 // pred_region
      _
    $region13: #{vae_forward.17} parent=1 // pred_fallthru
      _
    // Predicated region
    $region14: #{vae_forward.17} parent=1 // pred_check
      _
    $region15: #{vae_forward.17} parent=1 // pred_check_branch
      %19 = sbr.rel (0) target = $region17
    $region16: #{vae_forward.17} parent=1 // pred_region
      _
    $region17: #{vae_forward.17} parent=1 // pred_fallthru
      _
    %v21 = vld [vmem:[%s0] sm:$0x3]
    %v22 = vld [vmem:[%s1] sm:$0xff]
    %v23 = vld [vmem:[%s1 + $0x8] sm:$0xff]
    %v24 = vld [vmem:[%s1 + $0x10] sm:$0xff]
    %v25 = vld [vmem:[%s1 + $0x18] sm:$0xff]
    %v26 = vld [vmem:[%s1 + $0x20] sm:$0xff]
    %v27 = vld [vmem:[%s1 + $0x28] sm:$0xff]
    %v28 = vld [vmem:[%s1 + $0x30] sm:$0xff]
    %v29 = vld [vmem:[%s1 + $0x38] sm:$0xff]
    %v30 = vld [vmem:[%s1 + $0x40] sm:$0xff]
    %v31 = vld [vmem:[%s1 + $0x48] sm:$0xff]
    %v32 = vld [vmem:[%s1 + $0x50] sm:$0xff]
    %v33 = vld [vmem:[%s1 + $0x58] sm:$0xff]
    %v34 = vld [vmem:[%s1 + $0x60] sm:$0xff]
    %v35 = vld [vmem:[%s1 + $0x68] sm:$0xff]
    %v36 = vld [vmem:[%s1 + $0x70] sm:$0xff]
    %v37 = vld [vmem:[%s1 + $0x78] sm:$0xff]
    %v38 = vld [vmem:[%s1 + $0x80] sm:$0xff]
    %v39 = vld [vmem:[%s1 + $0x88] sm:$0xff]
    %v40 = vld [vmem:[%s1 + $0x90] sm:$0xff]
    %v41 = vld [vmem:[%s1 + $0x98] sm:$0xff]
    %v42 = vld [vmem:[%s1 + $0xa0] sm:$0xff]
    %v43 = vld [vmem:[%s1 + $0xa8] sm:$0xff]
    %v44 = vld [vmem:[%s1 + $0xb0] sm:$0xff]
    %v45 = vld [vmem:[%s1 + $0xb8] sm:$0xff]
    %v46 = vld [vmem:[%s1 + $0xc0] sm:$0xff]
    %v47 = vld [vmem:[%s1 + $0xc8] sm:$0xff]
    %v48 = vld [vmem:[%s1 + $0xd0] sm:$0xff]
    %v49 = vld [vmem:[%s1 + $0xd8] sm:$0xff]
    %v50 = vld [vmem:[%s1 + $0xe0] sm:$0xff]
    %v51 = vld [vmem:[%s1 + $0xe8] sm:$0xff]
    %v52 = vld [vmem:[%s1 + $0xf0] sm:$0xff]
    %v53 = vld [vmem:[%s1 + $0xf8] sm:$0xff]
    %v54 = vld [vmem:[%s1 + $0x100] sm:$0xff]
    %v55 = vld [vmem:[%s1 + $0x108] sm:$0xff]
    %v56 = vld [vmem:[%s1 + $0x110] sm:$0xff]
    %v57 = vld [vmem:[%s1 + $0x118] sm:$0xff]
    %v58 = vld [vmem:[%s1 + $0x120] sm:$0xff]
    %v59 = vld [vmem:[%s1 + $0x128] sm:$0xff]
    %v60 = vld [vmem:[%s1 + $0x130] sm:$0xff]
    %v61 = vld [vmem:[%s1 + $0x138] sm:$0xff]
    %v62 = vld [vmem:[%s1 + $0x140] sm:$0xff]
    %v63 = vld [vmem:[%s1 + $0x148] sm:$0xff]
    %v64 = vld [vmem:[%s1 + $0x150] sm:$0xff]
    %v65 = vld [vmem:[%s1 + $0x158] sm:$0xff]
    %v66 = vld [vmem:[%s1 + $0x160] sm:$0xff]
    %v67 = vld [vmem:[%s1 + $0x168] sm:$0xff]
    %v68 = vld [vmem:[%s1 + $0x170] sm:$0xff]
    %v69 = vld [vmem:[%s1 + $0x178] sm:$0xff]
    %v70 = vld [vmem:[%s1 + $0x180] sm:$0xff]
    %v71 = vld [vmem:[%s1 + $0x188] sm:$0xff]
    %v72 = vld [vmem:[%s1 + $0x190] sm:$0xff]
    %v73 = vld [vmem:[%s1 + $0x198] sm:$0xff]
    %v74 = vld [vmem:[%s1 + $0x1a0] sm:$0xff]
    %v75 = vld [vmem:[%s1 + $0x1a8] sm:$0xff]
    %v76 = vld [vmem:[%s1 + $0x1b0] sm:$0xff]
    %v77 = vld [vmem:[%s1 + $0x1b8] sm:$0xff]
    %v78 = vld [vmem:[%s1 + $0x1c0] sm:$0xff]
    %v79 = vld [vmem:[%s1 + $0x1c8] sm:$0xff]
    %v80 = vld [vmem:[%s1 + $0x1d0] sm:$0xff]
    %v81 = vld [vmem:[%s1 + $0x1d8] sm:$0xff]
    %v82 = vld [vmem:[%s1 + $0x1e0] sm:$0xff]
    %v83 = vld [vmem:[%s1 + $0x1e8] sm:$0xff]
    %v84 = vld [vmem:[%s1 + $0x1f0] sm:$0xff]
    %v85 = vld [vmem:[%s1 + $0x1f8] sm:$0xff]
    %v86 = vld [vmem:[%s1 + $0x200] sm:$0xff]
    %v87 = vld [vmem:[%s1 + $0x208] sm:$0xff]
    %v88 = vld [vmem:[%s1 + $0x210] sm:$0xff]
    %v89 = vld [vmem:[%s1 + $0x218] sm:$0xff]
    %v90 = vld [vmem:[%s1 + $0x220] sm:$0xff]
    %v91 = vld [vmem:[%s1 + $0x228] sm:$0xff]
    %v92 = vld [vmem:[%s1 + $0x230] sm:$0xff]
    %v93 = vld [vmem:[%s1 + $0x238] sm:$0xff]
    %v94 = vld [vmem:[%s2] sm:$0xf]
    %96 = vset.pattern.permute.xlu0 0
    %97 = vperm.xlu0 %96, %v94
    %v98 = vpop.permute.xlu0 %97
    %v172 = vunpack.c.l.b16 %v22
    %v173 = vunpack.c.h.b16 %v22
    %v174 = vunpack.c.l.b16 %v23
    %v175 = vunpack.c.h.b16 %v23
    %v176 = vunpack.c.l.b16 %v24
    %v177 = vunpack.c.h.b16 %v24
    %v178 = vunpack.c.l.b16 %v25
    %v179 = vunpack.c.h.b16 %v25
    %v180 = vunpack.c.l.b16 %v26
    %v181 = vunpack.c.h.b16 %v26
    %v182 = vunpack.c.l.b16 %v27
    %v183 = vunpack.c.h.b16 %v27
    %v184 = vunpack.c.l.b16 %v28
    %v185 = vunpack.c.h.b16 %v28
    %v186 = vunpack.c.l.b16 %v29
    %v187 = vunpack.c.h.b16 %v29
    %v188 = vunpack.c.l.b16 %v30
    %v189 = vunpack.c.h.b16 %v30
    %v190 = vunpack.c.l.b16 %v31
    %v191 = vunpack.c.h.b16 %v31
    %v192 = vunpack.c.l.b16 %v32
    %v193 = vunpack.c.h.b16 %v32
    %v194 = vunpack.c.l.b16 %v33
    %v195 = vunpack.c.h.b16 %v33
    %v196 = vunpack.c.l.b16 %v34
    %v197 = vunpack.c.h.b16 %v34
    %v198 = vunpack.c.l.b16 %v35
    %v199 = vunpack.c.h.b16 %v35
    %v200 = vunpack.c.l.b16 %v36
    %v201 = vunpack.c.h.b16 %v36
    %v202 = vunpack.c.l.b16 %v37
    %v203 = vunpack.c.h.b16 %v37
    %v204 = vunpack.c.l.b16 %v38
    %v205 = vunpack.c.h.b16 %v38
    %v206 = vunpack.c.l.b16 %v39
    %v207 = vunpack.c.h.b16 %v39
    %v208 = vunpack.c.l.b16 %v40
    %v209 = vunpack.c.h.b16 %v40
    %v210 = vunpack.c.l.b16 %v41
    %v211 = vunpack.c.h.b16 %v41
    %v212 = vunpack.c.l.b16 %v42
    %v213 = vunpack.c.h.b16 %v42
    %v214 = vunpack.c.l.b16 %v43
    %v215 = vunpack.c.h.b16 %v43
    %v216 = vunpack.c.l.b16 %v44
    %v217 = vunpack.c.h.b16 %v44
    %v218 = vunpack.c.l.b16 %v45
    %v219 = vunpack.c.h.b16 %v45
    %v220 = vunpack.c.l.b16 %v46
    %v221 = vunpack.c.h.b16 %v46
    %v222 = vunpack.c.l.b16 %v47
    %v223 = vunpack.c.h.b16 %v47
    %v224 = vunpack.c.l.b16 %v48
    %v225 = vunpack.c.h.b16 %v48
    %v226 = vunpack.c.l.b16 %v49
    %v227 = vunpack.c.h.b16 %v49
    %v228 = vunpack.c.l.b16 %v50
    %v229 = vunpack.c.h.b16 %v50
    %v230 = vunpack.c.l.b16 %v51
    %v231 = vunpack.c.h.b16 %v51
    %v232 = vunpack.c.l.b16 %v52
    %v233 = vunpack.c.h.b16 %v52
    %v234 = vunpack.c.l.b16 %v53
    %v235 = vunpack.c.h.b16 %v53
    %v236 = vunpack.c.l.b16 %v54
    %v237 = vunpack.c.h.b16 %v54
    %v238 = vunpack.c.l.b16 %v55
    %v239 = vunpack.c.h.b16 %v55
    %v240 = vunpack.c.l.b16 %v56
    %v241 = vunpack.c.h.b16 %v56
    %v242 = vunpack.c.l.b16 %v57
    %v243 = vunpack.c.h.b16 %v57
    %v244 = vunpack.c.l.b16 %v58
    %v245 = vunpack.c.h.b16 %v58
    %v246 = vunpack.c.l.b16 %v59
    %v247 = vunpack.c.h.b16 %v59
    %v248 = vunpack.c.l.b16 %v60
    %v249 = vunpack.c.h.b16 %v60
    %v250 = vunpack.c.l.b16 %v61
    %v251 = vunpack.c.h.b16 %v61
    %v252 = vunpack.c.l.b16 %v62
    %v253 = vunpack.c.h.b16 %v62
    %v254 = vunpack.c.l.b16 %v63
    %v255 = vunpack.c.h.b16 %v63
    %v256 = vunpack.c.l.b16 %v64
    %v257 = vunpack.c.h.b16 %v64
    %v258 = vunpack.c.l.b16 %v65
    %v259 = vunpack.c.h.b16 %v65
    %v260 = vunpack.c.l.b16 %v66
    %v261 = vunpack.c.h.b16 %v66
    %v262 = vunpack.c.l.b16 %v67
    %v263 = vunpack.c.h.b16 %v67
    %v264 = vunpack.c.l.b16 %v68
    %v265 = vunpack.c.h.b16 %v68
    %v266 = vunpack.c.l.b16 %v69
    %v267 = vunpack.c.h.b16 %v69
    %v268 = vunpack.c.l.b16 %v70
    %v269 = vunpack.c.h.b16 %v70
    %v270 = vunpack.c.l.b16 %v71
    %v271 = vunpack.c.h.b16 %v71
    %v272 = vunpack.c.l.b16 %v72
    %v273 = vunpack.c.h.b16 %v72
    %v274 = vunpack.c.l.b16 %v73
    %v275 = vunpack.c.h.b16 %v73
    %v276 = vunpack.c.l.b16 %v74
    %v277 = vunpack.c.h.b16 %v74
    %v278 = vunpack.c.l.b16 %v75
    %v279 = vunpack.c.h.b16 %v75
    %v280 = vunpack.c.l.b16 %v76
    %v281 = vunpack.c.h.b16 %v76
    %v282 = vunpack.c.l.b16 %v77
    %v283 = vunpack.c.h.b16 %v77
    %v284 = vunpack.c.l.b16 %v78
    %v285 = vunpack.c.h.b16 %v78
    %v286 = vunpack.c.l.b16 %v79
    %v287 = vunpack.c.h.b16 %v79
    %v288 = vunpack.c.l.b16 %v80
    %v289 = vunpack.c.h.b16 %v80
    %v290 = vunpack.c.l.b16 %v81
    %v291 = vunpack.c.h.b16 %v81
    %v292 = vunpack.c.l.b16 %v82
    %v293 = vunpack.c.h.b16 %v82
    %v294 = vunpack.c.l.b16 %v83
    %v295 = vunpack.c.h.b16 %v83
    %v296 = vunpack.c.l.b16 %v84
    %v297 = vunpack.c.h.b16 %v84
    %v298 = vunpack.c.l.b16 %v85
    %v299 = vunpack.c.h.b16 %v85
    %v300 = vunpack.c.l.b16 %v86
    %v301 = vunpack.c.h.b16 %v86
    %v302 = vunpack.c.l.b16 %v87
    %v303 = vunpack.c.h.b16 %v87
    %v304 = vunpack.c.l.b16 %v88
    %v305 = vunpack.c.h.b16 %v88
    %v306 = vunpack.c.l.b16 %v89
    %v307 = vunpack.c.h.b16 %v89
    %v308 = vunpack.c.l.b16 %v90
    %v309 = vunpack.c.h.b16 %v90
    %v310 = vunpack.c.l.b16 %v91
    %v311 = vunpack.c.h.b16 %v91
    %v312 = vunpack.c.l.b16 %v92
    %v313 = vunpack.c.h.b16 %v92
    %v314 = vunpack.c.l.b16 %v93
    %v315 = vunpack.c.h.b16 %v93
    %v316 = vpack.c.b16 %v188, %v172
    %v317 = vpack.c.b16 %v189, %v173
    %v318 = vpack.c.b16 %v190, %v174
    %v319 = vpack.c.b16 %v191, %v175
    %v320 = vpack.c.b16 %v192, %v176
    %v321 = vpack.c.b16 %v193, %v177
    %v322 = vpack.c.b16 %v194, %v178
    %v323 = vpack.c.b16 %v195, %v179
    %v324 = vpack.c.b16 %v196, %v180
    %v325 = vpack.c.b16 %v197, %v181
    %v326 = vpack.c.b16 %v198, %v182
    %v327 = vpack.c.b16 %v199, %v183
    %v328 = vpack.c.b16 %v200, %v184
    %v329 = vpack.c.b16 %v201, %v185
    %v330 = vpack.c.b16 %v202, %v186
    %v331 = vpack.c.b16 %v203, %v187
    %v332 = vpack.c.b16 %v220, %v204
    %v333 = vpack.c.b16 %v221, %v205
    %v334 = vpack.c.b16 %v222, %v206
    %v335 = vpack.c.b16 %v223, %v207
    %v336 = vpack.c.b16 %v224, %v208
    %v337 = vpack.c.b16 %v225, %v209
    %v338 = vpack.c.b16 %v226, %v210
    %v339 = vpack.c.b16 %v227, %v211
    %v340 = vpack.c.b16 %v228, %v212
    %v341 = vpack.c.b16 %v229, %v213
    %v342 = vpack.c.b16 %v230, %v214
    %v343 = vpack.c.b16 %v231, %v215
    %v344 = vpack.c.b16 %v232, %v216
    %v345 = vpack.c.b16 %v233, %v217
    %v346 = vpack.c.b16 %v234, %v218
    %v347 = vpack.c.b16 %v235, %v219
    %v348 = vpack.c.b16 %v252, %v236
    %v349 = vpack.c.b16 %v253, %v237
    %v350 = vpack.c.b16 %v254, %v238
    %v351 = vpack.c.b16 %v255, %v239
    %v352 = vpack.c.b16 %v256, %v240
    %v353 = vpack.c.b16 %v257, %v241
    %v354 = vpack.c.b16 %v258, %v242
    %v355 = vpack.c.b16 %v259, %v243
    %v356 = vpack.c.b16 %v260, %v244
    %v357 = vpack.c.b16 %v261, %v245
    %v358 = vpack.c.b16 %v262, %v246
    %v359 = vpack.c.b16 %v263, %v247
    %v360 = vpack.c.b16 %v264, %v248
    %v361 = vpack.c.b16 %v265, %v249
    %v362 = vpack.c.b16 %v266, %v250
    %v363 = vpack.c.b16 %v267, %v251
    %v364 = vpack.c.b16 %v284, %v268
    %v365 = vpack.c.b16 %v285, %v269
    %v366 = vpack.c.b16 %v286, %v270
    %v367 = vpack.c.b16 %v287, %v271
    %v368 = vpack.c.b16 %v288, %v272
    %v369 = vpack.c.b16 %v289, %v273
    %v370 = vpack.c.b16 %v290, %v274
    %v371 = vpack.c.b16 %v291, %v275
    %v372 = vpack.c.b16 %v292, %v276
    %v373 = vpack.c.b16 %v293, %v277
    %v374 = vpack.c.b16 %v294, %v278
    %v375 = vpack.c.b16 %v295, %v279
    %v376 = vpack.c.b16 %v296, %v280
    %v377 = vpack.c.b16 %v297, %v281
    %v378 = vpack.c.b16 %v298, %v282
    %v379 = vpack.c.b16 %v299, %v283
    %v380 = vpack.c.b16 %v300, %v300
    %v381 = vpack.c.b16 %v301, %v301
    %v382 = vpack.c.b16 %v302, %v302
    %v383 = vpack.c.b16 %v303, %v303
    %v384 = vpack.c.b16 %v304, %v304
    %v385 = vpack.c.b16 %v305, %v305
    %v386 = vpack.c.b16 %v306, %v306
    %v387 = vpack.c.b16 %v307, %v307
    %v388 = vpack.c.b16 %v308, %v308
    %v389 = vpack.c.b16 %v309, %v309
    %v390 = vpack.c.b16 %v310, %v310
    %v391 = vpack.c.b16 %v311, %v311
    %v392 = vpack.c.b16 %v312, %v312
    %v393 = vpack.c.b16 %v313, %v313
    %v394 = vpack.c.b16 %v314, %v314
    %v395 = vpack.c.b16 %v315, %v315
    %vm460 = vcmask 588800
    %v462 = vsel %vm460, %v21, 0
    %vm464 = vcmask 1043456
    %v466 = vsel %vm464, %v380, 0
    %v469 = vsel %vm464, %v381, 0
    %v472 = vsel %vm464, %v382, 0
    %v475 = vsel %vm464, %v383, 0
    %v478 = vsel %vm464, %v384, 0
    %v481 = vsel %vm464, %v385, 0
    %v484 = vsel %vm464, %v386, 0
    %v487 = vsel %vm464, %v387, 0
    %v490 = vsel %vm464, %v388, 0
    %v493 = vsel %vm464, %v389, 0
    %v496 = vsel %vm464, %v390, 0
    %v499 = vsel %vm464, %v391, 0
    %v502 = vsel %vm464, %v392, 0
    %v505 = vsel %vm464, %v393, 0
    %v508 = vsel %vm464, %v394, 0
    %v511 = vsel %vm464, %v395, 0
    %513 = vmatpush.bf16.msra.mxu0 0
    %514 = vmatpush.bf16.msra.mxu0 0
    %515 = vmatpush.bf16.msra.mxu0 0
    %516 = vmatpush.bf16.msra.mxu0 %v466
    %517 = vmatpush.bf16.msra.mxu0 %v364
    %518 = vmatpush.bf16.msra.mxu0 %v348
    %519 = vmatpush.bf16.msra.mxu0 %v332
    %520 = vmatpush.bf16.msra.mxu0 %v316
    %521 = vmatmul.bf16.gmra.mxu0 %v462
    %v522 = vpop.f32.mrf.mxu0
    %v523 = vadd.f32 %v98, %v522
    %v524 = vpop.f32.mrf.mxu0
    %525 = vdwg.mxu0
    %526 = vmatpush.bf16.msra.mxu0 0
    %527 = vmatpush.bf16.msra.mxu0 0
    %528 = vmatpush.bf16.msra.mxu0 0
    %529 = vmatpush.bf16.msra.mxu0 %v469
    %530 = vmatpush.bf16.msra.mxu0 %v365
    %531 = vmatpush.bf16.msra.mxu0 %v349
    %532 = vmatpush.bf16.msra.mxu0 %v333
    %533 = vmatpush.bf16.msra.mxu0 %v317
    %534 = vmatmul.bf16.gmra.mxu0 %v462
    %v535 = vpop.f32.mrf.mxu0
    %v536 = vadd.f32 %v98, %v535
    %v537 = vpop.f32.mrf.mxu0
    %538 = vdwg.mxu0
    %539 = vmatpush.bf16.msra.mxu0 0
    %540 = vmatpush.bf16.msra.mxu0 0
    %541 = vmatpush.bf16.msra.mxu0 0
    %542 = vmatpush.bf16.msra.mxu0 %v472
    %543 = vmatpush.bf16.msra.mxu0 %v366
    %544 = vmatpush.bf16.msra.mxu0 %v350
    %545 = vmatpush.bf16.msra.mxu0 %v334
    %546 = vmatpush.bf16.msra.mxu0 %v318
    %547 = vmatmul.bf16.gmra.mxu0 %v462
    %v548 = vpop.f32.mrf.mxu0
    %v549 = vadd.f32 %v98, %v548
    %v550 = vpop.f32.mrf.mxu0
    %551 = vdwg.mxu0
    %552 = vmatpush.bf16.msra.mxu0 0
    %553 = vmatpush.bf16.msra.mxu0 0
    %554 = vmatpush.bf16.msra.mxu0 0
    %555 = vmatpush.bf16.msra.mxu0 %v475
    %556 = vmatpush.bf16.msra.mxu0 %v367
    %557 = vmatpush.bf16.msra.mxu0 %v351
    %558 = vmatpush.bf16.msra.mxu0 %v335
    %559 = vmatpush.bf16.msra.mxu0 %v319
    %560 = vmatmul.bf16.gmra.mxu0 %v462
    %v561 = vpop.f32.mrf.mxu0
    %v562 = vadd.f32 %v98, %v561
    %v563 = vpop.f32.mrf.mxu0
    %564 = vdwg.mxu0
    %565 = vmatpush.bf16.msra.mxu0 0
    %566 = vmatpush.bf16.msra.mxu0 0
    %567 = vmatpush.bf16.msra.mxu0 0
    %568 = vmatpush.bf16.msra.mxu0 %v478
    %569 = vmatpush.bf16.msra.mxu0 %v368
    %570 = vmatpush.bf16.msra.mxu0 %v352
    %571 = vmatpush.bf16.msra.mxu0 %v336
    %572 = vmatpush.bf16.msra.mxu0 %v320
    %573 = vmatmul.bf16.gmra.mxu0 %v462
    %v574 = vpop.f32.mrf.mxu0
    %v575 = vadd.f32 %v98, %v574
    %v576 = vpop.f32.mrf.mxu0
    %577 = vdwg.mxu0
    %578 = vmatpush.bf16.msra.mxu0 0
    %579 = vmatpush.bf16.msra.mxu0 0
    %580 = vmatpush.bf16.msra.mxu0 0
    %581 = vmatpush.bf16.msra.mxu0 %v481
    %582 = vmatpush.bf16.msra.mxu0 %v369
    %583 = vmatpush.bf16.msra.mxu0 %v353
    %584 = vmatpush.bf16.msra.mxu0 %v337
    %585 = vmatpush.bf16.msra.mxu0 %v321
    %586 = vmatmul.bf16.gmra.mxu0 %v462
    %v587 = vpop.f32.mrf.mxu0
    %v588 = vadd.f32 %v98, %v587
    %v589 = vpop.f32.mrf.mxu0
    %590 = vdwg.mxu0
    %591 = vmatpush.bf16.msra.mxu0 0
    %592 = vmatpush.bf16.msra.mxu0 0
    %593 = vmatpush.bf16.msra.mxu0 0
    %594 = vmatpush.bf16.msra.mxu0 %v484
    %595 = vmatpush.bf16.msra.mxu0 %v370
    %596 = vmatpush.bf16.msra.mxu0 %v354
    %597 = vmatpush.bf16.msra.mxu0 %v338
    %598 = vmatpush.bf16.msra.mxu0 %v322
    %599 = vmatmul.bf16.gmra.mxu0 %v462
    %v600 = vpop.f32.mrf.mxu0
    %v601 = vadd.f32 %v98, %v600
    %v602 = vpop.f32.mrf.mxu0
    %603 = vdwg.mxu0
    %604 = vmatpush.bf16.msra.mxu0 0
    %605 = vmatpush.bf16.msra.mxu0 0
    %606 = vmatpush.bf16.msra.mxu0 0
    %607 = vmatpush.bf16.msra.mxu0 %v487
    %608 = vmatpush.bf16.msra.mxu0 %v371
    %609 = vmatpush.bf16.msra.mxu0 %v355
    %610 = vmatpush.bf16.msra.mxu0 %v339
    %611 = vmatpush.bf16.msra.mxu0 %v323
    %612 = vmatmul.bf16.gmra.mxu0 %v462
    %v613 = vpop.f32.mrf.mxu0
    %v614 = vadd.f32 %v98, %v613
    %v615 = vpop.f32.mrf.mxu0
    %616 = vdwg.mxu0
    %617 = vmatpush.bf16.msra.mxu0 0
    %618 = vmatpush.bf16.msra.mxu0 0
    %619 = vmatpush.bf16.msra.mxu0 0
    %620 = vmatpush.bf16.msra.mxu0 %v490
    %621 = vmatpush.bf16.msra.mxu0 %v372
    %622 = vmatpush.bf16.msra.mxu0 %v356
    %623 = vmatpush.bf16.msra.mxu0 %v340
    %624 = vmatpush.bf16.msra.mxu0 %v324
    %625 = vmatmul.bf16.gmra.mxu0 %v462
    %v626 = vpop.f32.mrf.mxu0
    %v627 = vadd.f32 %v98, %v626
    %v628 = vpop.f32.mrf.mxu0
    %629 = vdwg.mxu0
    %630 = vmatpush.bf16.msra.mxu0 0
    %631 = vmatpush.bf16.msra.mxu0 0
    %632 = vmatpush.bf16.msra.mxu0 0
    %633 = vmatpush.bf16.msra.mxu0 %v493
    %634 = vmatpush.bf16.msra.mxu0 %v373
    %635 = vmatpush.bf16.msra.mxu0 %v357
    %636 = vmatpush.bf16.msra.mxu0 %v341
    %637 = vmatpush.bf16.msra.mxu0 %v325
    %638 = vmatmul.bf16.gmra.mxu0 %v462
    %v639 = vpop.f32.mrf.mxu0
    %v640 = vadd.f32 %v98, %v639
    %v641 = vpop.f32.mrf.mxu0
    %642 = vdwg.mxu0
    %643 = vmatpush.bf16.msra.mxu0 0
    %644 = vmatpush.bf16.msra.mxu0 0
    %645 = vmatpush.bf16.msra.mxu0 0
    %646 = vmatpush.bf16.msra.mxu0 %v496
    %647 = vmatpush.bf16.msra.mxu0 %v374
    %648 = vmatpush.bf16.msra.mxu0 %v358
    %649 = vmatpush.bf16.msra.mxu0 %v342
    %650 = vmatpush.bf16.msra.mxu0 %v326
    %651 = vmatmul.bf16.gmra.mxu0 %v462
    %v652 = vpop.f32.mrf.mxu0
    %v653 = vadd.f32 %v98, %v652
    %v654 = vpop.f32.mrf.mxu0
    %655 = vdwg.mxu0
    %656 = vmatpush.bf16.msra.mxu0 0
    %657 = vmatpush.bf16.msra.mxu0 0
    %658 = vmatpush.bf16.msra.mxu0 0
    %659 = vmatpush.bf16.msra.mxu0 %v499
    %660 = vmatpush.bf16.msra.mxu0 %v375
    %661 = vmatpush.bf16.msra.mxu0 %v359
    %662 = vmatpush.bf16.msra.mxu0 %v343
    %663 = vmatpush.bf16.msra.mxu0 %v327
    %664 = vmatmul.bf16.gmra.mxu0 %v462
    %v665 = vpop.f32.mrf.mxu0
    %v666 = vadd.f32 %v98, %v665
    %v667 = vpop.f32.mrf.mxu0
    %668 = vdwg.mxu0
    %669 = vmatpush.bf16.msra.mxu0 0
    %670 = vmatpush.bf16.msra.mxu0 0
    %671 = vmatpush.bf16.msra.mxu0 0
    %672 = vmatpush.bf16.msra.mxu0 %v502
    %673 = vmatpush.bf16.msra.mxu0 %v376
    %674 = vmatpush.bf16.msra.mxu0 %v360
    %675 = vmatpush.bf16.msra.mxu0 %v344
    %676 = vmatpush.bf16.msra.mxu0 %v328
    %677 = vmatmul.bf16.gmra.mxu0 %v462
    %v678 = vpop.f32.mrf.mxu0
    %v679 = vadd.f32 %v98, %v678
    %v680 = vpop.f32.mrf.mxu0
    %681 = vdwg.mxu0
    %682 = vmatpush.bf16.msra.mxu0 0
    %683 = vmatpush.bf16.msra.mxu0 0
    %684 = vmatpush.bf16.msra.mxu0 0
    %685 = vmatpush.bf16.msra.mxu0 %v505
    %686 = vmatpush.bf16.msra.mxu0 %v377
    %687 = vmatpush.bf16.msra.mxu0 %v361
    %688 = vmatpush.bf16.msra.mxu0 %v345
    %689 = vmatpush.bf16.msra.mxu0 %v329
    %690 = vmatmul.bf16.gmra.mxu0 %v462
    %v691 = vpop.f32.mrf.mxu0
    %v692 = vadd.f32 %v98, %v691
    %v693 = vpop.f32.mrf.mxu0
    %694 = vdwg.mxu0
    %695 = vmatpush.bf16.msra.mxu0 0
    %696 = vmatpush.bf16.msra.mxu0 0
    %697 = vmatpush.bf16.msra.mxu0 0
    %698 = vmatpush.bf16.msra.mxu0 %v508
    %699 = vmatpush.bf16.msra.mxu0 %v378
    %700 = vmatpush.bf16.msra.mxu0 %v362
    %701 = vmatpush.bf16.msra.mxu0 %v346
    %702 = vmatpush.bf16.msra.mxu0 %v330
    %703 = vmatmul.bf16.gmra.mxu0 %v462
    %v704 = vpop.f32.mrf.mxu0
    %v705 = vadd.f32 %v98, %v704
    %v706 = vpop.f32.mrf.mxu0
    %707 = vdwg.mxu0
    %708 = vmatpush.bf16.msra.mxu0 0
    %709 = vmatpush.bf16.msra.mxu0 0
    %710 = vmatpush.bf16.msra.mxu0 0
    %711 = vmatpush.bf16.msra.mxu0 %v511
    %712 = vmatpush.bf16.msra.mxu0 %v379
    %713 = vmatpush.bf16.msra.mxu0 %v363
    %714 = vmatpush.bf16.msra.mxu0 %v347
    %715 = vmatpush.bf16.msra.mxu0 %v331
    %716 = vmatmul.bf16.gmra.mxu0 %v462
    %v717 = vpop.f32.mrf.mxu0
    %v718 = vadd.f32 %v98, %v717
    %v719 = vpop.f32.mrf.mxu0
    %720 = vdwg.mxu0
    %v721 = vxor.u32 %v523, 2147483648
    %v722 = vxor.u32 %v536, 2147483648
    %v723 = vxor.u32 %v549, 2147483648
    %v724 = vxor.u32 %v562, 2147483648
    %v725 = vxor.u32 %v575, 2147483648
    %v726 = vxor.u32 %v588, 2147483648
    %v727 = vxor.u32 %v601, 2147483648
    %v728 = vxor.u32 %v614, 2147483648
    %v729 = vxor.u32 %v627, 2147483648
    %v730 = vxor.u32 %v640, 2147483648
    %v731 = vxor.u32 %v653, 2147483648
    %v732 = vxor.u32 %v666, 2147483648
    %v733 = vxor.u32 %v679, 2147483648
    %v734 = vxor.u32 %v692, 2147483648
    %v735 = vxor.u32 %v705, 2147483648
    %v736 = vxor.u32 %v718, 2147483648
    %v737 = vmul.f32 %v721, 1.442695
    %v738 = vpow.pop %v737
    %v739 = vmul.f32 %v722, 1.442695
    %v740 = vpow.pop %v739
    %v741 = vmul.f32 %v723, 1.442695
    %v742 = vpow.pop %v741
    %v743 = vmul.f32 %v724, 1.442695
    %v744 = vpow.pop %v743
    %v745 = vmul.f32 %v725, 1.442695
    %v746 = vpow.pop %v745
    %v747 = vmul.f32 %v726, 1.442695
    %v748 = vpow.pop %v747
    %v749 = vmul.f32 %v727, 1.442695
    %v750 = vpow.pop %v749
    %v751 = vmul.f32 %v728, 1.442695
    %v752 = vpow.pop %v751
    %v753 = vmul.f32 %v729, 1.442695
    %v754 = vpow.pop %v753
    %v755 = vmul.f32 %v730, 1.442695
    %v756 = vpow.pop %v755
    %v757 = vmul.f32 %v731, 1.442695
    %v758 = vpow.pop %v757
    %v759 = vmul.f32 %v732, 1.442695
    %v760 = vpow.pop %v759
    %v761 = vmul.f32 %v733, 1.442695
    %v762 = vpow.pop %v761
    %v763 = vmul.f32 %v734, 1.442695
    %v764 = vpow.pop %v763
    %v765 = vmul.f32 %v735, 1.442695
    %v766 = vpow.pop %v765
    %v767 = vmul.f32 %v736, 1.442695
    %v768 = vpow.pop %v767
    %v769 = vadd.f32 %v738, 1.0
    %v770 = vadd.f32 %v740, 1.0
    %v771 = vadd.f32 %v742, 1.0
    %v772 = vadd.f32 %v744, 1.0
    %v773 = vadd.f32 %v746, 1.0
    %v774 = vadd.f32 %v748, 1.0
    %v775 = vadd.f32 %v750, 1.0
    %v776 = vadd.f32 %v752, 1.0
    %v777 = vadd.f32 %v754, 1.0
    %v778 = vadd.f32 %v756, 1.0
    %v779 = vadd.f32 %v758, 1.0
    %v780 = vadd.f32 %v760, 1.0
    %v781 = vadd.f32 %v762, 1.0
    %v782 = vadd.f32 %v764, 1.0
    %v783 = vadd.f32 %v766, 1.0
    %v784 = vadd.f32 %v768, 1.0
    %v785 = vrcp.pop %v769
    %v786 = vmul.f32 %v769, %v785
    %v787 = vsub.f32 1.0, %v786
    %v788 = vmul.f32 %v785, %v787
    %v789 = vadd.f32 %v785, %v788
    %vm790 = vweird.f32 %v769
    %vm791 = vweird.f32 %v785
    %vm792 = vmor %vm790, %vm791
    %v793 = vsel %vm792, %v785, %v789
    %v794 = vand.u32 2147483647, %v769
    %vm795 = vcmp.eq.f32.partialorder %v794, 8.507059e+37
    %v796 = vand.u32 %v769, 2147483648
    %v797 = vor.u32 1.1754944e-38, %v796
    %v798 = vsel %vm795, %v797, %v793
    %v799 = vmul.f32 1.0, %v798
    %v800 = vrcp.pop %v770
    %v801 = vmul.f32 %v770, %v800
    %v802 = vsub.f32 1.0, %v801
    %v803 = vmul.f32 %v800, %v802
    %v804 = vadd.f32 %v800, %v803
    %vm805 = vweird.f32 %v770
    %vm806 = vweird.f32 %v800
    %vm807 = vmor %vm805, %vm806
    %v808 = vsel %vm807, %v800, %v804
    %v809 = vand.u32 2147483647, %v770
    %vm810 = vcmp.eq.f32.partialorder %v809, 8.507059e+37
    %v811 = vand.u32 %v770, 2147483648
    %v812 = vor.u32 1.1754944e-38, %v811
    %v813 = vsel %vm810, %v812, %v808
    %v814 = vmul.f32 1.0, %v813
    %v815 = vrcp.pop %v771
    %v816 = vmul.f32 %v771, %v815
    %v817 = vsub.f32 1.0, %v816
    %v818 = vmul.f32 %v815, %v817
    %v819 = vadd.f32 %v815, %v818
    %vm820 = vweird.f32 %v771
    %vm821 = vweird.f32 %v815
    %vm822 = vmor %vm820, %vm821
    %v823 = vsel %vm822, %v815, %v819
    %v824 = vand.u32 2147483647, %v771
    %vm825 = vcmp.eq.f32.partialorder %v824, 8.507059e+37
    %v826 = vand.u32 %v771, 2147483648
    %v827 = vor.u32 1.1754944e-38, %v826
    %v828 = vsel %vm825, %v827, %v823
    %v829 = vmul.f32 1.0, %v828
    %v830 = vrcp.pop %v772
    %v831 = vmul.f32 %v772, %v830
    %v832 = vsub.f32 1.0, %v831
    %v833 = vmul.f32 %v830, %v832
    %v834 = vadd.f32 %v830, %v833
    %vm835 = vweird.f32 %v772
    %vm836 = vweird.f32 %v830
    %vm837 = vmor %vm835, %vm836
    %v838 = vsel %vm837, %v830, %v834
    %v839 = vand.u32 2147483647, %v772
    %vm840 = vcmp.eq.f32.partialorder %v839, 8.507059e+37
    %v841 = vand.u32 %v772, 2147483648
    %v842 = vor.u32 1.1754944e-38, %v841
    %v843 = vsel %vm840, %v842, %v838
    %v844 = vmul.f32 1.0, %v843
    %v845 = vrcp.pop %v773
    %v846 = vmul.f32 %v773, %v845
    %v847 = vsub.f32 1.0, %v846
    %v848 = vmul.f32 %v845, %v847
    %v849 = vadd.f32 %v845, %v848
    %vm850 = vweird.f32 %v773
    %vm851 = vweird.f32 %v845
    %vm852 = vmor %vm850, %vm851
    %v853 = vsel %vm852, %v845, %v849
    %v854 = vand.u32 2147483647, %v773
    %vm855 = vcmp.eq.f32.partialorder %v854, 8.507059e+37
    %v856 = vand.u32 %v773, 2147483648
    %v857 = vor.u32 1.1754944e-38, %v856
    %v858 = vsel %vm855, %v857, %v853
    %v859 = vmul.f32 1.0, %v858
    %v860 = vrcp.pop %v774
    %v861 = vmul.f32 %v774, %v860
    %v862 = vsub.f32 1.0, %v861
    %v863 = vmul.f32 %v860, %v862
    %v864 = vadd.f32 %v860, %v863
    %vm865 = vweird.f32 %v774
    %vm866 = vweird.f32 %v860
    %vm867 = vmor %vm865, %vm866
    %v868 = vsel %vm867, %v860, %v864
    %v869 = vand.u32 2147483647, %v774
    %vm870 = vcmp.eq.f32.partialorder %v869, 8.507059e+37
    %v871 = vand.u32 %v774, 2147483648
    %v872 = vor.u32 1.1754944e-38, %v871
    %v873 = vsel %vm870, %v872, %v868
    %v874 = vmul.f32 1.0, %v873
    %v875 = vrcp.pop %v775
    %v876 = vmul.f32 %v775, %v875
    %v877 = vsub.f32 1.0, %v876
    %v878 = vmul.f32 %v875, %v877
    %v879 = vadd.f32 %v875, %v878
    %vm880 = vweird.f32 %v775
    %vm881 = vweird.f32 %v875
    %vm882 = vmor %vm880, %vm881
    %v883 = vsel %vm882, %v875, %v879
    %v884 = vand.u32 2147483647, %v775
    %vm885 = vcmp.eq.f32.partialorder %v884, 8.507059e+37
    %v886 = vand.u32 %v775, 2147483648
    %v887 = vor.u32 1.1754944e-38, %v886
    %v888 = vsel %vm885, %v887, %v883
    %v889 = vmul.f32 1.0, %v888
    %v890 = vrcp.pop %v776
    %v891 = vmul.f32 %v776, %v890
    %v892 = vsub.f32 1.0, %v891
    %v893 = vmul.f32 %v890, %v892
    %v894 = vadd.f32 %v890, %v893
    %vm895 = vweird.f32 %v776
    %vm896 = vweird.f32 %v890
    %vm897 = vmor %vm895, %vm896
    %v898 = vsel %vm897, %v890, %v894
    %v899 = vand.u32 2147483647, %v776
    %vm900 = vcmp.eq.f32.partialorder %v899, 8.507059e+37
    %v901 = vand.u32 %v776, 2147483648
    %v902 = vor.u32 1.1754944e-38, %v901
    %v903 = vsel %vm900, %v902, %v898
    %v904 = vmul.f32 1.0, %v903
    %v905 = vrcp.pop %v777
    %v906 = vmul.f32 %v777, %v905
    %v907 = vsub.f32 1.0, %v906
    %v908 = vmul.f32 %v905, %v907
    %v909 = vadd.f32 %v905, %v908
    %vm910 = vweird.f32 %v777
    %vm911 = vweird.f32 %v905
    %vm912 = vmor %vm910, %vm911
    %v913 = vsel %vm912, %v905, %v909
    %v914 = vand.u32 2147483647, %v777
    %vm915 = vcmp.eq.f32.partialorder %v914, 8.507059e+37
    %v916 = vand.u32 %v777, 2147483648
    %v917 = vor.u32 1.1754944e-38, %v916
    %v918 = vsel %vm915, %v917, %v913
    %v919 = vmul.f32 1.0, %v918
    %v920 = vrcp.pop %v778
    %v921 = vmul.f32 %v778, %v920
    %v922 = vsub.f32 1.0, %v921
    %v923 = vmul.f32 %v920, %v922
    %v924 = vadd.f32 %v920, %v923
    %vm925 = vweird.f32 %v778
    %vm926 = vweird.f32 %v920
    %vm927 = vmor %vm925, %vm926
    %v928 = vsel %vm927, %v920, %v924
    %v929 = vand.u32 2147483647, %v778
    %vm930 = vcmp.eq.f32.partialorder %v929, 8.507059e+37
    %v931 = vand.u32 %v778, 2147483648
    %v932 = vor.u32 1.1754944e-38, %v931
    %v933 = vsel %vm930, %v932, %v928
    %v934 = vmul.f32 1.0, %v933
    %v935 = vrcp.pop %v779
    %v936 = vmul.f32 %v779, %v935
    %v937 = vsub.f32 1.0, %v936
    %v938 = vmul.f32 %v935, %v937
    %v939 = vadd.f32 %v935, %v938
    %vm940 = vweird.f32 %v779
    %vm941 = vweird.f32 %v935
    %vm942 = vmor %vm940, %vm941
    %v943 = vsel %vm942, %v935, %v939
    %v944 = vand.u32 2147483647, %v779
    %vm945 = vcmp.eq.f32.partialorder %v944, 8.507059e+37
    %v946 = vand.u32 %v779, 2147483648
    %v947 = vor.u32 1.1754944e-38, %v946
    %v948 = vsel %vm945, %v947, %v943
    %v949 = vmul.f32 1.0, %v948
    %v950 = vrcp.pop %v780
    %v951 = vmul.f32 %v780, %v950
    %v952 = vsub.f32 1.0, %v951
    %v953 = vmul.f32 %v950, %v952
    %v954 = vadd.f32 %v950, %v953
    %vm955 = vweird.f32 %v780
    %vm956 = vweird.f32 %v950
    %vm957 = vmor %vm955, %vm956
    %v958 = vsel %vm957, %v950, %v954
    %v959 = vand.u32 2147483647, %v780
    %vm960 = vcmp.eq.f32.partialorder %v959, 8.507059e+37
    %v961 = vand.u32 %v780, 2147483648
    %v962 = vor.u32 1.1754944e-38, %v961
    %v963 = vsel %vm960, %v962, %v958
    %v964 = vmul.f32 1.0, %v963
    %v965 = vrcp.pop %v781
    %v966 = vmul.f32 %v781, %v965
    %v967 = vsub.f32 1.0, %v966
    %v968 = vmul.f32 %v965, %v967
    %v969 = vadd.f32 %v965, %v968
    %vm970 = vweird.f32 %v781
    %vm971 = vweird.f32 %v965
    %vm972 = vmor %vm970, %vm971
    %v973 = vsel %vm972, %v965, %v969
    %v974 = vand.u32 2147483647, %v781
    %vm975 = vcmp.eq.f32.partialorder %v974, 8.507059e+37
    %v976 = vand.u32 %v781, 2147483648
    %v977 = vor.u32 1.1754944e-38, %v976
    %v978 = vsel %vm975, %v977, %v973
    %v979 = vmul.f32 1.0, %v978
    %v980 = vrcp.pop %v782
    %v981 = vmul.f32 %v782, %v980
    %v982 = vsub.f32 1.0, %v981
    %v983 = vmul.f32 %v980, %v982
    %v984 = vadd.f32 %v980, %v983
    %vm985 = vweird.f32 %v782
    %vm986 = vweird.f32 %v980
    %vm987 = vmor %vm985, %vm986
    %v988 = vsel %vm987, %v980, %v984
    %v989 = vand.u32 2147483647, %v782
    %vm990 = vcmp.eq.f32.partialorder %v989, 8.507059e+37
    %v991 = vand.u32 %v782, 2147483648
    %v992 = vor.u32 1.1754944e-38, %v991
    %v993 = vsel %vm990, %v992, %v988
    %v994 = vmul.f32 1.0, %v993
    %v995 = vrcp.pop %v783
    %v996 = vmul.f32 %v783, %v995
    %v997 = vsub.f32 1.0, %v996
    %v998 = vmul.f32 %v995, %v997
    %v999 = vadd.f32 %v995, %v998
    %vm1000 = vweird.f32 %v783
    %vm1001 = vweird.f32 %v995
    %vm1002 = vmor %vm1000, %vm1001
    %v1003 = vsel %vm1002, %v995, %v999
    %v1004 = vand.u32 2147483647, %v783
    %vm1005 = vcmp.eq.f32.partialorder %v1004, 8.507059e+37
    %v1006 = vand.u32 %v783, 2147483648
    %v1007 = vor.u32 1.1754944e-38, %v1006
    %v1008 = vsel %vm1005, %v1007, %v1003
    %v1009 = vmul.f32 1.0, %v1008
    %v1010 = vrcp.pop %v784
    %v1011 = vmul.f32 %v784, %v1010
    %v1012 = vsub.f32 1.0, %v1011
    %v1013 = vmul.f32 %v1010, %v1012
    %v1014 = vadd.f32 %v1010, %v1013
    %vm1015 = vweird.f32 %v784
    %vm1016 = vweird.f32 %v1010
    %vm1017 = vmor %vm1015, %vm1016
    %v1018 = vsel %vm1017, %v1010, %v1014
    %v1019 = vand.u32 2147483647, %v784
    %vm1020 = vcmp.eq.f32.partialorder %v1019, 8.507059e+37
    %v1021 = vand.u32 %v784, 2147483648
    %v1022 = vor.u32 1.1754944e-38, %v1021
    %v1023 = vsel %vm1020, %v1022, %v1018
    %v1024 = vmul.f32 1.0, %v1023
    %v1041 = vrot.slane %v814, 4
    %v1042 = vrot.slane %v844, 4
    %v1043 = vrot.slane %v874, 4
    %v1044 = vrot.slane %v904, 4
    %v1045 = vrot.slane %v934, 4
    %v1046 = vrot.slane %v964, 4
    %v1047 = vrot.slane %v994, 4
    %v1048 = vrot.slane %v1024, 4
    %v1049 = vsel %vm464, %v799, %v1041
    %v1050 = vsel %vm464, %v829, %v1042
    %v1051 = vsel %vm464, %v859, %v1043
    %v1052 = vsel %vm464, %v889, %v1044
    %v1053 = vsel %vm464, %v919, %v1045
    %v1054 = vsel %vm464, %v949, %v1046
    %v1055 = vsel %vm464, %v979, %v1047
    %v1056 = vsel %vm464, %v1009, %v1048
    %1065 = vst [vmem:[%s4] sm:$0xff] %v1049
    %1066 = vst [vmem:[%s4 + $0x8] sm:$0xff] %v1050
    %1067 = vst [vmem:[%s4 + $0x10] sm:$0xff] %v1051
    %1068 = vst [vmem:[%s4 + $0x18] sm:$0xff] %v1052
    %1069 = vst [vmem:[%s4 + $0x20] sm:$0xff] %v1053
    %1070 = vst [vmem:[%s4 + $0x28] sm:$0xff] %v1054
    %1071 = vst [vmem:[%s4 + $0x30] sm:$0xff] %v1055
    %1072 = vst [vmem:[%s4 + $0x38] sm:$0xff] %v1056
    %v1073 = vld [vmem:[%s3] sm:$0xff]
    %v1074 = vld [vmem:[%s3 + $0x8] sm:$0xff]
    %v1075 = vld [vmem:[%s3 + $0x10] sm:$0xff]
    %v1076 = vld [vmem:[%s3 + $0x18] sm:$0xff]
    %v1077 = vld [vmem:[%s3 + $0x20] sm:$0xff]
    %v1078 = vld [vmem:[%s3 + $0x28] sm:$0xff]
    %v1079 = vld [vmem:[%s3 + $0x30] sm:$0xff]
    %v1080 = vld [vmem:[%s3 + $0x38] sm:$0xff]
    %v1081 = vadd.f32 %v799, 1e-15
    %v1082 = vadd.f32 %v814, 1e-15
    %v1083 = vadd.f32 %v829, 1e-15
    %v1084 = vadd.f32 %v844, 1e-15
    %v1085 = vadd.f32 %v859, 1e-15
    %v1086 = vadd.f32 %v874, 1e-15
    %v1087 = vadd.f32 %v889, 1e-15
    %v1088 = vadd.f32 %v904, 1e-15
    %v1089 = vadd.f32 %v919, 1e-15
    %v1090 = vadd.f32 %v934, 1e-15
    %v1091 = vadd.f32 %v949, 1e-15
    %v1092 = vadd.f32 %v964, 1e-15
    %v1093 = vadd.f32 %v979, 1e-15
    %v1094 = vadd.f32 %v994, 1e-15
    %v1095 = vadd.f32 %v1009, 1e-15
    %v1096 = vadd.f32 %v1024, 1e-15
    %v1097 = vlog2.pop %v1081
    %v1098 = vmul.f32 %v1097, 0.6931472
    %v1099 = vlog2.pop %v1082
    %v1100 = vmul.f32 %v1099, 0.6931472
    %v1101 = vlog2.pop %v1083
    %v1102 = vmul.f32 %v1101, 0.6931472
    %v1103 = vlog2.pop %v1084
    %v1104 = vmul.f32 %v1103, 0.6931472
    %v1105 = vlog2.pop %v1085
    %v1106 = vmul.f32 %v1105, 0.6931472
    %v1107 = vlog2.pop %v1086
    %v1108 = vmul.f32 %v1107, 0.6931472
    %v1109 = vlog2.pop %v1087
    %v1110 = vmul.f32 %v1109, 0.6931472
    %v1111 = vlog2.pop %v1088
    %v1112 = vmul.f32 %v1111, 0.6931472
    %v1113 = vlog2.pop %v1089
    %v1114 = vmul.f32 %v1113, 0.6931472
    %v1115 = vlog2.pop %v1090
    %v1116 = vmul.f32 %v1115, 0.6931472
    %v1117 = vlog2.pop %v1091
    %v1118 = vmul.f32 %v1117, 0.6931472
    %v1119 = vlog2.pop %v1092
    %v1120 = vmul.f32 %v1119, 0.6931472
    %v1121 = vlog2.pop %v1093
    %v1122 = vmul.f32 %v1121, 0.6931472
    %v1123 = vlog2.pop %v1094
    %v1124 = vmul.f32 %v1123, 0.6931472
    %v1125 = vlog2.pop %v1095
    %v1126 = vmul.f32 %v1125, 0.6931472
    %v1127 = vlog2.pop %v1096
    %v1128 = vmul.f32 %v1127, 0.6931472
    %v1145 = vrot.slane %v1100, 4
    %v1146 = vrot.slane %v1104, 4
    %v1147 = vrot.slane %v1108, 4
    %v1148 = vrot.slane %v1112, 4
    %v1149 = vrot.slane %v1116, 4
    %v1150 = vrot.slane %v1120, 4
    %v1151 = vrot.slane %v1124, 4
    %v1152 = vrot.slane %v1128, 4
    %v1153 = vsel %vm464, %v1098, %v1145
    %v1154 = vsel %vm464, %v1102, %v1146
    %v1155 = vsel %vm464, %v1106, %v1147
    %v1156 = vsel %vm464, %v1110, %v1148
    %v1157 = vsel %vm464, %v1114, %v1149
    %v1158 = vsel %vm464, %v1118, %v1150
    %v1159 = vsel %vm464, %v1122, %v1151
    %v1160 = vsel %vm464, %v1126, %v1152
    %v1169 = vmul.f32 %v1073, %v1153
    %v1170 = vmul.f32 %v1074, %v1154
    %v1171 = vmul.f32 %v1075, %v1155
    %v1172 = vmul.f32 %v1076, %v1156
    %v1173 = vmul.f32 %v1077, %v1157
    %v1174 = vmul.f32 %v1078, %v1158
    %v1175 = vmul.f32 %v1079, %v1159
    %v1176 = vmul.f32 %v1080, %v1160
    %v1177 = vsub.f32 1.0, %v1073
    %v1178 = vsub.f32 1.0, %v1074
    %v1179 = vsub.f32 1.0, %v1075
    %v1180 = vsub.f32 1.0, %v1076
    %v1181 = vsub.f32 1.0, %v1077
    %v1182 = vsub.f32 1.0, %v1078
    %v1183 = vsub.f32 1.0, %v1079
    %v1184 = vsub.f32 1.0, %v1080
    %v1185 = vsub.f32 1.0, %v799
    %v1186 = vsub.f32 1.0, %v814
    %v1187 = vsub.f32 1.0, %v829
    %v1188 = vsub.f32 1.0, %v844
    %v1189 = vsub.f32 1.0, %v859
    %v1190 = vsub.f32 1.0, %v874
    %v1191 = vsub.f32 1.0, %v889
    %v1192 = vsub.f32 1.0, %v904
    %v1193 = vsub.f32 1.0, %v919
    %v1194 = vsub.f32 1.0, %v934
    %v1195 = vsub.f32 1.0, %v949
    %v1196 = vsub.f32 1.0, %v964
    %v1197 = vsub.f32 1.0, %v979
    %v1198 = vsub.f32 1.0, %v994
    %v1199 = vsub.f32 1.0, %v1009
    %v1200 = vsub.f32 1.0, %v1024
    %v1201 = vadd.f32 %v1185, 1e-15
    %v1202 = vadd.f32 %v1186, 1e-15
    %v1203 = vadd.f32 %v1187, 1e-15
    %v1204 = vadd.f32 %v1188, 1e-15
    %v1205 = vadd.f32 %v1189, 1e-15
    %v1206 = vadd.f32 %v1190, 1e-15
    %v1207 = vadd.f32 %v1191, 1e-15
    %v1208 = vadd.f32 %v1192, 1e-15
    %v1209 = vadd.f32 %v1193, 1e-15
    %v1210 = vadd.f32 %v1194, 1e-15
    %v1211 = vadd.f32 %v1195, 1e-15
    %v1212 = vadd.f32 %v1196, 1e-15
    %v1213 = vadd.f32 %v1197, 1e-15
    %v1214 = vadd.f32 %v1198, 1e-15
    %v1215 = vadd.f32 %v1199, 1e-15
    %v1216 = vadd.f32 %v1200, 1e-15
    %v1217 = vlog2.pop %v1201
    %v1218 = vmul.f32 %v1217, 0.6931472
    %v1219 = vlog2.pop %v1202
    %v1220 = vmul.f32 %v1219, 0.6931472
    %v1221 = vlog2.pop %v1203
    %v1222 = vmul.f32 %v1221, 0.6931472
    %v1223 = vlog2.pop %v1204
    %v1224 = vmul.f32 %v1223, 0.6931472
    %v1225 = vlog2.pop %v1205
    %v1226 = vmul.f32 %v1225, 0.6931472
    %v1227 = vlog2.pop %v1206
    %v1228 = vmul.f32 %v1227, 0.6931472
    %v1229 = vlog2.pop %v1207
    %v1230 = vmul.f32 %v1229, 0.6931472
    %v1231 = vlog2.pop %v1208
    %v1232 = vmul.f32 %v1231, 0.6931472
    %v1233 = vlog2.pop %v1209
    %v1234 = vmul.f32 %v1233, 0.6931472
    %v1235 = vlog2.pop %v1210
    %v1236 = vmul.f32 %v1235, 0.6931472
    %v1237 = vlog2.pop %v1211
    %v1238 = vmul.f32 %v1237, 0.6931472
    %v1239 = vlog2.pop %v1212
    %v1240 = vmul.f32 %v1239, 0.6931472
    %v1241 = vlog2.pop %v1213
    %v1242 = vmul.f32 %v1241, 0.6931472
    %v1243 = vlog2.pop %v1214
    %v1244 = vmul.f32 %v1243, 0.6931472
    %v1245 = vlog2.pop %v1215
    %v1246 = vmul.f32 %v1245, 0.6931472
    %v1247 = vlog2.pop %v1216
    %v1248 = vmul.f32 %v1247, 0.6931472
    %v1265 = vrot.slane %v1220, 4
    %v1266 = vrot.slane %v1224, 4
    %v1267 = vrot.slane %v1228, 4
    %v1268 = vrot.slane %v1232, 4
    %v1269 = vrot.slane %v1236, 4
    %v1270 = vrot.slane %v1240, 4
    %v1271 = vrot.slane %v1244, 4
    %v1272 = vrot.slane %v1248, 4
    %v1273 = vsel %vm464, %v1218, %v1265
    %v1274 = vsel %vm464, %v1222, %v1266
    %v1275 = vsel %vm464, %v1226, %v1267
    %v1276 = vsel %vm464, %v1230, %v1268
    %v1277 = vsel %vm464, %v1234, %v1269
    %v1278 = vsel %vm464, %v1238, %v1270
    %v1279 = vsel %vm464, %v1242, %v1271
    %v1280 = vsel %vm464, %v1246, %v1272
    %v1289 = vmul.f32 %v1177, %v1273
    %v1290 = vmul.f32 %v1178, %v1274
    %v1291 = vmul.f32 %v1179, %v1275
    %v1292 = vmul.f32 %v1180, %v1276
    %v1293 = vmul.f32 %v1181, %v1277
    %v1294 = vmul.f32 %v1182, %v1278
    %v1295 = vmul.f32 %v1183, %v1279
    %v1296 = vmul.f32 %v1184, %v1280
    %v1297 = vadd.f32 %v1169, %v1289
    %v1298 = vadd.f32 %v1170, %v1290
    %v1299 = vadd.f32 %v1171, %v1291
    %v1300 = vadd.f32 %v1172, %v1292
    %v1301 = vadd.f32 %v1173, %v1293
    %v1302 = vadd.f32 %v1174, %v1294
    %v1303 = vadd.f32 %v1175, %v1295
    %v1304 = vadd.f32 %v1176, %v1296
    %1313 = vst [vmem:[#allocation1] ss:$2 sm:$0xff] %v1297
    %s1314 = scalar_lea.vmem [#allocation1], 16
    %1315 = vst [vmem:[%s1314] ss:$2 sm:$0xff] %v1298
    %s1316 = scalar_lea.vmem [#allocation1], 32
    %1317 = vst [vmem:[%s1316] ss:$2 sm:$0xff] %v1299
    %s1318 = scalar_lea.vmem [#allocation1], 48
    %1319 = vst [vmem:[%s1318] ss:$2 sm:$0xff] %v1300
    %v1320 = vld.sshfl [vmem:[#allocation1] sm:$0xff pattern:$0x75316420]
    %v1321 = vld.sshfl [vmem:[#allocation1 + $0x8] sm:$0xff pattern:$0x75316420]
    %v1322 = vld.sshfl [vmem:[#allocation1 + $0x10] sm:$0xff pattern:$0x75316420]
    %v1323 = vld.sshfl [vmem:[#allocation1 + $0x18] sm:$0xff pattern:$0x75316420]
    %v1324 = vld.sshfl [vmem:[#allocation1 + $0x20] sm:$0xff pattern:$0x75316420]
    %v1325 = vld.sshfl [vmem:[#allocation1 + $0x28] sm:$0xff pattern:$0x75316420]
    %v1326 = vld.sshfl [vmem:[#allocation1 + $0x30] sm:$0xff pattern:$0x75316420]
    %v1327 = vld.sshfl [vmem:[#allocation1 + $0x38] sm:$0xff pattern:$0x75316420]
    %1328 = vst [vmem:[#allocation1] ss:$2 sm:$0xff] %v1301
    %1329 = vst [vmem:[%s1314] ss:$2 sm:$0xff] %v1302
    %1330 = vst [vmem:[%s1316] ss:$2 sm:$0xff] %v1303
    %1331 = vst [vmem:[%s1318] ss:$2 sm:$0xff] %v1304
    %v1332 = vld.sshfl [vmem:[#allocation1] sm:$0xff pattern:$0x75316420]
    %v1333 = vld.sshfl [vmem:[#allocation1 + $0x8] sm:$0xff pattern:$0x75316420]
    %v1334 = vld.sshfl [vmem:[#allocation1 + $0x10] sm:$0xff pattern:$0x75316420]
    %v1335 = vld.sshfl [vmem:[#allocation1 + $0x18] sm:$0xff pattern:$0x75316420]
    %v1336 = vld.sshfl [vmem:[#allocation1 + $0x20] sm:$0xff pattern:$0x75316420]
    %v1337 = vld.sshfl [vmem:[#allocation1 + $0x28] sm:$0xff pattern:$0x75316420]
    %v1338 = vld.sshfl [vmem:[#allocation1 + $0x30] sm:$0xff pattern:$0x75316420]
    %v1339 = vld.sshfl [vmem:[#allocation1 + $0x38] sm:$0xff pattern:$0x75316420]
    %v1356 = vsel %vm464, %v1320, 0.0
    %v1357 = vsel %vm464, %v1321, 0.0
    %v1358 = vadd.f32 %v1356, %v1357
    %v1359 = vsel %vm464, %v1322, 0.0
    %v1360 = vadd.f32 %v1358, %v1359
    %v1361 = vsel %vm464, %v1323, 0.0
    %v1362 = vadd.f32 %v1360, %v1361
    %v1363 = vsel %vm464, %v1324, 0.0
    %v1364 = vadd.f32 %v1362, %v1363
    %v1365 = vsel %vm464, %v1325, 0.0
    %v1366 = vadd.f32 %v1364, %v1365
    %v1367 = vsel %vm464, %v1326, 0.0
    %v1368 = vadd.f32 %v1366, %v1367
    %v1369 = vsel %vm464, %v1327, 0.0
    %v1370 = vadd.f32 %v1368, %v1369
    %v1371 = vsel %vm464, %v1332, 0.0
    %v1372 = vadd.f32 %v1370, %v1371
    %v1373 = vsel %vm464, %v1333, 0.0
    %v1374 = vadd.f32 %v1372, %v1373
    %v1375 = vsel %vm464, %v1334, 0.0
    %v1376 = vadd.f32 %v1374, %v1375
    %v1377 = vsel %vm464, %v1335, 0.0
    %v1378 = vadd.f32 %v1376, %v1377
    %v1379 = vsel %vm464, %v1336, 0.0
    %v1380 = vadd.f32 %v1378, %v1379
    %v1381 = vsel %vm464, %v1337, 0.0
    %v1382 = vadd.f32 %v1380, %v1381
    %v1383 = vsel %vm464, %v1338, 0.0
    %v1384 = vadd.f32 %v1382, %v1383
    %v1385 = vsel %vm464, %v1339, 0.0
    %v1386 = vadd.f32 %v1384, %v1385
    %1387 = vadd.xlane.f32.xlu0 %v1386
    %v1388 = vpop.xlane.xlu0 %1387
    %v1389 = vrot.slane %v1388, 4
    %v1390 = vadd.f32 %v1388, %v1389
    %v1391 = vrot.slane %v1390, 2
    %v1392 = vadd.f32 %v1390, %v1391
    %v1393 = vrot.slane %v1392, 1
    %v1394 = vadd.f32 %v1392, %v1393
    %s1395 = vtos %v1394
    %v1396 = vstv %s1395
    %vm1397 = vcmask 0
    %1398 = vst.msk [vmem:[#allocation2] sm:$0x1] %vm1397, %v1396
    // Predicated region
    $region18: #{vae_forward.17} parent=1 // pred_check
      _
    $region19: #{vae_forward.17} parent=1 // pred_check_branch
      %1400 = sbr.rel (0) target = $region21
    $region20: #{vae_forward.17} parent=1 // pred_region
      _
    $region21: #{vae_forward.17} parent=1 // pred_fallthru
      _
    // Predicated region
    $region22: #{vae_forward.17} parent=1 // pred_check
      _
    $region23: #{vae_forward.17} parent=1 // pred_check_branch
      %1402 = sbr.rel (0) target = $region25
    $region24: #{vae_forward.17} parent=1 // pred_region
      %1404 = vsyncadd [#allocation3], 0
      %s1406 = sshll.u32 [#allocation2], 4
      %s1407 = int_to_ptr.vmem [resolvable:$true] %s1406
      %s1408 = sshll.u32 %s5, 4
      %s1409 = int_to_ptr.hbm [resolvable:$true] %s1408
      %1411 = dma.vmem_to_hbm [thread:$0]  %s1407, 16, %s1409, [#allocation3]
    $region25: #{vae_forward.17} parent=1 // pred_fallthru
      _
    // Predicated region
    $region26: #{vae_forward.17} parent=1 // pred_check
      _
    $region27: #{vae_forward.17} parent=1 // pred_check_branch
      %1413 = sbr.rel (0) target = $region29
    $region28: #{vae_forward.17} parent=1 // pred_region
      _
    $region29: #{vae_forward.17} parent=1 // pred_fallthru
      _
    // Predicated region
    $region30: #{vae_forward.17} parent=1 // pred_check
      _
    $region31: #{vae_forward.17} parent=1 // pred_check_branch
      %1415 = sbr.rel (0) target = $region33
    $region32: #{vae_forward.17} parent=1 // pred_region
      %1417 = dma.done [#allocation3], 16
    $region33: #{vae_forward.17} parent=1 // pred_fallthru
      _
    %1418 = vsyncpa [#allocation3], 1

</llo_original>
